<compile_context>
chip_gen: v5e
topology: v5e:2x2
jax: 0.10.0
libtpu: 0.0.40
codegen_flags: <defaults>
</compile_context>

<pallas_src>
import functools
import math

import jax
import jax.numpy as jnp
from jax.experimental import pallas as pl
from jax.experimental.pallas import tpu as pltpu

NUM_GROUPS = 8
EPS = 1e-5                       # PyTorch GroupNorm default eps
NUM_BLOCKS = 6
NUM_LAYERS = 2 * NUM_BLOCKS + 1
_BLOCK_ACTS = ("gelu", "silu", "leakyrelu")      # block i uses _BLOCK_ACTS[i % 3]
_OFFCENTER_TAPS = tuple((dh, dw) for dh in (-1, 0, 1) for dw in (-1, 0, 1)
                        if not (dh == 0 and dw == 0))


# ---------------------------------------------------------------------------
# Activations (VPU/EUP-safe primitives only)
# ---------------------------------------------------------------------------
def _gelu(x):
    # tanh-approximate GELU: the tanh runs on the EUP slot (otherwise idle here).
    # TODO(synk): deviates ~1e-3 from exact erf-based torch.nn.GELU(); restore an
    # erf polynomial if bit-closer parity with PyTorch is required.
    c = 0.7978845608028654       # sqrt(2/pi)
    return 0.5 * x * (1.0 + jnp.tanh(c * (x + 0.044715 * x * x * x)))


def _silu(x):
    return x * jax.nn.sigmoid(x)


def _leaky_relu(x):              # torch.nn.LeakyReLU(0.2)
    return jnp.where(x >= 0, x, 0.2 * x)


def _apply_act(x, act):
    if act == "silu":
        return _silu(x)
    if act == "leakyrelu":
        return _leaky_relu(x)
    return _gelu(x)


# ---------------------------------------------------------------------------
# Fused ResidualGroup kernel: 13 x [conv3x3 -> GroupNorm -> (+skip) -> act],
# NB images per grid step, activations VMEM/vreg-resident for the whole group.
# ---------------------------------------------------------------------------
def _residual_group_kernel(x_ref, m_ref, w_ref, b_ref, g_ref, be_ref, o_ref,
                           *, H, W, C, NB):
    # x_ref : (NB, C, H*W)   lane-dense activations, NB images per step
    # m_ref : (8, C, H*W)    pre-combined per-tap boundary masks (off-center taps)
    # w_ref : (13, C, 9*C)   per-layer conv weights (im2col column order), f32
    # b_ref : (13, C, 1)     conv biases
    # g_ref : (13, C, 1)     GroupNorm gammas
    # be_ref: (13, C, 1)     GroupNorm betas
    # o_ref : (NB, C, H*W)
    HW = H * W
    inv_hw = 1.0 / float(HW)

    def im2col(v):
        # (9*C, HW); row ((dh+1)*3+(dw+1))*C + ci matches pack_params() columns.
        # pltpu.roll wraps across the flattened H*W axis; the per-tap boundary
        # masks zero every wrapped / out-of-image position.
        cols = []
        for dh in (-1, 0, 1):
            for dw in (-1, 0, 1):
                off = dh * W + dw
                if off == 0:
                    cols.append(v)
                else:
                    tap = _OFFCENTER_TAPS.index((dh, dw))
                    s = pltpu.roll(v, (-off) % HW, axis=1)
                    cols.append(s * m_ref[tap])        # one VPU mul per tap
        return jnp.concatenate(cols, axis=0)           # (9*C, HW) f32

    def conv_gn_act(v, l, skip, act):
        # bf16 only at the MXU boundary; everything else stays f32 (v5e-safe).
        patches = im2col(v).astype(jnp.bfloat16)
        w_l = w_ref[l].astype(jnp.bfloat16)
        y = jnp.dot(w_l, patches,
                    preferred_element_type=jnp.float32)          # MXU: (C, HW)
        y = y + b_ref[l]                                         # (C,1) bcast
        # GroupNorm(8, C), one channel per group: single-pass stats over H*W.
        # TODO(synk): generalize to channels_per_group > 1 (cross-sublane sums).
        s1 = jnp.sum(y, axis=1, keepdims=True)
        s2 = jnp.sum(y * y, axis=1, keepdims=True)
        mean = s1 * inv_hw
        var = s2 * inv_hw - mean * mean
        y = (y - mean) * jax.lax.rsqrt(var + EPS)
        y = y * g_ref[l] + be_ref[l]
        if skip is not None:
            y = y + skip
        return _apply_act(y, act)

    # NB independent per-image chains (static unroll): GroupNorm stays per-image
    # and the scheduler can interleave the chains' MXU/XLU/EUP work.
    for n in range(NB):
        x = x_ref[n]                                   # (C, HW) f32
        resid = x
        cur = x
        for blk in range(NUM_BLOCKS):
            act = _BLOCK_ACTS[blk % 3]
            blk_in = cur
            h = conv_gn_act(cur, 2 * blk, None, act)            # act(gn1(conv1(x)))
            cur = conv_gn_act(h, 2 * blk + 1, blk_in, act)      # act(gn2(conv2(h))+x)
        o_ref[n] = conv_gn_act(cur, NUM_LAYERS - 1, resid, "gelu")


def _tap_masks(C, H, W):
    # Pre-combined per-tap validity masks (row AND col condition), channel
    # replicated so the kernel does a single full-width VPU multiply per tap.
    pos = jnp.arange(H * W, dtype=jnp.int32)
    row = pos // W
    col = pos % W
    ms = []
    for dh, dw in _OFFCENTER_TAPS:
        ok = (row + dh >= 0) & (row + dh < H) & (col + dw >= 0) & (col + dw < W)
        ms.append(ok)
    m = jnp.stack(ms).astype(jnp.float32)              # (8, H*W)
    return jnp.broadcast_to(m[:, None, :], (len(_OFFCENTER_TAPS), C, H * W))


def _pick_nb(N, max_nb=8):
    # Largest images-per-step NB dividing N, preferring >= 2 grid steps so both
    # v7x TensorCores get work; NB capped to keep vreg pressure sane.
    divs = [d for d in range(1, min(N, max_nb) + 1) if N % d == 0]
    multi = [d for d in divs if N // d >= 2]
    return max(multi) if multi else max(divs)


def residual_group_fwd(x_nchw, packed):
    """x_nchw: (N, C, H, W) float32; packed: dict from pack_params()."""
    N, C, H, W = x_nchw.shape
    assert C == NUM_GROUPS, "kernel assumes GroupNorm groups == channels (C == 8)"
    HW = H * W
    NB = _pick_nb(N)
    x = x_nchw.reshape(N, C, HW).astype(jnp.float32)   # free layout merge
    masks = _tap_masks(C, H, W)
    kern = functools.partial(_residual_group_kernel, H=H, W=W, C=C, NB=NB)
    cost = pl.CostEstimate(
        flops=2 * N * NUM_LAYERS * C * 9 * C * HW,
        transcendentals=N * NUM_LAYERS * C * HW,
        bytes_accessed=(2 * N * C * HW * 4
                        + NUM_LAYERS * C * 9 * C * 4
                        + 3 * NUM_LAYERS * C * 4
                        + 8 * C * HW * 4),
    )
    out = pl.pallas_call(
        kern,
        out_shape=jax.ShapeDtypeStruct((N, C, HW), jnp.float32),
        grid=(N // NB,),
        in_specs=[
            pl.BlockSpec((NB, C, HW), lambda n: (n, 0, 0)),
            pl.BlockSpec((8, C, HW), lambda n: (0, 0, 0)),
            pl.BlockSpec((NUM_LAYERS, C, 9 * C), lambda n: (0, 0, 0)),
            pl.BlockSpec((NUM_LAYERS, C, 1), lambda n: (0, 0, 0)),
            pl.BlockSpec((NUM_LAYERS, C, 1), lambda n: (0, 0, 0)),
            pl.BlockSpec((NUM_LAYERS, C, 1), lambda n: (0, 0, 0)),
        ],
        out_specs=pl.BlockSpec((NB, C, HW), lambda n: (n, 0, 0)),
        compiler_params=pltpu.CompilerParams(dimension_semantics=("parallel",)),
        cost_estimate=cost,
    )(x, masks, packed["w"], packed["b"], packed["g"], packed["be"])
    return out.reshape(N, C, H, W)


# ---------------------------------------------------------------------------
# Parameters: PyTorch-layout init + packing into the stacked kernel operands.
# Layer order: [blk0.conv1, blk0.conv2, blk1.conv1, ..., blk5.conv2, fusion].
# ---------------------------------------------------------------------------
def init_params(key, C, num_blocks=NUM_BLOCKS):
    n_layers = 2 * num_blocks + 1
    keys = jax.random.split(key, 2 * n_layers)
    layers = []
    for l in range(n_layers):
        kw, kb = keys[2 * l], keys[2 * l + 1]
        w = jax.random.normal(kw, (C, C, 3, 3), jnp.float32) / math.sqrt(9 * C)
        b = 0.01 * jax.random.normal(kb, (C,), jnp.float32)
        layers.append(dict(w=w, b=b,
                           gamma=jnp.ones((C,), jnp.float32),
                           beta=jnp.zeros((C,), jnp.float32)))
    return layers


def pack_params(layers):
    C = layers[0]["w"].shape[0]
    # conv weight (Cout, Cin, 3, 3) -> (Cout, 3, 3, Cin) -> (Cout, 9*Cin):
    # column (kh*3 + kw)*Cin + ci matches the kernel's im2col row order.
    w = jnp.stack([jnp.transpose(p["w"], (0, 2, 3, 1)).reshape(C, 9 * C)
                   for p in layers])
    b = jnp.stack([p["b"].reshape(C, 1) for p in layers])
    g = jnp.stack([p["gamma"].reshape(C, 1) for p in layers])
    be = jnp.stack([p["beta"].reshape(C, 1) for p in layers])
    return dict(w=w, b=b, g=g, be=be)


if __name__ == "__main__":
    key = jax.random.PRNGKey(0)
    k_x, k_p = jax.random.split(key)
    # channels must satisfy GroupNorm(8, C) -> minimal valid C = 8
    N, C, H, W = 4, 8, 16, 16          # N=4 exercises NB=2 images/step, grid=(2,)
    x = jax.random.normal(k_x, (N, C, H, W), jnp.float32)
    packed = pack_params(init_params(k_p, C, num_blocks=NUM_BLOCKS))

    fwd = jax.jit(residual_group_fwd)
    y = jax.block_until_ready(fwd(x, packed))

    assert y.shape == (N, C, H, W)
    assert bool(jnp.all(jnp.isfinite(y)))
    print("KERNEL_OK")
</pallas_src>

<mosaic_0001>
module attributes {stable_mosaic.version = 11 : i64} {
  func.func @_residual_group_kernel(%arg0: i32, %arg1: memref<2x8x256xf32, #tpu.memory_space<vmem>>, %arg2: memref<8x8x256xf32, #tpu.memory_space<vmem>>, %arg3: memref<13x8x72xf32, #tpu.memory_space<vmem>>, %arg4: memref<13x8x1xf32, #tpu.memory_space<vmem>>, %arg5: memref<13x8x1xf32, #tpu.memory_space<vmem>>, %arg6: memref<13x8x1xf32, #tpu.memory_space<vmem>>, %arg7: memref<2x8x256xf32, #tpu.memory_space<vmem>>) attributes {dimension_semantics = [#tpu.dimension_semantics<parallel>], iteration_bounds = array<i64: 2>, scalar_prefetch = 0 : i64, scratch_operands = 0 : i64, tpu.core_type = #tpu.core_type<tc>, window_params = [{transform_indices = @transform_0, window_bounds = array<i64: 2, 8, 256>}, {pipeline_mode = #tpu.pipeline_mode<synchronous>, transform_indices = @transform_1, window_bounds = array<i64: 8, 8, 256>}, {pipeline_mode = #tpu.pipeline_mode<synchronous>, transform_indices = @transform_2, window_bounds = array<i64: 13, 8, 72>}, {pipeline_mode = #tpu.pipeline_mode<synchronous>, transform_indices = @transform_3, window_bounds = array<i64: 13, 8, 1>}, {pipeline_mode = #tpu.pipeline_mode<synchronous>, transform_indices = @transform_4, window_bounds = array<i64: 13, 8, 1>}, {pipeline_mode = #tpu.pipeline_mode<synchronous>, transform_indices = @transform_5, window_bounds = array<i64: 13, 8, 1>}, {transform_indices = @transform_6, window_bounds = array<i64: 2, 8, 256>}]} {
    %c0 = arith.constant 0 : index
    %c0_0 = arith.constant 0 : index
    %c0_1 = arith.constant 0 : index
    %0 = vector.load %arg1[%c0, %c0_0, %c0_1] : memref<2x8x256xf32, #tpu.memory_space<vmem>>, vector<1x8x256xf32>
    %1 = vector.shape_cast %0 : vector<1x8x256xf32> to vector<8x256xf32>
    %c17_i32 = arith.constant 17 : i32
    %2 = tpu.dynamic_rotate %1 by %c17_i32 dim 1 : vector<8x256xf32>, i32 -> vector<8x256xf32>
    %c0_2 = arith.constant 0 : index
    %c0_3 = arith.constant 0 : index
    %c0_4 = arith.constant 0 : index
    %3 = vector.load %arg2[%c0_2, %c0_3, %c0_4] : memref<8x8x256xf32, #tpu.memory_space<vmem>>, vector<1x8x256xf32>
    %4 = vector.shape_cast %3 : vector<1x8x256xf32> to vector<8x256xf32>
    %5 = arith.mulf %2, %4 : vector<8x256xf32>
    %c16_i32 = arith.constant 16 : i32
    %6 = tpu.dynamic_rotate %1 by %c16_i32 dim 1 : vector<8x256xf32>, i32 -> vector<8x256xf32>
    %c1 = arith.constant 1 : index
    %c0_5 = arith.constant 0 : index
    %c0_6 = arith.constant 0 : index
    %7 = vector.load %arg2[%c1, %c0_5, %c0_6] : memref<8x8x256xf32, #tpu.memory_space<vmem>>, vector<1x8x256xf32>
    %8 = vector.shape_cast %7 : vector<1x8x256xf32> to vector<8x256xf32>
    %9 = arith.mulf %6, %8 : vector<8x256xf32>
    %c15_i32 = arith.constant 15 : i32
    %10 = tpu.dynamic_rotate %1 by %c15_i32 dim 1 : vector<8x256xf32>, i32 -> vector<8x256xf32>
    %c2 = arith.constant 2 : index
    %c0_7 = arith.constant 0 : index
    %c0_8 = arith.constant 0 : index
    %11 = vector.load %arg2[%c2, %c0_7, %c0_8] : memref<8x8x256xf32, #tpu.memory_space<vmem>>, vector<1x8x256xf32>
    %12 = vector.shape_cast %11 : vector<1x8x256xf32> to vector<8x256xf32>
    %13 = arith.mulf %10, %12 : vector<8x256xf32>
    %c1_i32 = arith.constant 1 : i32
    %14 = tpu.dynamic_rotate %1 by %c1_i32 dim 1 : vector<8x256xf32>, i32 -> vector<8x256xf32>
    %c3 = arith.constant 3 : index
    %c0_9 = arith.constant 0 : index
    %c0_10 = arith.constant 0 : index
    %15 = vector.load %arg2[%c3, %c0_9, %c0_10] : memref<8x8x256xf32, #tpu.memory_space<vmem>>, vector<1x8x256xf32>
    %16 = vector.shape_cast %15 : vector<1x8x256xf32> to vector<8x256xf32>
    %17 = arith.mulf %14, %16 : vector<8x256xf32>
    %c255_i32 = arith.constant 255 : i32
    %18 = tpu.dynamic_rotate %1 by %c255_i32 dim 1 : vector<8x256xf32>, i32 -> vector<8x256xf32>
    %c4 = arith.constant 4 : index
    %c0_11 = arith.constant 0 : index
    %c0_12 = arith.constant 0 : index
    %19 = vector.load %arg2[%c4, %c0_11, %c0_12] : memref<8x8x256xf32, #tpu.memory_space<vmem>>, vector<1x8x256xf32>
    %20 = vector.shape_cast %19 : vector<1x8x256xf32> to vector<8x256xf32>
    %21 = arith.mulf %18, %20 : vector<8x256xf32>
    %c241_i32 = arith.constant 241 : i32
    %22 = tpu.dynamic_rotate %1 by %c241_i32 dim 1 : vector<8x256xf32>, i32 -> vector<8x256xf32>
    %c5 = arith.constant 5 : index
    %c0_13 = arith.constant 0 : index
    %c0_14 = arith.constant 0 : index
    %23 = vector.load %arg2[%c5, %c0_13, %c0_14] : memref<8x8x256xf32, #tpu.memory_space<vmem>>, vector<1x8x256xf32>
    %24 = vector.shape_cast %23 : vector<1x8x256xf32> to vector<8x256xf32>
    %25 = arith.mulf %22, %24 : vector<8x256xf32>
    %c240_i32 = arith.constant 240 : i32
    %26 = tpu.dynamic_rotate %1 by %c240_i32 dim 1 : vector<8x256xf32>, i32 -> vector<8x256xf32>
    %c6 = arith.constant 6 : index
    %c0_15 = arith.constant 0 : index
    %c0_16 = arith.constant 0 : index
    %27 = vector.load %arg2[%c6, %c0_15, %c0_16] : memref<8x8x256xf32, #tpu.memory_space<vmem>>, vector<1x8x256xf32>
    %28 = vector.shape_cast %27 : vector<1x8x256xf32> to vector<8x256xf32>
    %29 = arith.mulf %26, %28 : vector<8x256xf32>
    %c239_i32 = arith.constant 239 : i32
    %30 = tpu.dynamic_rotate %1 by %c239_i32 dim 1 : vector<8x256xf32>, i32 -> vector<8x256xf32>
    %c7 = arith.constant 7 : index
    %c0_17 = arith.constant 0 : index
    %c0_18 = arith.constant 0 : index
    %31 = vector.load %arg2[%c7, %c0_17, %c0_18] : memref<8x8x256xf32, #tpu.memory_space<vmem>>, vector<1x8x256xf32>
    %32 = vector.shape_cast %31 : vector<1x8x256xf32> to vector<8x256xf32>
    %33 = arith.mulf %30, %32 : vector<8x256xf32>
    %34 = tpu.concatenate %5, %9, %13, %17, %1, %21, %25, %29, %33 in 0 : vector<8x256xf32>, vector<8x256xf32>, vector<8x256xf32>, vector<8x256xf32>, vector<8x256xf32>, vector<8x256xf32>, vector<8x256xf32>, vector<8x256xf32>, vector<8x256xf32> -> vector<72x256xf32>
    %35 = arith.truncf %34 : vector<72x256xf32> to vector<72x256xbf16>
    %c0_19 = arith.constant 0 : index
    %c0_20 = arith.constant 0 : index
    %c0_21 = arith.constant 0 : index
    %36 = vector.load %arg3[%c0_19, %c0_20, %c0_21] : memref<13x8x72xf32, #tpu.memory_space<vmem>>, vector<1x8x72xf32>
    %37 = vector.shape_cast %36 : vector<1x8x72xf32> to vector<8x72xf32>
    %38 = arith.truncf %37 : vector<8x72xf32> to vector<8x72xbf16>
    %cst = arith.constant dense<0.000000e+00> : vector<8x256xf32>
    %39 = tpu.matmul %38, %35, %cst {dimension_numbers = #tpu.dot_dimension_numbers<[1], [0], [0], [1], [0, 0, 1, 1], [], []>} : vector<8x72xbf16>, vector<72x256xbf16>, vector<8x256xf32> -> vector<8x256xf32>
    %c0_22 = arith.constant 0 : index
    %c0_23 = arith.constant 0 : index
    %c0_24 = arith.constant 0 : index
    %40 = vector.load %arg4[%c0_22, %c0_23, %c0_24] : memref<13x8x1xf32, #tpu.memory_space<vmem>>, vector<1x8x1xf32>
    %41 = vector.shape_cast %40 : vector<1x8x1xf32> to vector<8x1xf32>
    %42 = vector.broadcast %41 : vector<8x1xf32> to vector<8x256xf32>
    %43 = arith.addf %39, %42 : vector<8x256xf32>
    %cst_25 = arith.constant dense<0.000000e+00> : vector<8xf32>
    %44 = vector.multi_reduction <add>, %43, %cst_25 [1] : vector<8x256xf32> to vector<8xf32>
    %45 = vector.shape_cast %44 : vector<8xf32> to vector<8x1xf32>
    %46 = arith.mulf %43, %43 : vector<8x256xf32>
    %cst_26 = arith.constant dense<0.000000e+00> : vector<8xf32>
    %47 = vector.multi_reduction <add>, %46, %cst_26 [1] : vector<8x256xf32> to vector<8xf32>
    %48 = vector.shape_cast %47 : vector<8xf32> to vector<8x1xf32>
    %cst_27 = arith.constant 3.906250e-03 : f32
    %49 = vector.broadcast %cst_27 : f32 to vector<8x1xf32>
    %50 = arith.mulf %45, %49 : vector<8x1xf32>
    %cst_28 = arith.constant 3.906250e-03 : f32
    %51 = vector.broadcast %cst_28 : f32 to vector<8x1xf32>
    %52 = arith.mulf %48, %51 : vector<8x1xf32>
    %53 = arith.mulf %50, %50 : vector<8x1xf32>
    %54 = arith.subf %52, %53 : vector<8x1xf32>
    %55 = vector.broadcast %50 : vector<8x1xf32> to vector<8x256xf32>
    %56 = arith.subf %43, %55 : vector<8x256xf32>
    %cst_29 = arith.constant 9.99999974E-6 : f32
    %57 = vector.broadcast %cst_29 : f32 to vector<8x1xf32>
    %58 = arith.addf %54, %57 : vector<8x1xf32>
    %59 = math.rsqrt %58 : vector<8x1xf32>
    %60 = vector.broadcast %59 : vector<8x1xf32> to vector<8x256xf32>
    %61 = arith.mulf %56, %60 : vector<8x256xf32>
    %c0_30 = arith.constant 0 : index
    %c0_31 = arith.constant 0 : index
    %c0_32 = arith.constant 0 : index
    %62 = vector.load %arg5[%c0_30, %c0_31, %c0_32] : memref<13x8x1xf32, #tpu.memory_space<vmem>>, vector<1x8x1xf32>
    %63 = vector.shape_cast %62 : vector<1x8x1xf32> to vector<8x1xf32>
    %64 = vector.broadcast %63 : vector<8x1xf32> to vector<8x256xf32>
    %65 = arith.mulf %61, %64 : vector<8x256xf32>
    %c0_33 = arith.constant 0 : index
    %c0_34 = arith.constant 0 : index
    %c0_35 = arith.constant 0 : index
    %66 = vector.load %arg6[%c0_33, %c0_34, %c0_35] : memref<13x8x1xf32, #tpu.memory_space<vmem>>, vector<1x8x1xf32>
    %67 = vector.shape_cast %66 : vector<1x8x1xf32> to vector<8x1xf32>
    %68 = vector.broadcast %67 : vector<8x1xf32> to vector<8x256xf32>
    %69 = arith.addf %65, %68 : vector<8x256xf32>
    %cst_36 = arith.constant 5.000000e-01 : f32
    %70 = vector.broadcast %cst_36 : f32 to vector<8x256xf32>
    %71 = arith.mulf %70, %69 : vector<8x256xf32>
    %cst_37 = arith.constant 4.471500e-02 : f32
    %72 = vector.broadcast %cst_37 : f32 to vector<8x256xf32>
    %73 = arith.mulf %72, %69 : vector<8x256xf32>
    %74 = arith.mulf %73, %69 : vector<8x256xf32>
    %75 = arith.mulf %74, %69 : vector<8x256xf32>
    %76 = arith.addf %69, %75 : vector<8x256xf32>
    %cst_38 = arith.constant 0.797884583 : f32
    %77 = vector.broadcast %cst_38 : f32 to vector<8x256xf32>
    %78 = arith.mulf %77, %76 : vector<8x256xf32>
    %79 = math.tanh %78 : vector<8x256xf32>
    %cst_39 = arith.constant 1.000000e+00 : f32
    %80 = vector.broadcast %cst_39 : f32 to vector<8x256xf32>
    %81 = arith.addf %80, %79 : vector<8x256xf32>
    %82 = arith.mulf %71, %81 : vector<8x256xf32>
    %c17_i32_40 = arith.constant 17 : i32
    %83 = tpu.dynamic_rotate %82 by %c17_i32_40 dim 1 : vector<8x256xf32>, i32 -> vector<8x256xf32>
    %c0_41 = arith.constant 0 : index
    %c0_42 = arith.constant 0 : index
    %c0_43 = arith.constant 0 : index
    %84 = vector.load %arg2[%c0_41, %c0_42, %c0_43] : memref<8x8x256xf32, #tpu.memory_space<vmem>>, vector<1x8x256xf32>
    %85 = vector.shape_cast %84 : vector<1x8x256xf32> to vector<8x256xf32>
    %86 = arith.mulf %83, %85 : vector<8x256xf32>
    %c16_i32_44 = arith.constant 16 : i32
    %87 = tpu.dynamic_rotate %82 by %c16_i32_44 dim 1 : vector<8x256xf32>, i32 -> vector<8x256xf32>
    %c1_45 = arith.constant 1 : index
    %c0_46 = arith.constant 0 : index
    %c0_47 = arith.constant 0 : index
    %88 = vector.load %arg2[%c1_45, %c0_46, %c0_47] : memref<8x8x256xf32, #tpu.memory_space<vmem>>, vector<1x8x256xf32>
    %89 = vector.shape_cast %88 : vector<1x8x256xf32> to vector<8x256xf32>
    %90 = arith.mulf %87, %89 : vector<8x256xf32>
    %c15_i32_48 = arith.constant 15 : i32
    %91 = tpu.dynamic_rotate %82 by %c15_i32_48 dim 1 : vector<8x256xf32>, i32 -> vector<8x256xf32>
    %c2_49 = arith.constant 2 : index
    %c0_50 = arith.constant 0 : index
    %c0_51 = arith.constant 0 : index
    %92 = vector.load %arg2[%c2_49, %c0_50, %c0_51] : memref<8x8x256xf32, #tpu.memory_space<vmem>>, vector<1x8x256xf32>
    %93 = vector.shape_cast %92 : vector<1x8x256xf32> to vector<8x256xf32>
    %94 = arith.mulf %91, %93 : vector<8x256xf32>
    %c1_i32_52 = arith.constant 1 : i32
    %95 = tpu.dynamic_rotate %82 by %c1_i32_52 dim 1 : vector<8x256xf32>, i32 -> vector<8x256xf32>
    %c3_53 = arith.constant 3 : index
    %c0_54 = arith.constant 0 : index
    %c0_55 = arith.constant 0 : index
    %96 = vector.load %arg2[%c3_53, %c0_54, %c0_55] : memref<8x8x256xf32, #tpu.memory_space<vmem>>, vector<1x8x256xf32>
    %97 = vector.shape_cast %96 : vector<1x8x256xf32> to vector<8x256xf32>
    %98 = arith.mulf %95, %97 : vector<8x256xf32>
    %c255_i32_56 = arith.constant 255 : i32
    %99 = tpu.dynamic_rotate %82 by %c255_i32_56 dim 1 : vector<8x256xf32>, i32 -> vector<8x256xf32>
    %c4_57 = arith.constant 4 : index
    %c0_58 = arith.constant 0 : index
    %c0_59 = arith.constant 0 : index
    %100 = vector.load %arg2[%c4_57, %c0_58, %c0_59] : memref<8x8x256xf32, #tpu.memory_space<vmem>>, vector<1x8x256xf32>
    %101 = vector.shape_cast %100 : vector<1x8x256xf32> to vector<8x256xf32>
    %102 = arith.mulf %99, %101 : vector<8x256xf32>
    %c241_i32_60 = arith.constant 241 : i32
    %103 = tpu.dynamic_rotate %82 by %c241_i32_60 dim 1 : vector<8x256xf32>, i32 -> vector<8x256xf32>
    %c5_61 = arith.constant 5 : index
    %c0_62 = arith.constant 0 : index
    %c0_63 = arith.constant 0 : index
    %104 = vector.load %arg2[%c5_61, %c0_62, %c0_63] : memref<8x8x256xf32, #tpu.memory_space<vmem>>, vector<1x8x256xf32>
    %105 = vector.shape_cast %104 : vector<1x8x256xf32> to vector<8x256xf32>
    %106 = arith.mulf %103, %105 : vector<8x256xf32>
    %c240_i32_64 = arith.constant 240 : i32
    %107 = tpu.dynamic_rotate %82 by %c240_i32_64 dim 1 : vector<8x256xf32>, i32 -> vector<8x256xf32>
    %c6_65 = arith.constant 6 : index
    %c0_66 = arith.constant 0 : index
    %c0_67 = arith.constant 0 : index
    %108 = vector.load %arg2[%c6_65, %c0_66, %c0_67] : memref<8x8x256xf32, #tpu.memory_space<vmem>>, vector<1x8x256xf32>
    %109 = vector.shape_cast %108 : vector<1x8x256xf32> to vector<8x256xf32>
    %110 = arith.mulf %107, %109 : vector<8x256xf32>
    %c239_i32_68 = arith.constant 239 : i32
    %111 = tpu.dynamic_rotate %82 by %c239_i32_68 dim 1 : vector<8x256xf32>, i32 -> vector<8x256xf32>
    %c7_69 = arith.constant 7 : index
    %c0_70 = arith.constant 0 : index
    %c0_71 = arith.constant 0 : index
    %112 = vector.load %arg2[%c7_69, %c0_70, %c0_71] : memref<8x8x256xf32, #tpu.memory_space<vmem>>, vector<1x8x256xf32>
    %113 = vector.shape_cast %112 : vector<1x8x256xf32> to vector<8x256xf32>
    %114 = arith.mulf %111, %113 : vector<8x256xf32>
    %115 = tpu.concatenate %86, %90, %94, %98, %82, %102, %106, %110, %114 in 0 : vector<8x256xf32>, vector<8x256xf32>, vector<8x256xf32>, vector<8x256xf32>, vector<8x256xf32>, vector<8x256xf32>, vector<8x256xf32>, vector<8x256xf32>, vector<8x256xf32> -> vector<72x256xf32>
    %116 = arith.truncf %115 : vector<72x256xf32> to vector<72x256xbf16>
    %c1_72 = arith.constant 1 : index
    %c0_73 = arith.constant 0 : index
    %c0_74 = arith.constant 0 : index
    %117 = vector.load %arg3[%c1_72, %c0_73, %c0_74] : memref<13x8x72xf32, #tpu.memory_space<vmem>>, vector<1x8x72xf32>
    %118 = vector.shape_cast %117 : vector<1x8x72xf32> to vector<8x72xf32>
    %119 = arith.truncf %118 : vector<8x72xf32> to vector<8x72xbf16>
    %cst_75 = arith.constant dense<0.000000e+00> : vector<8x256xf32>
    %120 = tpu.matmul %119, %116, %cst_75 {dimension_numbers = #tpu.dot_dimension_numbers<[1], [0], [0], [1], [0, 0, 1, 1], [], []>} : vector<8x72xbf16>, vector<72x256xbf16>, vector<8x256xf32> -> vector<8x256xf32>
    %c1_76 = arith.constant 1 : index
    %c0_77 = arith.constant 0 : index
    %c0_78 = arith.constant 0 : index
    %121 = vector.load %arg4[%c1_76, %c0_77, %c0_78] : memref<13x8x1xf32, #tpu.memory_space<vmem>>, vector<1x8x1xf32>
    %122 = vector.shape_cast %121 : vector<1x8x1xf32> to vector<8x1xf32>
    %123 = vector.broadcast %122 : vector<8x1xf32> to vector<8x256xf32>
    %124 = arith.addf %120, %123 : vector<8x256xf32>
    %cst_79 = arith.constant dense<0.000000e+00> : vector<8xf32>
    %125 = vector.multi_reduction <add>, %124, %cst_79 [1] : vector<8x256xf32> to vector<8xf32>
    %126 = vector.shape_cast %125 : vector<8xf32> to vector<8x1xf32>
    %127 = arith.mulf %124, %124 : vector<8x256xf32>
    %cst_80 = arith.constant dense<0.000000e+00> : vector<8xf32>
    %128 = vector.multi_reduction <add>, %127, %cst_80 [1] : vector<8x256xf32> to vector<8xf32>
    %129 = vector.shape_cast %128 : vector<8xf32> to vector<8x1xf32>
    %cst_81 = arith.constant 3.906250e-03 : f32
    %130 = vector.broadcast %cst_81 : f32 to vector<8x1xf32>
    %131 = arith.mulf %126, %130 : vector<8x1xf32>
    %cst_82 = arith.constant 3.906250e-03 : f32
    %132 = vector.broadcast %cst_82 : f32 to vector<8x1xf32>
    %133 = arith.mulf %129, %132 : vector<8x1xf32>
    %134 = arith.mulf %131, %131 : vector<8x1xf32>
    %135 = arith.subf %133, %134 : vector<8x1xf32>
    %136 = vector.broadcast %131 : vector<8x1xf32> to vector<8x256xf32>
    %137 = arith.subf %124, %136 : vector<8x256xf32>
    %cst_83 = arith.constant 9.99999974E-6 : f32
    %138 = vector.broadcast %cst_83 : f32 to vector<8x1xf32>
    %139 = arith.addf %135, %138 : vector<8x1xf32>
    %140 = math.rsqrt %139 : vector<8x1xf32>
    %141 = vector.broadcast %140 : vector<8x1xf32> to vector<8x256xf32>
    %142 = arith.mulf %137, %141 : vector<8x256xf32>
    %c1_84 = arith.constant 1 : index
    %c0_85 = arith.constant 0 : index
    %c0_86 = arith.constant 0 : index
    %143 = vector.load %arg5[%c1_84, %c0_85, %c0_86] : memref<13x8x1xf32, #tpu.memory_space<vmem>>, vector<1x8x1xf32>
    %144 = vector.shape_cast %143 : vector<1x8x1xf32> to vector<8x1xf32>
    %145 = vector.broadcast %144 : vector<8x1xf32> to vector<8x256xf32>
    %146 = arith.mulf %142, %145 : vector<8x256xf32>
    %c1_87 = arith.constant 1 : index
    %c0_88 = arith.constant 0 : index
    %c0_89 = arith.constant 0 : index
    %147 = vector.load %arg6[%c1_87, %c0_88, %c0_89] : memref<13x8x1xf32, #tpu.memory_space<vmem>>, vector<1x8x1xf32>
    %148 = vector.shape_cast %147 : vector<1x8x1xf32> to vector<8x1xf32>
    %149 = vector.broadcast %148 : vector<8x1xf32> to vector<8x256xf32>
    %150 = arith.addf %146, %149 : vector<8x256xf32>
    %151 = arith.addf %150, %1 : vector<8x256xf32>
    %cst_90 = arith.constant 5.000000e-01 : f32
    %152 = vector.broadcast %cst_90 : f32 to vector<8x256xf32>
    %153 = arith.mulf %152, %151 : vector<8x256xf32>
    %cst_91 = arith.constant 4.471500e-02 : f32
    %154 = vector.broadcast %cst_91 : f32 to vector<8x256xf32>
    %155 = arith.mulf %154, %151 : vector<8x256xf32>
    %156 = arith.mulf %155, %151 : vector<8x256xf32>
    %157 = arith.mulf %156, %151 : vector<8x256xf32>
    %158 = arith.addf %151, %157 : vector<8x256xf32>
    %cst_92 = arith.constant 0.797884583 : f32
    %159 = vector.broadcast %cst_92 : f32 to vector<8x256xf32>
    %160 = arith.mulf %159, %158 : vector<8x256xf32>
    %161 = math.tanh %160 : vector<8x256xf32>
    %cst_93 = arith.constant 1.000000e+00 : f32
    %162 = vector.broadcast %cst_93 : f32 to vector<8x256xf32>
    %163 = arith.addf %162, %161 : vector<8x256xf32>
    %164 = arith.mulf %153, %163 : vector<8x256xf32>
    %c17_i32_94 = arith.constant 17 : i32
    %165 = tpu.dynamic_rotate %164 by %c17_i32_94 dim 1 : vector<8x256xf32>, i32 -> vector<8x256xf32>
    %c0_95 = arith.constant 0 : index
    %c0_96 = arith.constant 0 : index
    %c0_97 = arith.constant 0 : index
    %166 = vector.load %arg2[%c0_95, %c0_96, %c0_97] : memref<8x8x256xf32, #tpu.memory_space<vmem>>, vector<1x8x256xf32>
    %167 = vector.shape_cast %166 : vector<1x8x256xf32> to vector<8x256xf32>
    %168 = arith.mulf %165, %167 : vector<8x256xf32>
    %c16_i32_98 = arith.constant 16 : i32
    %169 = tpu.dynamic_rotate %164 by %c16_i32_98 dim 1 : vector<8x256xf32>, i32 -> vector<8x256xf32>
    %c1_99 = arith.constant 1 : index
    %c0_100 = arith.constant 0 : index
    %c0_101 = arith.constant 0 : index
    %170 = vector.load %arg2[%c1_99, %c0_100, %c0_101] : memref<8x8x256xf32, #tpu.memory_space<vmem>>, vector<1x8x256xf32>
    %171 = vector.shape_cast %170 : vector<1x8x256xf32> to vector<8x256xf32>
    %172 = arith.mulf %169, %171 : vector<8x256xf32>
    %c15_i32_102 = arith.constant 15 : i32
    %173 = tpu.dynamic_rotate %164 by %c15_i32_102 dim 1 : vector<8x256xf32>, i32 -> vector<8x256xf32>
    %c2_103 = arith.constant 2 : index
    %c0_104 = arith.constant 0 : index
    %c0_105 = arith.constant 0 : index
    %174 = vector.load %arg2[%c2_103, %c0_104, %c0_105] : memref<8x8x256xf32, #tpu.memory_space<vmem>>, vector<1x8x256xf32>
    %175 = vector.shape_cast %174 : vector<1x8x256xf32> to vector<8x256xf32>
    %176 = arith.mulf %173, %175 : vector<8x256xf32>
    %c1_i32_106 = arith.constant 1 : i32
    %177 = tpu.dynamic_rotate %164 by %c1_i32_106 dim 1 : vector<8x256xf32>, i32 -> vector<8x256xf32>
    %c3_107 = arith.constant 3 : index
    %c0_108 = arith.constant 0 : index
    %c0_109 = arith.constant 0 : index
    %178 = vector.load %arg2[%c3_107, %c0_108, %c0_109] : memref<8x8x256xf32, #tpu.memory_space<vmem>>, vector<1x8x256xf32>
    %179 = vector.shape_cast %178 : vector<1x8x256xf32> to vector<8x256xf32>
    %180 = arith.mulf %177, %179 : vector<8x256xf32>
    %c255_i32_110 = arith.constant 255 : i32
    %181 = tpu.dynamic_rotate %164 by %c255_i32_110 dim 1 : vector<8x256xf32>, i32 -> vector<8x256xf32>
    %c4_111 = arith.constant 4 : index
    %c0_112 = arith.constant 0 : index
    %c0_113 = arith.constant 0 : index
    %182 = vector.load %arg2[%c4_111, %c0_112, %c0_113] : memref<8x8x256xf32, #tpu.memory_space<vmem>>, vector<1x8x256xf32>
    %183 = vector.shape_cast %182 : vector<1x8x256xf32> to vector<8x256xf32>
    %184 = arith.mulf %181, %183 : vector<8x256xf32>
    %c241_i32_114 = arith.constant 241 : i32
    %185 = tpu.dynamic_rotate %164 by %c241_i32_114 dim 1 : vector<8x256xf32>, i32 -> vector<8x256xf32>
    %c5_115 = arith.constant 5 : index
    %c0_116 = arith.constant 0 : index
    %c0_117 = arith.constant 0 : index
    %186 = vector.load %arg2[%c5_115, %c0_116, %c0_117] : memref<8x8x256xf32, #tpu.memory_space<vmem>>, vector<1x8x256xf32>
    %187 = vector.shape_cast %186 : vector<1x8x256xf32> to vector<8x256xf32>
    %188 = arith.mulf %185, %187 : vector<8x256xf32>
    %c240_i32_118 = arith.constant 240 : i32
    %189 = tpu.dynamic_rotate %164 by %c240_i32_118 dim 1 : vector<8x256xf32>, i32 -> vector<8x256xf32>
    %c6_119 = arith.constant 6 : index
    %c0_120 = arith.constant 0 : index
    %c0_121 = arith.constant 0 : index
    %190 = vector.load %arg2[%c6_119, %c0_120, %c0_121] : memref<8x8x256xf32, #tpu.memory_space<vmem>>, vector<1x8x256xf32>
    %191 = vector.shape_cast %190 : vector<1x8x256xf32> to vector<8x256xf32>
    %192 = arith.mulf %189, %191 : vector<8x256xf32>
    %c239_i32_122 = arith.constant 239 : i32
    %193 = tpu.dynamic_rotate %164 by %c239_i32_122 dim 1 : vector<8x256xf32>, i32 -> vector<8x256xf32>
    %c7_123 = arith.constant 7 : index
    %c0_124 = arith.constant 0 : index
    %c0_125 = arith.constant 0 : index
    %194 = vector.load %arg2[%c7_123, %c0_124, %c0_125] : memref<8x8x256xf32, #tpu.memory_space<vmem>>, vector<1x8x256xf32>
    %195 = vector.shape_cast %194 : vector<1x8x256xf32> to vector<8x256xf32>
    %196 = arith.mulf %193, %195 : vector<8x256xf32>
    %197 = tpu.concatenate %168, %172, %176, %180, %164, %184, %188, %192, %196 in 0 : vector<8x256xf32>, vector<8x256xf32>, vector<8x256xf32>, vector<8x256xf32>, vector<8x256xf32>, vector<8x256xf32>, vector<8x256xf32>, vector<8x256xf32>, vector<8x256xf32> -> vector<72x256xf32>
    %198 = arith.truncf %197 : vector<72x256xf32> to vector<72x256xbf16>
    %c2_126 = arith.constant 2 : index
    %c0_127 = arith.constant 0 : index
    %c0_128 = arith.constant 0 : index
    %199 = vector.load %arg3[%c2_126, %c0_127, %c0_128] : memref<13x8x72xf32, #tpu.memory_space<vmem>>, vector<1x8x72xf32>
    %200 = vector.shape_cast %199 : vector<1x8x72xf32> to vector<8x72xf32>
    %201 = arith.truncf %200 : vector<8x72xf32> to vector<8x72xbf16>
    %cst_129 = arith.constant dense<0.000000e+00> : vector<8x256xf32>
    %202 = tpu.matmul %201, %198, %cst_129 {dimension_numbers = #tpu.dot_dimension_numbers<[1], [0], [0], [1], [0, 0, 1, 1], [], []>} : vector<8x72xbf16>, vector<72x256xbf16>, vector<8x256xf32> -> vector<8x256xf32>
    %c2_130 = arith.constant 2 : index
    %c0_131 = arith.constant 0 : index
    %c0_132 = arith.constant 0 : index
    %203 = vector.load %arg4[%c2_130, %c0_131, %c0_132] : memref<13x8x1xf32, #tpu.memory_space<vmem>>, vector<1x8x1xf32>
    %204 = vector.shape_cast %203 : vector<1x8x1xf32> to vector<8x1xf32>
    %205 = vector.broadcast %204 : vector<8x1xf32> to vector<8x256xf32>
    %206 = arith.addf %202, %205 : vector<8x256xf32>
    %cst_133 = arith.constant dense<0.000000e+00> : vector<8xf32>
    %207 = vector.multi_reduction <add>, %206, %cst_133 [1] : vector<8x256xf32> to vector<8xf32>
    %208 = vector.shape_cast %207 : vector<8xf32> to vector<8x1xf32>
    %209 = arith.mulf %206, %206 : vector<8x256xf32>
    %cst_134 = arith.constant dense<0.000000e+00> : vector<8xf32>
    %210 = vector.multi_reduction <add>, %209, %cst_134 [1] : vector<8x256xf32> to vector<8xf32>
    %211 = vector.shape_cast %210 : vector<8xf32> to vector<8x1xf32>
    %cst_135 = arith.constant 3.906250e-03 : f32
    %212 = vector.broadcast %cst_135 : f32 to vector<8x1xf32>
    %213 = arith.mulf %208, %212 : vector<8x1xf32>
    %cst_136 = arith.constant 3.906250e-03 : f32
    %214 = vector.broadcast %cst_136 : f32 to vector<8x1xf32>
    %215 = arith.mulf %211, %214 : vector<8x1xf32>
    %216 = arith.mulf %213, %213 : vector<8x1xf32>
    %217 = arith.subf %215, %216 : vector<8x1xf32>
    %218 = vector.broadcast %213 : vector<8x1xf32> to vector<8x256xf32>
    %219 = arith.subf %206, %218 : vector<8x256xf32>
    %cst_137 = arith.constant 9.99999974E-6 : f32
    %220 = vector.broadcast %cst_137 : f32 to vector<8x1xf32>
    %221 = arith.addf %217, %220 : vector<8x1xf32>
    %222 = math.rsqrt %221 : vector<8x1xf32>
    %223 = vector.broadcast %222 : vector<8x1xf32> to vector<8x256xf32>
    %224 = arith.mulf %219, %223 : vector<8x256xf32>
    %c2_138 = arith.constant 2 : index
    %c0_139 = arith.constant 0 : index
    %c0_140 = arith.constant 0 : index
    %225 = vector.load %arg5[%c2_138, %c0_139, %c0_140] : memref<13x8x1xf32, #tpu.memory_space<vmem>>, vector<1x8x1xf32>
    %226 = vector.shape_cast %225 : vector<1x8x1xf32> to vector<8x1xf32>
    %227 = vector.broadcast %226 : vector<8x1xf32> to vector<8x256xf32>
    %228 = arith.mulf %224, %227 : vector<8x256xf32>
    %c2_141 = arith.constant 2 : index
    %c0_142 = arith.constant 0 : index
    %c0_143 = arith.constant 0 : index
    %229 = vector.load %arg6[%c2_141, %c0_142, %c0_143] : memref<13x8x1xf32, #tpu.memory_space<vmem>>, vector<1x8x1xf32>
    %230 = vector.shape_cast %229 : vector<1x8x1xf32> to vector<8x1xf32>
    %231 = vector.broadcast %230 : vector<8x1xf32> to vector<8x256xf32>
    %232 = arith.addf %228, %231 : vector<8x256xf32>
    %233 = arith.negf %232 : vector<8x256xf32>
    %234 = math.exp %233 : vector<8x256xf32>
    %cst_144 = arith.constant 1.000000e+00 : f32
    %235 = vector.broadcast %cst_144 : f32 to vector<8x256xf32>
    %236 = arith.addf %235, %234 : vector<8x256xf32>
    %237 = arith.divf %235, %236 : vector<8x256xf32>
    %238 = arith.mulf %232, %237 : vector<8x256xf32>
    %c17_i32_145 = arith.constant 17 : i32
    %239 = tpu.dynamic_rotate %238 by %c17_i32_145 dim 1 : vector<8x256xf32>, i32 -> vector<8x256xf32>
    %c0_146 = arith.constant 0 : index
    %c0_147 = arith.constant 0 : index
    %c0_148 = arith.constant 0 : index
    %240 = vector.load %arg2[%c0_146, %c0_147, %c0_148] : memref<8x8x256xf32, #tpu.memory_space<vmem>>, vector<1x8x256xf32>
    %241 = vector.shape_cast %240 : vector<1x8x256xf32> to vector<8x256xf32>
    %242 = arith.mulf %239, %241 : vector<8x256xf32>
    %c16_i32_149 = arith.constant 16 : i32
    %243 = tpu.dynamic_rotate %238 by %c16_i32_149 dim 1 : vector<8x256xf32>, i32 -> vector<8x256xf32>
    %c1_150 = arith.constant 1 : index
    %c0_151 = arith.constant 0 : index
    %c0_152 = arith.constant 0 : index
    %244 = vector.load %arg2[%c1_150, %c0_151, %c0_152] : memref<8x8x256xf32, #tpu.memory_space<vmem>>, vector<1x8x256xf32>
    %245 = vector.shape_cast %244 : vector<1x8x256xf32> to vector<8x256xf32>
    %246 = arith.mulf %243, %245 : vector<8x256xf32>
    %c15_i32_153 = arith.constant 15 : i32
    %247 = tpu.dynamic_rotate %238 by %c15_i32_153 dim 1 : vector<8x256xf32>, i32 -> vector<8x256xf32>
    %c2_154 = arith.constant 2 : index
    %c0_155 = arith.constant 0 : index
    %c0_156 = arith.constant 0 : index
    %248 = vector.load %arg2[%c2_154, %c0_155, %c0_156] : memref<8x8x256xf32, #tpu.memory_space<vmem>>, vector<1x8x256xf32>
    %249 = vector.shape_cast %248 : vector<1x8x256xf32> to vector<8x256xf32>
    %250 = arith.mulf %247, %249 : vector<8x256xf32>
    %c1_i32_157 = arith.constant 1 : i32
    %251 = tpu.dynamic_rotate %238 by %c1_i32_157 dim 1 : vector<8x256xf32>, i32 -> vector<8x256xf32>
    %c3_158 = arith.constant 3 : index
    %c0_159 = arith.constant 0 : index
    %c0_160 = arith.constant 0 : index
    %252 = vector.load %arg2[%c3_158, %c0_159, %c0_160] : memref<8x8x256xf32, #tpu.memory_space<vmem>>, vector<1x8x256xf32>
    %253 = vector.shape_cast %252 : vector<1x8x256xf32> to vector<8x256xf32>
    %254 = arith.mulf %251, %253 : vector<8x256xf32>
    %c255_i32_161 = arith.constant 255 : i32
    %255 = tpu.dynamic_rotate %238 by %c255_i32_161 dim 1 : vector<8x256xf32>, i32 -> vector<8x256xf32>
    %c4_162 = arith.constant 4 : index
    %c0_163 = arith.constant 0 : index
    %c0_164 = arith.constant 0 : index
    %256 = vector.load %arg2[%c4_162, %c0_163, %c0_164] : memref<8x8x256xf32, #tpu.memory_space<vmem>>, vector<1x8x256xf32>
    %257 = vector.shape_cast %256 : vector<1x8x256xf32> to vector<8x256xf32>
    %258 = arith.mulf %255, %257 : vector<8x256xf32>
    %c241_i32_165 = arith.constant 241 : i32
    %259 = tpu.dynamic_rotate %238 by %c241_i32_165 dim 1 : vector<8x256xf32>, i32 -> vector<8x256xf32>
    %c5_166 = arith.constant 5 : index
    %c0_167 = arith.constant 0 : index
    %c0_168 = arith.constant 0 : index
    %260 = vector.load %arg2[%c5_166, %c0_167, %c0_168] : memref<8x8x256xf32, #tpu.memory_space<vmem>>, vector<1x8x256xf32>
    %261 = vector.shape_cast %260 : vector<1x8x256xf32> to vector<8x256xf32>
    %262 = arith.mulf %259, %261 : vector<8x256xf32>
    %c240_i32_169 = arith.constant 240 : i32
    %263 = tpu.dynamic_rotate %238 by %c240_i32_169 dim 1 : vector<8x256xf32>, i32 -> vector<8x256xf32>
    %c6_170 = arith.constant 6 : index
    %c0_171 = arith.constant 0 : index
    %c0_172 = arith.constant 0 : index
    %264 = vector.load %arg2[%c6_170, %c0_171, %c0_172] : memref<8x8x256xf32, #tpu.memory_space<vmem>>, vector<1x8x256xf32>
    %265 = vector.shape_cast %264 : vector<1x8x256xf32> to vector<8x256xf32>
    %266 = arith.mulf %263, %265 : vector<8x256xf32>
    %c239_i32_173 = arith.constant 239 : i32
    %267 = tpu.dynamic_rotate %238 by %c239_i32_173 dim 1 : vector<8x256xf32>, i32 -> vector<8x256xf32>
    %c7_174 = arith.constant 7 : index
    %c0_175 = arith.constant 0 : index
    %c0_176 = arith.constant 0 : index
    %268 = vector.load %arg2[%c7_174, %c0_175, %c0_176] : memref<8x8x256xf32, #tpu.memory_space<vmem>>, vector<1x8x256xf32>
    %269 = vector.shape_cast %268 : vector<1x8x256xf32> to vector<8x256xf32>
    %270 = arith.mulf %267, %269 : vector<8x256xf32>
    %271 = tpu.concatenate %242, %246, %250, %254, %238, %258, %262, %266, %270 in 0 : vector<8x256xf32>, vector<8x256xf32>, vector<8x256xf32>, vector<8x256xf32>, vector<8x256xf32>, vector<8x256xf32>, vector<8x256xf32>, vector<8x256xf32>, vector<8x256xf32> -> vector<72x256xf32>
    %272 = arith.truncf %271 : vector<72x256xf32> to vector<72x256xbf16>
    %c3_177 = arith.constant 3 : index
    %c0_178 = arith.constant 0 : index
    %c0_179 = arith.constant 0 : index
    %273 = vector.load %arg3[%c3_177, %c0_178, %c0_179] : memref<13x8x72xf32, #tpu.memory_space<vmem>>, vector<1x8x72xf32>
    %274 = vector.shape_cast %273 : vector<1x8x72xf32> to vector<8x72xf32>
    %275 = arith.truncf %274 : vector<8x72xf32> to vector<8x72xbf16>
    %cst_180 = arith.constant dense<0.000000e+00> : vector<8x256xf32>
    %276 = tpu.matmul %275, %272, %cst_180 {dimension_numbers = #tpu.dot_dimension_numbers<[1], [0], [0], [1], [0, 0, 1, 1], [], []>} : vector<8x72xbf16>, vector<72x256xbf16>, vector<8x256xf32> -> vector<8x256xf32>
    %c3_181 = arith.constant 3 : index
    %c0_182 = arith.constant 0 : index
    %c0_183 = arith.constant 0 : index
    %277 = vector.load %arg4[%c3_181, %c0_182, %c0_183] : memref<13x8x1xf32, #tpu.memory_space<vmem>>, vector<1x8x1xf32>
    %278 = vector.shape_cast %277 : vector<1x8x1xf32> to vector<8x1xf32>
    %279 = vector.broadcast %278 : vector<8x1xf32> to vector<8x256xf32>
    %280 = arith.addf %276, %279 : vector<8x256xf32>
    %cst_184 = arith.constant dense<0.000000e+00> : vector<8xf32>
    %281 = vector.multi_reduction <add>, %280, %cst_184 [1] : vector<8x256xf32> to vector<8xf32>
    %282 = vector.shape_cast %281 : vector<8xf32> to vector<8x1xf32>
    %283 = arith.mulf %280, %280 : vector<8x256xf32>
    %cst_185 = arith.constant dense<0.000000e+00> : vector<8xf32>
    %284 = vector.multi_reduction <add>, %283, %cst_185 [1] : vector<8x256xf32> to vector<8xf32>
    %285 = vector.shape_cast %284 : vector<8xf32> to vector<8x1xf32>
    %cst_186 = arith.constant 3.906250e-03 : f32
    %286 = vector.broadcast %cst_186 : f32 to vector<8x1xf32>
    %287 = arith.mulf %282, %286 : vector<8x1xf32>
    %cst_187 = arith.constant 3.906250e-03 : f32
    %288 = vector.broadcast %cst_187 : f32 to vector<8x1xf32>
    %289 = arith.mulf %285, %288 : vector<8x1xf32>
    %290 = arith.mulf %287, %287 : vector<8x1xf32>
    %291 = arith.subf %289, %290 : vector<8x1xf32>
    %292 = vector.broadcast %287 : vector<8x1xf32> to vector<8x256xf32>
    %293 = arith.subf %280, %292 : vector<8x256xf32>
    %cst_188 = arith.constant 9.99999974E-6 : f32
    %294 = vector.broadcast %cst_188 : f32 to vector<8x1xf32>
    %295 = arith.addf %291, %294 : vector<8x1xf32>
    %296 = math.rsqrt %295 : vector<8x1xf32>
    %297 = vector.broadcast %296 : vector<8x1xf32> to vector<8x256xf32>
    %298 = arith.mulf %293, %297 : vector<8x256xf32>
    %c3_189 = arith.constant 3 : index
    %c0_190 = arith.constant 0 : index
    %c0_191 = arith.constant 0 : index
    %299 = vector.load %arg5[%c3_189, %c0_190, %c0_191] : memref<13x8x1xf32, #tpu.memory_space<vmem>>, vector<1x8x1xf32>
    %300 = vector.shape_cast %299 : vector<1x8x1xf32> to vector<8x1xf32>
    %301 = vector.broadcast %300 : vector<8x1xf32> to vector<8x256xf32>
    %302 = arith.mulf %298, %301 : vector<8x256xf32>
    %c3_192 = arith.constant 3 : index
    %c0_193 = arith.constant 0 : index
    %c0_194 = arith.constant 0 : index
    %303 = vector.load %arg6[%c3_192, %c0_193, %c0_194] : memref<13x8x1xf32, #tpu.memory_space<vmem>>, vector<1x8x1xf32>
    %304 = vector.shape_cast %303 : vector<1x8x1xf32> to vector<8x1xf32>
    %305 = vector.broadcast %304 : vector<8x1xf32> to vector<8x256xf32>
    %306 = arith.addf %302, %305 : vector<8x256xf32>
    %307 = arith.addf %306, %164 : vector<8x256xf32>
    %308 = arith.negf %307 : vector<8x256xf32>
    %309 = math.exp %308 : vector<8x256xf32>
    %cst_195 = arith.constant 1.000000e+00 : f32
    %310 = vector.broadcast %cst_195 : f32 to vector<8x256xf32>
    %311 = arith.addf %310, %309 : vector<8x256xf32>
    %312 = arith.divf %310, %311 : vector<8x256xf32>
    %313 = arith.mulf %307, %312 : vector<8x256xf32>
    %c17_i32_196 = arith.constant 17 : i32
    %314 = tpu.dynamic_rotate %313 by %c17_i32_196 dim 1 : vector<8x256xf32>, i32 -> vector<8x256xf32>
    %c0_197 = arith.constant 0 : index
    %c0_198 = arith.constant 0 : index
    %c0_199 = arith.constant 0 : index
    %315 = vector.load %arg2[%c0_197, %c0_198, %c0_199] : memref<8x8x256xf32, #tpu.memory_space<vmem>>, vector<1x8x256xf32>
    %316 = vector.shape_cast %315 : vector<1x8x256xf32> to vector<8x256xf32>
    %317 = arith.mulf %314, %316 : vector<8x256xf32>
    %c16_i32_200 = arith.constant 16 : i32
    %318 = tpu.dynamic_rotate %313 by %c16_i32_200 dim 1 : vector<8x256xf32>, i32 -> vector<8x256xf32>
    %c1_201 = arith.constant 1 : index
    %c0_202 = arith.constant 0 : index
    %c0_203 = arith.constant 0 : index
    %319 = vector.load %arg2[%c1_201, %c0_202, %c0_203] : memref<8x8x256xf32, #tpu.memory_space<vmem>>, vector<1x8x256xf32>
    %320 = vector.shape_cast %319 : vector<1x8x256xf32> to vector<8x256xf32>
    %321 = arith.mulf %318, %320 : vector<8x256xf32>
    %c15_i32_204 = arith.constant 15 : i32
    %322 = tpu.dynamic_rotate %313 by %c15_i32_204 dim 1 : vector<8x256xf32>, i32 -> vector<8x256xf32>
    %c2_205 = arith.constant 2 : index
    %c0_206 = arith.constant 0 : index
    %c0_207 = arith.constant 0 : index
    %323 = vector.load %arg2[%c2_205, %c0_206, %c0_207] : memref<8x8x256xf32, #tpu.memory_space<vmem>>, vector<1x8x256xf32>
    %324 = vector.shape_cast %323 : vector<1x8x256xf32> to vector<8x256xf32>
    %325 = arith.mulf %322, %324 : vector<8x256xf32>
    %c1_i32_208 = arith.constant 1 : i32
    %326 = tpu.dynamic_rotate %313 by %c1_i32_208 dim 1 : vector<8x256xf32>, i32 -> vector<8x256xf32>
    %c3_209 = arith.constant 3 : index
    %c0_210 = arith.constant 0 : index
    %c0_211 = arith.constant 0 : index
    %327 = vector.load %arg2[%c3_209, %c0_210, %c0_211] : memref<8x8x256xf32, #tpu.memory_space<vmem>>, vector<1x8x256xf32>
    %328 = vector.shape_cast %327 : vector<1x8x256xf32> to vector<8x256xf32>
    %329 = arith.mulf %326, %328 : vector<8x256xf32>
    %c255_i32_212 = arith.constant 255 : i32
    %330 = tpu.dynamic_rotate %313 by %c255_i32_212 dim 1 : vector<8x256xf32>, i32 -> vector<8x256xf32>
    %c4_213 = arith.constant 4 : index
    %c0_214 = arith.constant 0 : index
    %c0_215 = arith.constant 0 : index
    %331 = vector.load %arg2[%c4_213, %c0_214, %c0_215] : memref<8x8x256xf32, #tpu.memory_space<vmem>>, vector<1x8x256xf32>
    %332 = vector.shape_cast %331 : vector<1x8x256xf32> to vector<8x256xf32>
    %333 = arith.mulf %330, %332 : vector<8x256xf32>
    %c241_i32_216 = arith.constant 241 : i32
    %334 = tpu.dynamic_rotate %313 by %c241_i32_216 dim 1 : vector<8x256xf32>, i32 -> vector<8x256xf32>
    %c5_217 = arith.constant 5 : index
    %c0_218 = arith.constant 0 : index
    %c0_219 = arith.constant 0 : index
    %335 = vector.load %arg2[%c5_217, %c0_218, %c0_219] : memref<8x8x256xf32, #tpu.memory_space<vmem>>, vector<1x8x256xf32>
    %336 = vector.shape_cast %335 : vector<1x8x256xf32> to vector<8x256xf32>
    %337 = arith.mulf %334, %336 : vector<8x256xf32>
    %c240_i32_220 = arith.constant 240 : i32
    %338 = tpu.dynamic_rotate %313 by %c240_i32_220 dim 1 : vector<8x256xf32>, i32 -> vector<8x256xf32>
    %c6_221 = arith.constant 6 : index
    %c0_222 = arith.constant 0 : index
    %c0_223 = arith.constant 0 : index
    %339 = vector.load %arg2[%c6_221, %c0_222, %c0_223] : memref<8x8x256xf32, #tpu.memory_space<vmem>>, vector<1x8x256xf32>
    %340 = vector.shape_cast %339 : vector<1x8x256xf32> to vector<8x256xf32>
    %341 = arith.mulf %338, %340 : vector<8x256xf32>
    %c239_i32_224 = arith.constant 239 : i32
    %342 = tpu.dynamic_rotate %313 by %c239_i32_224 dim 1 : vector<8x256xf32>, i32 -> vector<8x256xf32>
    %c7_225 = arith.constant 7 : index
    %c0_226 = arith.constant 0 : index
    %c0_227 = arith.constant 0 : index
    %343 = vector.load %arg2[%c7_225, %c0_226, %c0_227] : memref<8x8x256xf32, #tpu.memory_space<vmem>>, vector<1x8x256xf32>
    %344 = vector.shape_cast %343 : vector<1x8x256xf32> to vector<8x256xf32>
    %345 = arith.mulf %342, %344 : vector<8x256xf32>
    %346 = tpu.concatenate %317, %321, %325, %329, %313, %333, %337, %341, %345 in 0 : vector<8x256xf32>, vector<8x256xf32>, vector<8x256xf32>, vector<8x256xf32>, vector<8x256xf32>, vector<8x256xf32>, vector<8x256xf32>, vector<8x256xf32>, vector<8x256xf32> -> vector<72x256xf32>
    %347 = arith.truncf %346 : vector<72x256xf32> to vector<72x256xbf16>
    %c4_228 = arith.constant 4 : index
    %c0_229 = arith.constant 0 : index
    %c0_230 = arith.constant 0 : index
    %348 = vector.load %arg3[%c4_228, %c0_229, %c0_230] : memref<13x8x72xf32, #tpu.memory_space<vmem>>, vector<1x8x72xf32>
    %349 = vector.shape_cast %348 : vector<1x8x72xf32> to vector<8x72xf32>
    %350 = arith.truncf %349 : vector<8x72xf32> to vector<8x72xbf16>
    %cst_231 = arith.constant dense<0.000000e+00> : vector<8x256xf32>
    %351 = tpu.matmul %350, %347, %cst_231 {dimension_numbers = #tpu.dot_dimension_numbers<[1], [0], [0], [1], [0, 0, 1, 1], [], []>} : vector<8x72xbf16>, vector<72x256xbf16>, vector<8x256xf32> -> vector<8x256xf32>
    %c4_232 = arith.constant 4 : index
    %c0_233 = arith.constant 0 : index
    %c0_234 = arith.constant 0 : index
    %352 = vector.load %arg4[%c4_232, %c0_233, %c0_234] : memref<13x8x1xf32, #tpu.memory_space<vmem>>, vector<1x8x1xf32>
    %353 = vector.shape_cast %352 : vector<1x8x1xf32> to vector<8x1xf32>
    %354 = vector.broadcast %353 : vector<8x1xf32> to vector<8x256xf32>
    %355 = arith.addf %351, %354 : vector<8x256xf32>
    %cst_235 = arith.constant dense<0.000000e+00> : vector<8xf32>
    %356 = vector.multi_reduction <add>, %355, %cst_235 [1] : vector<8x256xf32> to vector<8xf32>
    %357 = vector.shape_cast %356 : vector<8xf32> to vector<8x1xf32>
    %358 = arith.mulf %355, %355 : vector<8x256xf32>
    %cst_236 = arith.constant dense<0.000000e+00> : vector<8xf32>
    %359 = vector.multi_reduction <add>, %358, %cst_236 [1] : vector<8x256xf32> to vector<8xf32>
    %360 = vector.shape_cast %359 : vector<8xf32> to vector<8x1xf32>
    %cst_237 = arith.constant 3.906250e-03 : f32
    %361 = vector.broadcast %cst_237 : f32 to vector<8x1xf32>
    %362 = arith.mulf %357, %361 : vector<8x1xf32>
    %cst_238 = arith.constant 3.906250e-03 : f32
    %363 = vector.broadcast %cst_238 : f32 to vector<8x1xf32>
    %364 = arith.mulf %360, %363 : vector<8x1xf32>
    %365 = arith.mulf %362, %362 : vector<8x1xf32>
    %366 = arith.subf %364, %365 : vector<8x1xf32>
    %367 = vector.broadcast %362 : vector<8x1xf32> to vector<8x256xf32>
    %368 = arith.subf %355, %367 : vector<8x256xf32>
    %cst_239 = arith.constant 9.99999974E-6 : f32
    %369 = vector.broadcast %cst_239 : f32 to vector<8x1xf32>
    %370 = arith.addf %366, %369 : vector<8x1xf32>
    %371 = math.rsqrt %370 : vector<8x1xf32>
    %372 = vector.broadcast %371 : vector<8x1xf32> to vector<8x256xf32>
    %373 = arith.mulf %368, %372 : vector<8x256xf32>
    %c4_240 = arith.constant 4 : index
    %c0_241 = arith.constant 0 : index
    %c0_242 = arith.constant 0 : index
    %374 = vector.load %arg5[%c4_240, %c0_241, %c0_242] : memref<13x8x1xf32, #tpu.memory_space<vmem>>, vector<1x8x1xf32>
    %375 = vector.shape_cast %374 : vector<1x8x1xf32> to vector<8x1xf32>
    %376 = vector.broadcast %375 : vector<8x1xf32> to vector<8x256xf32>
    %377 = arith.mulf %373, %376 : vector<8x256xf32>
    %c4_243 = arith.constant 4 : index
    %c0_244 = arith.constant 0 : index
    %c0_245 = arith.constant 0 : index
    %378 = vector.load %arg6[%c4_243, %c0_244, %c0_245] : memref<13x8x1xf32, #tpu.memory_space<vmem>>, vector<1x8x1xf32>
    %379 = vector.shape_cast %378 : vector<1x8x1xf32> to vector<8x1xf32>
    %380 = vector.broadcast %379 : vector<8x1xf32> to vector<8x256xf32>
    %381 = arith.addf %377, %380 : vector<8x256xf32>
    %cst_246 = arith.constant 0.000000e+00 : f32
    %382 = vector.broadcast %cst_246 : f32 to vector<8x256xf32>
    %383 = arith.cmpf oge, %381, %382 : vector<8x256xf32>
    %cst_247 = arith.constant 2.000000e-01 : f32
    %384 = vector.broadcast %cst_247 : f32 to vector<8x256xf32>
    %385 = arith.mulf %384, %381 : vector<8x256xf32>
    %386 = arith.select %383, %381, %385 : vector<8x256xi1>, vector<8x256xf32>
    %c17_i32_248 = arith.constant 17 : i32
    %387 = tpu.dynamic_rotate %386 by %c17_i32_248 dim 1 : vector<8x256xf32>, i32 -> vector<8x256xf32>
    %c0_249 = arith.constant 0 : index
    %c0_250 = arith.constant 0 : index
    %c0_251 = arith.constant 0 : index
    %388 = vector.load %arg2[%c0_249, %c0_250, %c0_251] : memref<8x8x256xf32, #tpu.memory_space<vmem>>, vector<1x8x256xf32>
    %389 = vector.shape_cast %388 : vector<1x8x256xf32> to vector<8x256xf32>
    %390 = arith.mulf %387, %389 : vector<8x256xf32>
    %c16_i32_252 = arith.constant 16 : i32
    %391 = tpu.dynamic_rotate %386 by %c16_i32_252 dim 1 : vector<8x256xf32>, i32 -> vector<8x256xf32>
    %c1_253 = arith.constant 1 : index
    %c0_254 = arith.constant 0 : index
    %c0_255 = arith.constant 0 : index
    %392 = vector.load %arg2[%c1_253, %c0_254, %c0_255] : memref<8x8x256xf32, #tpu.memory_space<vmem>>, vector<1x8x256xf32>
    %393 = vector.shape_cast %392 : vector<1x8x256xf32> to vector<8x256xf32>
    %394 = arith.mulf %391, %393 : vector<8x256xf32>
    %c15_i32_256 = arith.constant 15 : i32
    %395 = tpu.dynamic_rotate %386 by %c15_i32_256 dim 1 : vector<8x256xf32>, i32 -> vector<8x256xf32>
    %c2_257 = arith.constant 2 : index
    %c0_258 = arith.constant 0 : index
    %c0_259 = arith.constant 0 : index
    %396 = vector.load %arg2[%c2_257, %c0_258, %c0_259] : memref<8x8x256xf32, #tpu.memory_space<vmem>>, vector<1x8x256xf32>
    %397 = vector.shape_cast %396 : vector<1x8x256xf32> to vector<8x256xf32>
    %398 = arith.mulf %395, %397 : vector<8x256xf32>
    %c1_i32_260 = arith.constant 1 : i32
    %399 = tpu.dynamic_rotate %386 by %c1_i32_260 dim 1 : vector<8x256xf32>, i32 -> vector<8x256xf32>
    %c3_261 = arith.constant 3 : index
    %c0_262 = arith.constant 0 : index
    %c0_263 = arith.constant 0 : index
    %400 = vector.load %arg2[%c3_261, %c0_262, %c0_263] : memref<8x8x256xf32, #tpu.memory_space<vmem>>, vector<1x8x256xf32>
    %401 = vector.shape_cast %400 : vector<1x8x256xf32> to vector<8x256xf32>
    %402 = arith.mulf %399, %401 : vector<8x256xf32>
    %c255_i32_264 = arith.constant 255 : i32
    %403 = tpu.dynamic_rotate %386 by %c255_i32_264 dim 1 : vector<8x256xf32>, i32 -> vector<8x256xf32>
    %c4_265 = arith.constant 4 : index
    %c0_266 = arith.constant 0 : index
    %c0_267 = arith.constant 0 : index
    %404 = vector.load %arg2[%c4_265, %c0_266, %c0_267] : memref<8x8x256xf32, #tpu.memory_space<vmem>>, vector<1x8x256xf32>
    %405 = vector.shape_cast %404 : vector<1x8x256xf32> to vector<8x256xf32>
    %406 = arith.mulf %403, %405 : vector<8x256xf32>
    %c241_i32_268 = arith.constant 241 : i32
    %407 = tpu.dynamic_rotate %386 by %c241_i32_268 dim 1 : vector<8x256xf32>, i32 -> vector<8x256xf32>
    %c5_269 = arith.constant 5 : index
    %c0_270 = arith.constant 0 : index
    %c0_271 = arith.constant 0 : index
    %408 = vector.load %arg2[%c5_269, %c0_270, %c0_271] : memref<8x8x256xf32, #tpu.memory_space<vmem>>, vector<1x8x256xf32>
    %409 = vector.shape_cast %408 : vector<1x8x256xf32> to vector<8x256xf32>
    %410 = arith.mulf %407, %409 : vector<8x256xf32>
    %c240_i32_272 = arith.constant 240 : i32
    %411 = tpu.dynamic_rotate %386 by %c240_i32_272 dim 1 : vector<8x256xf32>, i32 -> vector<8x256xf32>
    %c6_273 = arith.constant 6 : index
    %c0_274 = arith.constant 0 : index
    %c0_275 = arith.constant 0 : index
    %412 = vector.load %arg2[%c6_273, %c0_274, %c0_275] : memref<8x8x256xf32, #tpu.memory_space<vmem>>, vector<1x8x256xf32>
    %413 = vector.shape_cast %412 : vector<1x8x256xf32> to vector<8x256xf32>
    %414 = arith.mulf %411, %413 : vector<8x256xf32>
    %c239_i32_276 = arith.constant 239 : i32
    %415 = tpu.dynamic_rotate %386 by %c239_i32_276 dim 1 : vector<8x256xf32>, i32 -> vector<8x256xf32>
    %c7_277 = arith.constant 7 : index
    %c0_278 = arith.constant 0 : index
    %c0_279 = arith.constant 0 : index
    %416 = vector.load %arg2[%c7_277, %c0_278, %c0_279] : memref<8x8x256xf32, #tpu.memory_space<vmem>>, vector<1x8x256xf32>
    %417 = vector.shape_cast %416 : vector<1x8x256xf32> to vector<8x256xf32>
    %418 = arith.mulf %415, %417 : vector<8x256xf32>
    %419 = tpu.concatenate %390, %394, %398, %402, %386, %406, %410, %414, %418 in 0 : vector<8x256xf32>, vector<8x256xf32>, vector<8x256xf32>, vector<8x256xf32>, vector<8x256xf32>, vector<8x256xf32>, vector<8x256xf32>, vector<8x256xf32>, vector<8x256xf32> -> vector<72x256xf32>
    %420 = arith.truncf %419 : vector<72x256xf32> to vector<72x256xbf16>
    %c5_280 = arith.constant 5 : index
    %c0_281 = arith.constant 0 : index
    %c0_282 = arith.constant 0 : index
    %421 = vector.load %arg3[%c5_280, %c0_281, %c0_282] : memref<13x8x72xf32, #tpu.memory_space<vmem>>, vector<1x8x72xf32>
    %422 = vector.shape_cast %421 : vector<1x8x72xf32> to vector<8x72xf32>
    %423 = arith.truncf %422 : vector<8x72xf32> to vector<8x72xbf16>
    %cst_283 = arith.constant dense<0.000000e+00> : vector<8x256xf32>
    %424 = tpu.matmul %423, %420, %cst_283 {dimension_numbers = #tpu.dot_dimension_numbers<[1], [0], [0], [1], [0, 0, 1, 1], [], []>} : vector<8x72xbf16>, vector<72x256xbf16>, vector<8x256xf32> -> vector<8x256xf32>
    %c5_284 = arith.constant 5 : index
    %c0_285 = arith.constant 0 : index
    %c0_286 = arith.constant 0 : index
    %425 = vector.load %arg4[%c5_284, %c0_285, %c0_286] : memref<13x8x1xf32, #tpu.memory_space<vmem>>, vector<1x8x1xf32>
    %426 = vector.shape_cast %425 : vector<1x8x1xf32> to vector<8x1xf32>
    %427 = vector.broadcast %426 : vector<8x1xf32> to vector<8x256xf32>
    %428 = arith.addf %424, %427 : vector<8x256xf32>
    %cst_287 = arith.constant dense<0.000000e+00> : vector<8xf32>
    %429 = vector.multi_reduction <add>, %428, %cst_287 [1] : vector<8x256xf32> to vector<8xf32>
    %430 = vector.shape_cast %429 : vector<8xf32> to vector<8x1xf32>
    %431 = arith.mulf %428, %428 : vector<8x256xf32>
    %cst_288 = arith.constant dense<0.000000e+00> : vector<8xf32>
    %432 = vector.multi_reduction <add>, %431, %cst_288 [1] : vector<8x256xf32> to vector<8xf32>
    %433 = vector.shape_cast %432 : vector<8xf32> to vector<8x1xf32>
    %cst_289 = arith.constant 3.906250e-03 : f32
    %434 = vector.broadcast %cst_289 : f32 to vector<8x1xf32>
    %435 = arith.mulf %430, %434 : vector<8x1xf32>
    %cst_290 = arith.constant 3.906250e-03 : f32
    %436 = vector.broadcast %cst_290 : f32 to vector<8x1xf32>
    %437 = arith.mulf %433, %436 : vector<8x1xf32>
    %438 = arith.mulf %435, %435 : vector<8x1xf32>
    %439 = arith.subf %437, %438 : vector<8x1xf32>
    %440 = vector.broadcast %435 : vector<8x1xf32> to vector<8x256xf32>
    %441 = arith.subf %428, %440 : vector<8x256xf32>
    %cst_291 = arith.constant 9.99999974E-6 : f32
    %442 = vector.broadcast %cst_291 : f32 to vector<8x1xf32>
    %443 = arith.addf %439, %442 : vector<8x1xf32>
    %444 = math.rsqrt %443 : vector<8x1xf32>
    %445 = vector.broadcast %444 : vector<8x1xf32> to vector<8x256xf32>
    %446 = arith.mulf %441, %445 : vector<8x256xf32>
    %c5_292 = arith.constant 5 : index
    %c0_293 = arith.constant 0 : index
    %c0_294 = arith.constant 0 : index
    %447 = vector.load %arg5[%c5_292, %c0_293, %c0_294] : memref<13x8x1xf32, #tpu.memory_space<vmem>>, vector<1x8x1xf32>
    %448 = vector.shape_cast %447 : vector<1x8x1xf32> to vector<8x1xf32>
    %449 = vector.broadcast %448 : vector<8x1xf32> to vector<8x256xf32>
    %450 = arith.mulf %446, %449 : vector<8x256xf32>
    %c5_295 = arith.constant 5 : index
    %c0_296 = arith.constant 0 : index
    %c0_297 = arith.constant 0 : index
    %451 = vector.load %arg6[%c5_295, %c0_296, %c0_297] : memref<13x8x1xf32, #tpu.memory_space<vmem>>, vector<1x8x1xf32>
    %452 = vector.shape_cast %451 : vector<1x8x1xf32> to vector<8x1xf32>
    %453 = vector.broadcast %452 : vector<8x1xf32> to vector<8x256xf32>
    %454 = arith.addf %450, %453 : vector<8x256xf32>
    %455 = arith.addf %454, %313 : vector<8x256xf32>
    %cst_298 = arith.constant 0.000000e+00 : f32
    %456 = vector.broadcast %cst_298 : f32 to vector<8x256xf32>
    %457 = arith.cmpf oge, %455, %456 : vector<8x256xf32>
    %cst_299 = arith.constant 2.000000e-01 : f32
    %458 = vector.broadcast %cst_299 : f32 to vector<8x256xf32>
    %459 = arith.mulf %458, %455 : vector<8x256xf32>
    %460 = arith.select %457, %455, %459 : vector<8x256xi1>, vector<8x256xf32>
    %c17_i32_300 = arith.constant 17 : i32
    %461 = tpu.dynamic_rotate %460 by %c17_i32_300 dim 1 : vector<8x256xf32>, i32 -> vector<8x256xf32>
    %c0_301 = arith.constant 0 : index
    %c0_302 = arith.constant 0 : index
    %c0_303 = arith.constant 0 : index
    %462 = vector.load %arg2[%c0_301, %c0_302, %c0_303] : memref<8x8x256xf32, #tpu.memory_space<vmem>>, vector<1x8x256xf32>
    %463 = vector.shape_cast %462 : vector<1x8x256xf32> to vector<8x256xf32>
    %464 = arith.mulf %461, %463 : vector<8x256xf32>
    %c16_i32_304 = arith.constant 16 : i32
    %465 = tpu.dynamic_rotate %460 by %c16_i32_304 dim 1 : vector<8x256xf32>, i32 -> vector<8x256xf32>
    %c1_305 = arith.constant 1 : index
    %c0_306 = arith.constant 0 : index
    %c0_307 = arith.constant 0 : index
    %466 = vector.load %arg2[%c1_305, %c0_306, %c0_307] : memref<8x8x256xf32, #tpu.memory_space<vmem>>, vector<1x8x256xf32>
    %467 = vector.shape_cast %466 : vector<1x8x256xf32> to vector<8x256xf32>
    %468 = arith.mulf %465, %467 : vector<8x256xf32>
    %c15_i32_308 = arith.constant 15 : i32
    %469 = tpu.dynamic_rotate %460 by %c15_i32_308 dim 1 : vector<8x256xf32>, i32 -> vector<8x256xf32>
    %c2_309 = arith.constant 2 : index
    %c0_310 = arith.constant 0 : index
    %c0_311 = arith.constant 0 : index
    %470 = vector.load %arg2[%c2_309, %c0_310, %c0_311] : memref<8x8x256xf32, #tpu.memory_space<vmem>>, vector<1x8x256xf32>
    %471 = vector.shape_cast %470 : vector<1x8x256xf32> to vector<8x256xf32>
    %472 = arith.mulf %469, %471 : vector<8x256xf32>
    %c1_i32_312 = arith.constant 1 : i32
    %473 = tpu.dynamic_rotate %460 by %c1_i32_312 dim 1 : vector<8x256xf32>, i32 -> vector<8x256xf32>
    %c3_313 = arith.constant 3 : index
    %c0_314 = arith.constant 0 : index
    %c0_315 = arith.constant 0 : index
    %474 = vector.load %arg2[%c3_313, %c0_314, %c0_315] : memref<8x8x256xf32, #tpu.memory_space<vmem>>, vector<1x8x256xf32>
    %475 = vector.shape_cast %474 : vector<1x8x256xf32> to vector<8x256xf32>
    %476 = arith.mulf %473, %475 : vector<8x256xf32>
    %c255_i32_316 = arith.constant 255 : i32
    %477 = tpu.dynamic_rotate %460 by %c255_i32_316 dim 1 : vector<8x256xf32>, i32 -> vector<8x256xf32>
    %c4_317 = arith.constant 4 : index
    %c0_318 = arith.constant 0 : index
    %c0_319 = arith.constant 0 : index
    %478 = vector.load %arg2[%c4_317, %c0_318, %c0_319] : memref<8x8x256xf32, #tpu.memory_space<vmem>>, vector<1x8x256xf32>
    %479 = vector.shape_cast %478 : vector<1x8x256xf32> to vector<8x256xf32>
    %480 = arith.mulf %477, %479 : vector<8x256xf32>
    %c241_i32_320 = arith.constant 241 : i32
    %481 = tpu.dynamic_rotate %460 by %c241_i32_320 dim 1 : vector<8x256xf32>, i32 -> vector<8x256xf32>
    %c5_321 = arith.constant 5 : index
    %c0_322 = arith.constant 0 : index
    %c0_323 = arith.constant 0 : index
    %482 = vector.load %arg2[%c5_321, %c0_322, %c0_323] : memref<8x8x256xf32, #tpu.memory_space<vmem>>, vector<1x8x256xf32>
    %483 = vector.shape_cast %482 : vector<1x8x256xf32> to vector<8x256xf32>
    %484 = arith.mulf %481, %483 : vector<8x256xf32>
    %c240_i32_324 = arith.constant 240 : i32
    %485 = tpu.dynamic_rotate %460 by %c240_i32_324 dim 1 : vector<8x256xf32>, i32 -> vector<8x256xf32>
    %c6_325 = arith.constant 6 : index
    %c0_326 = arith.constant 0 : index
    %c0_327 = arith.constant 0 : index
    %486 = vector.load %arg2[%c6_325, %c0_326, %c0_327] : memref<8x8x256xf32, #tpu.memory_space<vmem>>, vector<1x8x256xf32>
    %487 = vector.shape_cast %486 : vector<1x8x256xf32> to vector<8x256xf32>
    %488 = arith.mulf %485, %487 : vector<8x256xf32>
    %c239_i32_328 = arith.constant 239 : i32
    %489 = tpu.dynamic_rotate %460 by %c239_i32_328 dim 1 : vector<8x256xf32>, i32 -> vector<8x256xf32>
    %c7_329 = arith.constant 7 : index
    %c0_330 = arith.constant 0 : index
    %c0_331 = arith.constant 0 : index
    %490 = vector.load %arg2[%c7_329, %c0_330, %c0_331] : memref<8x8x256xf32, #tpu.memory_space<vmem>>, vector<1x8x256xf32>
    %491 = vector.shape_cast %490 : vector<1x8x256xf32> to vector<8x256xf32>
    %492 = arith.mulf %489, %491 : vector<8x256xf32>
    %493 = tpu.concatenate %464, %468, %472, %476, %460, %480, %484, %488, %492 in 0 : vector<8x256xf32>, vector<8x256xf32>, vector<8x256xf32>, vector<8x256xf32>, vector<8x256xf32>, vector<8x256xf32>, vector<8x256xf32>, vector<8x256xf32>, vector<8x256xf32> -> vector<72x256xf32>
    %494 = arith.truncf %493 : vector<72x256xf32> to vector<72x256xbf16>
    %c6_332 = arith.constant 6 : index
    %c0_333 = arith.constant 0 : index
    %c0_334 = arith.constant 0 : index
    %495 = vector.load %arg3[%c6_332, %c0_333, %c0_334] : memref<13x8x72xf32, #tpu.memory_space<vmem>>, vector<1x8x72xf32>
    %496 = vector.shape_cast %495 : vector<1x8x72xf32> to vector<8x72xf32>
    %497 = arith.truncf %496 : vector<8x72xf32> to vector<8x72xbf16>
    %cst_335 = arith.constant dense<0.000000e+00> : vector<8x256xf32>
    %498 = tpu.matmul %497, %494, %cst_335 {dimension_numbers = #tpu.dot_dimension_numbers<[1], [0], [0], [1], [0, 0, 1, 1], [], []>} : vector<8x72xbf16>, vector<72x256xbf16>, vector<8x256xf32> -> vector<8x256xf32>
    %c6_336 = arith.constant 6 : index
    %c0_337 = arith.constant 0 : index
    %c0_338 = arith.constant 0 : index
    %499 = vector.load %arg4[%c6_336, %c0_337, %c0_338] : memref<13x8x1xf32, #tpu.memory_space<vmem>>, vector<1x8x1xf32>
    %500 = vector.shape_cast %499 : vector<1x8x1xf32> to vector<8x1xf32>
    %501 = vector.broadcast %500 : vector<8x1xf32> to vector<8x256xf32>
    %502 = arith.addf %498, %501 : vector<8x256xf32>
    %cst_339 = arith.constant dense<0.000000e+00> : vector<8xf32>
    %503 = vector.multi_reduction <add>, %502, %cst_339 [1] : vector<8x256xf32> to vector<8xf32>
    %504 = vector.shape_cast %503 : vector<8xf32> to vector<8x1xf32>
    %505 = arith.mulf %502, %502 : vector<8x256xf32>
    %cst_340 = arith.constant dense<0.000000e+00> : vector<8xf32>
    %506 = vector.multi_reduction <add>, %505, %cst_340 [1] : vector<8x256xf32> to vector<8xf32>
    %507 = vector.shape_cast %506 : vector<8xf32> to vector<8x1xf32>
    %cst_341 = arith.constant 3.906250e-03 : f32
    %508 = vector.broadcast %cst_341 : f32 to vector<8x1xf32>
    %509 = arith.mulf %504, %508 : vector<8x1xf32>
    %cst_342 = arith.constant 3.906250e-03 : f32
    %510 = vector.broadcast %cst_342 : f32 to vector<8x1xf32>
    %511 = arith.mulf %507, %510 : vector<8x1xf32>
    %512 = arith.mulf %509, %509 : vector<8x1xf32>
    %513 = arith.subf %511, %512 : vector<8x1xf32>
    %514 = vector.broadcast %509 : vector<8x1xf32> to vector<8x256xf32>
    %515 = arith.subf %502, %514 : vector<8x256xf32>
    %cst_343 = arith.constant 9.99999974E-6 : f32
    %516 = vector.broadcast %cst_343 : f32 to vector<8x1xf32>
    %517 = arith.addf %513, %516 : vector<8x1xf32>
    %518 = math.rsqrt %517 : vector<8x1xf32>
    %519 = vector.broadcast %518 : vector<8x1xf32> to vector<8x256xf32>
    %520 = arith.mulf %515, %519 : vector<8x256xf32>
    %c6_344 = arith.constant 6 : index
    %c0_345 = arith.constant 0 : index
    %c0_346 = arith.constant 0 : index
    %521 = vector.load %arg5[%c6_344, %c0_345, %c0_346] : memref<13x8x1xf32, #tpu.memory_space<vmem>>, vector<1x8x1xf32>
    %522 = vector.shape_cast %521 : vector<1x8x1xf32> to vector<8x1xf32>
    %523 = vector.broadcast %522 : vector<8x1xf32> to vector<8x256xf32>
    %524 = arith.mulf %520, %523 : vector<8x256xf32>
    %c6_347 = arith.constant 6 : index
    %c0_348 = arith.constant 0 : index
    %c0_349 = arith.constant 0 : index
    %525 = vector.load %arg6[%c6_347, %c0_348, %c0_349] : memref<13x8x1xf32, #tpu.memory_space<vmem>>, vector<1x8x1xf32>
    %526 = vector.shape_cast %525 : vector<1x8x1xf32> to vector<8x1xf32>
    %527 = vector.broadcast %526 : vector<8x1xf32> to vector<8x256xf32>
    %528 = arith.addf %524, %527 : vector<8x256xf32>
    %cst_350 = arith.constant 5.000000e-01 : f32
    %529 = vector.broadcast %cst_350 : f32 to vector<8x256xf32>
    %530 = arith.mulf %529, %528 : vector<8x256xf32>
    %cst_351 = arith.constant 4.471500e-02 : f32
    %531 = vector.broadcast %cst_351 : f32 to vector<8x256xf32>
    %532 = arith.mulf %531, %528 : vector<8x256xf32>
    %533 = arith.mulf %532, %528 : vector<8x256xf32>
    %534 = arith.mulf %533, %528 : vector<8x256xf32>
    %535 = arith.addf %528, %534 : vector<8x256xf32>
    %cst_352 = arith.constant 0.797884583 : f32
    %536 = vector.broadcast %cst_352 : f32 to vector<8x256xf32>
    %537 = arith.mulf %536, %535 : vector<8x256xf32>
    %538 = math.tanh %537 : vector<8x256xf32>
    %cst_353 = arith.constant 1.000000e+00 : f32
    %539 = vector.broadcast %cst_353 : f32 to vector<8x256xf32>
    %540 = arith.addf %539, %538 : vector<8x256xf32>
    %541 = arith.mulf %530, %540 : vector<8x256xf32>
    %c17_i32_354 = arith.constant 17 : i32
    %542 = tpu.dynamic_rotate %541 by %c17_i32_354 dim 1 : vector<8x256xf32>, i32 -> vector<8x256xf32>
    %c0_355 = arith.constant 0 : index
    %c0_356 = arith.constant 0 : index
    %c0_357 = arith.constant 0 : index
    %543 = vector.load %arg2[%c0_355, %c0_356, %c0_357] : memref<8x8x256xf32, #tpu.memory_space<vmem>>, vector<1x8x256xf32>
    %544 = vector.shape_cast %543 : vector<1x8x256xf32> to vector<8x256xf32>
    %545 = arith.mulf %542, %544 : vector<8x256xf32>
    %c16_i32_358 = arith.constant 16 : i32
    %546 = tpu.dynamic_rotate %541 by %c16_i32_358 dim 1 : vector<8x256xf32>, i32 -> vector<8x256xf32>
    %c1_359 = arith.constant 1 : index
    %c0_360 = arith.constant 0 : index
    %c0_361 = arith.constant 0 : index
    %547 = vector.load %arg2[%c1_359, %c0_360, %c0_361] : memref<8x8x256xf32, #tpu.memory_space<vmem>>, vector<1x8x256xf32>
    %548 = vector.shape_cast %547 : vector<1x8x256xf32> to vector<8x256xf32>
    %549 = arith.mulf %546, %548 : vector<8x256xf32>
    %c15_i32_362 = arith.constant 15 : i32
    %550 = tpu.dynamic_rotate %541 by %c15_i32_362 dim 1 : vector<8x256xf32>, i32 -> vector<8x256xf32>
    %c2_363 = arith.constant 2 : index
    %c0_364 = arith.constant 0 : index
    %c0_365 = arith.constant 0 : index
    %551 = vector.load %arg2[%c2_363, %c0_364, %c0_365] : memref<8x8x256xf32, #tpu.memory_space<vmem>>, vector<1x8x256xf32>
    %552 = vector.shape_cast %551 : vector<1x8x256xf32> to vector<8x256xf32>
    %553 = arith.mulf %550, %552 : vector<8x256xf32>
    %c1_i32_366 = arith.constant 1 : i32
    %554 = tpu.dynamic_rotate %541 by %c1_i32_366 dim 1 : vector<8x256xf32>, i32 -> vector<8x256xf32>
    %c3_367 = arith.constant 3 : index
    %c0_368 = arith.constant 0 : index
    %c0_369 = arith.constant 0 : index
    %555 = vector.load %arg2[%c3_367, %c0_368, %c0_369] : memref<8x8x256xf32, #tpu.memory_space<vmem>>, vector<1x8x256xf32>
    %556 = vector.shape_cast %555 : vector<1x8x256xf32> to vector<8x256xf32>
    %557 = arith.mulf %554, %556 : vector<8x256xf32>
    %c255_i32_370 = arith.constant 255 : i32
    %558 = tpu.dynamic_rotate %541 by %c255_i32_370 dim 1 : vector<8x256xf32>, i32 -> vector<8x256xf32>
    %c4_371 = arith.constant 4 : index
    %c0_372 = arith.constant 0 : index
    %c0_373 = arith.constant 0 : index
    %559 = vector.load %arg2[%c4_371, %c0_372, %c0_373] : memref<8x8x256xf32, #tpu.memory_space<vmem>>, vector<1x8x256xf32>
    %560 = vector.shape_cast %559 : vector<1x8x256xf32> to vector<8x256xf32>
    %561 = arith.mulf %558, %560 : vector<8x256xf32>
    %c241_i32_374 = arith.constant 241 : i32
    %562 = tpu.dynamic_rotate %541 by %c241_i32_374 dim 1 : vector<8x256xf32>, i32 -> vector<8x256xf32>
    %c5_375 = arith.constant 5 : index
    %c0_376 = arith.constant 0 : index
    %c0_377 = arith.constant 0 : index
    %563 = vector.load %arg2[%c5_375, %c0_376, %c0_377] : memref<8x8x256xf32, #tpu.memory_space<vmem>>, vector<1x8x256xf32>
    %564 = vector.shape_cast %563 : vector<1x8x256xf32> to vector<8x256xf32>
    %565 = arith.mulf %562, %564 : vector<8x256xf32>
    %c240_i32_378 = arith.constant 240 : i32
    %566 = tpu.dynamic_rotate %541 by %c240_i32_378 dim 1 : vector<8x256xf32>, i32 -> vector<8x256xf32>
    %c6_379 = arith.constant 6 : index
    %c0_380 = arith.constant 0 : index
    %c0_381 = arith.constant 0 : index
    %567 = vector.load %arg2[%c6_379, %c0_380, %c0_381] : memref<8x8x256xf32, #tpu.memory_space<vmem>>, vector<1x8x256xf32>
    %568 = vector.shape_cast %567 : vector<1x8x256xf32> to vector<8x256xf32>
    %569 = arith.mulf %566, %568 : vector<8x256xf32>
    %c239_i32_382 = arith.constant 239 : i32
    %570 = tpu.dynamic_rotate %541 by %c239_i32_382 dim 1 : vector<8x256xf32>, i32 -> vector<8x256xf32>
    %c7_383 = arith.constant 7 : index
    %c0_384 = arith.constant 0 : index
    %c0_385 = arith.constant 0 : index
    %571 = vector.load %arg2[%c7_383, %c0_384, %c0_385] : memref<8x8x256xf32, #tpu.memory_space<vmem>>, vector<1x8x256xf32>
    %572 = vector.shape_cast %571 : vector<1x8x256xf32> to vector<8x256xf32>
    %573 = arith.mulf %570, %572 : vector<8x256xf32>
    %574 = tpu.concatenate %545, %549, %553, %557, %541, %561, %565, %569, %573 in 0 : vector<8x256xf32>, vector<8x256xf32>, vector<8x256xf32>, vector<8x256xf32>, vector<8x256xf32>, vector<8x256xf32>, vector<8x256xf32>, vector<8x256xf32>, vector<8x256xf32> -> vector<72x256xf32>
    %575 = arith.truncf %574 : vector<72x256xf32> to vector<72x256xbf16>
    %c7_386 = arith.constant 7 : index
    %c0_387 = arith.constant 0 : index
    %c0_388 = arith.constant 0 : index
    %576 = vector.load %arg3[%c7_386, %c0_387, %c0_388] : memref<13x8x72xf32, #tpu.memory_space<vmem>>, vector<1x8x72xf32>
    %577 = vector.shape_cast %576 : vector<1x8x72xf32> to vector<8x72xf32>
    %578 = arith.truncf %577 : vector<8x72xf32> to vector<8x72xbf16>
    %cst_389 = arith.constant dense<0.000000e+00> : vector<8x256xf32>
    %579 = tpu.matmul %578, %575, %cst_389 {dimension_numbers = #tpu.dot_dimension_numbers<[1], [0], [0], [1], [0, 0, 1, 1], [], []>} : vector<8x72xbf16>, vector<72x256xbf16>, vector<8x256xf32> -> vector<8x256xf32>
    %c7_390 = arith.constant 7 : index
    %c0_391 = arith.constant 0 : index
    %c0_392 = arith.constant 0 : index
    %580 = vector.load %arg4[%c7_390, %c0_391, %c0_392] : memref<13x8x1xf32, #tpu.memory_space<vmem>>, vector<1x8x1xf32>
    %581 = vector.shape_cast %580 : vector<1x8x1xf32> to vector<8x1xf32>
    %582 = vector.broadcast %581 : vector<8x1xf32> to vector<8x256xf32>
    %583 = arith.addf %579, %582 : vector<8x256xf32>
    %cst_393 = arith.constant dense<0.000000e+00> : vector<8xf32>
    %584 = vector.multi_reduction <add>, %583, %cst_393 [1] : vector<8x256xf32> to vector<8xf32>
    %585 = vector.shape_cast %584 : vector<8xf32> to vector<8x1xf32>
    %586 = arith.mulf %583, %583 : vector<8x256xf32>
    %cst_394 = arith.constant dense<0.000000e+00> : vector<8xf32>
    %587 = vector.multi_reduction <add>, %586, %cst_394 [1] : vector<8x256xf32> to vector<8xf32>
    %588 = vector.shape_cast %587 : vector<8xf32> to vector<8x1xf32>
    %cst_395 = arith.constant 3.906250e-03 : f32
    %589 = vector.broadcast %cst_395 : f32 to vector<8x1xf32>
    %590 = arith.mulf %585, %589 : vector<8x1xf32>
    %cst_396 = arith.constant 3.906250e-03 : f32
    %591 = vector.broadcast %cst_396 : f32 to vector<8x1xf32>
    %592 = arith.mulf %588, %591 : vector<8x1xf32>
    %593 = arith.mulf %590, %590 : vector<8x1xf32>
    %594 = arith.subf %592, %593 : vector<8x1xf32>
    %595 = vector.broadcast %590 : vector<8x1xf32> to vector<8x256xf32>
    %596 = arith.subf %583, %595 : vector<8x256xf32>
    %cst_397 = arith.constant 9.99999974E-6 : f32
    %597 = vector.broadcast %cst_397 : f32 to vector<8x1xf32>
    %598 = arith.addf %594, %597 : vector<8x1xf32>
    %599 = math.rsqrt %598 : vector<8x1xf32>
    %600 = vector.broadcast %599 : vector<8x1xf32> to vector<8x256xf32>
    %601 = arith.mulf %596, %600 : vector<8x256xf32>
    %c7_398 = arith.constant 7 : index
    %c0_399 = arith.constant 0 : index
    %c0_400 = arith.constant 0 : index
    %602 = vector.load %arg5[%c7_398, %c0_399, %c0_400] : memref<13x8x1xf32, #tpu.memory_space<vmem>>, vector<1x8x1xf32>
    %603 = vector.shape_cast %602 : vector<1x8x1xf32> to vector<8x1xf32>
    %604 = vector.broadcast %603 : vector<8x1xf32> to vector<8x256xf32>
    %605 = arith.mulf %601, %604 : vector<8x256xf32>
    %c7_401 = arith.constant 7 : index
    %c0_402 = arith.constant 0 : index
    %c0_403 = arith.constant 0 : index
    %606 = vector.load %arg6[%c7_401, %c0_402, %c0_403] : memref<13x8x1xf32, #tpu.memory_space<vmem>>, vector<1x8x1xf32>
    %607 = vector.shape_cast %606 : vector<1x8x1xf32> to vector<8x1xf32>
    %608 = vector.broadcast %607 : vector<8x1xf32> to vector<8x256xf32>
    %609 = arith.addf %605, %608 : vector<8x256xf32>
    %610 = arith.addf %609, %460 : vector<8x256xf32>
    %cst_404 = arith.constant 5.000000e-01 : f32
    %611 = vector.broadcast %cst_404 : f32 to vector<8x256xf32>
    %612 = arith.mulf %611, %610 : vector<8x256xf32>
    %cst_405 = arith.constant 4.471500e-02 : f32
    %613 = vector.broadcast %cst_405 : f32 to vector<8x256xf32>
    %614 = arith.mulf %613, %610 : vector<8x256xf32>
    %615 = arith.mulf %614, %610 : vector<8x256xf32>
    %616 = arith.mulf %615, %610 : vector<8x256xf32>
    %617 = arith.addf %610, %616 : vector<8x256xf32>
    %cst_406 = arith.constant 0.797884583 : f32
    %618 = vector.broadcast %cst_406 : f32 to vector<8x256xf32>
    %619 = arith.mulf %618, %617 : vector<8x256xf32>
    %620 = math.tanh %619 : vector<8x256xf32>
    %cst_407 = arith.constant 1.000000e+00 : f32
    %621 = vector.broadcast %cst_407 : f32 to vector<8x256xf32>
    %622 = arith.addf %621, %620 : vector<8x256xf32>
    %623 = arith.mulf %612, %622 : vector<8x256xf32>
    %c17_i32_408 = arith.constant 17 : i32
    %624 = tpu.dynamic_rotate %623 by %c17_i32_408 dim 1 : vector<8x256xf32>, i32 -> vector<8x256xf32>
    %c0_409 = arith.constant 0 : index
    %c0_410 = arith.constant 0 : index
    %c0_411 = arith.constant 0 : index
    %625 = vector.load %arg2[%c0_409, %c0_410, %c0_411] : memref<8x8x256xf32, #tpu.memory_space<vmem>>, vector<1x8x256xf32>
    %626 = vector.shape_cast %625 : vector<1x8x256xf32> to vector<8x256xf32>
    %627 = arith.mulf %624, %626 : vector<8x256xf32>
    %c16_i32_412 = arith.constant 16 : i32
    %628 = tpu.dynamic_rotate %623 by %c16_i32_412 dim 1 : vector<8x256xf32>, i32 -> vector<8x256xf32>
    %c1_413 = arith.constant 1 : index
    %c0_414 = arith.constant 0 : index
    %c0_415 = arith.constant 0 : index
    %629 = vector.load %arg2[%c1_413, %c0_414, %c0_415] : memref<8x8x256xf32, #tpu.memory_space<vmem>>, vector<1x8x256xf32>
    %630 = vector.shape_cast %629 : vector<1x8x256xf32> to vector<8x256xf32>
    %631 = arith.mulf %628, %630 : vector<8x256xf32>
    %c15_i32_416 = arith.constant 15 : i32
    %632 = tpu.dynamic_rotate %623 by %c15_i32_416 dim 1 : vector<8x256xf32>, i32 -> vector<8x256xf32>
    %c2_417 = arith.constant 2 : index
    %c0_418 = arith.constant 0 : index
    %c0_419 = arith.constant 0 : index
    %633 = vector.load %arg2[%c2_417, %c0_418, %c0_419] : memref<8x8x256xf32, #tpu.memory_space<vmem>>, vector<1x8x256xf32>
    %634 = vector.shape_cast %633 : vector<1x8x256xf32> to vector<8x256xf32>
    %635 = arith.mulf %632, %634 : vector<8x256xf32>
    %c1_i32_420 = arith.constant 1 : i32
    %636 = tpu.dynamic_rotate %623 by %c1_i32_420 dim 1 : vector<8x256xf32>, i32 -> vector<8x256xf32>
    %c3_421 = arith.constant 3 : index
    %c0_422 = arith.constant 0 : index
    %c0_423 = arith.constant 0 : index
    %637 = vector.load %arg2[%c3_421, %c0_422, %c0_423] : memref<8x8x256xf32, #tpu.memory_space<vmem>>, vector<1x8x256xf32>
    %638 = vector.shape_cast %637 : vector<1x8x256xf32> to vector<8x256xf32>
    %639 = arith.mulf %636, %638 : vector<8x256xf32>
    %c255_i32_424 = arith.constant 255 : i32
    %640 = tpu.dynamic_rotate %623 by %c255_i32_424 dim 1 : vector<8x256xf32>, i32 -> vector<8x256xf32>
    %c4_425 = arith.constant 4 : index
    %c0_426 = arith.constant 0 : index
    %c0_427 = arith.constant 0 : index
    %641 = vector.load %arg2[%c4_425, %c0_426, %c0_427] : memref<8x8x256xf32, #tpu.memory_space<vmem>>, vector<1x8x256xf32>
    %642 = vector.shape_cast %641 : vector<1x8x256xf32> to vector<8x256xf32>
    %643 = arith.mulf %640, %642 : vector<8x256xf32>
    %c241_i32_428 = arith.constant 241 : i32
    %644 = tpu.dynamic_rotate %623 by %c241_i32_428 dim 1 : vector<8x256xf32>, i32 -> vector<8x256xf32>
    %c5_429 = arith.constant 5 : index
    %c0_430 = arith.constant 0 : index
    %c0_431 = arith.constant 0 : index
    %645 = vector.load %arg2[%c5_429, %c0_430, %c0_431] : memref<8x8x256xf32, #tpu.memory_space<vmem>>, vector<1x8x256xf32>
    %646 = vector.shape_cast %645 : vector<1x8x256xf32> to vector<8x256xf32>
    %647 = arith.mulf %644, %646 : vector<8x256xf32>
    %c240_i32_432 = arith.constant 240 : i32
    %648 = tpu.dynamic_rotate %623 by %c240_i32_432 dim 1 : vector<8x256xf32>, i32 -> vector<8x256xf32>
    %c6_433 = arith.constant 6 : index
    %c0_434 = arith.constant 0 : index
    %c0_435 = arith.constant 0 : index
    %649 = vector.load %arg2[%c6_433, %c0_434, %c0_435] : memref<8x8x256xf32, #tpu.memory_space<vmem>>, vector<1x8x256xf32>
    %650 = vector.shape_cast %649 : vector<1x8x256xf32> to vector<8x256xf32>
    %651 = arith.mulf %648, %650 : vector<8x256xf32>
    %c239_i32_436 = arith.constant 239 : i32
    %652 = tpu.dynamic_rotate %623 by %c239_i32_436 dim 1 : vector<8x256xf32>, i32 -> vector<8x256xf32>
    %c7_437 = arith.constant 7 : index
    %c0_438 = arith.constant 0 : index
    %c0_439 = arith.constant 0 : index
    %653 = vector.load %arg2[%c7_437, %c0_438, %c0_439] : memref<8x8x256xf32, #tpu.memory_space<vmem>>, vector<1x8x256xf32>
    %654 = vector.shape_cast %653 : vector<1x8x256xf32> to vector<8x256xf32>
    %655 = arith.mulf %652, %654 : vector<8x256xf32>
    %656 = tpu.concatenate %627, %631, %635, %639, %623, %643, %647, %651, %655 in 0 : vector<8x256xf32>, vector<8x256xf32>, vector<8x256xf32>, vector<8x256xf32>, vector<8x256xf32>, vector<8x256xf32>, vector<8x256xf32>, vector<8x256xf32>, vector<8x256xf32> -> vector<72x256xf32>
    %657 = arith.truncf %656 : vector<72x256xf32> to vector<72x256xbf16>
    %c8 = arith.constant 8 : index
    %c0_440 = arith.constant 0 : index
    %c0_441 = arith.constant 0 : index
    %658 = vector.load %arg3[%c8, %c0_440, %c0_441] : memref<13x8x72xf32, #tpu.memory_space<vmem>>, vector<1x8x72xf32>
    %659 = vector.shape_cast %658 : vector<1x8x72xf32> to vector<8x72xf32>
    %660 = arith.truncf %659 : vector<8x72xf32> to vector<8x72xbf16>
    %cst_442 = arith.constant dense<0.000000e+00> : vector<8x256xf32>
    %661 = tpu.matmul %660, %657, %cst_442 {dimension_numbers = #tpu.dot_dimension_numbers<[1], [0], [0], [1], [0, 0, 1, 1], [], []>} : vector<8x72xbf16>, vector<72x256xbf16>, vector<8x256xf32> -> vector<8x256xf32>
    %c8_443 = arith.constant 8 : index
    %c0_444 = arith.constant 0 : index
    %c0_445 = arith.constant 0 : index
    %662 = vector.load %arg4[%c8_443, %c0_444, %c0_445] : memref<13x8x1xf32, #tpu.memory_space<vmem>>, vector<1x8x1xf32>
    %663 = vector.shape_cast %662 : vector<1x8x1xf32> to vector<8x1xf32>
    %664 = vector.broadcast %663 : vector<8x1xf32> to vector<8x256xf32>
    %665 = arith.addf %661, %664 : vector<8x256xf32>
    %cst_446 = arith.constant dense<0.000000e+00> : vector<8xf32>
    %666 = vector.multi_reduction <add>, %665, %cst_446 [1] : vector<8x256xf32> to vector<8xf32>
    %667 = vector.shape_cast %666 : vector<8xf32> to vector<8x1xf32>
    %668 = arith.mulf %665, %665 : vector<8x256xf32>
    %cst_447 = arith.constant dense<0.000000e+00> : vector<8xf32>
    %669 = vector.multi_reduction <add>, %668, %cst_447 [1] : vector<8x256xf32> to vector<8xf32>
    %670 = vector.shape_cast %669 : vector<8xf32> to vector<8x1xf32>
    %cst_448 = arith.constant 3.906250e-03 : f32
    %671 = vector.broadcast %cst_448 : f32 to vector<8x1xf32>
    %672 = arith.mulf %667, %671 : vector<8x1xf32>
    %cst_449 = arith.constant 3.906250e-03 : f32
    %673 = vector.broadcast %cst_449 : f32 to vector<8x1xf32>
    %674 = arith.mulf %670, %673 : vector<8x1xf32>
    %675 = arith.mulf %672, %672 : vector<8x1xf32>
    %676 = arith.subf %674, %675 : vector<8x1xf32>
    %677 = vector.broadcast %672 : vector<8x1xf32> to vector<8x256xf32>
    %678 = arith.subf %665, %677 : vector<8x256xf32>
    %cst_450 = arith.constant 9.99999974E-6 : f32
    %679 = vector.broadcast %cst_450 : f32 to vector<8x1xf32>
    %680 = arith.addf %676, %679 : vector<8x1xf32>
    %681 = math.rsqrt %680 : vector<8x1xf32>
    %682 = vector.broadcast %681 : vector<8x1xf32> to vector<8x256xf32>
    %683 = arith.mulf %678, %682 : vector<8x256xf32>
    %c8_451 = arith.constant 8 : index
    %c0_452 = arith.constant 0 : index
    %c0_453 = arith.constant 0 : index
    %684 = vector.load %arg5[%c8_451, %c0_452, %c0_453] : memref<13x8x1xf32, #tpu.memory_space<vmem>>, vector<1x8x1xf32>
    %685 = vector.shape_cast %684 : vector<1x8x1xf32> to vector<8x1xf32>
    %686 = vector.broadcast %685 : vector<8x1xf32> to vector<8x256xf32>
    %687 = arith.mulf %683, %686 : vector<8x256xf32>
    %c8_454 = arith.constant 8 : index
    %c0_455 = arith.constant 0 : index
    %c0_456 = arith.constant 0 : index
    %688 = vector.load %arg6[%c8_454, %c0_455, %c0_456] : memref<13x8x1xf32, #tpu.memory_space<vmem>>, vector<1x8x1xf32>
    %689 = vector.shape_cast %688 : vector<1x8x1xf32> to vector<8x1xf32>
    %690 = vector.broadcast %689 : vector<8x1xf32> to vector<8x256xf32>
    %691 = arith.addf %687, %690 : vector<8x256xf32>
    %692 = arith.negf %691 : vector<8x256xf32>
    %693 = math.exp %692 : vector<8x256xf32>
    %cst_457 = arith.constant 1.000000e+00 : f32
    %694 = vector.broadcast %cst_457 : f32 to vector<8x256xf32>
    %695 = arith.addf %694, %693 : vector<8x256xf32>
    %696 = arith.divf %694, %695 : vector<8x256xf32>
    %697 = arith.mulf %691, %696 : vector<8x256xf32>
    %c17_i32_458 = arith.constant 17 : i32
    %698 = tpu.dynamic_rotate %697 by %c17_i32_458 dim 1 : vector<8x256xf32>, i32 -> vector<8x256xf32>
    %c0_459 = arith.constant 0 : index
    %c0_460 = arith.constant 0 : index
    %c0_461 = arith.constant 0 : index
    %699 = vector.load %arg2[%c0_459, %c0_460, %c0_461] : memref<8x8x256xf32, #tpu.memory_space<vmem>>, vector<1x8x256xf32>
    %700 = vector.shape_cast %699 : vector<1x8x256xf32> to vector<8x256xf32>
    %701 = arith.mulf %698, %700 : vector<8x256xf32>
    %c16_i32_462 = arith.constant 16 : i32
    %702 = tpu.dynamic_rotate %697 by %c16_i32_462 dim 1 : vector<8x256xf32>, i32 -> vector<8x256xf32>
    %c1_463 = arith.constant 1 : index
    %c0_464 = arith.constant 0 : index
    %c0_465 = arith.constant 0 : index
    %703 = vector.load %arg2[%c1_463, %c0_464, %c0_465] : memref<8x8x256xf32, #tpu.memory_space<vmem>>, vector<1x8x256xf32>
    %704 = vector.shape_cast %703 : vector<1x8x256xf32> to vector<8x256xf32>
    %705 = arith.mulf %702, %704 : vector<8x256xf32>
    %c15_i32_466 = arith.constant 15 : i32
    %706 = tpu.dynamic_rotate %697 by %c15_i32_466 dim 1 : vector<8x256xf32>, i32 -> vector<8x256xf32>
    %c2_467 = arith.constant 2 : index
    %c0_468 = arith.constant 0 : index
    %c0_469 = arith.constant 0 : index
    %707 = vector.load %arg2[%c2_467, %c0_468, %c0_469] : memref<8x8x256xf32, #tpu.memory_space<vmem>>, vector<1x8x256xf32>
    %708 = vector.shape_cast %707 : vector<1x8x256xf32> to vector<8x256xf32>
    %709 = arith.mulf %706, %708 : vector<8x256xf32>
    %c1_i32_470 = arith.constant 1 : i32
    %710 = tpu.dynamic_rotate %697 by %c1_i32_470 dim 1 : vector<8x256xf32>, i32 -> vector<8x256xf32>
    %c3_471 = arith.constant 3 : index
    %c0_472 = arith.constant 0 : index
    %c0_473 = arith.constant 0 : index
    %711 = vector.load %arg2[%c3_471, %c0_472, %c0_473] : memref<8x8x256xf32, #tpu.memory_space<vmem>>, vector<1x8x256xf32>
    %712 = vector.shape_cast %711 : vector<1x8x256xf32> to vector<8x256xf32>
    %713 = arith.mulf %710, %712 : vector<8x256xf32>
    %c255_i32_474 = arith.constant 255 : i32
    %714 = tpu.dynamic_rotate %697 by %c255_i32_474 dim 1 : vector<8x256xf32>, i32 -> vector<8x256xf32>
    %c4_475 = arith.constant 4 : index
    %c0_476 = arith.constant 0 : index
    %c0_477 = arith.constant 0 : index
    %715 = vector.load %arg2[%c4_475, %c0_476, %c0_477] : memref<8x8x256xf32, #tpu.memory_space<vmem>>, vector<1x8x256xf32>
    %716 = vector.shape_cast %715 : vector<1x8x256xf32> to vector<8x256xf32>
    %717 = arith.mulf %714, %716 : vector<8x256xf32>
    %c241_i32_478 = arith.constant 241 : i32
    %718 = tpu.dynamic_rotate %697 by %c241_i32_478 dim 1 : vector<8x256xf32>, i32 -> vector<8x256xf32>
    %c5_479 = arith.constant 5 : index
    %c0_480 = arith.constant 0 : index
    %c0_481 = arith.constant 0 : index
    %719 = vector.load %arg2[%c5_479, %c0_480, %c0_481] : memref<8x8x256xf32, #tpu.memory_space<vmem>>, vector<1x8x256xf32>
    %720 = vector.shape_cast %719 : vector<1x8x256xf32> to vector<8x256xf32>
    %721 = arith.mulf %718, %720 : vector<8x256xf32>
    %c240_i32_482 = arith.constant 240 : i32
    %722 = tpu.dynamic_rotate %697 by %c240_i32_482 dim 1 : vector<8x256xf32>, i32 -> vector<8x256xf32>
    %c6_483 = arith.constant 6 : index
    %c0_484 = arith.constant 0 : index
    %c0_485 = arith.constant 0 : index
    %723 = vector.load %arg2[%c6_483, %c0_484, %c0_485] : memref<8x8x256xf32, #tpu.memory_space<vmem>>, vector<1x8x256xf32>
    %724 = vector.shape_cast %723 : vector<1x8x256xf32> to vector<8x256xf32>
    %725 = arith.mulf %722, %724 : vector<8x256xf32>
    %c239_i32_486 = arith.constant 239 : i32
    %726 = tpu.dynamic_rotate %697 by %c239_i32_486 dim 1 : vector<8x256xf32>, i32 -> vector<8x256xf32>
    %c7_487 = arith.constant 7 : index
    %c0_488 = arith.constant 0 : index
    %c0_489 = arith.constant 0 : index
    %727 = vector.load %arg2[%c7_487, %c0_488, %c0_489] : memref<8x8x256xf32, #tpu.memory_space<vmem>>, vector<1x8x256xf32>
    %728 = vector.shape_cast %727 : vector<1x8x256xf32> to vector<8x256xf32>
    %729 = arith.mulf %726, %728 : vector<8x256xf32>
    %730 = tpu.concatenate %701, %705, %709, %713, %697, %717, %721, %725, %729 in 0 : vector<8x256xf32>, vector<8x256xf32>, vector<8x256xf32>, vector<8x256xf32>, vector<8x256xf32>, vector<8x256xf32>, vector<8x256xf32>, vector<8x256xf32>, vector<8x256xf32> -> vector<72x256xf32>
    %731 = arith.truncf %730 : vector<72x256xf32> to vector<72x256xbf16>
    %c9 = arith.constant 9 : index
    %c0_490 = arith.constant 0 : index
    %c0_491 = arith.constant 0 : index
    %732 = vector.load %arg3[%c9, %c0_490, %c0_491] : memref<13x8x72xf32, #tpu.memory_space<vmem>>, vector<1x8x72xf32>
    %733 = vector.shape_cast %732 : vector<1x8x72xf32> to vector<8x72xf32>
    %734 = arith.truncf %733 : vector<8x72xf32> to vector<8x72xbf16>
    %cst_492 = arith.constant dense<0.000000e+00> : vector<8x256xf32>
    %735 = tpu.matmul %734, %731, %cst_492 {dimension_numbers = #tpu.dot_dimension_numbers<[1], [0], [0], [1], [0, 0, 1, 1], [], []>} : vector<8x72xbf16>, vector<72x256xbf16>, vector<8x256xf32> -> vector<8x256xf32>
    %c9_493 = arith.constant 9 : index
    %c0_494 = arith.constant 0 : index
    %c0_495 = arith.constant 0 : index
    %736 = vector.load %arg4[%c9_493, %c0_494, %c0_495] : memref<13x8x1xf32, #tpu.memory_space<vmem>>, vector<1x8x1xf32>
    %737 = vector.shape_cast %736 : vector<1x8x1xf32> to vector<8x1xf32>
    %738 = vector.broadcast %737 : vector<8x1xf32> to vector<8x256xf32>
    %739 = arith.addf %735, %738 : vector<8x256xf32>
    %cst_496 = arith.constant dense<0.000000e+00> : vector<8xf32>
    %740 = vector.multi_reduction <add>, %739, %cst_496 [1] : vector<8x256xf32> to vector<8xf32>
    %741 = vector.shape_cast %740 : vector<8xf32> to vector<8x1xf32>
    %742 = arith.mulf %739, %739 : vector<8x256xf32>
    %cst_497 = arith.constant dense<0.000000e+00> : vector<8xf32>
    %743 = vector.multi_reduction <add>, %742, %cst_497 [1] : vector<8x256xf32> to vector<8xf32>
    %744 = vector.shape_cast %743 : vector<8xf32> to vector<8x1xf32>
    %cst_498 = arith.constant 3.906250e-03 : f32
    %745 = vector.broadcast %cst_498 : f32 to vector<8x1xf32>
    %746 = arith.mulf %741, %745 : vector<8x1xf32>
    %cst_499 = arith.constant 3.906250e-03 : f32
    %747 = vector.broadcast %cst_499 : f32 to vector<8x1xf32>
    %748 = arith.mulf %744, %747 : vector<8x1xf32>
    %749 = arith.mulf %746, %746 : vector<8x1xf32>
    %750 = arith.subf %748, %749 : vector<8x1xf32>
    %751 = vector.broadcast %746 : vector<8x1xf32> to vector<8x256xf32>
    %752 = arith.subf %739, %751 : vector<8x256xf32>
    %cst_500 = arith.constant 9.99999974E-6 : f32
    %753 = vector.broadcast %cst_500 : f32 to vector<8x1xf32>
    %754 = arith.addf %750, %753 : vector<8x1xf32>
    %755 = math.rsqrt %754 : vector<8x1xf32>
    %756 = vector.broadcast %755 : vector<8x1xf32> to vector<8x256xf32>
    %757 = arith.mulf %752, %756 : vector<8x256xf32>
    %c9_501 = arith.constant 9 : index
    %c0_502 = arith.constant 0 : index
    %c0_503 = arith.constant 0 : index
    %758 = vector.load %arg5[%c9_501, %c0_502, %c0_503] : memref<13x8x1xf32, #tpu.memory_space<vmem>>, vector<1x8x1xf32>
    %759 = vector.shape_cast %758 : vector<1x8x1xf32> to vector<8x1xf32>
    %760 = vector.broadcast %759 : vector<8x1xf32> to vector<8x256xf32>
    %761 = arith.mulf %757, %760 : vector<8x256xf32>
    %c9_504 = arith.constant 9 : index
    %c0_505 = arith.constant 0 : index
    %c0_506 = arith.constant 0 : index
    %762 = vector.load %arg6[%c9_504, %c0_505, %c0_506] : memref<13x8x1xf32, #tpu.memory_space<vmem>>, vector<1x8x1xf32>
    %763 = vector.shape_cast %762 : vector<1x8x1xf32> to vector<8x1xf32>
    %764 = vector.broadcast %763 : vector<8x1xf32> to vector<8x256xf32>
    %765 = arith.addf %761, %764 : vector<8x256xf32>
    %766 = arith.addf %765, %623 : vector<8x256xf32>
    %767 = arith.negf %766 : vector<8x256xf32>
    %768 = math.exp %767 : vector<8x256xf32>
    %cst_507 = arith.constant 1.000000e+00 : f32
    %769 = vector.broadcast %cst_507 : f32 to vector<8x256xf32>
    %770 = arith.addf %769, %768 : vector<8x256xf32>
    %771 = arith.divf %769, %770 : vector<8x256xf32>
    %772 = arith.mulf %766, %771 : vector<8x256xf32>
    %c17_i32_508 = arith.constant 17 : i32
    %773 = tpu.dynamic_rotate %772 by %c17_i32_508 dim 1 : vector<8x256xf32>, i32 -> vector<8x256xf32>
    %c0_509 = arith.constant 0 : index
    %c0_510 = arith.constant 0 : index
    %c0_511 = arith.constant 0 : index
    %774 = vector.load %arg2[%c0_509, %c0_510, %c0_511] : memref<8x8x256xf32, #tpu.memory_space<vmem>>, vector<1x8x256xf32>
    %775 = vector.shape_cast %774 : vector<1x8x256xf32> to vector<8x256xf32>
    %776 = arith.mulf %773, %775 : vector<8x256xf32>
    %c16_i32_512 = arith.constant 16 : i32
    %777 = tpu.dynamic_rotate %772 by %c16_i32_512 dim 1 : vector<8x256xf32>, i32 -> vector<8x256xf32>
    %c1_513 = arith.constant 1 : index
    %c0_514 = arith.constant 0 : index
    %c0_515 = arith.constant 0 : index
    %778 = vector.load %arg2[%c1_513, %c0_514, %c0_515] : memref<8x8x256xf32, #tpu.memory_space<vmem>>, vector<1x8x256xf32>
    %779 = vector.shape_cast %778 : vector<1x8x256xf32> to vector<8x256xf32>
    %780 = arith.mulf %777, %779 : vector<8x256xf32>
    %c15_i32_516 = arith.constant 15 : i32
    %781 = tpu.dynamic_rotate %772 by %c15_i32_516 dim 1 : vector<8x256xf32>, i32 -> vector<8x256xf32>
    %c2_517 = arith.constant 2 : index
    %c0_518 = arith.constant 0 : index
    %c0_519 = arith.constant 0 : index
    %782 = vector.load %arg2[%c2_517, %c0_518, %c0_519] : memref<8x8x256xf32, #tpu.memory_space<vmem>>, vector<1x8x256xf32>
    %783 = vector.shape_cast %782 : vector<1x8x256xf32> to vector<8x256xf32>
    %784 = arith.mulf %781, %783 : vector<8x256xf32>
    %c1_i32_520 = arith.constant 1 : i32
    %785 = tpu.dynamic_rotate %772 by %c1_i32_520 dim 1 : vector<8x256xf32>, i32 -> vector<8x256xf32>
    %c3_521 = arith.constant 3 : index
    %c0_522 = arith.constant 0 : index
    %c0_523 = arith.constant 0 : index
    %786 = vector.load %arg2[%c3_521, %c0_522, %c0_523] : memref<8x8x256xf32, #tpu.memory_space<vmem>>, vector<1x8x256xf32>
    %787 = vector.shape_cast %786 : vector<1x8x256xf32> to vector<8x256xf32>
    %788 = arith.mulf %785, %787 : vector<8x256xf32>
    %c255_i32_524 = arith.constant 255 : i32
    %789 = tpu.dynamic_rotate %772 by %c255_i32_524 dim 1 : vector<8x256xf32>, i32 -> vector<8x256xf32>
    %c4_525 = arith.constant 4 : index
    %c0_526 = arith.constant 0 : index
    %c0_527 = arith.constant 0 : index
    %790 = vector.load %arg2[%c4_525, %c0_526, %c0_527] : memref<8x8x256xf32, #tpu.memory_space<vmem>>, vector<1x8x256xf32>
    %791 = vector.shape_cast %790 : vector<1x8x256xf32> to vector<8x256xf32>
    %792 = arith.mulf %789, %791 : vector<8x256xf32>
    %c241_i32_528 = arith.constant 241 : i32
    %793 = tpu.dynamic_rotate %772 by %c241_i32_528 dim 1 : vector<8x256xf32>, i32 -> vector<8x256xf32>
    %c5_529 = arith.constant 5 : index
    %c0_530 = arith.constant 0 : index
    %c0_531 = arith.constant 0 : index
    %794 = vector.load %arg2[%c5_529, %c0_530, %c0_531] : memref<8x8x256xf32, #tpu.memory_space<vmem>>, vector<1x8x256xf32>
    %795 = vector.shape_cast %794 : vector<1x8x256xf32> to vector<8x256xf32>
    %796 = arith.mulf %793, %795 : vector<8x256xf32>
    %c240_i32_532 = arith.constant 240 : i32
    %797 = tpu.dynamic_rotate %772 by %c240_i32_532 dim 1 : vector<8x256xf32>, i32 -> vector<8x256xf32>
    %c6_533 = arith.constant 6 : index
    %c0_534 = arith.constant 0 : index
    %c0_535 = arith.constant 0 : index
    %798 = vector.load %arg2[%c6_533, %c0_534, %c0_535] : memref<8x8x256xf32, #tpu.memory_space<vmem>>, vector<1x8x256xf32>
    %799 = vector.shape_cast %798 : vector<1x8x256xf32> to vector<8x256xf32>
    %800 = arith.mulf %797, %799 : vector<8x256xf32>
    %c239_i32_536 = arith.constant 239 : i32
    %801 = tpu.dynamic_rotate %772 by %c239_i32_536 dim 1 : vector<8x256xf32>, i32 -> vector<8x256xf32>
    %c7_537 = arith.constant 7 : index
    %c0_538 = arith.constant 0 : index
    %c0_539 = arith.constant 0 : index
    %802 = vector.load %arg2[%c7_537, %c0_538, %c0_539] : memref<8x8x256xf32, #tpu.memory_space<vmem>>, vector<1x8x256xf32>
    %803 = vector.shape_cast %802 : vector<1x8x256xf32> to vector<8x256xf32>
    %804 = arith.mulf %801, %803 : vector<8x256xf32>
    %805 = tpu.concatenate %776, %780, %784, %788, %772, %792, %796, %800, %804 in 0 : vector<8x256xf32>, vector<8x256xf32>, vector<8x256xf32>, vector<8x256xf32>, vector<8x256xf32>, vector<8x256xf32>, vector<8x256xf32>, vector<8x256xf32>, vector<8x256xf32> -> vector<72x256xf32>
    %806 = arith.truncf %805 : vector<72x256xf32> to vector<72x256xbf16>
    %c10 = arith.constant 10 : index
    %c0_540 = arith.constant 0 : index
    %c0_541 = arith.constant 0 : index
    %807 = vector.load %arg3[%c10, %c0_540, %c0_541] : memref<13x8x72xf32, #tpu.memory_space<vmem>>, vector<1x8x72xf32>
    %808 = vector.shape_cast %807 : vector<1x8x72xf32> to vector<8x72xf32>
    %809 = arith.truncf %808 : vector<8x72xf32> to vector<8x72xbf16>
    %cst_542 = arith.constant dense<0.000000e+00> : vector<8x256xf32>
    %810 = tpu.matmul %809, %806, %cst_542 {dimension_numbers = #tpu.dot_dimension_numbers<[1], [0], [0], [1], [0, 0, 1, 1], [], []>} : vector<8x72xbf16>, vector<72x256xbf16>, vector<8x256xf32> -> vector<8x256xf32>
    %c10_543 = arith.constant 10 : index
    %c0_544 = arith.constant 0 : index
    %c0_545 = arith.constant 0 : index
    %811 = vector.load %arg4[%c10_543, %c0_544, %c0_545] : memref<13x8x1xf32, #tpu.memory_space<vmem>>, vector<1x8x1xf32>
    %812 = vector.shape_cast %811 : vector<1x8x1xf32> to vector<8x1xf32>
    %813 = vector.broadcast %812 : vector<8x1xf32> to vector<8x256xf32>
    %814 = arith.addf %810, %813 : vector<8x256xf32>
    %cst_546 = arith.constant dense<0.000000e+00> : vector<8xf32>
    %815 = vector.multi_reduction <add>, %814, %cst_546 [1] : vector<8x256xf32> to vector<8xf32>
    %816 = vector.shape_cast %815 : vector<8xf32> to vector<8x1xf32>
    %817 = arith.mulf %814, %814 : vector<8x256xf32>
    %cst_547 = arith.constant dense<0.000000e+00> : vector<8xf32>
    %818 = vector.multi_reduction <add>, %817, %cst_547 [1] : vector<8x256xf32> to vector<8xf32>
    %819 = vector.shape_cast %818 : vector<8xf32> to vector<8x1xf32>
    %cst_548 = arith.constant 3.906250e-03 : f32
    %820 = vector.broadcast %cst_548 : f32 to vector<8x1xf32>
    %821 = arith.mulf %816, %820 : vector<8x1xf32>
    %cst_549 = arith.constant 3.906250e-03 : f32
    %822 = vector.broadcast %cst_549 : f32 to vector<8x1xf32>
    %823 = arith.mulf %819, %822 : vector<8x1xf32>
    %824 = arith.mulf %821, %821 : vector<8x1xf32>
    %825 = arith.subf %823, %824 : vector<8x1xf32>
    %826 = vector.broadcast %821 : vector<8x1xf32> to vector<8x256xf32>
    %827 = arith.subf %814, %826 : vector<8x256xf32>
    %cst_550 = arith.constant 9.99999974E-6 : f32
    %828 = vector.broadcast %cst_550 : f32 to vector<8x1xf32>
    %829 = arith.addf %825, %828 : vector<8x1xf32>
    %830 = math.rsqrt %829 : vector<8x1xf32>
    %831 = vector.broadcast %830 : vector<8x1xf32> to vector<8x256xf32>
    %832 = arith.mulf %827, %831 : vector<8x256xf32>
    %c10_551 = arith.constant 10 : index
    %c0_552 = arith.constant 0 : index
    %c0_553 = arith.constant 0 : index
    %833 = vector.load %arg5[%c10_551, %c0_552, %c0_553] : memref<13x8x1xf32, #tpu.memory_space<vmem>>, vector<1x8x1xf32>
    %834 = vector.shape_cast %833 : vector<1x8x1xf32> to vector<8x1xf32>
    %835 = vector.broadcast %834 : vector<8x1xf32> to vector<8x256xf32>
    %836 = arith.mulf %832, %835 : vector<8x256xf32>
    %c10_554 = arith.constant 10 : index
    %c0_555 = arith.constant 0 : index
    %c0_556 = arith.constant 0 : index
    %837 = vector.load %arg6[%c10_554, %c0_555, %c0_556] : memref<13x8x1xf32, #tpu.memory_space<vmem>>, vector<1x8x1xf32>
    %838 = vector.shape_cast %837 : vector<1x8x1xf32> to vector<8x1xf32>
    %839 = vector.broadcast %838 : vector<8x1xf32> to vector<8x256xf32>
    %840 = arith.addf %836, %839 : vector<8x256xf32>
    %cst_557 = arith.constant 0.000000e+00 : f32
    %841 = vector.broadcast %cst_557 : f32 to vector<8x256xf32>
    %842 = arith.cmpf oge, %840, %841 : vector<8x256xf32>
    %cst_558 = arith.constant 2.000000e-01 : f32
    %843 = vector.broadcast %cst_558 : f32 to vector<8x256xf32>
    %844 = arith.mulf %843, %840 : vector<8x256xf32>
    %845 = arith.select %842, %840, %844 : vector<8x256xi1>, vector<8x256xf32>
    %c17_i32_559 = arith.constant 17 : i32
    %846 = tpu.dynamic_rotate %845 by %c17_i32_559 dim 1 : vector<8x256xf32>, i32 -> vector<8x256xf32>
    %c0_560 = arith.constant 0 : index
    %c0_561 = arith.constant 0 : index
    %c0_562 = arith.constant 0 : index
    %847 = vector.load %arg2[%c0_560, %c0_561, %c0_562] : memref<8x8x256xf32, #tpu.memory_space<vmem>>, vector<1x8x256xf32>
    %848 = vector.shape_cast %847 : vector<1x8x256xf32> to vector<8x256xf32>
    %849 = arith.mulf %846, %848 : vector<8x256xf32>
    %c16_i32_563 = arith.constant 16 : i32
    %850 = tpu.dynamic_rotate %845 by %c16_i32_563 dim 1 : vector<8x256xf32>, i32 -> vector<8x256xf32>
    %c1_564 = arith.constant 1 : index
    %c0_565 = arith.constant 0 : index
    %c0_566 = arith.constant 0 : index
    %851 = vector.load %arg2[%c1_564, %c0_565, %c0_566] : memref<8x8x256xf32, #tpu.memory_space<vmem>>, vector<1x8x256xf32>
    %852 = vector.shape_cast %851 : vector<1x8x256xf32> to vector<8x256xf32>
    %853 = arith.mulf %850, %852 : vector<8x256xf32>
    %c15_i32_567 = arith.constant 15 : i32
    %854 = tpu.dynamic_rotate %845 by %c15_i32_567 dim 1 : vector<8x256xf32>, i32 -> vector<8x256xf32>
    %c2_568 = arith.constant 2 : index
    %c0_569 = arith.constant 0 : index
    %c0_570 = arith.constant 0 : index
    %855 = vector.load %arg2[%c2_568, %c0_569, %c0_570] : memref<8x8x256xf32, #tpu.memory_space<vmem>>, vector<1x8x256xf32>
    %856 = vector.shape_cast %855 : vector<1x8x256xf32> to vector<8x256xf32>
    %857 = arith.mulf %854, %856 : vector<8x256xf32>
    %c1_i32_571 = arith.constant 1 : i32
    %858 = tpu.dynamic_rotate %845 by %c1_i32_571 dim 1 : vector<8x256xf32>, i32 -> vector<8x256xf32>
    %c3_572 = arith.constant 3 : index
    %c0_573 = arith.constant 0 : index
    %c0_574 = arith.constant 0 : index
    %859 = vector.load %arg2[%c3_572, %c0_573, %c0_574] : memref<8x8x256xf32, #tpu.memory_space<vmem>>, vector<1x8x256xf32>
    %860 = vector.shape_cast %859 : vector<1x8x256xf32> to vector<8x256xf32>
    %861 = arith.mulf %858, %860 : vector<8x256xf32>
    %c255_i32_575 = arith.constant 255 : i32
    %862 = tpu.dynamic_rotate %845 by %c255_i32_575 dim 1 : vector<8x256xf32>, i32 -> vector<8x256xf32>
    %c4_576 = arith.constant 4 : index
    %c0_577 = arith.constant 0 : index
    %c0_578 = arith.constant 0 : index
    %863 = vector.load %arg2[%c4_576, %c0_577, %c0_578] : memref<8x8x256xf32, #tpu.memory_space<vmem>>, vector<1x8x256xf32>
    %864 = vector.shape_cast %863 : vector<1x8x256xf32> to vector<8x256xf32>
    %865 = arith.mulf %862, %864 : vector<8x256xf32>
    %c241_i32_579 = arith.constant 241 : i32
    %866 = tpu.dynamic_rotate %845 by %c241_i32_579 dim 1 : vector<8x256xf32>, i32 -> vector<8x256xf32>
    %c5_580 = arith.constant 5 : index
    %c0_581 = arith.constant 0 : index
    %c0_582 = arith.constant 0 : index
    %867 = vector.load %arg2[%c5_580, %c0_581, %c0_582] : memref<8x8x256xf32, #tpu.memory_space<vmem>>, vector<1x8x256xf32>
    %868 = vector.shape_cast %867 : vector<1x8x256xf32> to vector<8x256xf32>
    %869 = arith.mulf %866, %868 : vector<8x256xf32>
    %c240_i32_583 = arith.constant 240 : i32
    %870 = tpu.dynamic_rotate %845 by %c240_i32_583 dim 1 : vector<8x256xf32>, i32 -> vector<8x256xf32>
    %c6_584 = arith.constant 6 : index
    %c0_585 = arith.constant 0 : index
    %c0_586 = arith.constant 0 : index
    %871 = vector.load %arg2[%c6_584, %c0_585, %c0_586] : memref<8x8x256xf32, #tpu.memory_space<vmem>>, vector<1x8x256xf32>
    %872 = vector.shape_cast %871 : vector<1x8x256xf32> to vector<8x256xf32>
    %873 = arith.mulf %870, %872 : vector<8x256xf32>
    %c239_i32_587 = arith.constant 239 : i32
    %874 = tpu.dynamic_rotate %845 by %c239_i32_587 dim 1 : vector<8x256xf32>, i32 -> vector<8x256xf32>
    %c7_588 = arith.constant 7 : index
    %c0_589 = arith.constant 0 : index
    %c0_590 = arith.constant 0 : index
    %875 = vector.load %arg2[%c7_588, %c0_589, %c0_590] : memref<8x8x256xf32, #tpu.memory_space<vmem>>, vector<1x8x256xf32>
    %876 = vector.shape_cast %875 : vector<1x8x256xf32> to vector<8x256xf32>
    %877 = arith.mulf %874, %876 : vector<8x256xf32>
    %878 = tpu.concatenate %849, %853, %857, %861, %845, %865, %869, %873, %877 in 0 : vector<8x256xf32>, vector<8x256xf32>, vector<8x256xf32>, vector<8x256xf32>, vector<8x256xf32>, vector<8x256xf32>, vector<8x256xf32>, vector<8x256xf32>, vector<8x256xf32> -> vector<72x256xf32>
    %879 = arith.truncf %878 : vector<72x256xf32> to vector<72x256xbf16>
    %c11 = arith.constant 11 : index
    %c0_591 = arith.constant 0 : index
    %c0_592 = arith.constant 0 : index
    %880 = vector.load %arg3[%c11, %c0_591, %c0_592] : memref<13x8x72xf32, #tpu.memory_space<vmem>>, vector<1x8x72xf32>
    %881 = vector.shape_cast %880 : vector<1x8x72xf32> to vector<8x72xf32>
    %882 = arith.truncf %881 : vector<8x72xf32> to vector<8x72xbf16>
    %cst_593 = arith.constant dense<0.000000e+00> : vector<8x256xf32>
    %883 = tpu.matmul %882, %879, %cst_593 {dimension_numbers = #tpu.dot_dimension_numbers<[1], [0], [0], [1], [0, 0, 1, 1], [], []>} : vector<8x72xbf16>, vector<72x256xbf16>, vector<8x256xf32> -> vector<8x256xf32>
    %c11_594 = arith.constant 11 : index
    %c0_595 = arith.constant 0 : index
    %c0_596 = arith.constant 0 : index
    %884 = vector.load %arg4[%c11_594, %c0_595, %c0_596] : memref<13x8x1xf32, #tpu.memory_space<vmem>>, vector<1x8x1xf32>
    %885 = vector.shape_cast %884 : vector<1x8x1xf32> to vector<8x1xf32>
    %886 = vector.broadcast %885 : vector<8x1xf32> to vector<8x256xf32>
    %887 = arith.addf %883, %886 : vector<8x256xf32>
    %cst_597 = arith.constant dense<0.000000e+00> : vector<8xf32>
    %888 = vector.multi_reduction <add>, %887, %cst_597 [1] : vector<8x256xf32> to vector<8xf32>
    %889 = vector.shape_cast %888 : vector<8xf32> to vector<8x1xf32>
    %890 = arith.mulf %887, %887 : vector<8x256xf32>
    %cst_598 = arith.constant dense<0.000000e+00> : vector<8xf32>
    %891 = vector.multi_reduction <add>, %890, %cst_598 [1] : vector<8x256xf32> to vector<8xf32>
    %892 = vector.shape_cast %891 : vector<8xf32> to vector<8x1xf32>
    %cst_599 = arith.constant 3.906250e-03 : f32
    %893 = vector.broadcast %cst_599 : f32 to vector<8x1xf32>
    %894 = arith.mulf %889, %893 : vector<8x1xf32>
    %cst_600 = arith.constant 3.906250e-03 : f32
    %895 = vector.broadcast %cst_600 : f32 to vector<8x1xf32>
    %896 = arith.mulf %892, %895 : vector<8x1xf32>
    %897 = arith.mulf %894, %894 : vector<8x1xf32>
    %898 = arith.subf %896, %897 : vector<8x1xf32>
    %899 = vector.broadcast %894 : vector<8x1xf32> to vector<8x256xf32>
    %900 = arith.subf %887, %899 : vector<8x256xf32>
    %cst_601 = arith.constant 9.99999974E-6 : f32
    %901 = vector.broadcast %cst_601 : f32 to vector<8x1xf32>
    %902 = arith.addf %898, %901 : vector<8x1xf32>
    %903 = math.rsqrt %902 : vector<8x1xf32>
    %904 = vector.broadcast %903 : vector<8x1xf32> to vector<8x256xf32>
    %905 = arith.mulf %900, %904 : vector<8x256xf32>
    %c11_602 = arith.constant 11 : index
    %c0_603 = arith.constant 0 : index
    %c0_604 = arith.constant 0 : index
    %906 = vector.load %arg5[%c11_602, %c0_603, %c0_604] : memref<13x8x1xf32, #tpu.memory_space<vmem>>, vector<1x8x1xf32>
    %907 = vector.shape_cast %906 : vector<1x8x1xf32> to vector<8x1xf32>
    %908 = vector.broadcast %907 : vector<8x1xf32> to vector<8x256xf32>
    %909 = arith.mulf %905, %908 : vector<8x256xf32>
    %c11_605 = arith.constant 11 : index
    %c0_606 = arith.constant 0 : index
    %c0_607 = arith.constant 0 : index
    %910 = vector.load %arg6[%c11_605, %c0_606, %c0_607] : memref<13x8x1xf32, #tpu.memory_space<vmem>>, vector<1x8x1xf32>
    %911 = vector.shape_cast %910 : vector<1x8x1xf32> to vector<8x1xf32>
    %912 = vector.broadcast %911 : vector<8x1xf32> to vector<8x256xf32>
    %913 = arith.addf %909, %912 : vector<8x256xf32>
    %914 = arith.addf %913, %772 : vector<8x256xf32>
    %cst_608 = arith.constant 0.000000e+00 : f32
    %915 = vector.broadcast %cst_608 : f32 to vector<8x256xf32>
    %916 = arith.cmpf oge, %914, %915 : vector<8x256xf32>
    %cst_609 = arith.constant 2.000000e-01 : f32
    %917 = vector.broadcast %cst_609 : f32 to vector<8x256xf32>
    %918 = arith.mulf %917, %914 : vector<8x256xf32>
    %919 = arith.select %916, %914, %918 : vector<8x256xi1>, vector<8x256xf32>
    %c17_i32_610 = arith.constant 17 : i32
    %920 = tpu.dynamic_rotate %919 by %c17_i32_610 dim 1 : vector<8x256xf32>, i32 -> vector<8x256xf32>
    %c0_611 = arith.constant 0 : index
    %c0_612 = arith.constant 0 : index
    %c0_613 = arith.constant 0 : index
    %921 = vector.load %arg2[%c0_611, %c0_612, %c0_613] : memref<8x8x256xf32, #tpu.memory_space<vmem>>, vector<1x8x256xf32>
    %922 = vector.shape_cast %921 : vector<1x8x256xf32> to vector<8x256xf32>
    %923 = arith.mulf %920, %922 : vector<8x256xf32>
    %c16_i32_614 = arith.constant 16 : i32
    %924 = tpu.dynamic_rotate %919 by %c16_i32_614 dim 1 : vector<8x256xf32>, i32 -> vector<8x256xf32>
    %c1_615 = arith.constant 1 : index
    %c0_616 = arith.constant 0 : index
    %c0_617 = arith.constant 0 : index
    %925 = vector.load %arg2[%c1_615, %c0_616, %c0_617] : memref<8x8x256xf32, #tpu.memory_space<vmem>>, vector<1x8x256xf32>
    %926 = vector.shape_cast %925 : vector<1x8x256xf32> to vector<8x256xf32>
    %927 = arith.mulf %924, %926 : vector<8x256xf32>
    %c15_i32_618 = arith.constant 15 : i32
    %928 = tpu.dynamic_rotate %919 by %c15_i32_618 dim 1 : vector<8x256xf32>, i32 -> vector<8x256xf32>
    %c2_619 = arith.constant 2 : index
    %c0_620 = arith.constant 0 : index
    %c0_621 = arith.constant 0 : index
    %929 = vector.load %arg2[%c2_619, %c0_620, %c0_621] : memref<8x8x256xf32, #tpu.memory_space<vmem>>, vector<1x8x256xf32>
    %930 = vector.shape_cast %929 : vector<1x8x256xf32> to vector<8x256xf32>
    %931 = arith.mulf %928, %930 : vector<8x256xf32>
    %c1_i32_622 = arith.constant 1 : i32
    %932 = tpu.dynamic_rotate %919 by %c1_i32_622 dim 1 : vector<8x256xf32>, i32 -> vector<8x256xf32>
    %c3_623 = arith.constant 3 : index
    %c0_624 = arith.constant 0 : index
    %c0_625 = arith.constant 0 : index
    %933 = vector.load %arg2[%c3_623, %c0_624, %c0_625] : memref<8x8x256xf32, #tpu.memory_space<vmem>>, vector<1x8x256xf32>
    %934 = vector.shape_cast %933 : vector<1x8x256xf32> to vector<8x256xf32>
    %935 = arith.mulf %932, %934 : vector<8x256xf32>
    %c255_i32_626 = arith.constant 255 : i32
    %936 = tpu.dynamic_rotate %919 by %c255_i32_626 dim 1 : vector<8x256xf32>, i32 -> vector<8x256xf32>
    %c4_627 = arith.constant 4 : index
    %c0_628 = arith.constant 0 : index
    %c0_629 = arith.constant 0 : index
    %937 = vector.load %arg2[%c4_627, %c0_628, %c0_629] : memref<8x8x256xf32, #tpu.memory_space<vmem>>, vector<1x8x256xf32>
    %938 = vector.shape_cast %937 : vector<1x8x256xf32> to vector<8x256xf32>
    %939 = arith.mulf %936, %938 : vector<8x256xf32>
    %c241_i32_630 = arith.constant 241 : i32
    %940 = tpu.dynamic_rotate %919 by %c241_i32_630 dim 1 : vector<8x256xf32>, i32 -> vector<8x256xf32>
    %c5_631 = arith.constant 5 : index
    %c0_632 = arith.constant 0 : index
    %c0_633 = arith.constant 0 : index
    %941 = vector.load %arg2[%c5_631, %c0_632, %c0_633] : memref<8x8x256xf32, #tpu.memory_space<vmem>>, vector<1x8x256xf32>
    %942 = vector.shape_cast %941 : vector<1x8x256xf32> to vector<8x256xf32>
    %943 = arith.mulf %940, %942 : vector<8x256xf32>
    %c240_i32_634 = arith.constant 240 : i32
    %944 = tpu.dynamic_rotate %919 by %c240_i32_634 dim 1 : vector<8x256xf32>, i32 -> vector<8x256xf32>
    %c6_635 = arith.constant 6 : index
    %c0_636 = arith.constant 0 : index
    %c0_637 = arith.constant 0 : index
    %945 = vector.load %arg2[%c6_635, %c0_636, %c0_637] : memref<8x8x256xf32, #tpu.memory_space<vmem>>, vector<1x8x256xf32>
    %946 = vector.shape_cast %945 : vector<1x8x256xf32> to vector<8x256xf32>
    %947 = arith.mulf %944, %946 : vector<8x256xf32>
    %c239_i32_638 = arith.constant 239 : i32
    %948 = tpu.dynamic_rotate %919 by %c239_i32_638 dim 1 : vector<8x256xf32>, i32 -> vector<8x256xf32>
    %c7_639 = arith.constant 7 : index
    %c0_640 = arith.constant 0 : index
    %c0_641 = arith.constant 0 : index
    %949 = vector.load %arg2[%c7_639, %c0_640, %c0_641] : memref<8x8x256xf32, #tpu.memory_space<vmem>>, vector<1x8x256xf32>
    %950 = vector.shape_cast %949 : vector<1x8x256xf32> to vector<8x256xf32>
    %951 = arith.mulf %948, %950 : vector<8x256xf32>
    %952 = tpu.concatenate %923, %927, %931, %935, %919, %939, %943, %947, %951 in 0 : vector<8x256xf32>, vector<8x256xf32>, vector<8x256xf32>, vector<8x256xf32>, vector<8x256xf32>, vector<8x256xf32>, vector<8x256xf32>, vector<8x256xf32>, vector<8x256xf32> -> vector<72x256xf32>
    %953 = arith.truncf %952 : vector<72x256xf32> to vector<72x256xbf16>
    %c12 = arith.constant 12 : index
    %c0_642 = arith.constant 0 : index
    %c0_643 = arith.constant 0 : index
    %954 = vector.load %arg3[%c12, %c0_642, %c0_643] : memref<13x8x72xf32, #tpu.memory_space<vmem>>, vector<1x8x72xf32>
    %955 = vector.shape_cast %954 : vector<1x8x72xf32> to vector<8x72xf32>
    %956 = arith.truncf %955 : vector<8x72xf32> to vector<8x72xbf16>
    %cst_644 = arith.constant dense<0.000000e+00> : vector<8x256xf32>
    %957 = tpu.matmul %956, %953, %cst_644 {dimension_numbers = #tpu.dot_dimension_numbers<[1], [0], [0], [1], [0, 0, 1, 1], [], []>} : vector<8x72xbf16>, vector<72x256xbf16>, vector<8x256xf32> -> vector<8x256xf32>
    %c12_645 = arith.constant 12 : index
    %c0_646 = arith.constant 0 : index
    %c0_647 = arith.constant 0 : index
    %958 = vector.load %arg4[%c12_645, %c0_646, %c0_647] : memref<13x8x1xf32, #tpu.memory_space<vmem>>, vector<1x8x1xf32>
    %959 = vector.shape_cast %958 : vector<1x8x1xf32> to vector<8x1xf32>
    %960 = vector.broadcast %959 : vector<8x1xf32> to vector<8x256xf32>
    %961 = arith.addf %957, %960 : vector<8x256xf32>
    %cst_648 = arith.constant dense<0.000000e+00> : vector<8xf32>
    %962 = vector.multi_reduction <add>, %961, %cst_648 [1] : vector<8x256xf32> to vector<8xf32>
    %963 = vector.shape_cast %962 : vector<8xf32> to vector<8x1xf32>
    %964 = arith.mulf %961, %961 : vector<8x256xf32>
    %cst_649 = arith.constant dense<0.000000e+00> : vector<8xf32>
    %965 = vector.multi_reduction <add>, %964, %cst_649 [1] : vector<8x256xf32> to vector<8xf32>
    %966 = vector.shape_cast %965 : vector<8xf32> to vector<8x1xf32>
    %cst_650 = arith.constant 3.906250e-03 : f32
    %967 = vector.broadcast %cst_650 : f32 to vector<8x1xf32>
    %968 = arith.mulf %963, %967 : vector<8x1xf32>
    %cst_651 = arith.constant 3.906250e-03 : f32
    %969 = vector.broadcast %cst_651 : f32 to vector<8x1xf32>
    %970 = arith.mulf %966, %969 : vector<8x1xf32>
    %971 = arith.mulf %968, %968 : vector<8x1xf32>
    %972 = arith.subf %970, %971 : vector<8x1xf32>
    %973 = vector.broadcast %968 : vector<8x1xf32> to vector<8x256xf32>
    %974 = arith.subf %961, %973 : vector<8x256xf32>
    %cst_652 = arith.constant 9.99999974E-6 : f32
    %975 = vector.broadcast %cst_652 : f32 to vector<8x1xf32>
    %976 = arith.addf %972, %975 : vector<8x1xf32>
    %977 = math.rsqrt %976 : vector<8x1xf32>
    %978 = vector.broadcast %977 : vector<8x1xf32> to vector<8x256xf32>
    %979 = arith.mulf %974, %978 : vector<8x256xf32>
    %c12_653 = arith.constant 12 : index
    %c0_654 = arith.constant 0 : index
    %c0_655 = arith.constant 0 : index
    %980 = vector.load %arg5[%c12_653, %c0_654, %c0_655] : memref<13x8x1xf32, #tpu.memory_space<vmem>>, vector<1x8x1xf32>
    %981 = vector.shape_cast %980 : vector<1x8x1xf32> to vector<8x1xf32>
    %982 = vector.broadcast %981 : vector<8x1xf32> to vector<8x256xf32>
    %983 = arith.mulf %979, %982 : vector<8x256xf32>
    %c12_656 = arith.constant 12 : index
    %c0_657 = arith.constant 0 : index
    %c0_658 = arith.constant 0 : index
    %984 = vector.load %arg6[%c12_656, %c0_657, %c0_658] : memref<13x8x1xf32, #tpu.memory_space<vmem>>, vector<1x8x1xf32>
    %985 = vector.shape_cast %984 : vector<1x8x1xf32> to vector<8x1xf32>
    %986 = vector.broadcast %985 : vector<8x1xf32> to vector<8x256xf32>
    %987 = arith.addf %983, %986 : vector<8x256xf32>
    %988 = arith.addf %987, %1 : vector<8x256xf32>
    %cst_659 = arith.constant 5.000000e-01 : f32
    %989 = vector.broadcast %cst_659 : f32 to vector<8x256xf32>
    %990 = arith.mulf %989, %988 : vector<8x256xf32>
    %cst_660 = arith.constant 4.471500e-02 : f32
    %991 = vector.broadcast %cst_660 : f32 to vector<8x256xf32>
    %992 = arith.mulf %991, %988 : vector<8x256xf32>
    %993 = arith.mulf %992, %988 : vector<8x256xf32>
    %994 = arith.mulf %993, %988 : vector<8x256xf32>
    %995 = arith.addf %988, %994 : vector<8x256xf32>
    %cst_661 = arith.constant 0.797884583 : f32
    %996 = vector.broadcast %cst_661 : f32 to vector<8x256xf32>
    %997 = arith.mulf %996, %995 : vector<8x256xf32>
    %998 = math.tanh %997 : vector<8x256xf32>
    %cst_662 = arith.constant 1.000000e+00 : f32
    %999 = vector.broadcast %cst_662 : f32 to vector<8x256xf32>
    %1000 = arith.addf %999, %998 : vector<8x256xf32>
    %1001 = arith.mulf %990, %1000 : vector<8x256xf32>
    %c0_663 = arith.constant 0 : index
    %c0_664 = arith.constant 0 : index
    %c0_665 = arith.constant 0 : index
    %1002 = vector.load %arg7[%c0_663, %c0_664, %c0_665] : memref<2x8x256xf32, #tpu.memory_space<vmem>>, vector<1x8x256xf32>
    %1003 = vector.shape_cast %1002 : vector<1x8x256xf32> to vector<8x256xf32>
    %1004 = vector.shape_cast %1001 : vector<8x256xf32> to vector<1x8x256xf32>
    tpu.vector_store %arg7[%c0_663, %c0_664, %c0_665], %1004 {strides = array<i32>} : memref<2x8x256xf32, #tpu.memory_space<vmem>>, vector<1x8x256xf32>,
    %c1_666 = arith.constant 1 : index
    %c0_667 = arith.constant 0 : index
    %c0_668 = arith.constant 0 : index
    %1005 = vector.load %arg1[%c1_666, %c0_667, %c0_668] : memref<2x8x256xf32, #tpu.memory_space<vmem>>, vector<1x8x256xf32>
    %1006 = vector.shape_cast %1005 : vector<1x8x256xf32> to vector<8x256xf32>
    %c17_i32_669 = arith.constant 17 : i32
    %1007 = tpu.dynamic_rotate %1006 by %c17_i32_669 dim 1 : vector<8x256xf32>, i32 -> vector<8x256xf32>
    %c0_670 = arith.constant 0 : index
    %c0_671 = arith.constant 0 : index
    %c0_672 = arith.constant 0 : index
    %1008 = vector.load %arg2[%c0_670, %c0_671, %c0_672] : memref<8x8x256xf32, #tpu.memory_space<vmem>>, vector<1x8x256xf32>
    %1009 = vector.shape_cast %1008 : vector<1x8x256xf32> to vector<8x256xf32>
    %1010 = arith.mulf %1007, %1009 : vector<8x256xf32>
    %c16_i32_673 = arith.constant 16 : i32
    %1011 = tpu.dynamic_rotate %1006 by %c16_i32_673 dim 1 : vector<8x256xf32>, i32 -> vector<8x256xf32>
    %c1_674 = arith.constant 1 : index
    %c0_675 = arith.constant 0 : index
    %c0_676 = arith.constant 0 : index
    %1012 = vector.load %arg2[%c1_674, %c0_675, %c0_676] : memref<8x8x256xf32, #tpu.memory_space<vmem>>, vector<1x8x256xf32>
    %1013 = vector.shape_cast %1012 : vector<1x8x256xf32> to vector<8x256xf32>
    %1014 = arith.mulf %1011, %1013 : vector<8x256xf32>
    %c15_i32_677 = arith.constant 15 : i32
    %1015 = tpu.dynamic_rotate %1006 by %c15_i32_677 dim 1 : vector<8x256xf32>, i32 -> vector<8x256xf32>
    %c2_678 = arith.constant 2 : index
    %c0_679 = arith.constant 0 : index
    %c0_680 = arith.constant 0 : index
    %1016 = vector.load %arg2[%c2_678, %c0_679, %c0_680] : memref<8x8x256xf32, #tpu.memory_space<vmem>>, vector<1x8x256xf32>
    %1017 = vector.shape_cast %1016 : vector<1x8x256xf32> to vector<8x256xf32>
    %1018 = arith.mulf %1015, %1017 : vector<8x256xf32>
    %c1_i32_681 = arith.constant 1 : i32
    %1019 = tpu.dynamic_rotate %1006 by %c1_i32_681 dim 1 : vector<8x256xf32>, i32 -> vector<8x256xf32>
    %c3_682 = arith.constant 3 : index
    %c0_683 = arith.constant 0 : index
    %c0_684 = arith.constant 0 : index
    %1020 = vector.load %arg2[%c3_682, %c0_683, %c0_684] : memref<8x8x256xf32, #tpu.memory_space<vmem>>, vector<1x8x256xf32>
    %1021 = vector.shape_cast %1020 : vector<1x8x256xf32> to vector<8x256xf32>
    %1022 = arith.mulf %1019, %1021 : vector<8x256xf32>
    %c255_i32_685 = arith.constant 255 : i32
    %1023 = tpu.dynamic_rotate %1006 by %c255_i32_685 dim 1 : vector<8x256xf32>, i32 -> vector<8x256xf32>
    %c4_686 = arith.constant 4 : index
    %c0_687 = arith.constant 0 : index
    %c0_688 = arith.constant 0 : index
    %1024 = vector.load %arg2[%c4_686, %c0_687, %c0_688] : memref<8x8x256xf32, #tpu.memory_space<vmem>>, vector<1x8x256xf32>
    %1025 = vector.shape_cast %1024 : vector<1x8x256xf32> to vector<8x256xf32>
    %1026 = arith.mulf %1023, %1025 : vector<8x256xf32>
    %c241_i32_689 = arith.constant 241 : i32
    %1027 = tpu.dynamic_rotate %1006 by %c241_i32_689 dim 1 : vector<8x256xf32>, i32 -> vector<8x256xf32>
    %c5_690 = arith.constant 5 : index
    %c0_691 = arith.constant 0 : index
    %c0_692 = arith.constant 0 : index
    %1028 = vector.load %arg2[%c5_690, %c0_691, %c0_692] : memref<8x8x256xf32, #tpu.memory_space<vmem>>, vector<1x8x256xf32>
    %1029 = vector.shape_cast %1028 : vector<1x8x256xf32> to vector<8x256xf32>
    %1030 = arith.mulf %1027, %1029 : vector<8x256xf32>
    %c240_i32_693 = arith.constant 240 : i32
    %1031 = tpu.dynamic_rotate %1006 by %c240_i32_693 dim 1 : vector<8x256xf32>, i32 -> vector<8x256xf32>
    %c6_694 = arith.constant 6 : index
    %c0_695 = arith.constant 0 : index
    %c0_696 = arith.constant 0 : index
    %1032 = vector.load %arg2[%c6_694, %c0_695, %c0_696] : memref<8x8x256xf32, #tpu.memory_space<vmem>>, vector<1x8x256xf32>
    %1033 = vector.shape_cast %1032 : vector<1x8x256xf32> to vector<8x256xf32>
    %1034 = arith.mulf %1031, %1033 : vector<8x256xf32>
    %c239_i32_697 = arith.constant 239 : i32
    %1035 = tpu.dynamic_rotate %1006 by %c239_i32_697 dim 1 : vector<8x256xf32>, i32 -> vector<8x256xf32>
    %c7_698 = arith.constant 7 : index
    %c0_699 = arith.constant 0 : index
    %c0_700 = arith.constant 0 : index
    %1036 = vector.load %arg2[%c7_698, %c0_699, %c0_700] : memref<8x8x256xf32, #tpu.memory_space<vmem>>, vector<1x8x256xf32>
    %1037 = vector.shape_cast %1036 : vector<1x8x256xf32> to vector<8x256xf32>
    %1038 = arith.mulf %1035, %1037 : vector<8x256xf32>
    %1039 = tpu.concatenate %1010, %1014, %1018, %1022, %1006, %1026, %1030, %1034, %1038 in 0 : vector<8x256xf32>, vector<8x256xf32>, vector<8x256xf32>, vector<8x256xf32>, vector<8x256xf32>, vector<8x256xf32>, vector<8x256xf32>, vector<8x256xf32>, vector<8x256xf32> -> vector<72x256xf32>
    %1040 = arith.truncf %1039 : vector<72x256xf32> to vector<72x256xbf16>
    %c0_701 = arith.constant 0 : index
    %c0_702 = arith.constant 0 : index
    %c0_703 = arith.constant 0 : index
    %1041 = vector.load %arg3[%c0_701, %c0_702, %c0_703] : memref<13x8x72xf32, #tpu.memory_space<vmem>>, vector<1x8x72xf32>
    %1042 = vector.shape_cast %1041 : vector<1x8x72xf32> to vector<8x72xf32>
    %1043 = arith.truncf %1042 : vector<8x72xf32> to vector<8x72xbf16>
    %cst_704 = arith.constant dense<0.000000e+00> : vector<8x256xf32>
    %1044 = tpu.matmul %1043, %1040, %cst_704 {dimension_numbers = #tpu.dot_dimension_numbers<[1], [0], [0], [1], [0, 0, 1, 1], [], []>} : vector<8x72xbf16>, vector<72x256xbf16>, vector<8x256xf32> -> vector<8x256xf32>
    %c0_705 = arith.constant 0 : index
    %c0_706 = arith.constant 0 : index
    %c0_707 = arith.constant 0 : index
    %1045 = vector.load %arg4[%c0_705, %c0_706, %c0_707] : memref<13x8x1xf32, #tpu.memory_space<vmem>>, vector<1x8x1xf32>
    %1046 = vector.shape_cast %1045 : vector<1x8x1xf32> to vector<8x1xf32>
    %1047 = vector.broadcast %1046 : vector<8x1xf32> to vector<8x256xf32>
    %1048 = arith.addf %1044, %1047 : vector<8x256xf32>
    %cst_708 = arith.constant dense<0.000000e+00> : vector<8xf32>
    %1049 = vector.multi_reduction <add>, %1048, %cst_708 [1] : vector<8x256xf32> to vector<8xf32>
    %1050 = vector.shape_cast %1049 : vector<8xf32> to vector<8x1xf32>
    %1051 = arith.mulf %1048, %1048 : vector<8x256xf32>
    %cst_709 = arith.constant dense<0.000000e+00> : vector<8xf32>
    %1052 = vector.multi_reduction <add>, %1051, %cst_709 [1] : vector<8x256xf32> to vector<8xf32>
    %1053 = vector.shape_cast %1052 : vector<8xf32> to vector<8x1xf32>
    %cst_710 = arith.constant 3.906250e-03 : f32
    %1054 = vector.broadcast %cst_710 : f32 to vector<8x1xf32>
    %1055 = arith.mulf %1050, %1054 : vector<8x1xf32>
    %cst_711 = arith.constant 3.906250e-03 : f32
    %1056 = vector.broadcast %cst_711 : f32 to vector<8x1xf32>
    %1057 = arith.mulf %1053, %1056 : vector<8x1xf32>
    %1058 = arith.mulf %1055, %1055 : vector<8x1xf32>
    %1059 = arith.subf %1057, %1058 : vector<8x1xf32>
    %1060 = vector.broadcast %1055 : vector<8x1xf32> to vector<8x256xf32>
    %1061 = arith.subf %1048, %1060 : vector<8x256xf32>
    %cst_712 = arith.constant 9.99999974E-6 : f32
    %1062 = vector.broadcast %cst_712 : f32 to vector<8x1xf32>
    %1063 = arith.addf %1059, %1062 : vector<8x1xf32>
    %1064 = math.rsqrt %1063 : vector<8x1xf32>
    %1065 = vector.broadcast %1064 : vector<8x1xf32> to vector<8x256xf32>
    %1066 = arith.mulf %1061, %1065 : vector<8x256xf32>
    %c0_713 = arith.constant 0 : index
    %c0_714 = arith.constant 0 : index
    %c0_715 = arith.constant 0 : index
    %1067 = vector.load %arg5[%c0_713, %c0_714, %c0_715] : memref<13x8x1xf32, #tpu.memory_space<vmem>>, vector<1x8x1xf32>
    %1068 = vector.shape_cast %1067 : vector<1x8x1xf32> to vector<8x1xf32>
    %1069 = vector.broadcast %1068 : vector<8x1xf32> to vector<8x256xf32>
    %1070 = arith.mulf %1066, %1069 : vector<8x256xf32>
    %c0_716 = arith.constant 0 : index
    %c0_717 = arith.constant 0 : index
    %c0_718 = arith.constant 0 : index
    %1071 = vector.load %arg6[%c0_716, %c0_717, %c0_718] : memref<13x8x1xf32, #tpu.memory_space<vmem>>, vector<1x8x1xf32>
    %1072 = vector.shape_cast %1071 : vector<1x8x1xf32> to vector<8x1xf32>
    %1073 = vector.broadcast %1072 : vector<8x1xf32> to vector<8x256xf32>
    %1074 = arith.addf %1070, %1073 : vector<8x256xf32>
    %cst_719 = arith.constant 5.000000e-01 : f32
    %1075 = vector.broadcast %cst_719 : f32 to vector<8x256xf32>
    %1076 = arith.mulf %1075, %1074 : vector<8x256xf32>
    %cst_720 = arith.constant 4.471500e-02 : f32
    %1077 = vector.broadcast %cst_720 : f32 to vector<8x256xf32>
    %1078 = arith.mulf %1077, %1074 : vector<8x256xf32>
    %1079 = arith.mulf %1078, %1074 : vector<8x256xf32>
    %1080 = arith.mulf %1079, %1074 : vector<8x256xf32>
    %1081 = arith.addf %1074, %1080 : vector<8x256xf32>
    %cst_721 = arith.constant 0.797884583 : f32
    %1082 = vector.broadcast %cst_721 : f32 to vector<8x256xf32>
    %1083 = arith.mulf %1082, %1081 : vector<8x256xf32>
    %1084 = math.tanh %1083 : vector<8x256xf32>
    %cst_722 = arith.constant 1.000000e+00 : f32
    %1085 = vector.broadcast %cst_722 : f32 to vector<8x256xf32>
    %1086 = arith.addf %1085, %1084 : vector<8x256xf32>
    %1087 = arith.mulf %1076, %1086 : vector<8x256xf32>
    %c17_i32_723 = arith.constant 17 : i32
    %1088 = tpu.dynamic_rotate %1087 by %c17_i32_723 dim 1 : vector<8x256xf32>, i32 -> vector<8x256xf32>
    %c0_724 = arith.constant 0 : index
    %c0_725 = arith.constant 0 : index
    %c0_726 = arith.constant 0 : index
    %1089 = vector.load %arg2[%c0_724, %c0_725, %c0_726] : memref<8x8x256xf32, #tpu.memory_space<vmem>>, vector<1x8x256xf32>
    %1090 = vector.shape_cast %1089 : vector<1x8x256xf32> to vector<8x256xf32>
    %1091 = arith.mulf %1088, %1090 : vector<8x256xf32>
    %c16_i32_727 = arith.constant 16 : i32
    %1092 = tpu.dynamic_rotate %1087 by %c16_i32_727 dim 1 : vector<8x256xf32>, i32 -> vector<8x256xf32>
    %c1_728 = arith.constant 1 : index
    %c0_729 = arith.constant 0 : index
    %c0_730 = arith.constant 0 : index
    %1093 = vector.load %arg2[%c1_728, %c0_729, %c0_730] : memref<8x8x256xf32, #tpu.memory_space<vmem>>, vector<1x8x256xf32>
    %1094 = vector.shape_cast %1093 : vector<1x8x256xf32> to vector<8x256xf32>
    %1095 = arith.mulf %1092, %1094 : vector<8x256xf32>
    %c15_i32_731 = arith.constant 15 : i32
    %1096 = tpu.dynamic_rotate %1087 by %c15_i32_731 dim 1 : vector<8x256xf32>, i32 -> vector<8x256xf32>
    %c2_732 = arith.constant 2 : index
    %c0_733 = arith.constant 0 : index
    %c0_734 = arith.constant 0 : index
    %1097 = vector.load %arg2[%c2_732, %c0_733, %c0_734] : memref<8x8x256xf32, #tpu.memory_space<vmem>>, vector<1x8x256xf32>
    %1098 = vector.shape_cast %1097 : vector<1x8x256xf32> to vector<8x256xf32>
    %1099 = arith.mulf %1096, %1098 : vector<8x256xf32>
    %c1_i32_735 = arith.constant 1 : i32
    %1100 = tpu.dynamic_rotate %1087 by %c1_i32_735 dim 1 : vector<8x256xf32>, i32 -> vector<8x256xf32>
    %c3_736 = arith.constant 3 : index
    %c0_737 = arith.constant 0 : index
    %c0_738 = arith.constant 0 : index
    %1101 = vector.load %arg2[%c3_736, %c0_737, %c0_738] : memref<8x8x256xf32, #tpu.memory_space<vmem>>, vector<1x8x256xf32>
    %1102 = vector.shape_cast %1101 : vector<1x8x256xf32> to vector<8x256xf32>
    %1103 = arith.mulf %1100, %1102 : vector<8x256xf32>
    %c255_i32_739 = arith.constant 255 : i32
    %1104 = tpu.dynamic_rotate %1087 by %c255_i32_739 dim 1 : vector<8x256xf32>, i32 -> vector<8x256xf32>
    %c4_740 = arith.constant 4 : index
    %c0_741 = arith.constant 0 : index
    %c0_742 = arith.constant 0 : index
    %1105 = vector.load %arg2[%c4_740, %c0_741, %c0_742] : memref<8x8x256xf32, #tpu.memory_space<vmem>>, vector<1x8x256xf32>
    %1106 = vector.shape_cast %1105 : vector<1x8x256xf32> to vector<8x256xf32>
    %1107 = arith.mulf %1104, %1106 : vector<8x256xf32>
    %c241_i32_743 = arith.constant 241 : i32
    %1108 = tpu.dynamic_rotate %1087 by %c241_i32_743 dim 1 : vector<8x256xf32>, i32 -> vector<8x256xf32>
    %c5_744 = arith.constant 5 : index
    %c0_745 = arith.constant 0 : index
    %c0_746 = arith.constant 0 : index
    %1109 = vector.load %arg2[%c5_744, %c0_745, %c0_746] : memref<8x8x256xf32, #tpu.memory_space<vmem>>, vector<1x8x256xf32>
    %1110 = vector.shape_cast %1109 : vector<1x8x256xf32> to vector<8x256xf32>
    %1111 = arith.mulf %1108, %1110 : vector<8x256xf32>
    %c240_i32_747 = arith.constant 240 : i32
    %1112 = tpu.dynamic_rotate %1087 by %c240_i32_747 dim 1 : vector<8x256xf32>, i32 -> vector<8x256xf32>
    %c6_748 = arith.constant 6 : index
    %c0_749 = arith.constant 0 : index
    %c0_750 = arith.constant 0 : index
    %1113 = vector.load %arg2[%c6_748, %c0_749, %c0_750] : memref<8x8x256xf32, #tpu.memory_space<vmem>>, vector<1x8x256xf32>
    %1114 = vector.shape_cast %1113 : vector<1x8x256xf32> to vector<8x256xf32>
    %1115 = arith.mulf %1112, %1114 : vector<8x256xf32>
    %c239_i32_751 = arith.constant 239 : i32
    %1116 = tpu.dynamic_rotate %1087 by %c239_i32_751 dim 1 : vector<8x256xf32>, i32 -> vector<8x256xf32>
    %c7_752 = arith.constant 7 : index
    %c0_753 = arith.constant 0 : index
    %c0_754 = arith.constant 0 : index
    %1117 = vector.load %arg2[%c7_752, %c0_753, %c0_754] : memref<8x8x256xf32, #tpu.memory_space<vmem>>, vector<1x8x256xf32>
    %1118 = vector.shape_cast %1117 : vector<1x8x256xf32> to vector<8x256xf32>
    %1119 = arith.mulf %1116, %1118 : vector<8x256xf32>
    %1120 = tpu.concatenate %1091, %1095, %1099, %1103, %1087, %1107, %1111, %1115, %1119 in 0 : vector<8x256xf32>, vector<8x256xf32>, vector<8x256xf32>, vector<8x256xf32>, vector<8x256xf32>, vector<8x256xf32>, vector<8x256xf32>, vector<8x256xf32>, vector<8x256xf32> -> vector<72x256xf32>
    %1121 = arith.truncf %1120 : vector<72x256xf32> to vector<72x256xbf16>
    %c1_755 = arith.constant 1 : index
    %c0_756 = arith.constant 0 : index
    %c0_757 = arith.constant 0 : index
    %1122 = vector.load %arg3[%c1_755, %c0_756, %c0_757] : memref<13x8x72xf32, #tpu.memory_space<vmem>>, vector<1x8x72xf32>
    %1123 = vector.shape_cast %1122 : vector<1x8x72xf32> to vector<8x72xf32>
    %1124 = arith.truncf %1123 : vector<8x72xf32> to vector<8x72xbf16>
    %cst_758 = arith.constant dense<0.000000e+00> : vector<8x256xf32>
    %1125 = tpu.matmul %1124, %1121, %cst_758 {dimension_numbers = #tpu.dot_dimension_numbers<[1], [0], [0], [1], [0, 0, 1, 1], [], []>} : vector<8x72xbf16>, vector<72x256xbf16>, vector<8x256xf32> -> vector<8x256xf32>
    %c1_759 = arith.constant 1 : index
    %c0_760 = arith.constant 0 : index
    %c0_761 = arith.constant 0 : index
    %1126 = vector.load %arg4[%c1_759, %c0_760, %c0_761] : memref<13x8x1xf32, #tpu.memory_space<vmem>>, vector<1x8x1xf32>
    %1127 = vector.shape_cast %1126 : vector<1x8x1xf32> to vector<8x1xf32>
    %1128 = vector.broadcast %1127 : vector<8x1xf32> to vector<8x256xf32>
    %1129 = arith.addf %1125, %1128 : vector<8x256xf32>
    %cst_762 = arith.constant dense<0.000000e+00> : vector<8xf32>
    %1130 = vector.multi_reduction <add>, %1129, %cst_762 [1] : vector<8x256xf32> to vector<8xf32>
    %1131 = vector.shape_cast %1130 : vector<8xf32> to vector<8x1xf32>
    %1132 = arith.mulf %1129, %1129 : vector<8x256xf32>
    %cst_763 = arith.constant dense<0.000000e+00> : vector<8xf32>
    %1133 = vector.multi_reduction <add>, %1132, %cst_763 [1] : vector<8x256xf32> to vector<8xf32>
    %1134 = vector.shape_cast %1133 : vector<8xf32> to vector<8x1xf32>
    %cst_764 = arith.constant 3.906250e-03 : f32
    %1135 = vector.broadcast %cst_764 : f32 to vector<8x1xf32>
    %1136 = arith.mulf %1131, %1135 : vector<8x1xf32>
    %cst_765 = arith.constant 3.906250e-03 : f32
    %1137 = vector.broadcast %cst_765 : f32 to vector<8x1xf32>
    %1138 = arith.mulf %1134, %1137 : vector<8x1xf32>
    %1139 = arith.mulf %1136, %1136 : vector<8x1xf32>
    %1140 = arith.subf %1138, %1139 : vector<8x1xf32>
    %1141 = vector.broadcast %1136 : vector<8x1xf32> to vector<8x256xf32>
    %1142 = arith.subf %1129, %1141 : vector<8x256xf32>
    %cst_766 = arith.constant 9.99999974E-6 : f32
    %1143 = vector.broadcast %cst_766 : f32 to vector<8x1xf32>
    %1144 = arith.addf %1140, %1143 : vector<8x1xf32>
    %1145 = math.rsqrt %1144 : vector<8x1xf32>
    %1146 = vector.broadcast %1145 : vector<8x1xf32> to vector<8x256xf32>
    %1147 = arith.mulf %1142, %1146 : vector<8x256xf32>
    %c1_767 = arith.constant 1 : index
    %c0_768 = arith.constant 0 : index
    %c0_769 = arith.constant 0 : index
    %1148 = vector.load %arg5[%c1_767, %c0_768, %c0_769] : memref<13x8x1xf32, #tpu.memory_space<vmem>>, vector<1x8x1xf32>
    %1149 = vector.shape_cast %1148 : vector<1x8x1xf32> to vector<8x1xf32>
    %1150 = vector.broadcast %1149 : vector<8x1xf32> to vector<8x256xf32>
    %1151 = arith.mulf %1147, %1150 : vector<8x256xf32>
    %c1_770 = arith.constant 1 : index
    %c0_771 = arith.constant 0 : index
    %c0_772 = arith.constant 0 : index
    %1152 = vector.load %arg6[%c1_770, %c0_771, %c0_772] : memref<13x8x1xf32, #tpu.memory_space<vmem>>, vector<1x8x1xf32>
    %1153 = vector.shape_cast %1152 : vector<1x8x1xf32> to vector<8x1xf32>
    %1154 = vector.broadcast %1153 : vector<8x1xf32> to vector<8x256xf32>
    %1155 = arith.addf %1151, %1154 : vector<8x256xf32>
    %1156 = arith.addf %1155, %1006 : vector<8x256xf32>
    %cst_773 = arith.constant 5.000000e-01 : f32
    %1157 = vector.broadcast %cst_773 : f32 to vector<8x256xf32>
    %1158 = arith.mulf %1157, %1156 : vector<8x256xf32>
    %cst_774 = arith.constant 4.471500e-02 : f32
    %1159 = vector.broadcast %cst_774 : f32 to vector<8x256xf32>
    %1160 = arith.mulf %1159, %1156 : vector<8x256xf32>
    %1161 = arith.mulf %1160, %1156 : vector<8x256xf32>
    %1162 = arith.mulf %1161, %1156 : vector<8x256xf32>
    %1163 = arith.addf %1156, %1162 : vector<8x256xf32>
    %cst_775 = arith.constant 0.797884583 : f32
    %1164 = vector.broadcast %cst_775 : f32 to vector<8x256xf32>
    %1165 = arith.mulf %1164, %1163 : vector<8x256xf32>
    %1166 = math.tanh %1165 : vector<8x256xf32>
    %cst_776 = arith.constant 1.000000e+00 : f32
    %1167 = vector.broadcast %cst_776 : f32 to vector<8x256xf32>
    %1168 = arith.addf %1167, %1166 : vector<8x256xf32>
    %1169 = arith.mulf %1158, %1168 : vector<8x256xf32>
    %c17_i32_777 = arith.constant 17 : i32
    %1170 = tpu.dynamic_rotate %1169 by %c17_i32_777 dim 1 : vector<8x256xf32>, i32 -> vector<8x256xf32>
    %c0_778 = arith.constant 0 : index
    %c0_779 = arith.constant 0 : index
    %c0_780 = arith.constant 0 : index
    %1171 = vector.load %arg2[%c0_778, %c0_779, %c0_780] : memref<8x8x256xf32, #tpu.memory_space<vmem>>, vector<1x8x256xf32>
    %1172 = vector.shape_cast %1171 : vector<1x8x256xf32> to vector<8x256xf32>
    %1173 = arith.mulf %1170, %1172 : vector<8x256xf32>
    %c16_i32_781 = arith.constant 16 : i32
    %1174 = tpu.dynamic_rotate %1169 by %c16_i32_781 dim 1 : vector<8x256xf32>, i32 -> vector<8x256xf32>
    %c1_782 = arith.constant 1 : index
    %c0_783 = arith.constant 0 : index
    %c0_784 = arith.constant 0 : index
    %1175 = vector.load %arg2[%c1_782, %c0_783, %c0_784] : memref<8x8x256xf32, #tpu.memory_space<vmem>>, vector<1x8x256xf32>
    %1176 = vector.shape_cast %1175 : vector<1x8x256xf32> to vector<8x256xf32>
    %1177 = arith.mulf %1174, %1176 : vector<8x256xf32>
    %c15_i32_785 = arith.constant 15 : i32
    %1178 = tpu.dynamic_rotate %1169 by %c15_i32_785 dim 1 : vector<8x256xf32>, i32 -> vector<8x256xf32>
    %c2_786 = arith.constant 2 : index
    %c0_787 = arith.constant 0 : index
    %c0_788 = arith.constant 0 : index
    %1179 = vector.load %arg2[%c2_786, %c0_787, %c0_788] : memref<8x8x256xf32, #tpu.memory_space<vmem>>, vector<1x8x256xf32>
    %1180 = vector.shape_cast %1179 : vector<1x8x256xf32> to vector<8x256xf32>
    %1181 = arith.mulf %1178, %1180 : vector<8x256xf32>
    %c1_i32_789 = arith.constant 1 : i32
    %1182 = tpu.dynamic_rotate %1169 by %c1_i32_789 dim 1 : vector<8x256xf32>, i32 -> vector<8x256xf32>
    %c3_790 = arith.constant 3 : index
    %c0_791 = arith.constant 0 : index
    %c0_792 = arith.constant 0 : index
    %1183 = vector.load %arg2[%c3_790, %c0_791, %c0_792] : memref<8x8x256xf32, #tpu.memory_space<vmem>>, vector<1x8x256xf32>
    %1184 = vector.shape_cast %1183 : vector<1x8x256xf32> to vector<8x256xf32>
    %1185 = arith.mulf %1182, %1184 : vector<8x256xf32>
    %c255_i32_793 = arith.constant 255 : i32
    %1186 = tpu.dynamic_rotate %1169 by %c255_i32_793 dim 1 : vector<8x256xf32>, i32 -> vector<8x256xf32>
    %c4_794 = arith.constant 4 : index
    %c0_795 = arith.constant 0 : index
    %c0_796 = arith.constant 0 : index
    %1187 = vector.load %arg2[%c4_794, %c0_795, %c0_796] : memref<8x8x256xf32, #tpu.memory_space<vmem>>, vector<1x8x256xf32>
    %1188 = vector.shape_cast %1187 : vector<1x8x256xf32> to vector<8x256xf32>
    %1189 = arith.mulf %1186, %1188 : vector<8x256xf32>
    %c241_i32_797 = arith.constant 241 : i32
    %1190 = tpu.dynamic_rotate %1169 by %c241_i32_797 dim 1 : vector<8x256xf32>, i32 -> vector<8x256xf32>
    %c5_798 = arith.constant 5 : index
    %c0_799 = arith.constant 0 : index
    %c0_800 = arith.constant 0 : index
    %1191 = vector.load %arg2[%c5_798, %c0_799, %c0_800] : memref<8x8x256xf32, #tpu.memory_space<vmem>>, vector<1x8x256xf32>
    %1192 = vector.shape_cast %1191 : vector<1x8x256xf32> to vector<8x256xf32>
    %1193 = arith.mulf %1190, %1192 : vector<8x256xf32>
    %c240_i32_801 = arith.constant 240 : i32
    %1194 = tpu.dynamic_rotate %1169 by %c240_i32_801 dim 1 : vector<8x256xf32>, i32 -> vector<8x256xf32>
    %c6_802 = arith.constant 6 : index
    %c0_803 = arith.constant 0 : index
    %c0_804 = arith.constant 0 : index
    %1195 = vector.load %arg2[%c6_802, %c0_803, %c0_804] : memref<8x8x256xf32, #tpu.memory_space<vmem>>, vector<1x8x256xf32>
    %1196 = vector.shape_cast %1195 : vector<1x8x256xf32> to vector<8x256xf32>
    %1197 = arith.mulf %1194, %1196 : vector<8x256xf32>
    %c239_i32_805 = arith.constant 239 : i32
    %1198 = tpu.dynamic_rotate %1169 by %c239_i32_805 dim 1 : vector<8x256xf32>, i32 -> vector<8x256xf32>
    %c7_806 = arith.constant 7 : index
    %c0_807 = arith.constant 0 : index
    %c0_808 = arith.constant 0 : index
    %1199 = vector.load %arg2[%c7_806, %c0_807, %c0_808] : memref<8x8x256xf32, #tpu.memory_space<vmem>>, vector<1x8x256xf32>
    %1200 = vector.shape_cast %1199 : vector<1x8x256xf32> to vector<8x256xf32>
    %1201 = arith.mulf %1198, %1200 : vector<8x256xf32>
    %1202 = tpu.concatenate %1173, %1177, %1181, %1185, %1169, %1189, %1193, %1197, %1201 in 0 : vector<8x256xf32>, vector<8x256xf32>, vector<8x256xf32>, vector<8x256xf32>, vector<8x256xf32>, vector<8x256xf32>, vector<8x256xf32>, vector<8x256xf32>, vector<8x256xf32> -> vector<72x256xf32>
    %1203 = arith.truncf %1202 : vector<72x256xf32> to vector<72x256xbf16>
    %c2_809 = arith.constant 2 : index
    %c0_810 = arith.constant 0 : index
    %c0_811 = arith.constant 0 : index
    %1204 = vector.load %arg3[%c2_809, %c0_810, %c0_811] : memref<13x8x72xf32, #tpu.memory_space<vmem>>, vector<1x8x72xf32>
    %1205 = vector.shape_cast %1204 : vector<1x8x72xf32> to vector<8x72xf32>
    %1206 = arith.truncf %1205 : vector<8x72xf32> to vector<8x72xbf16>
    %cst_812 = arith.constant dense<0.000000e+00> : vector<8x256xf32>
    %1207 = tpu.matmul %1206, %1203, %cst_812 {dimension_numbers = #tpu.dot_dimension_numbers<[1], [0], [0], [1], [0, 0, 1, 1], [], []>} : vector<8x72xbf16>, vector<72x256xbf16>, vector<8x256xf32> -> vector<8x256xf32>
    %c2_813 = arith.constant 2 : index
    %c0_814 = arith.constant 0 : index
    %c0_815 = arith.constant 0 : index
    %1208 = vector.load %arg4[%c2_813, %c0_814, %c0_815] : memref<13x8x1xf32, #tpu.memory_space<vmem>>, vector<1x8x1xf32>
    %1209 = vector.shape_cast %1208 : vector<1x8x1xf32> to vector<8x1xf32>
    %1210 = vector.broadcast %1209 : vector<8x1xf32> to vector<8x256xf32>
    %1211 = arith.addf %1207, %1210 : vector<8x256xf32>
    %cst_816 = arith.constant dense<0.000000e+00> : vector<8xf32>
    %1212 = vector.multi_reduction <add>, %1211, %cst_816 [1] : vector<8x256xf32> to vector<8xf32>
    %1213 = vector.shape_cast %1212 : vector<8xf32> to vector<8x1xf32>
    %1214 = arith.mulf %1211, %1211 : vector<8x256xf32>
    %cst_817 = arith.constant dense<0.000000e+00> : vector<8xf32>
    %1215 = vector.multi_reduction <add>, %1214, %cst_817 [1] : vector<8x256xf32> to vector<8xf32>
    %1216 = vector.shape_cast %1215 : vector<8xf32> to vector<8x1xf32>
    %cst_818 = arith.constant 3.906250e-03 : f32
    %1217 = vector.broadcast %cst_818 : f32 to vector<8x1xf32>
    %1218 = arith.mulf %1213, %1217 : vector<8x1xf32>
    %cst_819 = arith.constant 3.906250e-03 : f32
    %1219 = vector.broadcast %cst_819 : f32 to vector<8x1xf32>
    %1220 = arith.mulf %1216, %1219 : vector<8x1xf32>
    %1221 = arith.mulf %1218, %1218 : vector<8x1xf32>
    %1222 = arith.subf %1220, %1221 : vector<8x1xf32>
    %1223 = vector.broadcast %1218 : vector<8x1xf32> to vector<8x256xf32>
    %1224 = arith.subf %1211, %1223 : vector<8x256xf32>
    %cst_820 = arith.constant 9.99999974E-6 : f32
    %1225 = vector.broadcast %cst_820 : f32 to vector<8x1xf32>
    %1226 = arith.addf %1222, %1225 : vector<8x1xf32>
    %1227 = math.rsqrt %1226 : vector<8x1xf32>
    %1228 = vector.broadcast %1227 : vector<8x1xf32> to vector<8x256xf32>
    %1229 = arith.mulf %1224, %1228 : vector<8x256xf32>
    %c2_821 = arith.constant 2 : index
    %c0_822 = arith.constant 0 : index
    %c0_823 = arith.constant 0 : index
    %1230 = vector.load %arg5[%c2_821, %c0_822, %c0_823] : memref<13x8x1xf32, #tpu.memory_space<vmem>>, vector<1x8x1xf32>
    %1231 = vector.shape_cast %1230 : vector<1x8x1xf32> to vector<8x1xf32>
    %1232 = vector.broadcast %1231 : vector<8x1xf32> to vector<8x256xf32>
    %1233 = arith.mulf %1229, %1232 : vector<8x256xf32>
    %c2_824 = arith.constant 2 : index
    %c0_825 = arith.constant 0 : index
    %c0_826 = arith.constant 0 : index
    %1234 = vector.load %arg6[%c2_824, %c0_825, %c0_826] : memref<13x8x1xf32, #tpu.memory_space<vmem>>, vector<1x8x1xf32>
    %1235 = vector.shape_cast %1234 : vector<1x8x1xf32> to vector<8x1xf32>
    %1236 = vector.broadcast %1235 : vector<8x1xf32> to vector<8x256xf32>
    %1237 = arith.addf %1233, %1236 : vector<8x256xf32>
    %1238 = arith.negf %1237 : vector<8x256xf32>
    %1239 = math.exp %1238 : vector<8x256xf32>
    %cst_827 = arith.constant 1.000000e+00 : f32
    %1240 = vector.broadcast %cst_827 : f32 to vector<8x256xf32>
    %1241 = arith.addf %1240, %1239 : vector<8x256xf32>
    %1242 = arith.divf %1240, %1241 : vector<8x256xf32>
    %1243 = arith.mulf %1237, %1242 : vector<8x256xf32>
    %c17_i32_828 = arith.constant 17 : i32
    %1244 = tpu.dynamic_rotate %1243 by %c17_i32_828 dim 1 : vector<8x256xf32>, i32 -> vector<8x256xf32>
    %c0_829 = arith.constant 0 : index
    %c0_830 = arith.constant 0 : index
    %c0_831 = arith.constant 0 : index
    %1245 = vector.load %arg2[%c0_829, %c0_830, %c0_831] : memref<8x8x256xf32, #tpu.memory_space<vmem>>, vector<1x8x256xf32>
    %1246 = vector.shape_cast %1245 : vector<1x8x256xf32> to vector<8x256xf32>
    %1247 = arith.mulf %1244, %1246 : vector<8x256xf32>
    %c16_i32_832 = arith.constant 16 : i32
    %1248 = tpu.dynamic_rotate %1243 by %c16_i32_832 dim 1 : vector<8x256xf32>, i32 -> vector<8x256xf32>
    %c1_833 = arith.constant 1 : index
    %c0_834 = arith.constant 0 : index
    %c0_835 = arith.constant 0 : index
    %1249 = vector.load %arg2[%c1_833, %c0_834, %c0_835] : memref<8x8x256xf32, #tpu.memory_space<vmem>>, vector<1x8x256xf32>
    %1250 = vector.shape_cast %1249 : vector<1x8x256xf32> to vector<8x256xf32>
    %1251 = arith.mulf %1248, %1250 : vector<8x256xf32>
    %c15_i32_836 = arith.constant 15 : i32
    %1252 = tpu.dynamic_rotate %1243 by %c15_i32_836 dim 1 : vector<8x256xf32>, i32 -> vector<8x256xf32>
    %c2_837 = arith.constant 2 : index
    %c0_838 = arith.constant 0 : index
    %c0_839 = arith.constant 0 : index
    %1253 = vector.load %arg2[%c2_837, %c0_838, %c0_839] : memref<8x8x256xf32, #tpu.memory_space<vmem>>, vector<1x8x256xf32>
    %1254 = vector.shape_cast %1253 : vector<1x8x256xf32> to vector<8x256xf32>
    %1255 = arith.mulf %1252, %1254 : vector<8x256xf32>
    %c1_i32_840 = arith.constant 1 : i32
    %1256 = tpu.dynamic_rotate %1243 by %c1_i32_840 dim 1 : vector<8x256xf32>, i32 -> vector<8x256xf32>
    %c3_841 = arith.constant 3 : index
    %c0_842 = arith.constant 0 : index
    %c0_843 = arith.constant 0 : index
    %1257 = vector.load %arg2[%c3_841, %c0_842, %c0_843] : memref<8x8x256xf32, #tpu.memory_space<vmem>>, vector<1x8x256xf32>
    %1258 = vector.shape_cast %1257 : vector<1x8x256xf32> to vector<8x256xf32>
    %1259 = arith.mulf %1256, %1258 : vector<8x256xf32>
    %c255_i32_844 = arith.constant 255 : i32
    %1260 = tpu.dynamic_rotate %1243 by %c255_i32_844 dim 1 : vector<8x256xf32>, i32 -> vector<8x256xf32>
    %c4_845 = arith.constant 4 : index
    %c0_846 = arith.constant 0 : index
    %c0_847 = arith.constant 0 : index
    %1261 = vector.load %arg2[%c4_845, %c0_846, %c0_847] : memref<8x8x256xf32, #tpu.memory_space<vmem>>, vector<1x8x256xf32>
    %1262 = vector.shape_cast %1261 : vector<1x8x256xf32> to vector<8x256xf32>
    %1263 = arith.mulf %1260, %1262 : vector<8x256xf32>
    %c241_i32_848 = arith.constant 241 : i32
    %1264 = tpu.dynamic_rotate %1243 by %c241_i32_848 dim 1 : vector<8x256xf32>, i32 -> vector<8x256xf32>
    %c5_849 = arith.constant 5 : index
    %c0_850 = arith.constant 0 : index
    %c0_851 = arith.constant 0 : index
    %1265 = vector.load %arg2[%c5_849, %c0_850, %c0_851] : memref<8x8x256xf32, #tpu.memory_space<vmem>>, vector<1x8x256xf32>
    %1266 = vector.shape_cast %1265 : vector<1x8x256xf32> to vector<8x256xf32>
    %1267 = arith.mulf %1264, %1266 : vector<8x256xf32>
    %c240_i32_852 = arith.constant 240 : i32
    %1268 = tpu.dynamic_rotate %1243 by %c240_i32_852 dim 1 : vector<8x256xf32>, i32 -> vector<8x256xf32>
    %c6_853 = arith.constant 6 : index
    %c0_854 = arith.constant 0 : index
    %c0_855 = arith.constant 0 : index
    %1269 = vector.load %arg2[%c6_853, %c0_854, %c0_855] : memref<8x8x256xf32, #tpu.memory_space<vmem>>, vector<1x8x256xf32>
    %1270 = vector.shape_cast %1269 : vector<1x8x256xf32> to vector<8x256xf32>
    %1271 = arith.mulf %1268, %1270 : vector<8x256xf32>
    %c239_i32_856 = arith.constant 239 : i32
    %1272 = tpu.dynamic_rotate %1243 by %c239_i32_856 dim 1 : vector<8x256xf32>, i32 -> vector<8x256xf32>
    %c7_857 = arith.constant 7 : index
    %c0_858 = arith.constant 0 : index
    %c0_859 = arith.constant 0 : index
    %1273 = vector.load %arg2[%c7_857, %c0_858, %c0_859] : memref<8x8x256xf32, #tpu.memory_space<vmem>>, vector<1x8x256xf32>
    %1274 = vector.shape_cast %1273 : vector<1x8x256xf32> to vector<8x256xf32>
    %1275 = arith.mulf %1272, %1274 : vector<8x256xf32>
    %1276 = tpu.concatenate %1247, %1251, %1255, %1259, %1243, %1263, %1267, %1271, %1275 in 0 : vector<8x256xf32>, vector<8x256xf32>, vector<8x256xf32>, vector<8x256xf32>, vector<8x256xf32>, vector<8x256xf32>, vector<8x256xf32>, vector<8x256xf32>, vector<8x256xf32> -> vector<72x256xf32>
    %1277 = arith.truncf %1276 : vector<72x256xf32> to vector<72x256xbf16>
    %c3_860 = arith.constant 3 : index
    %c0_861 = arith.constant 0 : index
    %c0_862 = arith.constant 0 : index
    %1278 = vector.load %arg3[%c3_860, %c0_861, %c0_862] : memref<13x8x72xf32, #tpu.memory_space<vmem>>, vector<1x8x72xf32>
    %1279 = vector.shape_cast %1278 : vector<1x8x72xf32> to vector<8x72xf32>
    %1280 = arith.truncf %1279 : vector<8x72xf32> to vector<8x72xbf16>
    %cst_863 = arith.constant dense<0.000000e+00> : vector<8x256xf32>
    %1281 = tpu.matmul %1280, %1277, %cst_863 {dimension_numbers = #tpu.dot_dimension_numbers<[1], [0], [0], [1], [0, 0, 1, 1], [], []>} : vector<8x72xbf16>, vector<72x256xbf16>, vector<8x256xf32> -> vector<8x256xf32>
    %c3_864 = arith.constant 3 : index
    %c0_865 = arith.constant 0 : index
    %c0_866 = arith.constant 0 : index
    %1282 = vector.load %arg4[%c3_864, %c0_865, %c0_866] : memref<13x8x1xf32, #tpu.memory_space<vmem>>, vector<1x8x1xf32>
    %1283 = vector.shape_cast %1282 : vector<1x8x1xf32> to vector<8x1xf32>
    %1284 = vector.broadcast %1283 : vector<8x1xf32> to vector<8x256xf32>
    %1285 = arith.addf %1281, %1284 : vector<8x256xf32>
    %cst_867 = arith.constant dense<0.000000e+00> : vector<8xf32>
    %1286 = vector.multi_reduction <add>, %1285, %cst_867 [1] : vector<8x256xf32> to vector<8xf32>
    %1287 = vector.shape_cast %1286 : vector<8xf32> to vector<8x1xf32>
    %1288 = arith.mulf %1285, %1285 : vector<8x256xf32>
    %cst_868 = arith.constant dense<0.000000e+00> : vector<8xf32>
    %1289 = vector.multi_reduction <add>, %1288, %cst_868 [1] : vector<8x256xf32> to vector<8xf32>
    %1290 = vector.shape_cast %1289 : vector<8xf32> to vector<8x1xf32>
    %cst_869 = arith.constant 3.906250e-03 : f32
    %1291 = vector.broadcast %cst_869 : f32 to vector<8x1xf32>
    %1292 = arith.mulf %1287, %1291 : vector<8x1xf32>
    %cst_870 = arith.constant 3.906250e-03 : f32
    %1293 = vector.broadcast %cst_870 : f32 to vector<8x1xf32>
    %1294 = arith.mulf %1290, %1293 : vector<8x1xf32>
    %1295 = arith.mulf %1292, %1292 : vector<8x1xf32>
    %1296 = arith.subf %1294, %1295 : vector<8x1xf32>
    %1297 = vector.broadcast %1292 : vector<8x1xf32> to vector<8x256xf32>
    %1298 = arith.subf %1285, %1297 : vector<8x256xf32>
    %cst_871 = arith.constant 9.99999974E-6 : f32
    %1299 = vector.broadcast %cst_871 : f32 to vector<8x1xf32>
    %1300 = arith.addf %1296, %1299 : vector<8x1xf32>
    %1301 = math.rsqrt %1300 : vector<8x1xf32>
    %1302 = vector.broadcast %1301 : vector<8x1xf32> to vector<8x256xf32>
    %1303 = arith.mulf %1298, %1302 : vector<8x256xf32>
    %c3_872 = arith.constant 3 : index
    %c0_873 = arith.constant 0 : index
    %c0_874 = arith.constant 0 : index
    %1304 = vector.load %arg5[%c3_872, %c0_873, %c0_874] : memref<13x8x1xf32, #tpu.memory_space<vmem>>, vector<1x8x1xf32>
    %1305 = vector.shape_cast %1304 : vector<1x8x1xf32> to vector<8x1xf32>
    %1306 = vector.broadcast %1305 : vector<8x1xf32> to vector<8x256xf32>
    %1307 = arith.mulf %1303, %1306 : vector<8x256xf32>
    %c3_875 = arith.constant 3 : index
    %c0_876 = arith.constant 0 : index
    %c0_877 = arith.constant 0 : index
    %1308 = vector.load %arg6[%c3_875, %c0_876, %c0_877] : memref<13x8x1xf32, #tpu.memory_space<vmem>>, vector<1x8x1xf32>
    %1309 = vector.shape_cast %1308 : vector<1x8x1xf32> to vector<8x1xf32>
    %1310 = vector.broadcast %1309 : vector<8x1xf32> to vector<8x256xf32>
    %1311 = arith.addf %1307, %1310 : vector<8x256xf32>
    %1312 = arith.addf %1311, %1169 : vector<8x256xf32>
    %1313 = arith.negf %1312 : vector<8x256xf32>
    %1314 = math.exp %1313 : vector<8x256xf32>
    %cst_878 = arith.constant 1.000000e+00 : f32
    %1315 = vector.broadcast %cst_878 : f32 to vector<8x256xf32>
    %1316 = arith.addf %1315, %1314 : vector<8x256xf32>
    %1317 = arith.divf %1315, %1316 : vector<8x256xf32>
    %1318 = arith.mulf %1312, %1317 : vector<8x256xf32>
    %c17_i32_879 = arith.constant 17 : i32
    %1319 = tpu.dynamic_rotate %1318 by %c17_i32_879 dim 1 : vector<8x256xf32>, i32 -> vector<8x256xf32>
    %c0_880 = arith.constant 0 : index
    %c0_881 = arith.constant 0 : index
    %c0_882 = arith.constant 0 : index
    %1320 = vector.load %arg2[%c0_880, %c0_881, %c0_882] : memref<8x8x256xf32, #tpu.memory_space<vmem>>, vector<1x8x256xf32>
    %1321 = vector.shape_cast %1320 : vector<1x8x256xf32> to vector<8x256xf32>
    %1322 = arith.mulf %1319, %1321 : vector<8x256xf32>
    %c16_i32_883 = arith.constant 16 : i32
    %1323 = tpu.dynamic_rotate %1318 by %c16_i32_883 dim 1 : vector<8x256xf32>, i32 -> vector<8x256xf32>
    %c1_884 = arith.constant 1 : index
    %c0_885 = arith.constant 0 : index
    %c0_886 = arith.constant 0 : index
    %1324 = vector.load %arg2[%c1_884, %c0_885, %c0_886] : memref<8x8x256xf32, #tpu.memory_space<vmem>>, vector<1x8x256xf32>
    %1325 = vector.shape_cast %1324 : vector<1x8x256xf32> to vector<8x256xf32>
    %1326 = arith.mulf %1323, %1325 : vector<8x256xf32>
    %c15_i32_887 = arith.constant 15 : i32
    %1327 = tpu.dynamic_rotate %1318 by %c15_i32_887 dim 1 : vector<8x256xf32>, i32 -> vector<8x256xf32>
    %c2_888 = arith.constant 2 : index
    %c0_889 = arith.constant 0 : index
    %c0_890 = arith.constant 0 : index
    %1328 = vector.load %arg2[%c2_888, %c0_889, %c0_890] : memref<8x8x256xf32, #tpu.memory_space<vmem>>, vector<1x8x256xf32>
    %1329 = vector.shape_cast %1328 : vector<1x8x256xf32> to vector<8x256xf32>
    %1330 = arith.mulf %1327, %1329 : vector<8x256xf32>
    %c1_i32_891 = arith.constant 1 : i32
    %1331 = tpu.dynamic_rotate %1318 by %c1_i32_891 dim 1 : vector<8x256xf32>, i32 -> vector<8x256xf32>
    %c3_892 = arith.constant 3 : index
    %c0_893 = arith.constant 0 : index
    %c0_894 = arith.constant 0 : index
    %1332 = vector.load %arg2[%c3_892, %c0_893, %c0_894] : memref<8x8x256xf32, #tpu.memory_space<vmem>>, vector<1x8x256xf32>
    %1333 = vector.shape_cast %1332 : vector<1x8x256xf32> to vector<8x256xf32>
    %1334 = arith.mulf %1331, %1333 : vector<8x256xf32>
    %c255_i32_895 = arith.constant 255 : i32
    %1335 = tpu.dynamic_rotate %1318 by %c255_i32_895 dim 1 : vector<8x256xf32>, i32 -> vector<8x256xf32>
    %c4_896 = arith.constant 4 : index
    %c0_897 = arith.constant 0 : index
    %c0_898 = arith.constant 0 : index
    %1336 = vector.load %arg2[%c4_896, %c0_897, %c0_898] : memref<8x8x256xf32, #tpu.memory_space<vmem>>, vector<1x8x256xf32>
    %1337 = vector.shape_cast %1336 : vector<1x8x256xf32> to vector<8x256xf32>
    %1338 = arith.mulf %1335, %1337 : vector<8x256xf32>
    %c241_i32_899 = arith.constant 241 : i32
    %1339 = tpu.dynamic_rotate %1318 by %c241_i32_899 dim 1 : vector<8x256xf32>, i32 -> vector<8x256xf32>
    %c5_900 = arith.constant 5 : index
    %c0_901 = arith.constant 0 : index
    %c0_902 = arith.constant 0 : index
    %1340 = vector.load %arg2[%c5_900, %c0_901, %c0_902] : memref<8x8x256xf32, #tpu.memory_space<vmem>>, vector<1x8x256xf32>
    %1341 = vector.shape_cast %1340 : vector<1x8x256xf32> to vector<8x256xf32>
    %1342 = arith.mulf %1339, %1341 : vector<8x256xf32>
    %c240_i32_903 = arith.constant 240 : i32
    %1343 = tpu.dynamic_rotate %1318 by %c240_i32_903 dim 1 : vector<8x256xf32>, i32 -> vector<8x256xf32>
    %c6_904 = arith.constant 6 : index
    %c0_905 = arith.constant 0 : index
    %c0_906 = arith.constant 0 : index
    %1344 = vector.load %arg2[%c6_904, %c0_905, %c0_906] : memref<8x8x256xf32, #tpu.memory_space<vmem>>, vector<1x8x256xf32>
    %1345 = vector.shape_cast %1344 : vector<1x8x256xf32> to vector<8x256xf32>
    %1346 = arith.mulf %1343, %1345 : vector<8x256xf32>
    %c239_i32_907 = arith.constant 239 : i32
    %1347 = tpu.dynamic_rotate %1318 by %c239_i32_907 dim 1 : vector<8x256xf32>, i32 -> vector<8x256xf32>
    %c7_908 = arith.constant 7 : index
    %c0_909 = arith.constant 0 : index
    %c0_910 = arith.constant 0 : index
    %1348 = vector.load %arg2[%c7_908, %c0_909, %c0_910] : memref<8x8x256xf32, #tpu.memory_space<vmem>>, vector<1x8x256xf32>
    %1349 = vector.shape_cast %1348 : vector<1x8x256xf32> to vector<8x256xf32>
    %1350 = arith.mulf %1347, %1349 : vector<8x256xf32>
    %1351 = tpu.concatenate %1322, %1326, %1330, %1334, %1318, %1338, %1342, %1346, %1350 in 0 : vector<8x256xf32>, vector<8x256xf32>, vector<8x256xf32>, vector<8x256xf32>, vector<8x256xf32>, vector<8x256xf32>, vector<8x256xf32>, vector<8x256xf32>, vector<8x256xf32> -> vector<72x256xf32>
    %1352 = arith.truncf %1351 : vector<72x256xf32> to vector<72x256xbf16>
    %c4_911 = arith.constant 4 : index
    %c0_912 = arith.constant 0 : index
    %c0_913 = arith.constant 0 : index
    %1353 = vector.load %arg3[%c4_911, %c0_912, %c0_913] : memref<13x8x72xf32, #tpu.memory_space<vmem>>, vector<1x8x72xf32>
    %1354 = vector.shape_cast %1353 : vector<1x8x72xf32> to vector<8x72xf32>
    %1355 = arith.truncf %1354 : vector<8x72xf32> to vector<8x72xbf16>
    %cst_914 = arith.constant dense<0.000000e+00> : vector<8x256xf32>
    %1356 = tpu.matmul %1355, %1352, %cst_914 {dimension_numbers = #tpu.dot_dimension_numbers<[1], [0], [0], [1], [0, 0, 1, 1], [], []>} : vector<8x72xbf16>, vector<72x256xbf16>, vector<8x256xf32> -> vector<8x256xf32>
    %c4_915 = arith.constant 4 : index
    %c0_916 = arith.constant 0 : index
    %c0_917 = arith.constant 0 : index
    %1357 = vector.load %arg4[%c4_915, %c0_916, %c0_917] : memref<13x8x1xf32, #tpu.memory_space<vmem>>, vector<1x8x1xf32>
    %1358 = vector.shape_cast %1357 : vector<1x8x1xf32> to vector<8x1xf32>
    %1359 = vector.broadcast %1358 : vector<8x1xf32> to vector<8x256xf32>
    %1360 = arith.addf %1356, %1359 : vector<8x256xf32>
    %cst_918 = arith.constant dense<0.000000e+00> : vector<8xf32>
    %1361 = vector.multi_reduction <add>, %1360, %cst_918 [1] : vector<8x256xf32> to vector<8xf32>
    %1362 = vector.shape_cast %1361 : vector<8xf32> to vector<8x1xf32>
    %1363 = arith.mulf %1360, %1360 : vector<8x256xf32>
    %cst_919 = arith.constant dense<0.000000e+00> : vector<8xf32>
    %1364 = vector.multi_reduction <add>, %1363, %cst_919 [1] : vector<8x256xf32> to vector<8xf32>
    %1365 = vector.shape_cast %1364 : vector<8xf32> to vector<8x1xf32>
    %cst_920 = arith.constant 3.906250e-03 : f32
    %1366 = vector.broadcast %cst_920 : f32 to vector<8x1xf32>
    %1367 = arith.mulf %1362, %1366 : vector<8x1xf32>
    %cst_921 = arith.constant 3.906250e-03 : f32
    %1368 = vector.broadcast %cst_921 : f32 to vector<8x1xf32>
    %1369 = arith.mulf %1365, %1368 : vector<8x1xf32>
    %1370 = arith.mulf %1367, %1367 : vector<8x1xf32>
    %1371 = arith.subf %1369, %1370 : vector<8x1xf32>
    %1372 = vector.broadcast %1367 : vector<8x1xf32> to vector<8x256xf32>
    %1373 = arith.subf %1360, %1372 : vector<8x256xf32>
    %cst_922 = arith.constant 9.99999974E-6 : f32
    %1374 = vector.broadcast %cst_922 : f32 to vector<8x1xf32>
    %1375 = arith.addf %1371, %1374 : vector<8x1xf32>
    %1376 = math.rsqrt %1375 : vector<8x1xf32>
    %1377 = vector.broadcast %1376 : vector<8x1xf32> to vector<8x256xf32>
    %1378 = arith.mulf %1373, %1377 : vector<8x256xf32>
    %c4_923 = arith.constant 4 : index
    %c0_924 = arith.constant 0 : index
    %c0_925 = arith.constant 0 : index
    %1379 = vector.load %arg5[%c4_923, %c0_924, %c0_925] : memref<13x8x1xf32, #tpu.memory_space<vmem>>, vector<1x8x1xf32>
    %1380 = vector.shape_cast %1379 : vector<1x8x1xf32> to vector<8x1xf32>
    %1381 = vector.broadcast %1380 : vector<8x1xf32> to vector<8x256xf32>
    %1382 = arith.mulf %1378, %1381 : vector<8x256xf32>
    %c4_926 = arith.constant 4 : index
    %c0_927 = arith.constant 0 : index
    %c0_928 = arith.constant 0 : index
    %1383 = vector.load %arg6[%c4_926, %c0_927, %c0_928] : memref<13x8x1xf32, #tpu.memory_space<vmem>>, vector<1x8x1xf32>
    %1384 = vector.shape_cast %1383 : vector<1x8x1xf32> to vector<8x1xf32>
    %1385 = vector.broadcast %1384 : vector<8x1xf32> to vector<8x256xf32>
    %1386 = arith.addf %1382, %1385 : vector<8x256xf32>
    %cst_929 = arith.constant 0.000000e+00 : f32
    %1387 = vector.broadcast %cst_929 : f32 to vector<8x256xf32>
    %1388 = arith.cmpf oge, %1386, %1387 : vector<8x256xf32>
    %cst_930 = arith.constant 2.000000e-01 : f32
    %1389 = vector.broadcast %cst_930 : f32 to vector<8x256xf32>
    %1390 = arith.mulf %1389, %1386 : vector<8x256xf32>
    %1391 = arith.select %1388, %1386, %1390 : vector<8x256xi1>, vector<8x256xf32>
    %c17_i32_931 = arith.constant 17 : i32
    %1392 = tpu.dynamic_rotate %1391 by %c17_i32_931 dim 1 : vector<8x256xf32>, i32 -> vector<8x256xf32>
    %c0_932 = arith.constant 0 : index
    %c0_933 = arith.constant 0 : index
    %c0_934 = arith.constant 0 : index
    %1393 = vector.load %arg2[%c0_932, %c0_933, %c0_934] : memref<8x8x256xf32, #tpu.memory_space<vmem>>, vector<1x8x256xf32>
    %1394 = vector.shape_cast %1393 : vector<1x8x256xf32> to vector<8x256xf32>
    %1395 = arith.mulf %1392, %1394 : vector<8x256xf32>
    %c16_i32_935 = arith.constant 16 : i32
    %1396 = tpu.dynamic_rotate %1391 by %c16_i32_935 dim 1 : vector<8x256xf32>, i32 -> vector<8x256xf32>
    %c1_936 = arith.constant 1 : index
    %c0_937 = arith.constant 0 : index
    %c0_938 = arith.constant 0 : index
    %1397 = vector.load %arg2[%c1_936, %c0_937, %c0_938] : memref<8x8x256xf32, #tpu.memory_space<vmem>>, vector<1x8x256xf32>
    %1398 = vector.shape_cast %1397 : vector<1x8x256xf32> to vector<8x256xf32>
    %1399 = arith.mulf %1396, %1398 : vector<8x256xf32>
    %c15_i32_939 = arith.constant 15 : i32
    %1400 = tpu.dynamic_rotate %1391 by %c15_i32_939 dim 1 : vector<8x256xf32>, i32 -> vector<8x256xf32>
    %c2_940 = arith.constant 2 : index
    %c0_941 = arith.constant 0 : index
    %c0_942 = arith.constant 0 : index
    %1401 = vector.load %arg2[%c2_940, %c0_941, %c0_942] : memref<8x8x256xf32, #tpu.memory_space<vmem>>, vector<1x8x256xf32>
    %1402 = vector.shape_cast %1401 : vector<1x8x256xf32> to vector<8x256xf32>
    %1403 = arith.mulf %1400, %1402 : vector<8x256xf32>
    %c1_i32_943 = arith.constant 1 : i32
    %1404 = tpu.dynamic_rotate %1391 by %c1_i32_943 dim 1 : vector<8x256xf32>, i32 -> vector<8x256xf32>
    %c3_944 = arith.constant 3 : index
    %c0_945 = arith.constant 0 : index
    %c0_946 = arith.constant 0 : index
    %1405 = vector.load %arg2[%c3_944, %c0_945, %c0_946] : memref<8x8x256xf32, #tpu.memory_space<vmem>>, vector<1x8x256xf32>
    %1406 = vector.shape_cast %1405 : vector<1x8x256xf32> to vector<8x256xf32>
    %1407 = arith.mulf %1404, %1406 : vector<8x256xf32>
    %c255_i32_947 = arith.constant 255 : i32
    %1408 = tpu.dynamic_rotate %1391 by %c255_i32_947 dim 1 : vector<8x256xf32>, i32 -> vector<8x256xf32>
    %c4_948 = arith.constant 4 : index
    %c0_949 = arith.constant 0 : index
    %c0_950 = arith.constant 0 : index
    %1409 = vector.load %arg2[%c4_948, %c0_949, %c0_950] : memref<8x8x256xf32, #tpu.memory_space<vmem>>, vector<1x8x256xf32>
    %1410 = vector.shape_cast %1409 : vector<1x8x256xf32> to vector<8x256xf32>
    %1411 = arith.mulf %1408, %1410 : vector<8x256xf32>
    %c241_i32_951 = arith.constant 241 : i32
    %1412 = tpu.dynamic_rotate %1391 by %c241_i32_951 dim 1 : vector<8x256xf32>, i32 -> vector<8x256xf32>
    %c5_952 = arith.constant 5 : index
    %c0_953 = arith.constant 0 : index
    %c0_954 = arith.constant 0 : index
    %1413 = vector.load %arg2[%c5_952, %c0_953, %c0_954] : memref<8x8x256xf32, #tpu.memory_space<vmem>>, vector<1x8x256xf32>
    %1414 = vector.shape_cast %1413 : vector<1x8x256xf32> to vector<8x256xf32>
    %1415 = arith.mulf %1412, %1414 : vector<8x256xf32>
    %c240_i32_955 = arith.constant 240 : i32
    %1416 = tpu.dynamic_rotate %1391 by %c240_i32_955 dim 1 : vector<8x256xf32>, i32 -> vector<8x256xf32>
    %c6_956 = arith.constant 6 : index
    %c0_957 = arith.constant 0 : index
    %c0_958 = arith.constant 0 : index
    %1417 = vector.load %arg2[%c6_956, %c0_957, %c0_958] : memref<8x8x256xf32, #tpu.memory_space<vmem>>, vector<1x8x256xf32>
    %1418 = vector.shape_cast %1417 : vector<1x8x256xf32> to vector<8x256xf32>
    %1419 = arith.mulf %1416, %1418 : vector<8x256xf32>
    %c239_i32_959 = arith.constant 239 : i32
    %1420 = tpu.dynamic_rotate %1391 by %c239_i32_959 dim 1 : vector<8x256xf32>, i32 -> vector<8x256xf32>
    %c7_960 = arith.constant 7 : index
    %c0_961 = arith.constant 0 : index
    %c0_962 = arith.constant 0 : index
    %1421 = vector.load %arg2[%c7_960, %c0_961, %c0_962] : memref<8x8x256xf32, #tpu.memory_space<vmem>>, vector<1x8x256xf32>
    %1422 = vector.shape_cast %1421 : vector<1x8x256xf32> to vector<8x256xf32>
    %1423 = arith.mulf %1420, %1422 : vector<8x256xf32>
    %1424 = tpu.concatenate %1395, %1399, %1403, %1407, %1391, %1411, %1415, %1419, %1423 in 0 : vector<8x256xf32>, vector<8x256xf32>, vector<8x256xf32>, vector<8x256xf32>, vector<8x256xf32>, vector<8x256xf32>, vector<8x256xf32>, vector<8x256xf32>, vector<8x256xf32> -> vector<72x256xf32>
    %1425 = arith.truncf %1424 : vector<72x256xf32> to vector<72x256xbf16>
    %c5_963 = arith.constant 5 : index
    %c0_964 = arith.constant 0 : index
    %c0_965 = arith.constant 0 : index
    %1426 = vector.load %arg3[%c5_963, %c0_964, %c0_965] : memref<13x8x72xf32, #tpu.memory_space<vmem>>, vector<1x8x72xf32>
    %1427 = vector.shape_cast %1426 : vector<1x8x72xf32> to vector<8x72xf32>
    %1428 = arith.truncf %1427 : vector<8x72xf32> to vector<8x72xbf16>
    %cst_966 = arith.constant dense<0.000000e+00> : vector<8x256xf32>
    %1429 = tpu.matmul %1428, %1425, %cst_966 {dimension_numbers = #tpu.dot_dimension_numbers<[1], [0], [0], [1], [0, 0, 1, 1], [], []>} : vector<8x72xbf16>, vector<72x256xbf16>, vector<8x256xf32> -> vector<8x256xf32>
    %c5_967 = arith.constant 5 : index
    %c0_968 = arith.constant 0 : index
    %c0_969 = arith.constant 0 : index
    %1430 = vector.load %arg4[%c5_967, %c0_968, %c0_969] : memref<13x8x1xf32, #tpu.memory_space<vmem>>, vector<1x8x1xf32>
    %1431 = vector.shape_cast %1430 : vector<1x8x1xf32> to vector<8x1xf32>
    %1432 = vector.broadcast %1431 : vector<8x1xf32> to vector<8x256xf32>
    %1433 = arith.addf %1429, %1432 : vector<8x256xf32>
    %cst_970 = arith.constant dense<0.000000e+00> : vector<8xf32>
    %1434 = vector.multi_reduction <add>, %1433, %cst_970 [1] : vector<8x256xf32> to vector<8xf32>
    %1435 = vector.shape_cast %1434 : vector<8xf32> to vector<8x1xf32>
    %1436 = arith.mulf %1433, %1433 : vector<8x256xf32>
    %cst_971 = arith.constant dense<0.000000e+00> : vector<8xf32>
    %1437 = vector.multi_reduction <add>, %1436, %cst_971 [1] : vector<8x256xf32> to vector<8xf32>
    %1438 = vector.shape_cast %1437 : vector<8xf32> to vector<8x1xf32>
    %cst_972 = arith.constant 3.906250e-03 : f32
    %1439 = vector.broadcast %cst_972 : f32 to vector<8x1xf32>
    %1440 = arith.mulf %1435, %1439 : vector<8x1xf32>
    %cst_973 = arith.constant 3.906250e-03 : f32
    %1441 = vector.broadcast %cst_973 : f32 to vector<8x1xf32>
    %1442 = arith.mulf %1438, %1441 : vector<8x1xf32>
    %1443 = arith.mulf %1440, %1440 : vector<8x1xf32>
    %1444 = arith.subf %1442, %1443 : vector<8x1xf32>
    %1445 = vector.broadcast %1440 : vector<8x1xf32> to vector<8x256xf32>
    %1446 = arith.subf %1433, %1445 : vector<8x256xf32>
    %cst_974 = arith.constant 9.99999974E-6 : f32
    %1447 = vector.broadcast %cst_974 : f32 to vector<8x1xf32>
    %1448 = arith.addf %1444, %1447 : vector<8x1xf32>
    %1449 = math.rsqrt %1448 : vector<8x1xf32>
    %1450 = vector.broadcast %1449 : vector<8x1xf32> to vector<8x256xf32>
    %1451 = arith.mulf %1446, %1450 : vector<8x256xf32>
    %c5_975 = arith.constant 5 : index
    %c0_976 = arith.constant 0 : index
    %c0_977 = arith.constant 0 : index
    %1452 = vector.load %arg5[%c5_975, %c0_976, %c0_977] : memref<13x8x1xf32, #tpu.memory_space<vmem>>, vector<1x8x1xf32>
    %1453 = vector.shape_cast %1452 : vector<1x8x1xf32> to vector<8x1xf32>
    %1454 = vector.broadcast %1453 : vector<8x1xf32> to vector<8x256xf32>
    %1455 = arith.mulf %1451, %1454 : vector<8x256xf32>
    %c5_978 = arith.constant 5 : index
    %c0_979 = arith.constant 0 : index
    %c0_980 = arith.constant 0 : index
    %1456 = vector.load %arg6[%c5_978, %c0_979, %c0_980] : memref<13x8x1xf32, #tpu.memory_space<vmem>>, vector<1x8x1xf32>
    %1457 = vector.shape_cast %1456 : vector<1x8x1xf32> to vector<8x1xf32>
    %1458 = vector.broadcast %1457 : vector<8x1xf32> to vector<8x256xf32>
    %1459 = arith.addf %1455, %1458 : vector<8x256xf32>
    %1460 = arith.addf %1459, %1318 : vector<8x256xf32>
    %cst_981 = arith.constant 0.000000e+00 : f32
    %1461 = vector.broadcast %cst_981 : f32 to vector<8x256xf32>
    %1462 = arith.cmpf oge, %1460, %1461 : vector<8x256xf32>
    %cst_982 = arith.constant 2.000000e-01 : f32
    %1463 = vector.broadcast %cst_982 : f32 to vector<8x256xf32>
    %1464 = arith.mulf %1463, %1460 : vector<8x256xf32>
    %1465 = arith.select %1462, %1460, %1464 : vector<8x256xi1>, vector<8x256xf32>
    %c17_i32_983 = arith.constant 17 : i32
    %1466 = tpu.dynamic_rotate %1465 by %c17_i32_983 dim 1 : vector<8x256xf32>, i32 -> vector<8x256xf32>
    %c0_984 = arith.constant 0 : index
    %c0_985 = arith.constant 0 : index
    %c0_986 = arith.constant 0 : index
    %1467 = vector.load %arg2[%c0_984, %c0_985, %c0_986] : memref<8x8x256xf32, #tpu.memory_space<vmem>>, vector<1x8x256xf32>
    %1468 = vector.shape_cast %1467 : vector<1x8x256xf32> to vector<8x256xf32>
    %1469 = arith.mulf %1466, %1468 : vector<8x256xf32>
    %c16_i32_987 = arith.constant 16 : i32
    %1470 = tpu.dynamic_rotate %1465 by %c16_i32_987 dim 1 : vector<8x256xf32>, i32 -> vector<8x256xf32>
    %c1_988 = arith.constant 1 : index
    %c0_989 = arith.constant 0 : index
    %c0_990 = arith.constant 0 : index
    %1471 = vector.load %arg2[%c1_988, %c0_989, %c0_990] : memref<8x8x256xf32, #tpu.memory_space<vmem>>, vector<1x8x256xf32>
    %1472 = vector.shape_cast %1471 : vector<1x8x256xf32> to vector<8x256xf32>
    %1473 = arith.mulf %1470, %1472 : vector<8x256xf32>
    %c15_i32_991 = arith.constant 15 : i32
    %1474 = tpu.dynamic_rotate %1465 by %c15_i32_991 dim 1 : vector<8x256xf32>, i32 -> vector<8x256xf32>
    %c2_992 = arith.constant 2 : index
    %c0_993 = arith.constant 0 : index
    %c0_994 = arith.constant 0 : index
    %1475 = vector.load %arg2[%c2_992, %c0_993, %c0_994] : memref<8x8x256xf32, #tpu.memory_space<vmem>>, vector<1x8x256xf32>
    %1476 = vector.shape_cast %1475 : vector<1x8x256xf32> to vector<8x256xf32>
    %1477 = arith.mulf %1474, %1476 : vector<8x256xf32>
    %c1_i32_995 = arith.constant 1 : i32
    %1478 = tpu.dynamic_rotate %1465 by %c1_i32_995 dim 1 : vector<8x256xf32>, i32 -> vector<8x256xf32>
    %c3_996 = arith.constant 3 : index
    %c0_997 = arith.constant 0 : index
    %c0_998 = arith.constant 0 : index
    %1479 = vector.load %arg2[%c3_996, %c0_997, %c0_998] : memref<8x8x256xf32, #tpu.memory_space<vmem>>, vector<1x8x256xf32>
    %1480 = vector.shape_cast %1479 : vector<1x8x256xf32> to vector<8x256xf32>
    %1481 = arith.mulf %1478, %1480 : vector<8x256xf32>
    %c255_i32_999 = arith.constant 255 : i32
    %1482 = tpu.dynamic_rotate %1465 by %c255_i32_999 dim 1 : vector<8x256xf32>, i32 -> vector<8x256xf32>
    %c4_1000 = arith.constant 4 : index
    %c0_1001 = arith.constant 0 : index
    %c0_1002 = arith.constant 0 : index
    %1483 = vector.load %arg2[%c4_1000, %c0_1001, %c0_1002] : memref<8x8x256xf32, #tpu.memory_space<vmem>>, vector<1x8x256xf32>
    %1484 = vector.shape_cast %1483 : vector<1x8x256xf32> to vector<8x256xf32>
    %1485 = arith.mulf %1482, %1484 : vector<8x256xf32>
    %c241_i32_1003 = arith.constant 241 : i32
    %1486 = tpu.dynamic_rotate %1465 by %c241_i32_1003 dim 1 : vector<8x256xf32>, i32 -> vector<8x256xf32>
    %c5_1004 = arith.constant 5 : index
    %c0_1005 = arith.constant 0 : index
    %c0_1006 = arith.constant 0 : index
    %1487 = vector.load %arg2[%c5_1004, %c0_1005, %c0_1006] : memref<8x8x256xf32, #tpu.memory_space<vmem>>, vector<1x8x256xf32>
    %1488 = vector.shape_cast %1487 : vector<1x8x256xf32> to vector<8x256xf32>
    %1489 = arith.mulf %1486, %1488 : vector<8x256xf32>
    %c240_i32_1007 = arith.constant 240 : i32
    %1490 = tpu.dynamic_rotate %1465 by %c240_i32_1007 dim 1 : vector<8x256xf32>, i32 -> vector<8x256xf32>
    %c6_1008 = arith.constant 6 : index
    %c0_1009 = arith.constant 0 : index
    %c0_1010 = arith.constant 0 : index
    %1491 = vector.load %arg2[%c6_1008, %c0_1009, %c0_1010] : memref<8x8x256xf32, #tpu.memory_space<vmem>>, vector<1x8x256xf32>
    %1492 = vector.shape_cast %1491 : vector<1x8x256xf32> to vector<8x256xf32>
    %1493 = arith.mulf %1490, %1492 : vector<8x256xf32>
    %c239_i32_1011 = arith.constant 239 : i32
    %1494 = tpu.dynamic_rotate %1465 by %c239_i32_1011 dim 1 : vector<8x256xf32>, i32 -> vector<8x256xf32>
    %c7_1012 = arith.constant 7 : index
    %c0_1013 = arith.constant 0 : index
    %c0_1014 = arith.constant 0 : index
    %1495 = vector.load %arg2[%c7_1012, %c0_1013, %c0_1014] : memref<8x8x256xf32, #tpu.memory_space<vmem>>, vector<1x8x256xf32>
    %1496 = vector.shape_cast %1495 : vector<1x8x256xf32> to vector<8x256xf32>
    %1497 = arith.mulf %1494, %1496 : vector<8x256xf32>
    %1498 = tpu.concatenate %1469, %1473, %1477, %1481, %1465, %1485, %1489, %1493, %1497 in 0 : vector<8x256xf32>, vector<8x256xf32>, vector<8x256xf32>, vector<8x256xf32>, vector<8x256xf32>, vector<8x256xf32>, vector<8x256xf32>, vector<8x256xf32>, vector<8x256xf32> -> vector<72x256xf32>
    %1499 = arith.truncf %1498 : vector<72x256xf32> to vector<72x256xbf16>
    %c6_1015 = arith.constant 6 : index
    %c0_1016 = arith.constant 0 : index
    %c0_1017 = arith.constant 0 : index
    %1500 = vector.load %arg3[%c6_1015, %c0_1016, %c0_1017] : memref<13x8x72xf32, #tpu.memory_space<vmem>>, vector<1x8x72xf32>
    %1501 = vector.shape_cast %1500 : vector<1x8x72xf32> to vector<8x72xf32>
    %1502 = arith.truncf %1501 : vector<8x72xf32> to vector<8x72xbf16>
    %cst_1018 = arith.constant dense<0.000000e+00> : vector<8x256xf32>
    %1503 = tpu.matmul %1502, %1499, %cst_1018 {dimension_numbers = #tpu.dot_dimension_numbers<[1], [0], [0], [1], [0, 0, 1, 1], [], []>} : vector<8x72xbf16>, vector<72x256xbf16>, vector<8x256xf32> -> vector<8x256xf32>
    %c6_1019 = arith.constant 6 : index
    %c0_1020 = arith.constant 0 : index
    %c0_1021 = arith.constant 0 : index
    %1504 = vector.load %arg4[%c6_1019, %c0_1020, %c0_1021] : memref<13x8x1xf32, #tpu.memory_space<vmem>>, vector<1x8x1xf32>
    %1505 = vector.shape_cast %1504 : vector<1x8x1xf32> to vector<8x1xf32>
    %1506 = vector.broadcast %1505 : vector<8x1xf32> to vector<8x256xf32>
    %1507 = arith.addf %1503, %1506 : vector<8x256xf32>
    %cst_1022 = arith.constant dense<0.000000e+00> : vector<8xf32>
    %1508 = vector.multi_reduction <add>, %1507, %cst_1022 [1] : vector<8x256xf32> to vector<8xf32>
    %1509 = vector.shape_cast %1508 : vector<8xf32> to vector<8x1xf32>
    %1510 = arith.mulf %1507, %1507 : vector<8x256xf32>
    %cst_1023 = arith.constant dense<0.000000e+00> : vector<8xf32>
    %1511 = vector.multi_reduction <add>, %1510, %cst_1023 [1] : vector<8x256xf32> to vector<8xf32>
    %1512 = vector.shape_cast %1511 : vector<8xf32> to vector<8x1xf32>
    %cst_1024 = arith.constant 3.906250e-03 : f32
    %1513 = vector.broadcast %cst_1024 : f32 to vector<8x1xf32>
    %1514 = arith.mulf %1509, %1513 : vector<8x1xf32>
    %cst_1025 = arith.constant 3.906250e-03 : f32
    %1515 = vector.broadcast %cst_1025 : f32 to vector<8x1xf32>
    %1516 = arith.mulf %1512, %1515 : vector<8x1xf32>
    %1517 = arith.mulf %1514, %1514 : vector<8x1xf32>
    %1518 = arith.subf %1516, %1517 : vector<8x1xf32>
    %1519 = vector.broadcast %1514 : vector<8x1xf32> to vector<8x256xf32>
    %1520 = arith.subf %1507, %1519 : vector<8x256xf32>
    %cst_1026 = arith.constant 9.99999974E-6 : f32
    %1521 = vector.broadcast %cst_1026 : f32 to vector<8x1xf32>
    %1522 = arith.addf %1518, %1521 : vector<8x1xf32>
    %1523 = math.rsqrt %1522 : vector<8x1xf32>
    %1524 = vector.broadcast %1523 : vector<8x1xf32> to vector<8x256xf32>
    %1525 = arith.mulf %1520, %1524 : vector<8x256xf32>
    %c6_1027 = arith.constant 6 : index
    %c0_1028 = arith.constant 0 : index
    %c0_1029 = arith.constant 0 : index
    %1526 = vector.load %arg5[%c6_1027, %c0_1028, %c0_1029] : memref<13x8x1xf32, #tpu.memory_space<vmem>>, vector<1x8x1xf32>
    %1527 = vector.shape_cast %1526 : vector<1x8x1xf32> to vector<8x1xf32>
    %1528 = vector.broadcast %1527 : vector<8x1xf32> to vector<8x256xf32>
    %1529 = arith.mulf %1525, %1528 : vector<8x256xf32>
    %c6_1030 = arith.constant 6 : index
    %c0_1031 = arith.constant 0 : index
    %c0_1032 = arith.constant 0 : index
    %1530 = vector.load %arg6[%c6_1030, %c0_1031, %c0_1032] : memref<13x8x1xf32, #tpu.memory_space<vmem>>, vector<1x8x1xf32>
    %1531 = vector.shape_cast %1530 : vector<1x8x1xf32> to vector<8x1xf32>
    %1532 = vector.broadcast %1531 : vector<8x1xf32> to vector<8x256xf32>
    %1533 = arith.addf %1529, %1532 : vector<8x256xf32>
    %cst_1033 = arith.constant 5.000000e-01 : f32
    %1534 = vector.broadcast %cst_1033 : f32 to vector<8x256xf32>
    %1535 = arith.mulf %1534, %1533 : vector<8x256xf32>
    %cst_1034 = arith.constant 4.471500e-02 : f32
    %1536 = vector.broadcast %cst_1034 : f32 to vector<8x256xf32>
    %1537 = arith.mulf %1536, %1533 : vector<8x256xf32>
    %1538 = arith.mulf %1537, %1533 : vector<8x256xf32>
    %1539 = arith.mulf %1538, %1533 : vector<8x256xf32>
    %1540 = arith.addf %1533, %1539 : vector<8x256xf32>
    %cst_1035 = arith.constant 0.797884583 : f32
    %1541 = vector.broadcast %cst_1035 : f32 to vector<8x256xf32>
    %1542 = arith.mulf %1541, %1540 : vector<8x256xf32>
    %1543 = math.tanh %1542 : vector<8x256xf32>
    %cst_1036 = arith.constant 1.000000e+00 : f32
    %1544 = vector.broadcast %cst_1036 : f32 to vector<8x256xf32>
    %1545 = arith.addf %1544, %1543 : vector<8x256xf32>
    %1546 = arith.mulf %1535, %1545 : vector<8x256xf32>
    %c17_i32_1037 = arith.constant 17 : i32
    %1547 = tpu.dynamic_rotate %1546 by %c17_i32_1037 dim 1 : vector<8x256xf32>, i32 -> vector<8x256xf32>
    %c0_1038 = arith.constant 0 : index
    %c0_1039 = arith.constant 0 : index
    %c0_1040 = arith.constant 0 : index
    %1548 = vector.load %arg2[%c0_1038, %c0_1039, %c0_1040] : memref<8x8x256xf32, #tpu.memory_space<vmem>>, vector<1x8x256xf32>
    %1549 = vector.shape_cast %1548 : vector<1x8x256xf32> to vector<8x256xf32>
    %1550 = arith.mulf %1547, %1549 : vector<8x256xf32>
    %c16_i32_1041 = arith.constant 16 : i32
    %1551 = tpu.dynamic_rotate %1546 by %c16_i32_1041 dim 1 : vector<8x256xf32>, i32 -> vector<8x256xf32>
    %c1_1042 = arith.constant 1 : index
    %c0_1043 = arith.constant 0 : index
    %c0_1044 = arith.constant 0 : index
    %1552 = vector.load %arg2[%c1_1042, %c0_1043, %c0_1044] : memref<8x8x256xf32, #tpu.memory_space<vmem>>, vector<1x8x256xf32>
    %1553 = vector.shape_cast %1552 : vector<1x8x256xf32> to vector<8x256xf32>
    %1554 = arith.mulf %1551, %1553 : vector<8x256xf32>
    %c15_i32_1045 = arith.constant 15 : i32
    %1555 = tpu.dynamic_rotate %1546 by %c15_i32_1045 dim 1 : vector<8x256xf32>, i32 -> vector<8x256xf32>
    %c2_1046 = arith.constant 2 : index
    %c0_1047 = arith.constant 0 : index
    %c0_1048 = arith.constant 0 : index
    %1556 = vector.load %arg2[%c2_1046, %c0_1047, %c0_1048] : memref<8x8x256xf32, #tpu.memory_space<vmem>>, vector<1x8x256xf32>
    %1557 = vector.shape_cast %1556 : vector<1x8x256xf32> to vector<8x256xf32>
    %1558 = arith.mulf %1555, %1557 : vector<8x256xf32>
    %c1_i32_1049 = arith.constant 1 : i32
    %1559 = tpu.dynamic_rotate %1546 by %c1_i32_1049 dim 1 : vector<8x256xf32>, i32 -> vector<8x256xf32>
    %c3_1050 = arith.constant 3 : index
    %c0_1051 = arith.constant 0 : index
    %c0_1052 = arith.constant 0 : index
    %1560 = vector.load %arg2[%c3_1050, %c0_1051, %c0_1052] : memref<8x8x256xf32, #tpu.memory_space<vmem>>, vector<1x8x256xf32>
    %1561 = vector.shape_cast %1560 : vector<1x8x256xf32> to vector<8x256xf32>
    %1562 = arith.mulf %1559, %1561 : vector<8x256xf32>
    %c255_i32_1053 = arith.constant 255 : i32
    %1563 = tpu.dynamic_rotate %1546 by %c255_i32_1053 dim 1 : vector<8x256xf32>, i32 -> vector<8x256xf32>
    %c4_1054 = arith.constant 4 : index
    %c0_1055 = arith.constant 0 : index
    %c0_1056 = arith.constant 0 : index
    %1564 = vector.load %arg2[%c4_1054, %c0_1055, %c0_1056] : memref<8x8x256xf32, #tpu.memory_space<vmem>>, vector<1x8x256xf32>
    %1565 = vector.shape_cast %1564 : vector<1x8x256xf32> to vector<8x256xf32>
    %1566 = arith.mulf %1563, %1565 : vector<8x256xf32>
    %c241_i32_1057 = arith.constant 241 : i32
    %1567 = tpu.dynamic_rotate %1546 by %c241_i32_1057 dim 1 : vector<8x256xf32>, i32 -> vector<8x256xf32>
    %c5_1058 = arith.constant 5 : index
    %c0_1059 = arith.constant 0 : index
    %c0_1060 = arith.constant 0 : index
    %1568 = vector.load %arg2[%c5_1058, %c0_1059, %c0_1060] : memref<8x8x256xf32, #tpu.memory_space<vmem>>, vector<1x8x256xf32>
    %1569 = vector.shape_cast %1568 : vector<1x8x256xf32> to vector<8x256xf32>
    %1570 = arith.mulf %1567, %1569 : vector<8x256xf32>
    %c240_i32_1061 = arith.constant 240 : i32
    %1571 = tpu.dynamic_rotate %1546 by %c240_i32_1061 dim 1 : vector<8x256xf32>, i32 -> vector<8x256xf32>
    %c6_1062 = arith.constant 6 : index
    %c0_1063 = arith.constant 0 : index
    %c0_1064 = arith.constant 0 : index
    %1572 = vector.load %arg2[%c6_1062, %c0_1063, %c0_1064] : memref<8x8x256xf32, #tpu.memory_space<vmem>>, vector<1x8x256xf32>
    %1573 = vector.shape_cast %1572 : vector<1x8x256xf32> to vector<8x256xf32>
    %1574 = arith.mulf %1571, %1573 : vector<8x256xf32>
    %c239_i32_1065 = arith.constant 239 : i32
    %1575 = tpu.dynamic_rotate %1546 by %c239_i32_1065 dim 1 : vector<8x256xf32>, i32 -> vector<8x256xf32>
    %c7_1066 = arith.constant 7 : index
    %c0_1067 = arith.constant 0 : index
    %c0_1068 = arith.constant 0 : index
    %1576 = vector.load %arg2[%c7_1066, %c0_1067, %c0_1068] : memref<8x8x256xf32, #tpu.memory_space<vmem>>, vector<1x8x256xf32>
    %1577 = vector.shape_cast %1576 : vector<1x8x256xf32> to vector<8x256xf32>
    %1578 = arith.mulf %1575, %1577 : vector<8x256xf32>
    %1579 = tpu.concatenate %1550, %1554, %1558, %1562, %1546, %1566, %1570, %1574, %1578 in 0 : vector<8x256xf32>, vector<8x256xf32>, vector<8x256xf32>, vector<8x256xf32>, vector<8x256xf32>, vector<8x256xf32>, vector<8x256xf32>, vector<8x256xf32>, vector<8x256xf32> -> vector<72x256xf32>
    %1580 = arith.truncf %1579 : vector<72x256xf32> to vector<72x256xbf16>
    %c7_1069 = arith.constant 7 : index
    %c0_1070 = arith.constant 0 : index
    %c0_1071 = arith.constant 0 : index
    %1581 = vector.load %arg3[%c7_1069, %c0_1070, %c0_1071] : memref<13x8x72xf32, #tpu.memory_space<vmem>>, vector<1x8x72xf32>
    %1582 = vector.shape_cast %1581 : vector<1x8x72xf32> to vector<8x72xf32>
    %1583 = arith.truncf %1582 : vector<8x72xf32> to vector<8x72xbf16>
    %cst_1072 = arith.constant dense<0.000000e+00> : vector<8x256xf32>
    %1584 = tpu.matmul %1583, %1580, %cst_1072 {dimension_numbers = #tpu.dot_dimension_numbers<[1], [0], [0], [1], [0, 0, 1, 1], [], []>} : vector<8x72xbf16>, vector<72x256xbf16>, vector<8x256xf32> -> vector<8x256xf32>
    %c7_1073 = arith.constant 7 : index
    %c0_1074 = arith.constant 0 : index
    %c0_1075 = arith.constant 0 : index
    %1585 = vector.load %arg4[%c7_1073, %c0_1074, %c0_1075] : memref<13x8x1xf32, #tpu.memory_space<vmem>>, vector<1x8x1xf32>
    %1586 = vector.shape_cast %1585 : vector<1x8x1xf32> to vector<8x1xf32>
    %1587 = vector.broadcast %1586 : vector<8x1xf32> to vector<8x256xf32>
    %1588 = arith.addf %1584, %1587 : vector<8x256xf32>
    %cst_1076 = arith.constant dense<0.000000e+00> : vector<8xf32>
    %1589 = vector.multi_reduction <add>, %1588, %cst_1076 [1] : vector<8x256xf32> to vector<8xf32>
    %1590 = vector.shape_cast %1589 : vector<8xf32> to vector<8x1xf32>
    %1591 = arith.mulf %1588, %1588 : vector<8x256xf32>
    %cst_1077 = arith.constant dense<0.000000e+00> : vector<8xf32>
    %1592 = vector.multi_reduction <add>, %1591, %cst_1077 [1] : vector<8x256xf32> to vector<8xf32>
    %1593 = vector.shape_cast %1592 : vector<8xf32> to vector<8x1xf32>
    %cst_1078 = arith.constant 3.906250e-03 : f32
    %1594 = vector.broadcast %cst_1078 : f32 to vector<8x1xf32>
    %1595 = arith.mulf %1590, %1594 : vector<8x1xf32>
    %cst_1079 = arith.constant 3.906250e-03 : f32
    %1596 = vector.broadcast %cst_1079 : f32 to vector<8x1xf32>
    %1597 = arith.mulf %1593, %1596 : vector<8x1xf32>
    %1598 = arith.mulf %1595, %1595 : vector<8x1xf32>
    %1599 = arith.subf %1597, %1598 : vector<8x1xf32>
    %1600 = vector.broadcast %1595 : vector<8x1xf32> to vector<8x256xf32>
    %1601 = arith.subf %1588, %1600 : vector<8x256xf32>
    %cst_1080 = arith.constant 9.99999974E-6 : f32
    %1602 = vector.broadcast %cst_1080 : f32 to vector<8x1xf32>
    %1603 = arith.addf %1599, %1602 : vector<8x1xf32>
    %1604 = math.rsqrt %1603 : vector<8x1xf32>
    %1605 = vector.broadcast %1604 : vector<8x1xf32> to vector<8x256xf32>
    %1606 = arith.mulf %1601, %1605 : vector<8x256xf32>
    %c7_1081 = arith.constant 7 : index
    %c0_1082 = arith.constant 0 : index
    %c0_1083 = arith.constant 0 : index
    %1607 = vector.load %arg5[%c7_1081, %c0_1082, %c0_1083] : memref<13x8x1xf32, #tpu.memory_space<vmem>>, vector<1x8x1xf32>
    %1608 = vector.shape_cast %1607 : vector<1x8x1xf32> to vector<8x1xf32>
    %1609 = vector.broadcast %1608 : vector<8x1xf32> to vector<8x256xf32>
    %1610 = arith.mulf %1606, %1609 : vector<8x256xf32>
    %c7_1084 = arith.constant 7 : index
    %c0_1085 = arith.constant 0 : index
    %c0_1086 = arith.constant 0 : index
    %1611 = vector.load %arg6[%c7_1084, %c0_1085, %c0_1086] : memref<13x8x1xf32, #tpu.memory_space<vmem>>, vector<1x8x1xf32>
    %1612 = vector.shape_cast %1611 : vector<1x8x1xf32> to vector<8x1xf32>
    %1613 = vector.broadcast %1612 : vector<8x1xf32> to vector<8x256xf32>
    %1614 = arith.addf %1610, %1613 : vector<8x256xf32>
    %1615 = arith.addf %1614, %1465 : vector<8x256xf32>
    %cst_1087 = arith.constant 5.000000e-01 : f32
    %1616 = vector.broadcast %cst_1087 : f32 to vector<8x256xf32>
    %1617 = arith.mulf %1616, %1615 : vector<8x256xf32>
    %cst_1088 = arith.constant 4.471500e-02 : f32
    %1618 = vector.broadcast %cst_1088 : f32 to vector<8x256xf32>
    %1619 = arith.mulf %1618, %1615 : vector<8x256xf32>
    %1620 = arith.mulf %1619, %1615 : vector<8x256xf32>
    %1621 = arith.mulf %1620, %1615 : vector<8x256xf32>
    %1622 = arith.addf %1615, %1621 : vector<8x256xf32>
    %cst_1089 = arith.constant 0.797884583 : f32
    %1623 = vector.broadcast %cst_1089 : f32 to vector<8x256xf32>
    %1624 = arith.mulf %1623, %1622 : vector<8x256xf32>
    %1625 = math.tanh %1624 : vector<8x256xf32>
    %cst_1090 = arith.constant 1.000000e+00 : f32
    %1626 = vector.broadcast %cst_1090 : f32 to vector<8x256xf32>
    %1627 = arith.addf %1626, %1625 : vector<8x256xf32>
    %1628 = arith.mulf %1617, %1627 : vector<8x256xf32>
    %c17_i32_1091 = arith.constant 17 : i32
    %1629 = tpu.dynamic_rotate %1628 by %c17_i32_1091 dim 1 : vector<8x256xf32>, i32 -> vector<8x256xf32>
    %c0_1092 = arith.constant 0 : index
    %c0_1093 = arith.constant 0 : index
    %c0_1094 = arith.constant 0 : index
    %1630 = vector.load %arg2[%c0_1092, %c0_1093, %c0_1094] : memref<8x8x256xf32, #tpu.memory_space<vmem>>, vector<1x8x256xf32>
    %1631 = vector.shape_cast %1630 : vector<1x8x256xf32> to vector<8x256xf32>
    %1632 = arith.mulf %1629, %1631 : vector<8x256xf32>
    %c16_i32_1095 = arith.constant 16 : i32
    %1633 = tpu.dynamic_rotate %1628 by %c16_i32_1095 dim 1 : vector<8x256xf32>, i32 -> vector<8x256xf32>
    %c1_1096 = arith.constant 1 : index
    %c0_1097 = arith.constant 0 : index
    %c0_1098 = arith.constant 0 : index
    %1634 = vector.load %arg2[%c1_1096, %c0_1097, %c0_1098] : memref<8x8x256xf32, #tpu.memory_space<vmem>>, vector<1x8x256xf32>
    %1635 = vector.shape_cast %1634 : vector<1x8x256xf32> to vector<8x256xf32>
    %1636 = arith.mulf %1633, %1635 : vector<8x256xf32>
    %c15_i32_1099 = arith.constant 15 : i32
    %1637 = tpu.dynamic_rotate %1628 by %c15_i32_1099 dim 1 : vector<8x256xf32>, i32 -> vector<8x256xf32>
    %c2_1100 = arith.constant 2 : index
    %c0_1101 = arith.constant 0 : index
    %c0_1102 = arith.constant 0 : index
    %1638 = vector.load %arg2[%c2_1100, %c0_1101, %c0_1102] : memref<8x8x256xf32, #tpu.memory_space<vmem>>, vector<1x8x256xf32>
    %1639 = vector.shape_cast %1638 : vector<1x8x256xf32> to vector<8x256xf32>
    %1640 = arith.mulf %1637, %1639 : vector<8x256xf32>
    %c1_i32_1103 = arith.constant 1 : i32
    %1641 = tpu.dynamic_rotate %1628 by %c1_i32_1103 dim 1 : vector<8x256xf32>, i32 -> vector<8x256xf32>
    %c3_1104 = arith.constant 3 : index
    %c0_1105 = arith.constant 0 : index
    %c0_1106 = arith.constant 0 : index
    %1642 = vector.load %arg2[%c3_1104, %c0_1105, %c0_1106] : memref<8x8x256xf32, #tpu.memory_space<vmem>>, vector<1x8x256xf32>
    %1643 = vector.shape_cast %1642 : vector<1x8x256xf32> to vector<8x256xf32>
    %1644 = arith.mulf %1641, %1643 : vector<8x256xf32>
    %c255_i32_1107 = arith.constant 255 : i32
    %1645 = tpu.dynamic_rotate %1628 by %c255_i32_1107 dim 1 : vector<8x256xf32>, i32 -> vector<8x256xf32>
    %c4_1108 = arith.constant 4 : index
    %c0_1109 = arith.constant 0 : index
    %c0_1110 = arith.constant 0 : index
    %1646 = vector.load %arg2[%c4_1108, %c0_1109, %c0_1110] : memref<8x8x256xf32, #tpu.memory_space<vmem>>, vector<1x8x256xf32>
    %1647 = vector.shape_cast %1646 : vector<1x8x256xf32> to vector<8x256xf32>
    %1648 = arith.mulf %1645, %1647 : vector<8x256xf32>
    %c241_i32_1111 = arith.constant 241 : i32
    %1649 = tpu.dynamic_rotate %1628 by %c241_i32_1111 dim 1 : vector<8x256xf32>, i32 -> vector<8x256xf32>
    %c5_1112 = arith.constant 5 : index
    %c0_1113 = arith.constant 0 : index
    %c0_1114 = arith.constant 0 : index
    %1650 = vector.load %arg2[%c5_1112, %c0_1113, %c0_1114] : memref<8x8x256xf32, #tpu.memory_space<vmem>>, vector<1x8x256xf32>
    %1651 = vector.shape_cast %1650 : vector<1x8x256xf32> to vector<8x256xf32>
    %1652 = arith.mulf %1649, %1651 : vector<8x256xf32>
    %c240_i32_1115 = arith.constant 240 : i32
    %1653 = tpu.dynamic_rotate %1628 by %c240_i32_1115 dim 1 : vector<8x256xf32>, i32 -> vector<8x256xf32>
    %c6_1116 = arith.constant 6 : index
    %c0_1117 = arith.constant 0 : index
    %c0_1118 = arith.constant 0 : index
    %1654 = vector.load %arg2[%c6_1116, %c0_1117, %c0_1118] : memref<8x8x256xf32, #tpu.memory_space<vmem>>, vector<1x8x256xf32>
    %1655 = vector.shape_cast %1654 : vector<1x8x256xf32> to vector<8x256xf32>
    %1656 = arith.mulf %1653, %1655 : vector<8x256xf32>
    %c239_i32_1119 = arith.constant 239 : i32
    %1657 = tpu.dynamic_rotate %1628 by %c239_i32_1119 dim 1 : vector<8x256xf32>, i32 -> vector<8x256xf32>
    %c7_1120 = arith.constant 7 : index
    %c0_1121 = arith.constant 0 : index
    %c0_1122 = arith.constant 0 : index
    %1658 = vector.load %arg2[%c7_1120, %c0_1121, %c0_1122] : memref<8x8x256xf32, #tpu.memory_space<vmem>>, vector<1x8x256xf32>
    %1659 = vector.shape_cast %1658 : vector<1x8x256xf32> to vector<8x256xf32>
    %1660 = arith.mulf %1657, %1659 : vector<8x256xf32>
    %1661 = tpu.concatenate %1632, %1636, %1640, %1644, %1628, %1648, %1652, %1656, %1660 in 0 : vector<8x256xf32>, vector<8x256xf32>, vector<8x256xf32>, vector<8x256xf32>, vector<8x256xf32>, vector<8x256xf32>, vector<8x256xf32>, vector<8x256xf32>, vector<8x256xf32> -> vector<72x256xf32>
    %1662 = arith.truncf %1661 : vector<72x256xf32> to vector<72x256xbf16>
    %c8_1123 = arith.constant 8 : index
    %c0_1124 = arith.constant 0 : index
    %c0_1125 = arith.constant 0 : index
    %1663 = vector.load %arg3[%c8_1123, %c0_1124, %c0_1125] : memref<13x8x72xf32, #tpu.memory_space<vmem>>, vector<1x8x72xf32>
    %1664 = vector.shape_cast %1663 : vector<1x8x72xf32> to vector<8x72xf32>
    %1665 = arith.truncf %1664 : vector<8x72xf32> to vector<8x72xbf16>
    %cst_1126 = arith.constant dense<0.000000e+00> : vector<8x256xf32>
    %1666 = tpu.matmul %1665, %1662, %cst_1126 {dimension_numbers = #tpu.dot_dimension_numbers<[1], [0], [0], [1], [0, 0, 1, 1], [], []>} : vector<8x72xbf16>, vector<72x256xbf16>, vector<8x256xf32> -> vector<8x256xf32>
    %c8_1127 = arith.constant 8 : index
    %c0_1128 = arith.constant 0 : index
    %c0_1129 = arith.constant 0 : index
    %1667 = vector.load %arg4[%c8_1127, %c0_1128, %c0_1129] : memref<13x8x1xf32, #tpu.memory_space<vmem>>, vector<1x8x1xf32>
    %1668 = vector.shape_cast %1667 : vector<1x8x1xf32> to vector<8x1xf32>
    %1669 = vector.broadcast %1668 : vector<8x1xf32> to vector<8x256xf32>
    %1670 = arith.addf %1666, %1669 : vector<8x256xf32>
    %cst_1130 = arith.constant dense<0.000000e+00> : vector<8xf32>
    %1671 = vector.multi_reduction <add>, %1670, %cst_1130 [1] : vector<8x256xf32> to vector<8xf32>
    %1672 = vector.shape_cast %1671 : vector<8xf32> to vector<8x1xf32>
    %1673 = arith.mulf %1670, %1670 : vector<8x256xf32>
    %cst_1131 = arith.constant dense<0.000000e+00> : vector<8xf32>
    %1674 = vector.multi_reduction <add>, %1673, %cst_1131 [1] : vector<8x256xf32> to vector<8xf32>
    %1675 = vector.shape_cast %1674 : vector<8xf32> to vector<8x1xf32>
    %cst_1132 = arith.constant 3.906250e-03 : f32
    %1676 = vector.broadcast %cst_1132 : f32 to vector<8x1xf32>
    %1677 = arith.mulf %1672, %1676 : vector<8x1xf32>
    %cst_1133 = arith.constant 3.906250e-03 : f32
    %1678 = vector.broadcast %cst_1133 : f32 to vector<8x1xf32>
    %1679 = arith.mulf %1675, %1678 : vector<8x1xf32>
    %1680 = arith.mulf %1677, %1677 : vector<8x1xf32>
    %1681 = arith.subf %1679, %1680 : vector<8x1xf32>
    %1682 = vector.broadcast %1677 : vector<8x1xf32> to vector<8x256xf32>
    %1683 = arith.subf %1670, %1682 : vector<8x256xf32>
    %cst_1134 = arith.constant 9.99999974E-6 : f32
    %1684 = vector.broadcast %cst_1134 : f32 to vector<8x1xf32>
    %1685 = arith.addf %1681, %1684 : vector<8x1xf32>
    %1686 = math.rsqrt %1685 : vector<8x1xf32>
    %1687 = vector.broadcast %1686 : vector<8x1xf32> to vector<8x256xf32>
    %1688 = arith.mulf %1683, %1687 : vector<8x256xf32>
    %c8_1135 = arith.constant 8 : index
    %c0_1136 = arith.constant 0 : index
    %c0_1137 = arith.constant 0 : index
    %1689 = vector.load %arg5[%c8_1135, %c0_1136, %c0_1137] : memref<13x8x1xf32, #tpu.memory_space<vmem>>, vector<1x8x1xf32>
    %1690 = vector.shape_cast %1689 : vector<1x8x1xf32> to vector<8x1xf32>
    %1691 = vector.broadcast %1690 : vector<8x1xf32> to vector<8x256xf32>
    %1692 = arith.mulf %1688, %1691 : vector<8x256xf32>
    %c8_1138 = arith.constant 8 : index
    %c0_1139 = arith.constant 0 : index
    %c0_1140 = arith.constant 0 : index
    %1693 = vector.load %arg6[%c8_1138, %c0_1139, %c0_1140] : memref<13x8x1xf32, #tpu.memory_space<vmem>>, vector<1x8x1xf32>
    %1694 = vector.shape_cast %1693 : vector<1x8x1xf32> to vector<8x1xf32>
    %1695 = vector.broadcast %1694 : vector<8x1xf32> to vector<8x256xf32>
    %1696 = arith.addf %1692, %1695 : vector<8x256xf32>
    %1697 = arith.negf %1696 : vector<8x256xf32>
    %1698 = math.exp %1697 : vector<8x256xf32>
    %cst_1141 = arith.constant 1.000000e+00 : f32
    %1699 = vector.broadcast %cst_1141 : f32 to vector<8x256xf32>
    %1700 = arith.addf %1699, %1698 : vector<8x256xf32>
    %1701 = arith.divf %1699, %1700 : vector<8x256xf32>
    %1702 = arith.mulf %1696, %1701 : vector<8x256xf32>
    %c17_i32_1142 = arith.constant 17 : i32
    %1703 = tpu.dynamic_rotate %1702 by %c17_i32_1142 dim 1 : vector<8x256xf32>, i32 -> vector<8x256xf32>
    %c0_1143 = arith.constant 0 : index
    %c0_1144 = arith.constant 0 : index
    %c0_1145 = arith.constant 0 : index
    %1704 = vector.load %arg2[%c0_1143, %c0_1144, %c0_1145] : memref<8x8x256xf32, #tpu.memory_space<vmem>>, vector<1x8x256xf32>
    %1705 = vector.shape_cast %1704 : vector<1x8x256xf32> to vector<8x256xf32>
    %1706 = arith.mulf %1703, %1705 : vector<8x256xf32>
    %c16_i32_1146 = arith.constant 16 : i32
    %1707 = tpu.dynamic_rotate %1702 by %c16_i32_1146 dim 1 : vector<8x256xf32>, i32 -> vector<8x256xf32>
    %c1_1147 = arith.constant 1 : index
    %c0_1148 = arith.constant 0 : index
    %c0_1149 = arith.constant 0 : index
    %1708 = vector.load %arg2[%c1_1147, %c0_1148, %c0_1149] : memref<8x8x256xf32, #tpu.memory_space<vmem>>, vector<1x8x256xf32>
    %1709 = vector.shape_cast %1708 : vector<1x8x256xf32> to vector<8x256xf32>
    %1710 = arith.mulf %1707, %1709 : vector<8x256xf32>
    %c15_i32_1150 = arith.constant 15 : i32
    %1711 = tpu.dynamic_rotate %1702 by %c15_i32_1150 dim 1 : vector<8x256xf32>, i32 -> vector<8x256xf32>
    %c2_1151 = arith.constant 2 : index
    %c0_1152 = arith.constant 0 : index
    %c0_1153 = arith.constant 0 : index
    %1712 = vector.load %arg2[%c2_1151, %c0_1152, %c0_1153] : memref<8x8x256xf32, #tpu.memory_space<vmem>>, vector<1x8x256xf32>
    %1713 = vector.shape_cast %1712 : vector<1x8x256xf32> to vector<8x256xf32>
    %1714 = arith.mulf %1711, %1713 : vector<8x256xf32>
    %c1_i32_1154 = arith.constant 1 : i32
    %1715 = tpu.dynamic_rotate %1702 by %c1_i32_1154 dim 1 : vector<8x256xf32>, i32 -> vector<8x256xf32>
    %c3_1155 = arith.constant 3 : index
    %c0_1156 = arith.constant 0 : index
    %c0_1157 = arith.constant 0 : index
    %1716 = vector.load %arg2[%c3_1155, %c0_1156, %c0_1157] : memref<8x8x256xf32, #tpu.memory_space<vmem>>, vector<1x8x256xf32>
    %1717 = vector.shape_cast %1716 : vector<1x8x256xf32> to vector<8x256xf32>
    %1718 = arith.mulf %1715, %1717 : vector<8x256xf32>
    %c255_i32_1158 = arith.constant 255 : i32
    %1719 = tpu.dynamic_rotate %1702 by %c255_i32_1158 dim 1 : vector<8x256xf32>, i32 -> vector<8x256xf32>
    %c4_1159 = arith.constant 4 : index
    %c0_1160 = arith.constant 0 : index
    %c0_1161 = arith.constant 0 : index
    %1720 = vector.load %arg2[%c4_1159, %c0_1160, %c0_1161] : memref<8x8x256xf32, #tpu.memory_space<vmem>>, vector<1x8x256xf32>
    %1721 = vector.shape_cast %1720 : vector<1x8x256xf32> to vector<8x256xf32>
    %1722 = arith.mulf %1719, %1721 : vector<8x256xf32>
    %c241_i32_1162 = arith.constant 241 : i32
    %1723 = tpu.dynamic_rotate %1702 by %c241_i32_1162 dim 1 : vector<8x256xf32>, i32 -> vector<8x256xf32>
    %c5_1163 = arith.constant 5 : index
    %c0_1164 = arith.constant 0 : index
    %c0_1165 = arith.constant 0 : index
    %1724 = vector.load %arg2[%c5_1163, %c0_1164, %c0_1165] : memref<8x8x256xf32, #tpu.memory_space<vmem>>, vector<1x8x256xf32>
    %1725 = vector.shape_cast %1724 : vector<1x8x256xf32> to vector<8x256xf32>
    %1726 = arith.mulf %1723, %1725 : vector<8x256xf32>
    %c240_i32_1166 = arith.constant 240 : i32
    %1727 = tpu.dynamic_rotate %1702 by %c240_i32_1166 dim 1 : vector<8x256xf32>, i32 -> vector<8x256xf32>
    %c6_1167 = arith.constant 6 : index
    %c0_1168 = arith.constant 0 : index
    %c0_1169 = arith.constant 0 : index
    %1728 = vector.load %arg2[%c6_1167, %c0_1168, %c0_1169] : memref<8x8x256xf32, #tpu.memory_space<vmem>>, vector<1x8x256xf32>
    %1729 = vector.shape_cast %1728 : vector<1x8x256xf32> to vector<8x256xf32>
    %1730 = arith.mulf %1727, %1729 : vector<8x256xf32>
    %c239_i32_1170 = arith.constant 239 : i32
    %1731 = tpu.dynamic_rotate %1702 by %c239_i32_1170 dim 1 : vector<8x256xf32>, i32 -> vector<8x256xf32>
    %c7_1171 = arith.constant 7 : index
    %c0_1172 = arith.constant 0 : index
    %c0_1173 = arith.constant 0 : index
    %1732 = vector.load %arg2[%c7_1171, %c0_1172, %c0_1173] : memref<8x8x256xf32, #tpu.memory_space<vmem>>, vector<1x8x256xf32>
    %1733 = vector.shape_cast %1732 : vector<1x8x256xf32> to vector<8x256xf32>
    %1734 = arith.mulf %1731, %1733 : vector<8x256xf32>
    %1735 = tpu.concatenate %1706, %1710, %1714, %1718, %1702, %1722, %1726, %1730, %1734 in 0 : vector<8x256xf32>, vector<8x256xf32>, vector<8x256xf32>, vector<8x256xf32>, vector<8x256xf32>, vector<8x256xf32>, vector<8x256xf32>, vector<8x256xf32>, vector<8x256xf32> -> vector<72x256xf32>
    %1736 = arith.truncf %1735 : vector<72x256xf32> to vector<72x256xbf16>
    %c9_1174 = arith.constant 9 : index
    %c0_1175 = arith.constant 0 : index
    %c0_1176 = arith.constant 0 : index
    %1737 = vector.load %arg3[%c9_1174, %c0_1175, %c0_1176] : memref<13x8x72xf32, #tpu.memory_space<vmem>>, vector<1x8x72xf32>
    %1738 = vector.shape_cast %1737 : vector<1x8x72xf32> to vector<8x72xf32>
    %1739 = arith.truncf %1738 : vector<8x72xf32> to vector<8x72xbf16>
    %cst_1177 = arith.constant dense<0.000000e+00> : vector<8x256xf32>
    %1740 = tpu.matmul %1739, %1736, %cst_1177 {dimension_numbers = #tpu.dot_dimension_numbers<[1], [0], [0], [1], [0, 0, 1, 1], [], []>} : vector<8x72xbf16>, vector<72x256xbf16>, vector<8x256xf32> -> vector<8x256xf32>
    %c9_1178 = arith.constant 9 : index
    %c0_1179 = arith.constant 0 : index
    %c0_1180 = arith.constant 0 : index
    %1741 = vector.load %arg4[%c9_1178, %c0_1179, %c0_1180] : memref<13x8x1xf32, #tpu.memory_space<vmem>>, vector<1x8x1xf32>
    %1742 = vector.shape_cast %1741 : vector<1x8x1xf32> to vector<8x1xf32>
    %1743 = vector.broadcast %1742 : vector<8x1xf32> to vector<8x256xf32>
    %1744 = arith.addf %1740, %1743 : vector<8x256xf32>
    %cst_1181 = arith.constant dense<0.000000e+00> : vector<8xf32>
    %1745 = vector.multi_reduction <add>, %1744, %cst_1181 [1] : vector<8x256xf32> to vector<8xf32>
    %1746 = vector.shape_cast %1745 : vector<8xf32> to vector<8x1xf32>
    %1747 = arith.mulf %1744, %1744 : vector<8x256xf32>
    %cst_1182 = arith.constant dense<0.000000e+00> : vector<8xf32>
    %1748 = vector.multi_reduction <add>, %1747, %cst_1182 [1] : vector<8x256xf32> to vector<8xf32>
    %1749 = vector.shape_cast %1748 : vector<8xf32> to vector<8x1xf32>
    %cst_1183 = arith.constant 3.906250e-03 : f32
    %1750 = vector.broadcast %cst_1183 : f32 to vector<8x1xf32>
    %1751 = arith.mulf %1746, %1750 : vector<8x1xf32>
    %cst_1184 = arith.constant 3.906250e-03 : f32
    %1752 = vector.broadcast %cst_1184 : f32 to vector<8x1xf32>
    %1753 = arith.mulf %1749, %1752 : vector<8x1xf32>
    %1754 = arith.mulf %1751, %1751 : vector<8x1xf32>
    %1755 = arith.subf %1753, %1754 : vector<8x1xf32>
    %1756 = vector.broadcast %1751 : vector<8x1xf32> to vector<8x256xf32>
    %1757 = arith.subf %1744, %1756 : vector<8x256xf32>
    %cst_1185 = arith.constant 9.99999974E-6 : f32
    %1758 = vector.broadcast %cst_1185 : f32 to vector<8x1xf32>
    %1759 = arith.addf %1755, %1758 : vector<8x1xf32>
    %1760 = math.rsqrt %1759 : vector<8x1xf32>
    %1761 = vector.broadcast %1760 : vector<8x1xf32> to vector<8x256xf32>
    %1762 = arith.mulf %1757, %1761 : vector<8x256xf32>
    %c9_1186 = arith.constant 9 : index
    %c0_1187 = arith.constant 0 : index
    %c0_1188 = arith.constant 0 : index
    %1763 = vector.load %arg5[%c9_1186, %c0_1187, %c0_1188] : memref<13x8x1xf32, #tpu.memory_space<vmem>>, vector<1x8x1xf32>
    %1764 = vector.shape_cast %1763 : vector<1x8x1xf32> to vector<8x1xf32>
    %1765 = vector.broadcast %1764 : vector<8x1xf32> to vector<8x256xf32>
    %1766 = arith.mulf %1762, %1765 : vector<8x256xf32>
    %c9_1189 = arith.constant 9 : index
    %c0_1190 = arith.constant 0 : index
    %c0_1191 = arith.constant 0 : index
    %1767 = vector.load %arg6[%c9_1189, %c0_1190, %c0_1191] : memref<13x8x1xf32, #tpu.memory_space<vmem>>, vector<1x8x1xf32>
    %1768 = vector.shape_cast %1767 : vector<1x8x1xf32> to vector<8x1xf32>
    %1769 = vector.broadcast %1768 : vector<8x1xf32> to vector<8x256xf32>
    %1770 = arith.addf %1766, %1769 : vector<8x256xf32>
    %1771 = arith.addf %1770, %1628 : vector<8x256xf32>
    %1772 = arith.negf %1771 : vector<8x256xf32>
    %1773 = math.exp %1772 : vector<8x256xf32>
    %cst_1192 = arith.constant 1.000000e+00 : f32
    %1774 = vector.broadcast %cst_1192 : f32 to vector<8x256xf32>
    %1775 = arith.addf %1774, %1773 : vector<8x256xf32>
    %1776 = arith.divf %1774, %1775 : vector<8x256xf32>
    %1777 = arith.mulf %1771, %1776 : vector<8x256xf32>
    %c17_i32_1193 = arith.constant 17 : i32
    %1778 = tpu.dynamic_rotate %1777 by %c17_i32_1193 dim 1 : vector<8x256xf32>, i32 -> vector<8x256xf32>
    %c0_1194 = arith.constant 0 : index
    %c0_1195 = arith.constant 0 : index
    %c0_1196 = arith.constant 0 : index
    %1779 = vector.load %arg2[%c0_1194, %c0_1195, %c0_1196] : memref<8x8x256xf32, #tpu.memory_space<vmem>>, vector<1x8x256xf32>
    %1780 = vector.shape_cast %1779 : vector<1x8x256xf32> to vector<8x256xf32>
    %1781 = arith.mulf %1778, %1780 : vector<8x256xf32>
    %c16_i32_1197 = arith.constant 16 : i32
    %1782 = tpu.dynamic_rotate %1777 by %c16_i32_1197 dim 1 : vector<8x256xf32>, i32 -> vector<8x256xf32>
    %c1_1198 = arith.constant 1 : index
    %c0_1199 = arith.constant 0 : index
    %c0_1200 = arith.constant 0 : index
    %1783 = vector.load %arg2[%c1_1198, %c0_1199, %c0_1200] : memref<8x8x256xf32, #tpu.memory_space<vmem>>, vector<1x8x256xf32>
    %1784 = vector.shape_cast %1783 : vector<1x8x256xf32> to vector<8x256xf32>
    %1785 = arith.mulf %1782, %1784 : vector<8x256xf32>
    %c15_i32_1201 = arith.constant 15 : i32
    %1786 = tpu.dynamic_rotate %1777 by %c15_i32_1201 dim 1 : vector<8x256xf32>, i32 -> vector<8x256xf32>
    %c2_1202 = arith.constant 2 : index
    %c0_1203 = arith.constant 0 : index
    %c0_1204 = arith.constant 0 : index
    %1787 = vector.load %arg2[%c2_1202, %c0_1203, %c0_1204] : memref<8x8x256xf32, #tpu.memory_space<vmem>>, vector<1x8x256xf32>
    %1788 = vector.shape_cast %1787 : vector<1x8x256xf32> to vector<8x256xf32>
    %1789 = arith.mulf %1786, %1788 : vector<8x256xf32>
    %c1_i32_1205 = arith.constant 1 : i32
    %1790 = tpu.dynamic_rotate %1777 by %c1_i32_1205 dim 1 : vector<8x256xf32>, i32 -> vector<8x256xf32>
    %c3_1206 = arith.constant 3 : index
    %c0_1207 = arith.constant 0 : index
    %c0_1208 = arith.constant 0 : index
    %1791 = vector.load %arg2[%c3_1206, %c0_1207, %c0_1208] : memref<8x8x256xf32, #tpu.memory_space<vmem>>, vector<1x8x256xf32>
    %1792 = vector.shape_cast %1791 : vector<1x8x256xf32> to vector<8x256xf32>
    %1793 = arith.mulf %1790, %1792 : vector<8x256xf32>
    %c255_i32_1209 = arith.constant 255 : i32
    %1794 = tpu.dynamic_rotate %1777 by %c255_i32_1209 dim 1 : vector<8x256xf32>, i32 -> vector<8x256xf32>
    %c4_1210 = arith.constant 4 : index
    %c0_1211 = arith.constant 0 : index
    %c0_1212 = arith.constant 0 : index
    %1795 = vector.load %arg2[%c4_1210, %c0_1211, %c0_1212] : memref<8x8x256xf32, #tpu.memory_space<vmem>>, vector<1x8x256xf32>
    %1796 = vector.shape_cast %1795 : vector<1x8x256xf32> to vector<8x256xf32>
    %1797 = arith.mulf %1794, %1796 : vector<8x256xf32>
    %c241_i32_1213 = arith.constant 241 : i32
    %1798 = tpu.dynamic_rotate %1777 by %c241_i32_1213 dim 1 : vector<8x256xf32>, i32 -> vector<8x256xf32>
    %c5_1214 = arith.constant 5 : index
    %c0_1215 = arith.constant 0 : index
    %c0_1216 = arith.constant 0 : index
    %1799 = vector.load %arg2[%c5_1214, %c0_1215, %c0_1216] : memref<8x8x256xf32, #tpu.memory_space<vmem>>, vector<1x8x256xf32>
    %1800 = vector.shape_cast %1799 : vector<1x8x256xf32> to vector<8x256xf32>
    %1801 = arith.mulf %1798, %1800 : vector<8x256xf32>
    %c240_i32_1217 = arith.constant 240 : i32
    %1802 = tpu.dynamic_rotate %1777 by %c240_i32_1217 dim 1 : vector<8x256xf32>, i32 -> vector<8x256xf32>
    %c6_1218 = arith.constant 6 : index
    %c0_1219 = arith.constant 0 : index
    %c0_1220 = arith.constant 0 : index
    %1803 = vector.load %arg2[%c6_1218, %c0_1219, %c0_1220] : memref<8x8x256xf32, #tpu.memory_space<vmem>>, vector<1x8x256xf32>
    %1804 = vector.shape_cast %1803 : vector<1x8x256xf32> to vector<8x256xf32>
    %1805 = arith.mulf %1802, %1804 : vector<8x256xf32>
    %c239_i32_1221 = arith.constant 239 : i32
    %1806 = tpu.dynamic_rotate %1777 by %c239_i32_1221 dim 1 : vector<8x256xf32>, i32 -> vector<8x256xf32>
    %c7_1222 = arith.constant 7 : index
    %c0_1223 = arith.constant 0 : index
    %c0_1224 = arith.constant 0 : index
    %1807 = vector.load %arg2[%c7_1222, %c0_1223, %c0_1224] : memref<8x8x256xf32, #tpu.memory_space<vmem>>, vector<1x8x256xf32>
    %1808 = vector.shape_cast %1807 : vector<1x8x256xf32> to vector<8x256xf32>
    %1809 = arith.mulf %1806, %1808 : vector<8x256xf32>
    %1810 = tpu.concatenate %1781, %1785, %1789, %1793, %1777, %1797, %1801, %1805, %1809 in 0 : vector<8x256xf32>, vector<8x256xf32>, vector<8x256xf32>, vector<8x256xf32>, vector<8x256xf32>, vector<8x256xf32>, vector<8x256xf32>, vector<8x256xf32>, vector<8x256xf32> -> vector<72x256xf32>
    %1811 = arith.truncf %1810 : vector<72x256xf32> to vector<72x256xbf16>
    %c10_1225 = arith.constant 10 : index
    %c0_1226 = arith.constant 0 : index
    %c0_1227 = arith.constant 0 : index
    %1812 = vector.load %arg3[%c10_1225, %c0_1226, %c0_1227] : memref<13x8x72xf32, #tpu.memory_space<vmem>>, vector<1x8x72xf32>
    %1813 = vector.shape_cast %1812 : vector<1x8x72xf32> to vector<8x72xf32>
    %1814 = arith.truncf %1813 : vector<8x72xf32> to vector<8x72xbf16>
    %cst_1228 = arith.constant dense<0.000000e+00> : vector<8x256xf32>
    %1815 = tpu.matmul %1814, %1811, %cst_1228 {dimension_numbers = #tpu.dot_dimension_numbers<[1], [0], [0], [1], [0, 0, 1, 1], [], []>} : vector<8x72xbf16>, vector<72x256xbf16>, vector<8x256xf32> -> vector<8x256xf32>
    %c10_1229 = arith.constant 10 : index
    %c0_1230 = arith.constant 0 : index
    %c0_1231 = arith.constant 0 : index
    %1816 = vector.load %arg4[%c10_1229, %c0_1230, %c0_1231] : memref<13x8x1xf32, #tpu.memory_space<vmem>>, vector<1x8x1xf32>
    %1817 = vector.shape_cast %1816 : vector<1x8x1xf32> to vector<8x1xf32>
    %1818 = vector.broadcast %1817 : vector<8x1xf32> to vector<8x256xf32>
    %1819 = arith.addf %1815, %1818 : vector<8x256xf32>
    %cst_1232 = arith.constant dense<0.000000e+00> : vector<8xf32>
    %1820 = vector.multi_reduction <add>, %1819, %cst_1232 [1] : vector<8x256xf32> to vector<8xf32>
    %1821 = vector.shape_cast %1820 : vector<8xf32> to vector<8x1xf32>
    %1822 = arith.mulf %1819, %1819 : vector<8x256xf32>
    %cst_1233 = arith.constant dense<0.000000e+00> : vector<8xf32>
    %1823 = vector.multi_reduction <add>, %1822, %cst_1233 [1] : vector<8x256xf32> to vector<8xf32>
    %1824 = vector.shape_cast %1823 : vector<8xf32> to vector<8x1xf32>
    %cst_1234 = arith.constant 3.906250e-03 : f32
    %1825 = vector.broadcast %cst_1234 : f32 to vector<8x1xf32>
    %1826 = arith.mulf %1821, %1825 : vector<8x1xf32>
    %cst_1235 = arith.constant 3.906250e-03 : f32
    %1827 = vector.broadcast %cst_1235 : f32 to vector<8x1xf32>
    %1828 = arith.mulf %1824, %1827 : vector<8x1xf32>
    %1829 = arith.mulf %1826, %1826 : vector<8x1xf32>
    %1830 = arith.subf %1828, %1829 : vector<8x1xf32>
    %1831 = vector.broadcast %1826 : vector<8x1xf32> to vector<8x256xf32>
    %1832 = arith.subf %1819, %1831 : vector<8x256xf32>
    %cst_1236 = arith.constant 9.99999974E-6 : f32
    %1833 = vector.broadcast %cst_1236 : f32 to vector<8x1xf32>
    %1834 = arith.addf %1830, %1833 : vector<8x1xf32>
    %1835 = math.rsqrt %1834 : vector<8x1xf32>
    %1836 = vector.broadcast %1835 : vector<8x1xf32> to vector<8x256xf32>
    %1837 = arith.mulf %1832, %1836 : vector<8x256xf32>
    %c10_1237 = arith.constant 10 : index
    %c0_1238 = arith.constant 0 : index
    %c0_1239 = arith.constant 0 : index
    %1838 = vector.load %arg5[%c10_1237, %c0_1238, %c0_1239] : memref<13x8x1xf32, #tpu.memory_space<vmem>>, vector<1x8x1xf32>
    %1839 = vector.shape_cast %1838 : vector<1x8x1xf32> to vector<8x1xf32>
    %1840 = vector.broadcast %1839 : vector<8x1xf32> to vector<8x256xf32>
    %1841 = arith.mulf %1837, %1840 : vector<8x256xf32>
    %c10_1240 = arith.constant 10 : index
    %c0_1241 = arith.constant 0 : index
    %c0_1242 = arith.constant 0 : index
    %1842 = vector.load %arg6[%c10_1240, %c0_1241, %c0_1242] : memref<13x8x1xf32, #tpu.memory_space<vmem>>, vector<1x8x1xf32>
    %1843 = vector.shape_cast %1842 : vector<1x8x1xf32> to vector<8x1xf32>
    %1844 = vector.broadcast %1843 : vector<8x1xf32> to vector<8x256xf32>
    %1845 = arith.addf %1841, %1844 : vector<8x256xf32>
    %cst_1243 = arith.constant 0.000000e+00 : f32
    %1846 = vector.broadcast %cst_1243 : f32 to vector<8x256xf32>
    %1847 = arith.cmpf oge, %1845, %1846 : vector<8x256xf32>
    %cst_1244 = arith.constant 2.000000e-01 : f32
    %1848 = vector.broadcast %cst_1244 : f32 to vector<8x256xf32>
    %1849 = arith.mulf %1848, %1845 : vector<8x256xf32>
    %1850 = arith.select %1847, %1845, %1849 : vector<8x256xi1>, vector<8x256xf32>
    %c17_i32_1245 = arith.constant 17 : i32
    %1851 = tpu.dynamic_rotate %1850 by %c17_i32_1245 dim 1 : vector<8x256xf32>, i32 -> vector<8x256xf32>
    %c0_1246 = arith.constant 0 : index
    %c0_1247 = arith.constant 0 : index
    %c0_1248 = arith.constant 0 : index
    %1852 = vector.load %arg2[%c0_1246, %c0_1247, %c0_1248] : memref<8x8x256xf32, #tpu.memory_space<vmem>>, vector<1x8x256xf32>
    %1853 = vector.shape_cast %1852 : vector<1x8x256xf32> to vector<8x256xf32>
    %1854 = arith.mulf %1851, %1853 : vector<8x256xf32>
    %c16_i32_1249 = arith.constant 16 : i32
    %1855 = tpu.dynamic_rotate %1850 by %c16_i32_1249 dim 1 : vector<8x256xf32>, i32 -> vector<8x256xf32>
    %c1_1250 = arith.constant 1 : index
    %c0_1251 = arith.constant 0 : index
    %c0_1252 = arith.constant 0 : index
    %1856 = vector.load %arg2[%c1_1250, %c0_1251, %c0_1252] : memref<8x8x256xf32, #tpu.memory_space<vmem>>, vector<1x8x256xf32>
    %1857 = vector.shape_cast %1856 : vector<1x8x256xf32> to vector<8x256xf32>
    %1858 = arith.mulf %1855, %1857 : vector<8x256xf32>
    %c15_i32_1253 = arith.constant 15 : i32
    %1859 = tpu.dynamic_rotate %1850 by %c15_i32_1253 dim 1 : vector<8x256xf32>, i32 -> vector<8x256xf32>
    %c2_1254 = arith.constant 2 : index
    %c0_1255 = arith.constant 0 : index
    %c0_1256 = arith.constant 0 : index
    %1860 = vector.load %arg2[%c2_1254, %c0_1255, %c0_1256] : memref<8x8x256xf32, #tpu.memory_space<vmem>>, vector<1x8x256xf32>
    %1861 = vector.shape_cast %1860 : vector<1x8x256xf32> to vector<8x256xf32>
    %1862 = arith.mulf %1859, %1861 : vector<8x256xf32>
    %c1_i32_1257 = arith.constant 1 : i32
    %1863 = tpu.dynamic_rotate %1850 by %c1_i32_1257 dim 1 : vector<8x256xf32>, i32 -> vector<8x256xf32>
    %c3_1258 = arith.constant 3 : index
    %c0_1259 = arith.constant 0 : index
    %c0_1260 = arith.constant 0 : index
    %1864 = vector.load %arg2[%c3_1258, %c0_1259, %c0_1260] : memref<8x8x256xf32, #tpu.memory_space<vmem>>, vector<1x8x256xf32>
    %1865 = vector.shape_cast %1864 : vector<1x8x256xf32> to vector<8x256xf32>
    %1866 = arith.mulf %1863, %1865 : vector<8x256xf32>
    %c255_i32_1261 = arith.constant 255 : i32
    %1867 = tpu.dynamic_rotate %1850 by %c255_i32_1261 dim 1 : vector<8x256xf32>, i32 -> vector<8x256xf32>
    %c4_1262 = arith.constant 4 : index
    %c0_1263 = arith.constant 0 : index
    %c0_1264 = arith.constant 0 : index
    %1868 = vector.load %arg2[%c4_1262, %c0_1263, %c0_1264] : memref<8x8x256xf32, #tpu.memory_space<vmem>>, vector<1x8x256xf32>
    %1869 = vector.shape_cast %1868 : vector<1x8x256xf32> to vector<8x256xf32>
    %1870 = arith.mulf %1867, %1869 : vector<8x256xf32>
    %c241_i32_1265 = arith.constant 241 : i32
    %1871 = tpu.dynamic_rotate %1850 by %c241_i32_1265 dim 1 : vector<8x256xf32>, i32 -> vector<8x256xf32>
    %c5_1266 = arith.constant 5 : index
    %c0_1267 = arith.constant 0 : index
    %c0_1268 = arith.constant 0 : index
    %1872 = vector.load %arg2[%c5_1266, %c0_1267, %c0_1268] : memref<8x8x256xf32, #tpu.memory_space<vmem>>, vector<1x8x256xf32>
    %1873 = vector.shape_cast %1872 : vector<1x8x256xf32> to vector<8x256xf32>
    %1874 = arith.mulf %1871, %1873 : vector<8x256xf32>
    %c240_i32_1269 = arith.constant 240 : i32
    %1875 = tpu.dynamic_rotate %1850 by %c240_i32_1269 dim 1 : vector<8x256xf32>, i32 -> vector<8x256xf32>
    %c6_1270 = arith.constant 6 : index
    %c0_1271 = arith.constant 0 : index
    %c0_1272 = arith.constant 0 : index
    %1876 = vector.load %arg2[%c6_1270, %c0_1271, %c0_1272] : memref<8x8x256xf32, #tpu.memory_space<vmem>>, vector<1x8x256xf32>
    %1877 = vector.shape_cast %1876 : vector<1x8x256xf32> to vector<8x256xf32>
    %1878 = arith.mulf %1875, %1877 : vector<8x256xf32>
    %c239_i32_1273 = arith.constant 239 : i32
    %1879 = tpu.dynamic_rotate %1850 by %c239_i32_1273 dim 1 : vector<8x256xf32>, i32 -> vector<8x256xf32>
    %c7_1274 = arith.constant 7 : index
    %c0_1275 = arith.constant 0 : index
    %c0_1276 = arith.constant 0 : index
    %1880 = vector.load %arg2[%c7_1274, %c0_1275, %c0_1276] : memref<8x8x256xf32, #tpu.memory_space<vmem>>, vector<1x8x256xf32>
    %1881 = vector.shape_cast %1880 : vector<1x8x256xf32> to vector<8x256xf32>
    %1882 = arith.mulf %1879, %1881 : vector<8x256xf32>
    %1883 = tpu.concatenate %1854, %1858, %1862, %1866, %1850, %1870, %1874, %1878, %1882 in 0 : vector<8x256xf32>, vector<8x256xf32>, vector<8x256xf32>, vector<8x256xf32>, vector<8x256xf32>, vector<8x256xf32>, vector<8x256xf32>, vector<8x256xf32>, vector<8x256xf32> -> vector<72x256xf32>
    %1884 = arith.truncf %1883 : vector<72x256xf32> to vector<72x256xbf16>
    %c11_1277 = arith.constant 11 : index
    %c0_1278 = arith.constant 0 : index
    %c0_1279 = arith.constant 0 : index
    %1885 = vector.load %arg3[%c11_1277, %c0_1278, %c0_1279] : memref<13x8x72xf32, #tpu.memory_space<vmem>>, vector<1x8x72xf32>
    %1886 = vector.shape_cast %1885 : vector<1x8x72xf32> to vector<8x72xf32>
    %1887 = arith.truncf %1886 : vector<8x72xf32> to vector<8x72xbf16>
    %cst_1280 = arith.constant dense<0.000000e+00> : vector<8x256xf32>
    %1888 = tpu.matmul %1887, %1884, %cst_1280 {dimension_numbers = #tpu.dot_dimension_numbers<[1], [0], [0], [1], [0, 0, 1, 1], [], []>} : vector<8x72xbf16>, vector<72x256xbf16>, vector<8x256xf32> -> vector<8x256xf32>
    %c11_1281 = arith.constant 11 : index
    %c0_1282 = arith.constant 0 : index
    %c0_1283 = arith.constant 0 : index
    %1889 = vector.load %arg4[%c11_1281, %c0_1282, %c0_1283] : memref<13x8x1xf32, #tpu.memory_space<vmem>>, vector<1x8x1xf32>
    %1890 = vector.shape_cast %1889 : vector<1x8x1xf32> to vector<8x1xf32>
    %1891 = vector.broadcast %1890 : vector<8x1xf32> to vector<8x256xf32>
    %1892 = arith.addf %1888, %1891 : vector<8x256xf32>
    %cst_1284 = arith.constant dense<0.000000e+00> : vector<8xf32>
    %1893 = vector.multi_reduction <add>, %1892, %cst_1284 [1] : vector<8x256xf32> to vector<8xf32>
    %1894 = vector.shape_cast %1893 : vector<8xf32> to vector<8x1xf32>
    %1895 = arith.mulf %1892, %1892 : vector<8x256xf32>
    %cst_1285 = arith.constant dense<0.000000e+00> : vector<8xf32>
    %1896 = vector.multi_reduction <add>, %1895, %cst_1285 [1] : vector<8x256xf32> to vector<8xf32>
    %1897 = vector.shape_cast %1896 : vector<8xf32> to vector<8x1xf32>
    %cst_1286 = arith.constant 3.906250e-03 : f32
    %1898 = vector.broadcast %cst_1286 : f32 to vector<8x1xf32>
    %1899 = arith.mulf %1894, %1898 : vector<8x1xf32>
    %cst_1287 = arith.constant 3.906250e-03 : f32
    %1900 = vector.broadcast %cst_1287 : f32 to vector<8x1xf32>
    %1901 = arith.mulf %1897, %1900 : vector<8x1xf32>
    %1902 = arith.mulf %1899, %1899 : vector<8x1xf32>
    %1903 = arith.subf %1901, %1902 : vector<8x1xf32>
    %1904 = vector.broadcast %1899 : vector<8x1xf32> to vector<8x256xf32>
    %1905 = arith.subf %1892, %1904 : vector<8x256xf32>
    %cst_1288 = arith.constant 9.99999974E-6 : f32
    %1906 = vector.broadcast %cst_1288 : f32 to vector<8x1xf32>
    %1907 = arith.addf %1903, %1906 : vector<8x1xf32>
    %1908 = math.rsqrt %1907 : vector<8x1xf32>
    %1909 = vector.broadcast %1908 : vector<8x1xf32> to vector<8x256xf32>
    %1910 = arith.mulf %1905, %1909 : vector<8x256xf32>
    %c11_1289 = arith.constant 11 : index
    %c0_1290 = arith.constant 0 : index
    %c0_1291 = arith.constant 0 : index
    %1911 = vector.load %arg5[%c11_1289, %c0_1290, %c0_1291] : memref<13x8x1xf32, #tpu.memory_space<vmem>>, vector<1x8x1xf32>
    %1912 = vector.shape_cast %1911 : vector<1x8x1xf32> to vector<8x1xf32>
    %1913 = vector.broadcast %1912 : vector<8x1xf32> to vector<8x256xf32>
    %1914 = arith.mulf %1910, %1913 : vector<8x256xf32>
    %c11_1292 = arith.constant 11 : index
    %c0_1293 = arith.constant 0 : index
    %c0_1294 = arith.constant 0 : index
    %1915 = vector.load %arg6[%c11_1292, %c0_1293, %c0_1294] : memref<13x8x1xf32, #tpu.memory_space<vmem>>, vector<1x8x1xf32>
    %1916 = vector.shape_cast %1915 : vector<1x8x1xf32> to vector<8x1xf32>
    %1917 = vector.broadcast %1916 : vector<8x1xf32> to vector<8x256xf32>
    %1918 = arith.addf %1914, %1917 : vector<8x256xf32>
    %1919 = arith.addf %1918, %1777 : vector<8x256xf32>
    %cst_1295 = arith.constant 0.000000e+00 : f32
    %1920 = vector.broadcast %cst_1295 : f32 to vector<8x256xf32>
    %1921 = arith.cmpf oge, %1919, %1920 : vector<8x256xf32>
    %cst_1296 = arith.constant 2.000000e-01 : f32
    %1922 = vector.broadcast %cst_1296 : f32 to vector<8x256xf32>
    %1923 = arith.mulf %1922, %1919 : vector<8x256xf32>
    %1924 = arith.select %1921, %1919, %1923 : vector<8x256xi1>, vector<8x256xf32>
    %c17_i32_1297 = arith.constant 17 : i32
    %1925 = tpu.dynamic_rotate %1924 by %c17_i32_1297 dim 1 : vector<8x256xf32>, i32 -> vector<8x256xf32>
    %c0_1298 = arith.constant 0 : index
    %c0_1299 = arith.constant 0 : index
    %c0_1300 = arith.constant 0 : index
    %1926 = vector.load %arg2[%c0_1298, %c0_1299, %c0_1300] : memref<8x8x256xf32, #tpu.memory_space<vmem>>, vector<1x8x256xf32>
    %1927 = vector.shape_cast %1926 : vector<1x8x256xf32> to vector<8x256xf32>
    %1928 = arith.mulf %1925, %1927 : vector<8x256xf32>
    %c16_i32_1301 = arith.constant 16 : i32
    %1929 = tpu.dynamic_rotate %1924 by %c16_i32_1301 dim 1 : vector<8x256xf32>, i32 -> vector<8x256xf32>
    %c1_1302 = arith.constant 1 : index
    %c0_1303 = arith.constant 0 : index
    %c0_1304 = arith.constant 0 : index
    %1930 = vector.load %arg2[%c1_1302, %c0_1303, %c0_1304] : memref<8x8x256xf32, #tpu.memory_space<vmem>>, vector<1x8x256xf32>
    %1931 = vector.shape_cast %1930 : vector<1x8x256xf32> to vector<8x256xf32>
    %1932 = arith.mulf %1929, %1931 : vector<8x256xf32>
    %c15_i32_1305 = arith.constant 15 : i32
    %1933 = tpu.dynamic_rotate %1924 by %c15_i32_1305 dim 1 : vector<8x256xf32>, i32 -> vector<8x256xf32>
    %c2_1306 = arith.constant 2 : index
    %c0_1307 = arith.constant 0 : index
    %c0_1308 = arith.constant 0 : index
    %1934 = vector.load %arg2[%c2_1306, %c0_1307, %c0_1308] : memref<8x8x256xf32, #tpu.memory_space<vmem>>, vector<1x8x256xf32>
    %1935 = vector.shape_cast %1934 : vector<1x8x256xf32> to vector<8x256xf32>
    %1936 = arith.mulf %1933, %1935 : vector<8x256xf32>
    %c1_i32_1309 = arith.constant 1 : i32
    %1937 = tpu.dynamic_rotate %1924 by %c1_i32_1309 dim 1 : vector<8x256xf32>, i32 -> vector<8x256xf32>
    %c3_1310 = arith.constant 3 : index
    %c0_1311 = arith.constant 0 : index
    %c0_1312 = arith.constant 0 : index
    %1938 = vector.load %arg2[%c3_1310, %c0_1311, %c0_1312] : memref<8x8x256xf32, #tpu.memory_space<vmem>>, vector<1x8x256xf32>
    %1939 = vector.shape_cast %1938 : vector<1x8x256xf32> to vector<8x256xf32>
    %1940 = arith.mulf %1937, %1939 : vector<8x256xf32>
    %c255_i32_1313 = arith.constant 255 : i32
    %1941 = tpu.dynamic_rotate %1924 by %c255_i32_1313 dim 1 : vector<8x256xf32>, i32 -> vector<8x256xf32>
    %c4_1314 = arith.constant 4 : index
    %c0_1315 = arith.constant 0 : index
    %c0_1316 = arith.constant 0 : index
    %1942 = vector.load %arg2[%c4_1314, %c0_1315, %c0_1316] : memref<8x8x256xf32, #tpu.memory_space<vmem>>, vector<1x8x256xf32>
    %1943 = vector.shape_cast %1942 : vector<1x8x256xf32> to vector<8x256xf32>
    %1944 = arith.mulf %1941, %1943 : vector<8x256xf32>
    %c241_i32_1317 = arith.constant 241 : i32
    %1945 = tpu.dynamic_rotate %1924 by %c241_i32_1317 dim 1 : vector<8x256xf32>, i32 -> vector<8x256xf32>
    %c5_1318 = arith.constant 5 : index
    %c0_1319 = arith.constant 0 : index
    %c0_1320 = arith.constant 0 : index
    %1946 = vector.load %arg2[%c5_1318, %c0_1319, %c0_1320] : memref<8x8x256xf32, #tpu.memory_space<vmem>>, vector<1x8x256xf32>
    %1947 = vector.shape_cast %1946 : vector<1x8x256xf32> to vector<8x256xf32>
    %1948 = arith.mulf %1945, %1947 : vector<8x256xf32>
    %c240_i32_1321 = arith.constant 240 : i32
    %1949 = tpu.dynamic_rotate %1924 by %c240_i32_1321 dim 1 : vector<8x256xf32>, i32 -> vector<8x256xf32>
    %c6_1322 = arith.constant 6 : index
    %c0_1323 = arith.constant 0 : index
    %c0_1324 = arith.constant 0 : index
    %1950 = vector.load %arg2[%c6_1322, %c0_1323, %c0_1324] : memref<8x8x256xf32, #tpu.memory_space<vmem>>, vector<1x8x256xf32>
    %1951 = vector.shape_cast %1950 : vector<1x8x256xf32> to vector<8x256xf32>
    %1952 = arith.mulf %1949, %1951 : vector<8x256xf32>
    %c239_i32_1325 = arith.constant 239 : i32
    %1953 = tpu.dynamic_rotate %1924 by %c239_i32_1325 dim 1 : vector<8x256xf32>, i32 -> vector<8x256xf32>
    %c7_1326 = arith.constant 7 : index
    %c0_1327 = arith.constant 0 : index
    %c0_1328 = arith.constant 0 : index
    %1954 = vector.load %arg2[%c7_1326, %c0_1327, %c0_1328] : memref<8x8x256xf32, #tpu.memory_space<vmem>>, vector<1x8x256xf32>
    %1955 = vector.shape_cast %1954 : vector<1x8x256xf32> to vector<8x256xf32>
    %1956 = arith.mulf %1953, %1955 : vector<8x256xf32>
    %1957 = tpu.concatenate %1928, %1932, %1936, %1940, %1924, %1944, %1948, %1952, %1956 in 0 : vector<8x256xf32>, vector<8x256xf32>, vector<8x256xf32>, vector<8x256xf32>, vector<8x256xf32>, vector<8x256xf32>, vector<8x256xf32>, vector<8x256xf32>, vector<8x256xf32> -> vector<72x256xf32>
    %1958 = arith.truncf %1957 : vector<72x256xf32> to vector<72x256xbf16>
    %c12_1329 = arith.constant 12 : index
    %c0_1330 = arith.constant 0 : index
    %c0_1331 = arith.constant 0 : index
    %1959 = vector.load %arg3[%c12_1329, %c0_1330, %c0_1331] : memref<13x8x72xf32, #tpu.memory_space<vmem>>, vector<1x8x72xf32>
    %1960 = vector.shape_cast %1959 : vector<1x8x72xf32> to vector<8x72xf32>
    %1961 = arith.truncf %1960 : vector<8x72xf32> to vector<8x72xbf16>
    %cst_1332 = arith.constant dense<0.000000e+00> : vector<8x256xf32>
    %1962 = tpu.matmul %1961, %1958, %cst_1332 {dimension_numbers = #tpu.dot_dimension_numbers<[1], [0], [0], [1], [0, 0, 1, 1], [], []>} : vector<8x72xbf16>, vector<72x256xbf16>, vector<8x256xf32> -> vector<8x256xf32>
    %c12_1333 = arith.constant 12 : index
    %c0_1334 = arith.constant 0 : index
    %c0_1335 = arith.constant 0 : index
    %1963 = vector.load %arg4[%c12_1333, %c0_1334, %c0_1335] : memref<13x8x1xf32, #tpu.memory_space<vmem>>, vector<1x8x1xf32>
    %1964 = vector.shape_cast %1963 : vector<1x8x1xf32> to vector<8x1xf32>
    %1965 = vector.broadcast %1964 : vector<8x1xf32> to vector<8x256xf32>
    %1966 = arith.addf %1962, %1965 : vector<8x256xf32>
    %cst_1336 = arith.constant dense<0.000000e+00> : vector<8xf32>
    %1967 = vector.multi_reduction <add>, %1966, %cst_1336 [1] : vector<8x256xf32> to vector<8xf32>
    %1968 = vector.shape_cast %1967 : vector<8xf32> to vector<8x1xf32>
    %1969 = arith.mulf %1966, %1966 : vector<8x256xf32>
    %cst_1337 = arith.constant dense<0.000000e+00> : vector<8xf32>
    %1970 = vector.multi_reduction <add>, %1969, %cst_1337 [1] : vector<8x256xf32> to vector<8xf32>
    %1971 = vector.shape_cast %1970 : vector<8xf32> to vector<8x1xf32>
    %cst_1338 = arith.constant 3.906250e-03 : f32
    %1972 = vector.broadcast %cst_1338 : f32 to vector<8x1xf32>
    %1973 = arith.mulf %1968, %1972 : vector<8x1xf32>
    %cst_1339 = arith.constant 3.906250e-03 : f32
    %1974 = vector.broadcast %cst_1339 : f32 to vector<8x1xf32>
    %1975 = arith.mulf %1971, %1974 : vector<8x1xf32>
    %1976 = arith.mulf %1973, %1973 : vector<8x1xf32>
    %1977 = arith.subf %1975, %1976 : vector<8x1xf32>
    %1978 = vector.broadcast %1973 : vector<8x1xf32> to vector<8x256xf32>
    %1979 = arith.subf %1966, %1978 : vector<8x256xf32>
    %cst_1340 = arith.constant 9.99999974E-6 : f32
    %1980 = vector.broadcast %cst_1340 : f32 to vector<8x1xf32>
    %1981 = arith.addf %1977, %1980 : vector<8x1xf32>
    %1982 = math.rsqrt %1981 : vector<8x1xf32>
    %1983 = vector.broadcast %1982 : vector<8x1xf32> to vector<8x256xf32>
    %1984 = arith.mulf %1979, %1983 : vector<8x256xf32>
    %c12_1341 = arith.constant 12 : index
    %c0_1342 = arith.constant 0 : index
    %c0_1343 = arith.constant 0 : index
    %1985 = vector.load %arg5[%c12_1341, %c0_1342, %c0_1343] : memref<13x8x1xf32, #tpu.memory_space<vmem>>, vector<1x8x1xf32>
    %1986 = vector.shape_cast %1985 : vector<1x8x1xf32> to vector<8x1xf32>
    %1987 = vector.broadcast %1986 : vector<8x1xf32> to vector<8x256xf32>
    %1988 = arith.mulf %1984, %1987 : vector<8x256xf32>
    %c12_1344 = arith.constant 12 : index
    %c0_1345 = arith.constant 0 : index
    %c0_1346 = arith.constant 0 : index
    %1989 = vector.load %arg6[%c12_1344, %c0_1345, %c0_1346] : memref<13x8x1xf32, #tpu.memory_space<vmem>>, vector<1x8x1xf32>
    %1990 = vector.shape_cast %1989 : vector<1x8x1xf32> to vector<8x1xf32>
    %1991 = vector.broadcast %1990 : vector<8x1xf32> to vector<8x256xf32>
    %1992 = arith.addf %1988, %1991 : vector<8x256xf32>
    %1993 = arith.addf %1992, %1006 : vector<8x256xf32>
    %cst_1347 = arith.constant 5.000000e-01 : f32
    %1994 = vector.broadcast %cst_1347 : f32 to vector<8x256xf32>
    %1995 = arith.mulf %1994, %1993 : vector<8x256xf32>
    %cst_1348 = arith.constant 4.471500e-02 : f32
    %1996 = vector.broadcast %cst_1348 : f32 to vector<8x256xf32>
    %1997 = arith.mulf %1996, %1993 : vector<8x256xf32>
    %1998 = arith.mulf %1997, %1993 : vector<8x256xf32>
    %1999 = arith.mulf %1998, %1993 : vector<8x256xf32>
    %2000 = arith.addf %1993, %1999 : vector<8x256xf32>
    %cst_1349 = arith.constant 0.797884583 : f32
    %2001 = vector.broadcast %cst_1349 : f32 to vector<8x256xf32>
    %2002 = arith.mulf %2001, %2000 : vector<8x256xf32>
    %2003 = math.tanh %2002 : vector<8x256xf32>
    %cst_1350 = arith.constant 1.000000e+00 : f32
    %2004 = vector.broadcast %cst_1350 : f32 to vector<8x256xf32>
    %2005 = arith.addf %2004, %2003 : vector<8x256xf32>
    %2006 = arith.mulf %1995, %2005 : vector<8x256xf32>
    %c1_1351 = arith.constant 1 : index
    %c0_1352 = arith.constant 0 : index
    %c0_1353 = arith.constant 0 : index
    %2007 = vector.load %arg7[%c1_1351, %c0_1352, %c0_1353] : memref<2x8x256xf32, #tpu.memory_space<vmem>>, vector<1x8x256xf32>
    %2008 = vector.shape_cast %2007 : vector<1x8x256xf32> to vector<8x256xf32>
    %2009 = vector.shape_cast %2006 : vector<8x256xf32> to vector<1x8x256xf32>
    tpu.vector_store %arg7[%c1_1351, %c0_1352, %c0_1353], %2009 {strides = array<i32>} : memref<2x8x256xf32, #tpu.memory_space<vmem>>, vector<1x8x256xf32>,
    return
  }
  func.func @transform_0(%arg0: i32) -> (i32, i32, i32) {
    %c0_i32 = arith.constant 0 : i32
    %c0_i32_0 = arith.constant 0 : i32
    %c0_i32_1 = arith.constant 0 : i32
    return %arg0, %c0_i32, %c0_i32_0 : i32, i32, i32
  }
  func.func @transform_1(%arg0: i32) -> (i32, i32, i32) {
    %c0_i32 = arith.constant 0 : i32
    %c0_i32_0 = arith.constant 0 : i32
    %c0_i32_1 = arith.constant 0 : i32
    %c0_i32_2 = arith.constant 0 : i32
    return %c0_i32, %c0_i32_0, %c0_i32_1 : i32, i32, i32
  }
  func.func @transform_2(%arg0: i32) -> (i32, i32, i32) {
    %c0_i32 = arith.constant 0 : i32
    %c0_i32_0 = arith.constant 0 : i32
    %c0_i32_1 = arith.constant 0 : i32
    %c0_i32_2 = arith.constant 0 : i32
    return %c0_i32, %c0_i32_0, %c0_i32_1 : i32, i32, i32
  }
  func.func @transform_3(%arg0: i32) -> (i32, i32, i32) {
    %c0_i32 = arith.constant 0 : i32
    %c0_i32_0 = arith.constant 0 : i32
    %c0_i32_1 = arith.constant 0 : i32
    %c0_i32_2 = arith.constant 0 : i32
    return %c0_i32, %c0_i32_0, %c0_i32_1 : i32, i32, i32
  }
  func.func @transform_4(%arg0: i32) -> (i32, i32, i32) {
    %c0_i32 = arith.constant 0 : i32
    %c0_i32_0 = arith.constant 0 : i32
    %c0_i32_1 = arith.constant 0 : i32
    %c0_i32_2 = arith.constant 0 : i32
    return %c0_i32, %c0_i32_0, %c0_i32_1 : i32, i32, i32
  }
  func.func @transform_5(%arg0: i32) -> (i32, i32, i32) {
    %c0_i32 = arith.constant 0 : i32
    %c0_i32_0 = arith.constant 0 : i32
    %c0_i32_1 = arith.constant 0 : i32
    %c0_i32_2 = arith.constant 0 : i32
    return %c0_i32, %c0_i32_0, %c0_i32_1 : i32, i32, i32
  }
  func.func @transform_6(%arg0: i32) -> (i32, i32, i32) {
    %c0_i32 = arith.constant 0 : i32
    %c0_i32_0 = arith.constant 0 : i32
    %c0_i32_1 = arith.constant 0 : i32
    return %arg0, %c0_i32, %c0_i32_0 : i32, i32, i32
  }
}

</mosaic_0001>

<llo_original>
// kernel: residual_group_fwd.1
$region0: #{residual_group_fwd.1}
  #allocation0 [shape = 'u32[]', space=smem, size = 0x4, offset = 0x4, fixed_abs, tag = 'smem constant byte address 0x4 - core index']
  #allocation1 [shape = 'u32[72,128]{1,0:T(1,128)}', space=vmem, size = 0x9000, scoped, tag = 'internal scratch']
  %s0 = inlined_call_operand.vmem [shape: f32[4,8,256], index: 0, kind: input, shape index: {}]
  %s1 = inlined_call_operand.vmem [shape: f32[8,8,256], index: 1, kind: input, shape index: {}]
  %s2 = inlined_call_operand.vmem [shape: f32[13,8,72], index: 2, kind: input, shape index: {}]
  %s3 = inlined_call_operand.vmem [shape: f32[13,8,1], index: 3, kind: input, shape index: {}]
  %s4 = inlined_call_operand.vmem [shape: f32[13,8,1], index: 4, kind: input, shape index: {}]
  %s5 = inlined_call_operand.vmem [shape: f32[13,8,1], index: 5, kind: input, shape index: {}]
  %s6 = inlined_call_operand.vmem [shape: f32[4,8,256], index: 6, kind: output, shape index: {}]
  %s7 = sld [smem:[#allocation0]]
  $region57: #{residual_group_fwd.1} parent=0
    _
  %s9 = ssub.s32 1, %s7
  %s10 = scalar_select 0, %s9, %s7
  loop: start=0, step=1, limit=4
  $region2: #{residual_group_fwd.1} parent=0 // loop_pre_header
    _
  $region3: #{residual_group_fwd.1} parent=0 // loop_header
    %s12 = sphi 0, %s16
    %p13 = scmp.ge.s32.totalorder %s12, 4
    %s22 = sphi 0, %s24
    %s25 = sphi 0, %s22
    %s26 = sphi 0, %s25
    %s42 = sphi 0, %s26
    %s46 = sphi 0, %s46
    %s48 = sphi 0, %s46
    %s49 = sphi 0, %s48
    %s63 = sphi 0, %s49
    %s67 = sphi 0, %s67
    %s69 = sphi 0, %s67
    %s70 = sphi 0, %s69
    %s84 = sphi 0, %s70
    %s88 = sphi 0, %s88
    %s90 = sphi 0, %s88
    %s91 = sphi 0, %s90
    %s105 = sphi 0, %s91
    %s109 = sphi 0, %s109
    %s111 = sphi 0, %s109
    %s112 = sphi 0, %s111
    %s126 = sphi 0, %s112
    %s130 = sphi 0, %s130
    %s132 = sphi 0, %s130
    %s133 = sphi 0, %s132
    %s147 = sphi 0, %s133
    %s153 = sphi 0, %s155
    %s156 = sphi 0, %s153
    %s157 = sphi 0, %s156
    %s173 = sphi 0, %s157
  $region4: #{residual_group_fwd.1} parent=0 // loop_header_branch
    %15 = sbr.rel (%p13) target = $region8
  $region5: #{residual_group_fwd.1} parent=0 // loop_body
    %s17 = ssub.s32 %s12, 1
    %s18 = ssub.s32 %s12, 2
    %s19 = sadd.s32 %s12, 1
    %s20 = ssub.s32 %s12, %s19
    %p21 = scmp.eq.s32.totalorder %s20, 0
    %s23 = sadd.s32 %s22, 1
    %s24 = scalar_select %p21, %s22, %s23
    %p27 = pneg %p21
    %p28 = scmp.eq.s32.totalorder %s12, 1
    %p29 = por %p27, %p28
    %p30 = scmp.ne.s32.totalorder %s22, %s25
    %p31 = scmp.eq.s32.totalorder %s12, 0
    %p32 = por %p30, %p31
    %p33 = scmp.ne.s32.totalorder %s22, %s25
    %p34 = scmp.eq.s32.totalorder %s17, 1
    %p35 = por %p33, %p34
    %p36 = scmp.ne.s32.totalorder %s25, %s26
    %p37 = scmp.eq.s32.totalorder %s17, 0
    %p38 = por %p36, %p37
    %p39 = scmp.ne.s32.totalorder %s25, %s26
    %p40 = scmp.eq.s32.totalorder %s18, 1
    %p41 = por %p39, %p40
    %p43 = scmp.ne.s32.totalorder %s26, %s42
    %p44 = scmp.eq.s32.totalorder %s18, 0
    %p45 = por %p43, %p44
    %s47 = sadd.s32 %s46, 1
    %p50 = scmp.eq.s32.totalorder %s12, 1
    %p51 = scmp.ne.s32.totalorder %s46, %s48
    %p52 = scmp.eq.s32.totalorder %s12, 0
    %p53 = por %p51, %p52
    %p54 = scmp.ne.s32.totalorder %s46, %s48
    %p55 = scmp.eq.s32.totalorder %s17, 1
    %p56 = por %p54, %p55
    %p57 = scmp.ne.s32.totalorder %s48, %s49
    %p58 = scmp.eq.s32.totalorder %s17, 0
    %p59 = por %p57, %p58
    %p60 = scmp.ne.s32.totalorder %s48, %s49
    %p61 = scmp.eq.s32.totalorder %s18, 1
    %p62 = por %p60, %p61
    %p64 = scmp.ne.s32.totalorder %s49, %s63
    %p65 = scmp.eq.s32.totalorder %s18, 0
    %p66 = por %p64, %p65
    %s68 = sadd.s32 %s67, 1
    %p71 = scmp.eq.s32.totalorder %s12, 1
    %p72 = scmp.ne.s32.totalorder %s67, %s69
    %p73 = scmp.eq.s32.totalorder %s12, 0
    %p74 = por %p72, %p73
    %p75 = scmp.ne.s32.totalorder %s67, %s69
    %p76 = scmp.eq.s32.totalorder %s17, 1
    %p77 = por %p75, %p76
    %p78 = scmp.ne.s32.totalorder %s69, %s70
    %p79 = scmp.eq.s32.totalorder %s17, 0
    %p80 = por %p78, %p79
    %p81 = scmp.ne.s32.totalorder %s69, %s70
    %p82 = scmp.eq.s32.totalorder %s18, 1
    %p83 = por %p81, %p82
    %p85 = scmp.ne.s32.totalorder %s70, %s84
    %p86 = scmp.eq.s32.totalorder %s18, 0
    %p87 = por %p85, %p86
    %s89 = sadd.s32 %s88, 1
    %p92 = scmp.eq.s32.totalorder %s12, 1
    %p93 = scmp.ne.s32.totalorder %s88, %s90
    %p94 = scmp.eq.s32.totalorder %s12, 0
    %p95 = por %p93, %p94
    %p96 = scmp.ne.s32.totalorder %s88, %s90
    %p97 = scmp.eq.s32.totalorder %s17, 1
    %p98 = por %p96, %p97
    %p99 = scmp.ne.s32.totalorder %s90, %s91
    %p100 = scmp.eq.s32.totalorder %s17, 0
    %p101 = por %p99, %p100
    %p102 = scmp.ne.s32.totalorder %s90, %s91
    %p103 = scmp.eq.s32.totalorder %s18, 1
    %p104 = por %p102, %p103
    %p106 = scmp.ne.s32.totalorder %s91, %s105
    %p107 = scmp.eq.s32.totalorder %s18, 0
    %p108 = por %p106, %p107
    %s110 = sadd.s32 %s109, 1
    %p113 = scmp.eq.s32.totalorder %s12, 1
    %p114 = scmp.ne.s32.totalorder %s109, %s111
    %p115 = scmp.eq.s32.totalorder %s12, 0
    %p116 = por %p114, %p115
    %p117 = scmp.ne.s32.totalorder %s109, %s111
    %p118 = scmp.eq.s32.totalorder %s17, 1
    %p119 = por %p117, %p118
    %p120 = scmp.ne.s32.totalorder %s111, %s112
    %p121 = scmp.eq.s32.totalorder %s17, 0
    %p122 = por %p120, %p121
    %p123 = scmp.ne.s32.totalorder %s111, %s112
    %p124 = scmp.eq.s32.totalorder %s18, 1
    %p125 = por %p123, %p124
    %p127 = scmp.ne.s32.totalorder %s112, %s126
    %p128 = scmp.eq.s32.totalorder %s18, 0
    %p129 = por %p127, %p128
    %s131 = sadd.s32 %s130, 1
    %p134 = scmp.eq.s32.totalorder %s12, 1
    %p135 = scmp.ne.s32.totalorder %s130, %s132
    %p136 = scmp.eq.s32.totalorder %s12, 0
    %p137 = por %p135, %p136
    %p138 = scmp.ne.s32.totalorder %s130, %s132
    %p139 = scmp.eq.s32.totalorder %s17, 1
    %p140 = por %p138, %p139
    %p141 = scmp.ne.s32.totalorder %s132, %s133
    %p142 = scmp.eq.s32.totalorder %s17, 0
    %p143 = por %p141, %p142
    %p144 = scmp.ne.s32.totalorder %s132, %s133
    %p145 = scmp.eq.s32.totalorder %s18, 1
    %p146 = por %p144, %p145
    %p148 = scmp.ne.s32.totalorder %s133, %s147
    %p149 = scmp.eq.s32.totalorder %s18, 0
    %p150 = por %p148, %p149
    %s151 = ssub.s32 %s12, %s19
    %p152 = scmp.eq.s32.totalorder %s151, 0
    %s154 = sadd.s32 %s153, 1
    %s155 = scalar_select %p152, %s153, %s154
    %p158 = pneg %p152
    %p159 = scmp.eq.s32.totalorder %s12, 1
    %p160 = por %p158, %p159
    %p161 = scmp.ne.s32.totalorder %s153, %s156
    %p162 = scmp.eq.s32.totalorder %s12, 0
    %p163 = por %p161, %p162
    %p164 = scmp.ne.s32.totalorder %s153, %s156
    %p165 = scmp.eq.s32.totalorder %s17, 1
    %p166 = por %p164, %p165
    %p167 = scmp.ne.s32.totalorder %s156, %s157
    %p168 = scmp.eq.s32.totalorder %s17, 0
    %p169 = por %p167, %p168
    %p170 = scmp.ne.s32.totalorder %s156, %s157
    %p171 = scmp.eq.s32.totalorder %s18, 1
    %p172 = por %p170, %p171
    %p174 = scmp.ne.s32.totalorder %s157, %s173
    %p175 = scmp.eq.s32.totalorder %s18, 0
    %p176 = por %p174, %p175
    %p177 = scmp.le.s32.totalorder 1, %s12
    %p178 = scmp.lt.s32.totalorder %s12, 3
    %p179 = pnand %p177, %p178
    %p180 = pneg %p179
    // Predicated region
    $region9: #{residual_group_fwd.1} parent=5 // pred_check
      _
    $region10: #{residual_group_fwd.1} parent=5 // pred_check_branch
      %182 = sbr.rel (%p179) target = $region12
    $region11: #{residual_group_fwd.1} parent=5 // pred_region
      %s183 = ssub.s32 %s12, 1
      // Predicated region
      $region13: #{residual_group_fwd.1} parent=11 // pred_check
        %p184 = pneg %p59
      $region14: #{residual_group_fwd.1} parent=11 // pred_check_branch
        %186 = sbr.rel (%p184) target = $region16
      $region15: #{residual_group_fwd.1} parent=11 // pred_region
        _
      $region16: #{residual_group_fwd.1} parent=11 // pred_fallthru
        _
      // Predicated region
      $region17: #{residual_group_fwd.1} parent=11 // pred_check
        %p187 = pneg %p80
      $region18: #{residual_group_fwd.1} parent=11 // pred_check_branch
        %189 = sbr.rel (%p187) target = $region20
      $region19: #{residual_group_fwd.1} parent=11 // pred_region
        _
      $region20: #{residual_group_fwd.1} parent=11 // pred_fallthru
        _
      // Predicated region
      $region21: #{residual_group_fwd.1} parent=11 // pred_check
        %p190 = pneg %p101
      $region22: #{residual_group_fwd.1} parent=11 // pred_check_branch
        %192 = sbr.rel (%p190) target = $region24
      $region23: #{residual_group_fwd.1} parent=11 // pred_region
        _
      $region24: #{residual_group_fwd.1} parent=11 // pred_fallthru
        _
      // Predicated region
      $region25: #{residual_group_fwd.1} parent=11 // pred_check
        %p193 = pneg %p122
      $region26: #{residual_group_fwd.1} parent=11 // pred_check_branch
        %195 = sbr.rel (%p193) target = $region28
      $region27: #{residual_group_fwd.1} parent=11 // pred_region
        _
      $region28: #{residual_group_fwd.1} parent=11 // pred_fallthru
        _
      // Predicated region
      $region29: #{residual_group_fwd.1} parent=11 // pred_check
        %p196 = pneg %p143
      $region30: #{residual_group_fwd.1} parent=11 // pred_check_branch
        %198 = sbr.rel (%p196) target = $region32
      $region31: #{residual_group_fwd.1} parent=11 // pred_region
        _
      $region32: #{residual_group_fwd.1} parent=11 // pred_fallthru
        _
    $region12: #{residual_group_fwd.1} parent=5 // pred_fallthru
      _
    %p199 = scmp.lt.s32.totalorder %s12, 2
    // Predicated region
    $region33: #{residual_group_fwd.1} parent=5 // pred_check
      %p200 = pneg %p199
    $region34: #{residual_group_fwd.1} parent=5 // pred_check_branch
      %202 = sbr.rel (%p200) target = $region36
    $region35: #{residual_group_fwd.1} parent=5 // pred_region
      // Predicated region
      $region37: #{residual_group_fwd.1} parent=35 // pred_check
        %p203 = pneg %p32
      $region38: #{residual_group_fwd.1} parent=35 // pred_check_branch
        %205 = sbr.rel (%p203) target = $region40
      $region39: #{residual_group_fwd.1} parent=35 // pred_region
        %s206 = smul.u32 2, %s12
        %p207 = scmp.lt.s32.totalorder %s206, 3
        %s208 = scalar_select %p207, %s206, 3
        %s209 = smul.addr %s208, 2
        %s210 = smul.addr %s209, 8
        %s211 = scalar_lea.vmem %s0, %s210
        %s212 = smul.u32 2, %s12
      $region40: #{residual_group_fwd.1} parent=35 // pred_fallthru
        _
    $region36: #{residual_group_fwd.1} parent=5 // pred_fallthru
      _
    %p213 = scmp.le.s32.totalorder 1, %s12
    %p214 = scmp.lt.s32.totalorder %s12, 3
    %p215 = pnand %p213, %p214
    %p216 = pneg %p215
    // Predicated region
    $region41: #{residual_group_fwd.1} parent=5 // pred_check
      _
    $region42: #{residual_group_fwd.1} parent=5 // pred_check_branch
      %218 = sbr.rel (%p215) target = $region44
    $region43: #{residual_group_fwd.1} parent=5 // pred_region
      %s219 = ssub.s32 %s12, 1
      %s220 = smul.u32 2, %s17
      %p221 = scmp.lt.s32.totalorder %s220, 3
      %s222 = scalar_select %p221, %s220, 3
      %s223 = smul.addr %s222, 2
      %s224 = smul.addr %s223, 8
      %s225 = scalar_lea.vmem %s0, %s224
      %p226 = pneg %p38
      %p227 = pneg %p35
      %p228 = pneg %p59
      %p229 = pneg %p56
      %p230 = pneg %p80
      %p231 = pneg %p77
      %p232 = pneg %p101
      %p233 = pneg %p98
      %p234 = pneg %p122
      %p235 = pneg %p119
      %p236 = pneg %p143
      %p237 = pneg %p140
      %p238 = pneg %p169
      %p239 = pneg %p166
      %s240 = smul.u32 2, %s17
      %p241 = scmp.lt.s32.totalorder %s240, 3
      %s242 = scalar_select %p241, %s240, 3
      %s243 = smul.addr %s242, 2
      %s244 = smul.addr %s243, 8
      %s245 = scalar_lea.vmem %s6, %s244
      %s246 = smul.u32 2, %s17
      %p247 = scmp.lt.s32.totalorder %s246, 3
      %s248 = scalar_select %p247, %s246, 3
      %s249 = smul.addr %s248, 2
      %s250 = smul.addr %s249, 8
      %s251 = scalar_lea.vmem %s0, %s250
      %s252 = smul.u32 2, %s17
      %s253 = smul.u32 2, %s17
      %p254 = scmp.lt.s32.totalorder %s253, 3
      %s255 = scalar_select %p254, %s253, 3
      %s256 = smul.addr %s255, 2
      %s257 = smul.addr %s256, 8
      %s258 = scalar_lea.vmem %s6, %s257
      %s259 = smul.u32 2, %s17
      %v261 = vld [vmem:[%s251] sm:$0xff]
      %v262 = vld [vmem:[%s251 + $0x8] sm:$0xff]
      %263 = vrot.lane.b32.xlu0 %v261, 17
      %v264 = vpop.permute.xlu0 %263
      %265 = vrot.lane.b32.xlu0 %v262, 17
      %v266 = vpop.permute.xlu0 %265
      %v267 = vlaneseq
      %v268 = vand.u32 %v267, 127
      %vm269 = vcmp.lt.s32.totalorder %v268, 17
      %v270 = vsel %vm269, %v264, %v266
      %v271 = vsel %vm269, %v266, %v264
      %v272 = vld [vmem:[%s1] sm:$0xff]
      %v273 = vld [vmem:[%s1 + $0x8] sm:$0xff]
      %v274 = vmul.f32 %v271, %v272
      %v275 = vmul.f32 %v270, %v273
      %276 = vrot.lane.b32.xlu0 %v261, 16
      %v277 = vpop.permute.xlu0 %276
      %278 = vrot.lane.b32.xlu0 %v262, 16
      %v279 = vpop.permute.xlu0 %278
      %vm280 = vcmp.lt.s32.totalorder %v268, 16
      %v281 = vsel %vm280, %v277, %v279
      %v282 = vsel %vm280, %v279, %v277
      %s283 = scalar_lea.vmem %s1, 16
      %v284 = vld [vmem:[%s283] sm:$0xff]
      %v285 = vld [vmem:[%s283 + $0x8] sm:$0xff]
      %v286 = vmul.f32 %v282, %v284
      %v287 = vmul.f32 %v281, %v285
      %288 = vrot.lane.b32.xlu0 %v261, 15
      %v289 = vpop.permute.xlu0 %288
      %290 = vrot.lane.b32.xlu0 %v262, 15
      %v291 = vpop.permute.xlu0 %290
      %vm292 = vcmp.lt.s32.totalorder %v268, 15
      %v293 = vsel %vm292, %v289, %v291
      %v294 = vsel %vm292, %v291, %v289
      %s295 = scalar_lea.vmem %s1, 32
      %v296 = vld [vmem:[%s295] sm:$0xff]
      %v297 = vld [vmem:[%s295 + $0x8] sm:$0xff]
      %v298 = vmul.f32 %v294, %v296
      %v299 = vmul.f32 %v293, %v297
      %300 = vrot.lane.b32.xlu0 %v261, 1
      %v301 = vpop.permute.xlu0 %300
      %302 = vrot.lane.b32.xlu0 %v262, 1
      %v303 = vpop.permute.xlu0 %302
      %vm304 = vcmp.lt.s32.totalorder %v268, 1
      %v305 = vsel %vm304, %v301, %v303
      %v306 = vsel %vm304, %v303, %v301
      %s307 = scalar_lea.vmem %s1, 48
      %v308 = vld [vmem:[%s307] sm:$0xff]
      %v309 = vld [vmem:[%s307 + $0x8] sm:$0xff]
      %v310 = vmul.f32 %v306, %v308
      %v311 = vmul.f32 %v305, %v309
      %312 = vrot.lane.b32.xlu0 %v261, 127
      %v313 = vpop.permute.xlu0 %312
      %314 = vrot.lane.b32.xlu0 %v262, 127
      %v315 = vpop.permute.xlu0 %314
      %vm316 = vcmp.lt.s32.totalorder %v268, 127
      %v317 = vsel %vm316, %v313, %v315
      %v318 = vsel %vm316, %v315, %v313
      %s319 = scalar_lea.vmem %s1, 64
      %v320 = vld [vmem:[%s319] sm:$0xff]
      %v321 = vld [vmem:[%s319 + $0x8] sm:$0xff]
      %v322 = vmul.f32 %v317, %v320
      %v323 = vmul.f32 %v318, %v321
      %324 = vrot.lane.b32.xlu0 %v261, 113
      %v325 = vpop.permute.xlu0 %324
      %326 = vrot.lane.b32.xlu0 %v262, 113
      %v327 = vpop.permute.xlu0 %326
      %vm328 = vcmp.lt.s32.totalorder %v268, 113
      %v329 = vsel %vm328, %v325, %v327
      %v330 = vsel %vm328, %v327, %v325
      %s331 = scalar_lea.vmem %s1, 80
      %v332 = vld [vmem:[%s331] sm:$0xff]
      %v333 = vld [vmem:[%s331 + $0x8] sm:$0xff]
      %v334 = vmul.f32 %v329, %v332
      %v335 = vmul.f32 %v330, %v333
      %336 = vrot.lane.b32.xlu0 %v261, 112
      %v337 = vpop.permute.xlu0 %336
      %338 = vrot.lane.b32.xlu0 %v262, 112
      %v339 = vpop.permute.xlu0 %338
      %vm340 = vcmp.lt.s32.totalorder %v268, 112
      %v341 = vsel %vm340, %v337, %v339
      %v342 = vsel %vm340, %v339, %v337
      %s343 = scalar_lea.vmem %s1, 96
      %v344 = vld [vmem:[%s343] sm:$0xff]
      %v345 = vld [vmem:[%s343 + $0x8] sm:$0xff]
      %v346 = vmul.f32 %v341, %v344
      %v347 = vmul.f32 %v342, %v345
      %348 = vrot.lane.b32.xlu0 %v261, 111
      %v349 = vpop.permute.xlu0 %348
      %350 = vrot.lane.b32.xlu0 %v262, 111
      %v351 = vpop.permute.xlu0 %350
      %vm352 = vcmp.lt.s32.totalorder %v268, 111
      %v353 = vsel %vm352, %v349, %v351
      %v354 = vsel %vm352, %v351, %v349
      %s355 = scalar_lea.vmem %s1, 112
      %v356 = vld [vmem:[%s355] sm:$0xff]
      %v357 = vld [vmem:[%s355 + $0x8] sm:$0xff]
      %v358 = vmul.f32 %v353, %v356
      %v359 = vmul.f32 %v354, %v357
      %v360 = vpack.c.bf16 %v286, %v274
      %v361 = vpack.c.bf16 %v287, %v275
      %v362 = vpack.c.bf16 %v310, %v298
      %v363 = vpack.c.bf16 %v311, %v299
      %v364 = vpack.c.bf16 %v322, %v261
      %v365 = vpack.c.bf16 %v323, %v262
      %v366 = vpack.c.bf16 %v346, %v334
      %v367 = vpack.c.bf16 %v347, %v335
      %v368 = vpack.c.bf16 %v358, %v358
      %v369 = vpack.c.bf16 %v359, %v359
      %v370 = vld [vmem:[%s2] sm:$0xff]
      %v371 = vpack.c.bf16 %v370, %v370
      %v372 = vld [vmem:[%s3] sm:$0xff]
      %374 = vset.pattern.permute.xlu0 0
      %375 = vperm.xlu0 %374, %v372
      %v376 = vpop.permute.xlu0 %375
      %vm378 = vcmask 588800
      %v380 = vsel %vm378, %v371, 0
      %vm382 = vcmask 1043456
      %v384 = vsel %vm382, %v368, 0
      %v387 = vsel %vm382, %v369, 0
      %389 = vmatpush.bf16.msra.mxu0 0
      %390 = vmatpush.bf16.msra.mxu0 0
      %391 = vmatpush.bf16.msra.mxu0 0
      %392 = vmatpush.bf16.msra.mxu0 %v384
      %393 = vmatpush.bf16.msra.mxu0 %v366
      %394 = vmatpush.bf16.msra.mxu0 %v364
      %395 = vmatpush.bf16.msra.mxu0 %v362
      %396 = vmatpush.bf16.msra.mxu0 %v360
      %397 = vmatmul.bf16.gmra.mxu0 %v380
      %v398 = vpop.f32.mrf.mxu0
      %v399 = vadd.f32 %v376, %v398
      %v400 = vpop.f32.mrf.mxu0
      %401 = vdwg.mxu0
      %402 = vmatpush.bf16.msra.mxu0 0
      %403 = vmatpush.bf16.msra.mxu0 0
      %404 = vmatpush.bf16.msra.mxu0 0
      %405 = vmatpush.bf16.msra.mxu0 %v387
      %406 = vmatpush.bf16.msra.mxu0 %v367
      %407 = vmatpush.bf16.msra.mxu0 %v365
      %408 = vmatpush.bf16.msra.mxu0 %v363
      %409 = vmatpush.bf16.msra.mxu0 %v361
      %410 = vmatmul.bf16.gmra.mxu0 %v380
      %v411 = vpop.f32.mrf.mxu0
      %v412 = vadd.f32 %v376, %v411
      %v413 = vpop.f32.mrf.mxu0
      %414 = vdwg.mxu0
      %v415 = vadd.f32 %v399, %v412
      %416 = vadd.xlane.f32.xlu0 %v415
      %v417 = vpop.xlane.xlu0 %416
      %v418 = vmul.f32 %v399, %v399
      %v419 = vmul.f32 %v412, %v412
      %v420 = vadd.f32 %v418, %v419
      %421 = vadd.xlane.f32.xlu0 %v420
      %v422 = vpop.xlane.xlu0 %421
      %v423 = vmul.f32 %v417, 0.00390625
      %v424 = vmul.f32 %v422, 0.00390625
      %v425 = vmul.f32 %v423, %v423
      %v426 = vsub.f32 %v424, %v425
      %v427 = vsub.f32 %v399, %v423
      %v428 = vsub.f32 %v412, %v423
      %v429 = vadd.f32 %v426, 1e-05
      %v430 = vrsqrt.pop %v429
      %v431 = vmul.f32 %v430, %v429
      %v432 = vmul.f32 %v431, %v430
      %v433 = vmul.f32 0.5, %v432
      %v434 = vsub.f32 1.5, %v433
      %v435 = vmul.f32 %v430, %v434
      %vm436 = vweird.f32 %v429
      %vm437 = vweird.f32 %v430
      %vm438 = vmor %vm436, %vm437
      %v439 = vsel %vm438, %v430, %v435
      %v440 = vmul.f32 %v427, %v439
      %v441 = vmul.f32 %v428, %v439
      %v442 = vld [vmem:[%s4] sm:$0xff]
      %444 = vset.pattern.permute.xlu0 0
      %445 = vperm.xlu0 %444, %v442
      %v446 = vpop.permute.xlu0 %445
      %v448 = vmul.f32 %v440, %v446
      %v449 = vmul.f32 %v441, %v446
      %v450 = vld [vmem:[%s5] sm:$0xff]
      %452 = vset.pattern.permute.xlu0 0
      %453 = vperm.xlu0 %452, %v450
      %v454 = vpop.permute.xlu0 %453
      %v456 = vadd.f32 %v448, %v454
      %v457 = vadd.f32 %v449, %v454
      %v458 = vmul.f32 %v456, 0.5
      %v459 = vmul.f32 %v457, 0.5
      %v460 = vmul.f32 %v456, 0.044715
      %v461 = vmul.f32 %v457, 0.044715
      %v462 = vmul.f32 %v460, %v456
      %v463 = vmul.f32 %v461, %v457
      %v464 = vmul.f32 %v462, %v456
      %v465 = vmul.f32 %v463, %v457
      %v466 = vadd.f32 %v456, %v464
      %v467 = vadd.f32 %v457, %v465
      %v468 = vmul.f32 %v466, 0.7978846
      %v469 = vmul.f32 %v467, 0.7978846
      %v470 = vtanh.pop %v468
      %v471 = vtanh.pop %v469
      %v472 = vadd.f32 %v470, 1.0
      %v473 = vadd.f32 %v471, 1.0
      %v474 = vmul.f32 %v458, %v472
      %v475 = vmul.f32 %v459, %v473
      %476 = vrot.lane.b32.xlu0 %v474, 17
      %v477 = vpop.permute.xlu0 %476
      %478 = vrot.lane.b32.xlu0 %v475, 17
      %v479 = vpop.permute.xlu0 %478
      %v480 = vsel %vm269, %v477, %v479
      %v481 = vsel %vm269, %v479, %v477
      %v482 = vmul.f32 %v481, %v272
      %v483 = vmul.f32 %v480, %v273
      %484 = vrot.lane.b32.xlu0 %v474, 16
      %v485 = vpop.permute.xlu0 %484
      %486 = vrot.lane.b32.xlu0 %v475, 16
      %v487 = vpop.permute.xlu0 %486
      %v488 = vsel %vm280, %v485, %v487
      %v489 = vsel %vm280, %v487, %v485
      %v490 = vmul.f32 %v489, %v284
      %v491 = vmul.f32 %v488, %v285
      %492 = vrot.lane.b32.xlu0 %v474, 15
      %v493 = vpop.permute.xlu0 %492
      %494 = vrot.lane.b32.xlu0 %v475, 15
      %v495 = vpop.permute.xlu0 %494
      %v496 = vsel %vm292, %v493, %v495
      %v497 = vsel %vm292, %v495, %v493
      %v498 = vmul.f32 %v497, %v296
      %v499 = vmul.f32 %v496, %v297
      %500 = vrot.lane.b32.xlu0 %v474, 1
      %v501 = vpop.permute.xlu0 %500
      %502 = vrot.lane.b32.xlu0 %v475, 1
      %v503 = vpop.permute.xlu0 %502
      %v504 = vsel %vm304, %v501, %v503
      %v505 = vsel %vm304, %v503, %v501
      %v506 = vmul.f32 %v505, %v308
      %v507 = vmul.f32 %v504, %v309
      %508 = vrot.lane.b32.xlu0 %v474, 127
      %v509 = vpop.permute.xlu0 %508
      %510 = vrot.lane.b32.xlu0 %v475, 127
      %v511 = vpop.permute.xlu0 %510
      %v512 = vsel %vm316, %v509, %v511
      %v513 = vsel %vm316, %v511, %v509
      %v514 = vmul.f32 %v512, %v320
      %v515 = vmul.f32 %v513, %v321
      %516 = vrot.lane.b32.xlu0 %v474, 113
      %v517 = vpop.permute.xlu0 %516
      %518 = vrot.lane.b32.xlu0 %v475, 113
      %v519 = vpop.permute.xlu0 %518
      %v520 = vsel %vm328, %v517, %v519
      %v521 = vsel %vm328, %v519, %v517
      %v522 = vmul.f32 %v520, %v332
      %v523 = vmul.f32 %v521, %v333
      %524 = vrot.lane.b32.xlu0 %v474, 112
      %v525 = vpop.permute.xlu0 %524
      %526 = vrot.lane.b32.xlu0 %v475, 112
      %v527 = vpop.permute.xlu0 %526
      %v528 = vsel %vm340, %v525, %v527
      %v529 = vsel %vm340, %v527, %v525
      %v530 = vmul.f32 %v528, %v344
      %v531 = vmul.f32 %v529, %v345
      %532 = vrot.lane.b32.xlu0 %v474, 111
      %v533 = vpop.permute.xlu0 %532
      %534 = vrot.lane.b32.xlu0 %v475, 111
      %v535 = vpop.permute.xlu0 %534
      %v536 = vsel %vm352, %v533, %v535
      %v537 = vsel %vm352, %v535, %v533
      %v538 = vmul.f32 %v536, %v356
      %v539 = vmul.f32 %v537, %v357
      %v540 = vpack.c.bf16 %v490, %v482
      %v541 = vpack.c.bf16 %v491, %v483
      %v542 = vpack.c.bf16 %v506, %v498
      %v543 = vpack.c.bf16 %v507, %v499
      %v544 = vpack.c.bf16 %v514, %v474
      %v545 = vpack.c.bf16 %v515, %v475
      %v546 = vpack.c.bf16 %v530, %v522
      %v547 = vpack.c.bf16 %v531, %v523
      %v548 = vpack.c.bf16 %v538, %v538
      %v549 = vpack.c.bf16 %v539, %v539
      %s550 = scalar_lea.vmem %s2, 8
      %v551 = vld [vmem:[%s550] sm:$0xff]
      %v552 = vpack.c.bf16 %v551, %v551
      %s553 = scalar_lea.vmem %s3, 8
      %v554 = vld [vmem:[%s553] sm:$0xff]
      %556 = vset.pattern.permute.xlu0 0
      %557 = vperm.xlu0 %556, %v554
      %v558 = vpop.permute.xlu0 %557
      %v561 = vsel %vm378, %v552, 0
      %v564 = vsel %vm382, %v548, 0
      %v567 = vsel %vm382, %v549, 0
      %569 = vmatpush.bf16.msra.mxu0 0
      %570 = vmatpush.bf16.msra.mxu0 0
      %571 = vmatpush.bf16.msra.mxu0 0
      %572 = vmatpush.bf16.msra.mxu0 %v564
      %573 = vmatpush.bf16.msra.mxu0 %v546
      %574 = vmatpush.bf16.msra.mxu0 %v544
      %575 = vmatpush.bf16.msra.mxu0 %v542
      %576 = vmatpush.bf16.msra.mxu0 %v540
      %577 = vmatmul.bf16.gmra.mxu0 %v561
      %v578 = vpop.f32.mrf.mxu0
      %v579 = vadd.f32 %v558, %v578
      %v580 = vpop.f32.mrf.mxu0
      %581 = vdwg.mxu0
      %582 = vmatpush.bf16.msra.mxu0 0
      %583 = vmatpush.bf16.msra.mxu0 0
      %584 = vmatpush.bf16.msra.mxu0 0
      %585 = vmatpush.bf16.msra.mxu0 %v567
      %586 = vmatpush.bf16.msra.mxu0 %v547
      %587 = vmatpush.bf16.msra.mxu0 %v545
      %588 = vmatpush.bf16.msra.mxu0 %v543
      %589 = vmatpush.bf16.msra.mxu0 %v541
      %590 = vmatmul.bf16.gmra.mxu0 %v561
      %v591 = vpop.f32.mrf.mxu0
      %v592 = vadd.f32 %v558, %v591
      %v593 = vpop.f32.mrf.mxu0
      %594 = vdwg.mxu0
      %v595 = vadd.f32 %v579, %v592
      %596 = vadd.xlane.f32.xlu0 %v595
      %v597 = vpop.xlane.xlu0 %596
      %v598 = vmul.f32 %v579, %v579
      %v599 = vmul.f32 %v592, %v592
      %v600 = vadd.f32 %v598, %v599
      %601 = vadd.xlane.f32.xlu0 %v600
      %v602 = vpop.xlane.xlu0 %601
      %v603 = vmul.f32 %v597, 0.00390625
      %v604 = vmul.f32 %v602, 0.00390625
      %v605 = vmul.f32 %v603, %v603
      %v606 = vsub.f32 %v604, %v605
      %v607 = vsub.f32 %v579, %v603
      %v608 = vsub.f32 %v592, %v603
      %v609 = vadd.f32 %v606, 1e-05
      %v610 = vrsqrt.pop %v609
      %v611 = vmul.f32 %v610, %v609
      %v612 = vmul.f32 %v611, %v610
      %v613 = vmul.f32 0.5, %v612
      %v614 = vsub.f32 1.5, %v613
      %v615 = vmul.f32 %v610, %v614
      %vm616 = vweird.f32 %v609
      %vm617 = vweird.f32 %v610
      %vm618 = vmor %vm616, %vm617
      %v619 = vsel %vm618, %v610, %v615
      %v620 = vmul.f32 %v607, %v619
      %v621 = vmul.f32 %v608, %v619
      %s622 = scalar_lea.vmem %s4, 8
      %v623 = vld [vmem:[%s622] sm:$0xff]
      %625 = vset.pattern.permute.xlu0 0
      %626 = vperm.xlu0 %625, %v623
      %v627 = vpop.permute.xlu0 %626
      %v629 = vmul.f32 %v620, %v627
      %v630 = vmul.f32 %v621, %v627
      %s631 = scalar_lea.vmem %s5, 8
      %v632 = vld [vmem:[%s631] sm:$0xff]
      %634 = vset.pattern.permute.xlu0 0
      %635 = vperm.xlu0 %634, %v632
      %v636 = vpop.permute.xlu0 %635
      %v638 = vadd.f32 %v629, %v636
      %v639 = vadd.f32 %v630, %v636
      %v640 = vadd.f32 %v638, %v261
      %v641 = vadd.f32 %v639, %v262
      %v642 = vmul.f32 %v640, 0.5
      %v643 = vmul.f32 %v641, 0.5
      %v644 = vmul.f32 %v640, 0.044715
      %v645 = vmul.f32 %v641, 0.044715
      %v646 = vmul.f32 %v644, %v640
      %v647 = vmul.f32 %v645, %v641
      %v648 = vmul.f32 %v646, %v640
      %v649 = vmul.f32 %v647, %v641
      %v650 = vadd.f32 %v640, %v648
      %v651 = vadd.f32 %v641, %v649
      %v652 = vmul.f32 %v650, 0.7978846
      %v653 = vmul.f32 %v651, 0.7978846
      %v654 = vtanh.pop %v652
      %v655 = vtanh.pop %v653
      %v656 = vadd.f32 %v654, 1.0
      %v657 = vadd.f32 %v655, 1.0
      %v658 = vmul.f32 %v642, %v656
      %v659 = vmul.f32 %v643, %v657
      %660 = vrot.lane.b32.xlu0 %v658, 17
      %v661 = vpop.permute.xlu0 %660
      %662 = vrot.lane.b32.xlu0 %v659, 17
      %v663 = vpop.permute.xlu0 %662
      %v664 = vsel %vm269, %v661, %v663
      %v665 = vsel %vm269, %v663, %v661
      %v666 = vmul.f32 %v665, %v272
      %v667 = vmul.f32 %v664, %v273
      %668 = vrot.lane.b32.xlu0 %v658, 16
      %v669 = vpop.permute.xlu0 %668
      %670 = vrot.lane.b32.xlu0 %v659, 16
      %v671 = vpop.permute.xlu0 %670
      %v672 = vsel %vm280, %v669, %v671
      %v673 = vsel %vm280, %v671, %v669
      %v674 = vmul.f32 %v673, %v284
      %v675 = vmul.f32 %v672, %v285
      %676 = vrot.lane.b32.xlu0 %v658, 15
      %v677 = vpop.permute.xlu0 %676
      %678 = vrot.lane.b32.xlu0 %v659, 15
      %v679 = vpop.permute.xlu0 %678
      %v680 = vsel %vm292, %v677, %v679
      %v681 = vsel %vm292, %v679, %v677
      %v682 = vmul.f32 %v681, %v296
      %v683 = vmul.f32 %v680, %v297
      %684 = vrot.lane.b32.xlu0 %v658, 1
      %v685 = vpop.permute.xlu0 %684
      %686 = vrot.lane.b32.xlu0 %v659, 1
      %v687 = vpop.permute.xlu0 %686
      %v688 = vsel %vm304, %v685, %v687
      %v689 = vsel %vm304, %v687, %v685
      %v690 = vmul.f32 %v689, %v308
      %v691 = vmul.f32 %v688, %v309
      %692 = vrot.lane.b32.xlu0 %v658, 127
      %v693 = vpop.permute.xlu0 %692
      %694 = vrot.lane.b32.xlu0 %v659, 127
      %v695 = vpop.permute.xlu0 %694
      %v696 = vsel %vm316, %v693, %v695
      %v697 = vsel %vm316, %v695, %v693
      %v698 = vmul.f32 %v696, %v320
      %v699 = vmul.f32 %v697, %v321
      %700 = vrot.lane.b32.xlu0 %v658, 113
      %v701 = vpop.permute.xlu0 %700
      %702 = vrot.lane.b32.xlu0 %v659, 113
      %v703 = vpop.permute.xlu0 %702
      %v704 = vsel %vm328, %v701, %v703
      %v705 = vsel %vm328, %v703, %v701
      %v706 = vmul.f32 %v704, %v332
      %v707 = vmul.f32 %v705, %v333
      %708 = vrot.lane.b32.xlu0 %v658, 112
      %v709 = vpop.permute.xlu0 %708
      %710 = vrot.lane.b32.xlu0 %v659, 112
      %v711 = vpop.permute.xlu0 %710
      %v712 = vsel %vm340, %v709, %v711
      %v713 = vsel %vm340, %v711, %v709
      %v714 = vmul.f32 %v712, %v344
      %v715 = vmul.f32 %v713, %v345
      %716 = vrot.lane.b32.xlu0 %v658, 111
      %v717 = vpop.permute.xlu0 %716
      %718 = vrot.lane.b32.xlu0 %v659, 111
      %v719 = vpop.permute.xlu0 %718
      %v720 = vsel %vm352, %v717, %v719
      %v721 = vsel %vm352, %v719, %v717
      %v722 = vmul.f32 %v720, %v356
      %v723 = vmul.f32 %v721, %v357
      %v724 = vpack.c.bf16 %v674, %v666
      %v725 = vpack.c.bf16 %v675, %v667
      %v726 = vpack.c.bf16 %v690, %v682
      %v727 = vpack.c.bf16 %v691, %v683
      %v728 = vpack.c.bf16 %v698, %v658
      %v729 = vpack.c.bf16 %v699, %v659
      %v730 = vpack.c.bf16 %v714, %v706
      %v731 = vpack.c.bf16 %v715, %v707
      %v732 = vpack.c.bf16 %v722, %v722
      %v733 = vpack.c.bf16 %v723, %v723
      %s734 = scalar_lea.vmem %s2, 16
      %v735 = vld [vmem:[%s734] sm:$0xff]
      %v736 = vpack.c.bf16 %v735, %v735
      %s737 = scalar_lea.vmem %s3, 16
      %v738 = vld [vmem:[%s737] sm:$0xff]
      %740 = vset.pattern.permute.xlu0 0
      %741 = vperm.xlu0 %740, %v738
      %v742 = vpop.permute.xlu0 %741
      %v745 = vsel %vm378, %v736, 0
      %v748 = vsel %vm382, %v732, 0
      %v751 = vsel %vm382, %v733, 0
      %753 = vmatpush.bf16.msra.mxu0 0
      %754 = vmatpush.bf16.msra.mxu0 0
      %755 = vmatpush.bf16.msra.mxu0 0
      %756 = vmatpush.bf16.msra.mxu0 %v748
      %757 = vmatpush.bf16.msra.mxu0 %v730
      %758 = vmatpush.bf16.msra.mxu0 %v728
      %759 = vmatpush.bf16.msra.mxu0 %v726
      %760 = vmatpush.bf16.msra.mxu0 %v724
      %761 = vmatmul.bf16.gmra.mxu0 %v745
      %v762 = vpop.f32.mrf.mxu0
      %v763 = vadd.f32 %v742, %v762
      %v764 = vpop.f32.mrf.mxu0
      %765 = vdwg.mxu0
      %766 = vmatpush.bf16.msra.mxu0 0
      %767 = vmatpush.bf16.msra.mxu0 0
      %768 = vmatpush.bf16.msra.mxu0 0
      %769 = vmatpush.bf16.msra.mxu0 %v751
      %770 = vmatpush.bf16.msra.mxu0 %v731
      %771 = vmatpush.bf16.msra.mxu0 %v729
      %772 = vmatpush.bf16.msra.mxu0 %v727
      %773 = vmatpush.bf16.msra.mxu0 %v725
      %774 = vmatmul.bf16.gmra.mxu0 %v745
      %v775 = vpop.f32.mrf.mxu0
      %v776 = vadd.f32 %v742, %v775
      %v777 = vpop.f32.mrf.mxu0
      %778 = vdwg.mxu0
      %v779 = vadd.f32 %v763, %v776
      %780 = vadd.xlane.f32.xlu0 %v779
      %v781 = vpop.xlane.xlu0 %780
      %v782 = vmul.f32 %v763, %v763
      %v783 = vmul.f32 %v776, %v776
      %v784 = vadd.f32 %v782, %v783
      %785 = vadd.xlane.f32.xlu0 %v784
      %v786 = vpop.xlane.xlu0 %785
      %v787 = vmul.f32 %v781, 0.00390625
      %v788 = vmul.f32 %v786, 0.00390625
      %v789 = vmul.f32 %v787, %v787
      %v790 = vsub.f32 %v788, %v789
      %v791 = vsub.f32 %v763, %v787
      %v792 = vsub.f32 %v776, %v787
      %v793 = vadd.f32 %v790, 1e-05
      %v794 = vrsqrt.pop %v793
      %v795 = vmul.f32 %v794, %v793
      %v796 = vmul.f32 %v795, %v794
      %v797 = vmul.f32 0.5, %v796
      %v798 = vsub.f32 1.5, %v797
      %v799 = vmul.f32 %v794, %v798
      %vm800 = vweird.f32 %v793
      %vm801 = vweird.f32 %v794
      %vm802 = vmor %vm800, %vm801
      %v803 = vsel %vm802, %v794, %v799
      %v804 = vmul.f32 %v791, %v803
      %v805 = vmul.f32 %v792, %v803
      %s806 = scalar_lea.vmem %s4, 16
      %v807 = vld [vmem:[%s806] sm:$0xff]
      %809 = vset.pattern.permute.xlu0 0
      %810 = vperm.xlu0 %809, %v807
      %v811 = vpop.permute.xlu0 %810
      %v813 = vmul.f32 %v804, %v811
      %v814 = vmul.f32 %v805, %v811
      %s815 = scalar_lea.vmem %s5, 16
      %v816 = vld [vmem:[%s815] sm:$0xff]
      %818 = vset.pattern.permute.xlu0 0
      %819 = vperm.xlu0 %818, %v816
      %v820 = vpop.permute.xlu0 %819
      %v822 = vadd.f32 %v813, %v820
      %v823 = vadd.f32 %v814, %v820
      %v824 = vxor.u32 %v822, 2147483648
      %v825 = vxor.u32 %v823, 2147483648
      %v826 = vmul.f32 %v824, 1.442695
      %v827 = vpow.pop %v826
      %v828 = vmul.f32 %v825, 1.442695
      %v829 = vpow.pop %v828
      %v830 = vadd.f32 %v827, 1.0
      %v831 = vadd.f32 %v829, 1.0
      %v832 = vrcp.pop %v830
      %v833 = vmul.f32 %v830, %v832
      %v834 = vsub.f32 1.0, %v833
      %v835 = vmul.f32 %v832, %v834
      %v836 = vadd.f32 %v832, %v835
      %vm837 = vweird.f32 %v830
      %vm838 = vweird.f32 %v832
      %vm839 = vmor %vm837, %vm838
      %v840 = vsel %vm839, %v832, %v836
      %v841 = vand.u32 2147483647, %v830
      %vm842 = vcmp.eq.f32.partialorder %v841, 8.507059e+37
      %v843 = vand.u32 %v830, 2147483648
      %v844 = vor.u32 1.1754944e-38, %v843
      %v845 = vsel %vm842, %v844, %v840
      %v846 = vmul.f32 1.0, %v845
      %v847 = vrcp.pop %v831
      %v848 = vmul.f32 %v831, %v847
      %v849 = vsub.f32 1.0, %v848
      %v850 = vmul.f32 %v847, %v849
      %v851 = vadd.f32 %v847, %v850
      %vm852 = vweird.f32 %v831
      %vm853 = vweird.f32 %v847
      %vm854 = vmor %vm852, %vm853
      %v855 = vsel %vm854, %v847, %v851
      %v856 = vand.u32 2147483647, %v831
      %vm857 = vcmp.eq.f32.partialorder %v856, 8.507059e+37
      %v858 = vand.u32 %v831, 2147483648
      %v859 = vor.u32 1.1754944e-38, %v858
      %v860 = vsel %vm857, %v859, %v855
      %v861 = vmul.f32 1.0, %v860
      %v862 = vmul.f32 %v822, %v846
      %v863 = vmul.f32 %v823, %v861
      %864 = vrot.lane.b32.xlu0 %v862, 17
      %v865 = vpop.permute.xlu0 %864
      %866 = vrot.lane.b32.xlu0 %v863, 17
      %v867 = vpop.permute.xlu0 %866
      %v868 = vsel %vm269, %v865, %v867
      %v869 = vsel %vm269, %v867, %v865
      %v870 = vmul.f32 %v869, %v272
      %v871 = vmul.f32 %v868, %v273
      %872 = vrot.lane.b32.xlu0 %v862, 16
      %v873 = vpop.permute.xlu0 %872
      %874 = vrot.lane.b32.xlu0 %v863, 16
      %v875 = vpop.permute.xlu0 %874
      %v876 = vsel %vm280, %v873, %v875
      %v877 = vsel %vm280, %v875, %v873
      %v878 = vmul.f32 %v877, %v284
      %v879 = vmul.f32 %v876, %v285
      %880 = vrot.lane.b32.xlu0 %v862, 15
      %v881 = vpop.permute.xlu0 %880
      %882 = vrot.lane.b32.xlu0 %v863, 15
      %v883 = vpop.permute.xlu0 %882
      %v884 = vsel %vm292, %v881, %v883
      %v885 = vsel %vm292, %v883, %v881
      %v886 = vmul.f32 %v885, %v296
      %v887 = vmul.f32 %v884, %v297
      %888 = vrot.lane.b32.xlu0 %v862, 1
      %v889 = vpop.permute.xlu0 %888
      %890 = vrot.lane.b32.xlu0 %v863, 1
      %v891 = vpop.permute.xlu0 %890
      %v892 = vsel %vm304, %v889, %v891
      %v893 = vsel %vm304, %v891, %v889
      %v894 = vmul.f32 %v893, %v308
      %v895 = vmul.f32 %v892, %v309
      %896 = vrot.lane.b32.xlu0 %v862, 127
      %v897 = vpop.permute.xlu0 %896
      %898 = vrot.lane.b32.xlu0 %v863, 127
      %v899 = vpop.permute.xlu0 %898
      %v900 = vsel %vm316, %v897, %v899
      %v901 = vsel %vm316, %v899, %v897
      %v902 = vmul.f32 %v900, %v320
      %v903 = vmul.f32 %v901, %v321
      %904 = vrot.lane.b32.xlu0 %v862, 113
      %v905 = vpop.permute.xlu0 %904
      %906 = vrot.lane.b32.xlu0 %v863, 113
      %v907 = vpop.permute.xlu0 %906
      %v908 = vsel %vm328, %v905, %v907
      %v909 = vsel %vm328, %v907, %v905
      %v910 = vmul.f32 %v908, %v332
      %v911 = vmul.f32 %v909, %v333
      %912 = vrot.lane.b32.xlu0 %v862, 112
      %v913 = vpop.permute.xlu0 %912
      %914 = vrot.lane.b32.xlu0 %v863, 112
      %v915 = vpop.permute.xlu0 %914
      %v916 = vsel %vm340, %v913, %v915
      %v917 = vsel %vm340, %v915, %v913
      %v918 = vmul.f32 %v916, %v344
      %v919 = vmul.f32 %v917, %v345
      %920 = vrot.lane.b32.xlu0 %v862, 111
      %v921 = vpop.permute.xlu0 %920
      %922 = vrot.lane.b32.xlu0 %v863, 111
      %v923 = vpop.permute.xlu0 %922
      %v924 = vsel %vm352, %v921, %v923
      %v925 = vsel %vm352, %v923, %v921
      %v926 = vmul.f32 %v924, %v356
      %v927 = vmul.f32 %v925, %v357
      %v928 = vpack.c.bf16 %v878, %v870
      %v929 = vpack.c.bf16 %v879, %v871
      %v930 = vpack.c.bf16 %v894, %v886
      %v931 = vpack.c.bf16 %v895, %v887
      %v932 = vpack.c.bf16 %v902, %v862
      %v933 = vpack.c.bf16 %v903, %v863
      %v934 = vpack.c.bf16 %v918, %v910
      %v935 = vpack.c.bf16 %v919, %v911
      %v936 = vpack.c.bf16 %v926, %v926
      %v937 = vpack.c.bf16 %v927, %v927
      %s938 = scalar_lea.vmem %s2, 24
      %v939 = vld [vmem:[%s938] sm:$0xff]
      %v940 = vpack.c.bf16 %v939, %v939
      %s941 = scalar_lea.vmem %s3, 24
      %v942 = vld [vmem:[%s941] sm:$0xff]
      %944 = vset.pattern.permute.xlu0 0
      %945 = vperm.xlu0 %944, %v942
      %v946 = vpop.permute.xlu0 %945
      %v949 = vsel %vm378, %v940, 0
      %v952 = vsel %vm382, %v936, 0
      %v955 = vsel %vm382, %v937, 0
      %957 = vmatpush.bf16.msra.mxu0 0
      %958 = vmatpush.bf16.msra.mxu0 0
      %959 = vmatpush.bf16.msra.mxu0 0
      %960 = vmatpush.bf16.msra.mxu0 %v952
      %961 = vmatpush.bf16.msra.mxu0 %v934
      %962 = vmatpush.bf16.msra.mxu0 %v932
      %963 = vmatpush.bf16.msra.mxu0 %v930
      %964 = vmatpush.bf16.msra.mxu0 %v928
      %965 = vmatmul.bf16.gmra.mxu0 %v949
      %v966 = vpop.f32.mrf.mxu0
      %v967 = vadd.f32 %v946, %v966
      %v968 = vpop.f32.mrf.mxu0
      %969 = vdwg.mxu0
      %970 = vmatpush.bf16.msra.mxu0 0
      %971 = vmatpush.bf16.msra.mxu0 0
      %972 = vmatpush.bf16.msra.mxu0 0
      %973 = vmatpush.bf16.msra.mxu0 %v955
      %974 = vmatpush.bf16.msra.mxu0 %v935
      %975 = vmatpush.bf16.msra.mxu0 %v933
      %976 = vmatpush.bf16.msra.mxu0 %v931
      %977 = vmatpush.bf16.msra.mxu0 %v929
      %978 = vmatmul.bf16.gmra.mxu0 %v949
      %v979 = vpop.f32.mrf.mxu0
      %v980 = vadd.f32 %v946, %v979
      %v981 = vpop.f32.mrf.mxu0
      %982 = vdwg.mxu0
      %v983 = vadd.f32 %v967, %v980
      %984 = vadd.xlane.f32.xlu0 %v983
      %v985 = vpop.xlane.xlu0 %984
      %v986 = vmul.f32 %v967, %v967
      %v987 = vmul.f32 %v980, %v980
      %v988 = vadd.f32 %v986, %v987
      %989 = vadd.xlane.f32.xlu0 %v988
      %v990 = vpop.xlane.xlu0 %989
      %v991 = vmul.f32 %v985, 0.00390625
      %v992 = vmul.f32 %v990, 0.00390625
      %v993 = vmul.f32 %v991, %v991
      %v994 = vsub.f32 %v992, %v993
      %v995 = vsub.f32 %v967, %v991
      %v996 = vsub.f32 %v980, %v991
      %v997 = vadd.f32 %v994, 1e-05
      %v998 = vrsqrt.pop %v997
      %v999 = vmul.f32 %v998, %v997
      %v1000 = vmul.f32 %v999, %v998
      %v1001 = vmul.f32 0.5, %v1000
      %v1002 = vsub.f32 1.5, %v1001
      %v1003 = vmul.f32 %v998, %v1002
      %vm1004 = vweird.f32 %v997
      %vm1005 = vweird.f32 %v998
      %vm1006 = vmor %vm1004, %vm1005
      %v1007 = vsel %vm1006, %v998, %v1003
      %v1008 = vmul.f32 %v995, %v1007
      %v1009 = vmul.f32 %v996, %v1007
      %s1010 = scalar_lea.vmem %s4, 24
      %v1011 = vld [vmem:[%s1010] sm:$0xff]
      %1013 = vset.pattern.permute.xlu0 0
      %1014 = vperm.xlu0 %1013, %v1011
      %v1015 = vpop.permute.xlu0 %1014
      %v1017 = vmul.f32 %v1008, %v1015
      %v1018 = vmul.f32 %v1009, %v1015
      %s1019 = scalar_lea.vmem %s5, 24
      %v1020 = vld [vmem:[%s1019] sm:$0xff]
      %1022 = vset.pattern.permute.xlu0 0
      %1023 = vperm.xlu0 %1022, %v1020
      %v1024 = vpop.permute.xlu0 %1023
      %v1026 = vadd.f32 %v1017, %v1024
      %v1027 = vadd.f32 %v1018, %v1024
      %v1028 = vadd.f32 %v1026, %v658
      %v1029 = vadd.f32 %v1027, %v659
      %v1030 = vxor.u32 %v1028, 2147483648
      %v1031 = vxor.u32 %v1029, 2147483648
      %v1032 = vmul.f32 %v1030, 1.442695
      %v1033 = vpow.pop %v1032
      %v1034 = vmul.f32 %v1031, 1.442695
      %v1035 = vpow.pop %v1034
      %v1036 = vadd.f32 %v1033, 1.0
      %v1037 = vadd.f32 %v1035, 1.0
      %v1038 = vrcp.pop %v1036
      %v1039 = vmul.f32 %v1036, %v1038
      %v1040 = vsub.f32 1.0, %v1039
      %v1041 = vmul.f32 %v1038, %v1040
      %v1042 = vadd.f32 %v1038, %v1041
      %vm1043 = vweird.f32 %v1036
      %vm1044 = vweird.f32 %v1038
      %vm1045 = vmor %vm1043, %vm1044
      %v1046 = vsel %vm1045, %v1038, %v1042
      %v1047 = vand.u32 2147483647, %v1036
      %vm1048 = vcmp.eq.f32.partialorder %v1047, 8.507059e+37
      %v1049 = vand.u32 %v1036, 2147483648
      %v1050 = vor.u32 1.1754944e-38, %v1049
      %v1051 = vsel %vm1048, %v1050, %v1046
      %v1052 = vmul.f32 1.0, %v1051
      %v1053 = vrcp.pop %v1037
      %v1054 = vmul.f32 %v1037, %v1053
      %v1055 = vsub.f32 1.0, %v1054
      %v1056 = vmul.f32 %v1053, %v1055
      %v1057 = vadd.f32 %v1053, %v1056
      %vm1058 = vweird.f32 %v1037
      %vm1059 = vweird.f32 %v1053
      %vm1060 = vmor %vm1058, %vm1059
      %v1061 = vsel %vm1060, %v1053, %v1057
      %v1062 = vand.u32 2147483647, %v1037
      %vm1063 = vcmp.eq.f32.partialorder %v1062, 8.507059e+37
      %v1064 = vand.u32 %v1037, 2147483648
      %v1065 = vor.u32 1.1754944e-38, %v1064
      %v1066 = vsel %vm1063, %v1065, %v1061
      %v1067 = vmul.f32 1.0, %v1066
      %v1068 = vmul.f32 %v1028, %v1052
      %v1069 = vmul.f32 %v1029, %v1067
      %1070 = vrot.lane.b32.xlu0 %v1068, 17
      %v1071 = vpop.permute.xlu0 %1070
      %1072 = vrot.lane.b32.xlu0 %v1069, 17
      %v1073 = vpop.permute.xlu0 %1072
      %v1074 = vsel %vm269, %v1071, %v1073
      %v1075 = vsel %vm269, %v1073, %v1071
      %v1076 = vmul.f32 %v1075, %v272
      %v1077 = vmul.f32 %v1074, %v273
      %1078 = vrot.lane.b32.xlu0 %v1068, 16
      %v1079 = vpop.permute.xlu0 %1078
      %1080 = vrot.lane.b32.xlu0 %v1069, 16
      %v1081 = vpop.permute.xlu0 %1080
      %v1082 = vsel %vm280, %v1079, %v1081
      %v1083 = vsel %vm280, %v1081, %v1079
      %v1084 = vmul.f32 %v1083, %v284
      %v1085 = vmul.f32 %v1082, %v285
      %1086 = vrot.lane.b32.xlu0 %v1068, 15
      %v1087 = vpop.permute.xlu0 %1086
      %1088 = vrot.lane.b32.xlu0 %v1069, 15
      %v1089 = vpop.permute.xlu0 %1088
      %v1090 = vsel %vm292, %v1087, %v1089
      %v1091 = vsel %vm292, %v1089, %v1087
      %v1092 = vmul.f32 %v1091, %v296
      %v1093 = vmul.f32 %v1090, %v297
      %1094 = vrot.lane.b32.xlu0 %v1068, 1
      %v1095 = vpop.permute.xlu0 %1094
      %1096 = vrot.lane.b32.xlu0 %v1069, 1
      %v1097 = vpop.permute.xlu0 %1096
      %v1098 = vsel %vm304, %v1095, %v1097
      %v1099 = vsel %vm304, %v1097, %v1095
      %v1100 = vmul.f32 %v1099, %v308
      %v1101 = vmul.f32 %v1098, %v309
      %1102 = vrot.lane.b32.xlu0 %v1068, 127
      %v1103 = vpop.permute.xlu0 %1102
      %1104 = vrot.lane.b32.xlu0 %v1069, 127
      %v1105 = vpop.permute.xlu0 %1104
      %v1106 = vsel %vm316, %v1103, %v1105
      %v1107 = vsel %vm316, %v1105, %v1103
      %v1108 = vmul.f32 %v1106, %v320
      %v1109 = vmul.f32 %v1107, %v321
      %1110 = vrot.lane.b32.xlu0 %v1068, 113
      %v1111 = vpop.permute.xlu0 %1110
      %1112 = vrot.lane.b32.xlu0 %v1069, 113
      %v1113 = vpop.permute.xlu0 %1112
      %v1114 = vsel %vm328, %v1111, %v1113
      %v1115 = vsel %vm328, %v1113, %v1111
      %v1116 = vmul.f32 %v1114, %v332
      %v1117 = vmul.f32 %v1115, %v333
      %1118 = vrot.lane.b32.xlu0 %v1068, 112
      %v1119 = vpop.permute.xlu0 %1118
      %1120 = vrot.lane.b32.xlu0 %v1069, 112
      %v1121 = vpop.permute.xlu0 %1120
      %v1122 = vsel %vm340, %v1119, %v1121
      %v1123 = vsel %vm340, %v1121, %v1119
      %v1124 = vmul.f32 %v1122, %v344
      %v1125 = vmul.f32 %v1123, %v345
      %1126 = vrot.lane.b32.xlu0 %v1068, 111
      %v1127 = vpop.permute.xlu0 %1126
      %1128 = vrot.lane.b32.xlu0 %v1069, 111
      %v1129 = vpop.permute.xlu0 %1128
      %v1130 = vsel %vm352, %v1127, %v1129
      %v1131 = vsel %vm352, %v1129, %v1127
      %v1132 = vmul.f32 %v1130, %v356
      %v1133 = vmul.f32 %v1131, %v357
      %v1134 = vpack.c.bf16 %v1084, %v1076
      %v1135 = vpack.c.bf16 %v1085, %v1077
      %v1136 = vpack.c.bf16 %v1100, %v1092
      %v1137 = vpack.c.bf16 %v1101, %v1093
      %v1138 = vpack.c.bf16 %v1108, %v1068
      %v1139 = vpack.c.bf16 %v1109, %v1069
      %v1140 = vpack.c.bf16 %v1124, %v1116
      %v1141 = vpack.c.bf16 %v1125, %v1117
      %v1142 = vpack.c.bf16 %v1132, %v1132
      %v1143 = vpack.c.bf16 %v1133, %v1133
      %s1144 = scalar_lea.vmem %s2, 32
      %v1145 = vld [vmem:[%s1144] sm:$0xff]
      %v1146 = vpack.c.bf16 %v1145, %v1145
      %s1147 = scalar_lea.vmem %s3, 32
      %v1148 = vld [vmem:[%s1147] sm:$0xff]
      %1150 = vset.pattern.permute.xlu0 0
      %1151 = vperm.xlu0 %1150, %v1148
      %v1152 = vpop.permute.xlu0 %1151
      %v1155 = vsel %vm378, %v1146, 0
      %v1158 = vsel %vm382, %v1142, 0
      %v1161 = vsel %vm382, %v1143, 0
      %1163 = vmatpush.bf16.msra.mxu0 0
      %1164 = vmatpush.bf16.msra.mxu0 0
      %1165 = vmatpush.bf16.msra.mxu0 0
      %1166 = vmatpush.bf16.msra.mxu0 %v1158
      %1167 = vmatpush.bf16.msra.mxu0 %v1140
      %1168 = vmatpush.bf16.msra.mxu0 %v1138
      %1169 = vmatpush.bf16.msra.mxu0 %v1136
      %1170 = vmatpush.bf16.msra.mxu0 %v1134
      %1171 = vmatmul.bf16.gmra.mxu0 %v1155
      %v1172 = vpop.f32.mrf.mxu0
      %v1173 = vadd.f32 %v1152, %v1172
      %v1174 = vpop.f32.mrf.mxu0
      %1175 = vdwg.mxu0
      %1176 = vmatpush.bf16.msra.mxu0 0
      %1177 = vmatpush.bf16.msra.mxu0 0
      %1178 = vmatpush.bf16.msra.mxu0 0
      %1179 = vmatpush.bf16.msra.mxu0 %v1161
      %1180 = vmatpush.bf16.msra.mxu0 %v1141
      %1181 = vmatpush.bf16.msra.mxu0 %v1139
      %1182 = vmatpush.bf16.msra.mxu0 %v1137
      %1183 = vmatpush.bf16.msra.mxu0 %v1135
      %1184 = vmatmul.bf16.gmra.mxu0 %v1155
      %v1185 = vpop.f32.mrf.mxu0
      %v1186 = vadd.f32 %v1152, %v1185
      %v1187 = vpop.f32.mrf.mxu0
      %1188 = vdwg.mxu0
      %v1189 = vadd.f32 %v1173, %v1186
      %1190 = vadd.xlane.f32.xlu0 %v1189
      %v1191 = vpop.xlane.xlu0 %1190
      %v1192 = vmul.f32 %v1173, %v1173
      %v1193 = vmul.f32 %v1186, %v1186
      %v1194 = vadd.f32 %v1192, %v1193
      %1195 = vadd.xlane.f32.xlu0 %v1194
      %v1196 = vpop.xlane.xlu0 %1195
      %v1197 = vmul.f32 %v1191, 0.00390625
      %v1198 = vmul.f32 %v1196, 0.00390625
      %v1199 = vmul.f32 %v1197, %v1197
      %v1200 = vsub.f32 %v1198, %v1199
      %v1201 = vsub.f32 %v1173, %v1197
      %v1202 = vsub.f32 %v1186, %v1197
      %v1203 = vadd.f32 %v1200, 1e-05
      %v1204 = vrsqrt.pop %v1203
      %v1205 = vmul.f32 %v1204, %v1203
      %v1206 = vmul.f32 %v1205, %v1204
      %v1207 = vmul.f32 0.5, %v1206
      %v1208 = vsub.f32 1.5, %v1207
      %v1209 = vmul.f32 %v1204, %v1208
      %vm1210 = vweird.f32 %v1203
      %vm1211 = vweird.f32 %v1204
      %vm1212 = vmor %vm1210, %vm1211
      %v1213 = vsel %vm1212, %v1204, %v1209
      %v1214 = vmul.f32 %v1201, %v1213
      %v1215 = vmul.f32 %v1202, %v1213
      %s1216 = scalar_lea.vmem %s4, 32
      %v1217 = vld [vmem:[%s1216] sm:$0xff]
      %1219 = vset.pattern.permute.xlu0 0
      %1220 = vperm.xlu0 %1219, %v1217
      %v1221 = vpop.permute.xlu0 %1220
      %v1223 = vmul.f32 %v1214, %v1221
      %v1224 = vmul.f32 %v1215, %v1221
      %s1225 = scalar_lea.vmem %s5, 32
      %v1226 = vld [vmem:[%s1225] sm:$0xff]
      %1228 = vset.pattern.permute.xlu0 0
      %1229 = vperm.xlu0 %1228, %v1226
      %v1230 = vpop.permute.xlu0 %1229
      %v1232 = vadd.f32 %v1223, %v1230
      %v1233 = vadd.f32 %v1224, %v1230
      %vm1234 = vcmp.ge.f32.partialorder %v1232, 0.0
      %vm1235 = vcmp.ge.f32.partialorder %v1233, 0.0
      %v1236 = vmul.f32 %v1232, 0.2
      %v1237 = vmul.f32 %v1233, 0.2
      %v1238 = vsel %vm1234, %v1232, %v1236
      %v1239 = vsel %vm1235, %v1233, %v1237
      %1240 = vrot.lane.b32.xlu0 %v1238, 17
      %v1241 = vpop.permute.xlu0 %1240
      %1242 = vrot.lane.b32.xlu0 %v1239, 17
      %v1243 = vpop.permute.xlu0 %1242
      %v1244 = vsel %vm269, %v1241, %v1243
      %v1245 = vsel %vm269, %v1243, %v1241
      %v1246 = vmul.f32 %v1245, %v272
      %v1247 = vmul.f32 %v1244, %v273
      %1248 = vrot.lane.b32.xlu0 %v1238, 16
      %v1249 = vpop.permute.xlu0 %1248
      %1250 = vrot.lane.b32.xlu0 %v1239, 16
      %v1251 = vpop.permute.xlu0 %1250
      %v1252 = vsel %vm280, %v1249, %v1251
      %v1253 = vsel %vm280, %v1251, %v1249
      %v1254 = vmul.f32 %v1253, %v284
      %v1255 = vmul.f32 %v1252, %v285
      %1256 = vrot.lane.b32.xlu0 %v1238, 15
      %v1257 = vpop.permute.xlu0 %1256
      %1258 = vrot.lane.b32.xlu0 %v1239, 15
      %v1259 = vpop.permute.xlu0 %1258
      %v1260 = vsel %vm292, %v1257, %v1259
      %v1261 = vsel %vm292, %v1259, %v1257
      %v1262 = vmul.f32 %v1261, %v296
      %v1263 = vmul.f32 %v1260, %v297
      %1264 = vrot.lane.b32.xlu0 %v1238, 1
      %v1265 = vpop.permute.xlu0 %1264
      %1266 = vrot.lane.b32.xlu0 %v1239, 1
      %v1267 = vpop.permute.xlu0 %1266
      %v1268 = vsel %vm304, %v1265, %v1267
      %v1269 = vsel %vm304, %v1267, %v1265
      %v1270 = vmul.f32 %v1269, %v308
      %v1271 = vmul.f32 %v1268, %v309
      %1272 = vrot.lane.b32.xlu0 %v1238, 127
      %v1273 = vpop.permute.xlu0 %1272
      %1274 = vrot.lane.b32.xlu0 %v1239, 127
      %v1275 = vpop.permute.xlu0 %1274
      %v1276 = vsel %vm316, %v1273, %v1275
      %v1277 = vsel %vm316, %v1275, %v1273
      %v1278 = vmul.f32 %v1276, %v320
      %v1279 = vmul.f32 %v1277, %v321
      %1280 = vrot.lane.b32.xlu0 %v1238, 113
      %v1281 = vpop.permute.xlu0 %1280
      %1282 = vrot.lane.b32.xlu0 %v1239, 113
      %v1283 = vpop.permute.xlu0 %1282
      %v1284 = vsel %vm328, %v1281, %v1283
      %v1285 = vsel %vm328, %v1283, %v1281
      %v1286 = vmul.f32 %v1284, %v332
      %v1287 = vmul.f32 %v1285, %v333
      %1288 = vrot.lane.b32.xlu0 %v1238, 112
      %v1289 = vpop.permute.xlu0 %1288
      %1290 = vrot.lane.b32.xlu0 %v1239, 112
      %v1291 = vpop.permute.xlu0 %1290
      %v1292 = vsel %vm340, %v1289, %v1291
      %v1293 = vsel %vm340, %v1291, %v1289
      %v1294 = vmul.f32 %v1292, %v344
      %v1295 = vmul.f32 %v1293, %v345
      %1296 = vrot.lane.b32.xlu0 %v1238, 111
      %v1297 = vpop.permute.xlu0 %1296
      %1298 = vrot.lane.b32.xlu0 %v1239, 111
      %v1299 = vpop.permute.xlu0 %1298
      %v1300 = vsel %vm352, %v1297, %v1299
      %v1301 = vsel %vm352, %v1299, %v1297
      %v1302 = vmul.f32 %v1300, %v356
      %v1303 = vmul.f32 %v1301, %v357
      %v1304 = vpack.c.bf16 %v1254, %v1246
      %v1305 = vpack.c.bf16 %v1255, %v1247
      %v1306 = vpack.c.bf16 %v1270, %v1262
      %v1307 = vpack.c.bf16 %v1271, %v1263
      %v1308 = vpack.c.bf16 %v1278, %v1238
      %v1309 = vpack.c.bf16 %v1279, %v1239
      %v1310 = vpack.c.bf16 %v1294, %v1286
      %v1311 = vpack.c.bf16 %v1295, %v1287
      %v1312 = vpack.c.bf16 %v1302, %v1302
      %v1313 = vpack.c.bf16 %v1303, %v1303
      %s1314 = scalar_lea.vmem %s2, 40
      %v1315 = vld [vmem:[%s1314] sm:$0xff]
      %v1316 = vpack.c.bf16 %v1315, %v1315
      %s1317 = scalar_lea.vmem %s3, 40
      %v1318 = vld [vmem:[%s1317] sm:$0xff]
      %1320 = vset.pattern.permute.xlu0 0
      %1321 = vperm.xlu0 %1320, %v1318
      %v1322 = vpop.permute.xlu0 %1321
      %v1325 = vsel %vm378, %v1316, 0
      %v1328 = vsel %vm382, %v1312, 0
      %v1331 = vsel %vm382, %v1313, 0
      %1333 = vmatpush.bf16.msra.mxu0 0
      %1334 = vmatpush.bf16.msra.mxu0 0
      %1335 = vmatpush.bf16.msra.mxu0 0
      %1336 = vmatpush.bf16.msra.mxu0 %v1328
      %1337 = vmatpush.bf16.msra.mxu0 %v1310
      %1338 = vmatpush.bf16.msra.mxu0 %v1308
      %1339 = vmatpush.bf16.msra.mxu0 %v1306
      %1340 = vmatpush.bf16.msra.mxu0 %v1304
      %1341 = vmatmul.bf16.gmra.mxu0 %v1325
      %v1342 = vpop.f32.mrf.mxu0
      %v1343 = vadd.f32 %v1322, %v1342
      %v1344 = vpop.f32.mrf.mxu0
      %1345 = vdwg.mxu0
      %1346 = vmatpush.bf16.msra.mxu0 0
      %1347 = vmatpush.bf16.msra.mxu0 0
      %1348 = vmatpush.bf16.msra.mxu0 0
      %1349 = vmatpush.bf16.msra.mxu0 %v1331
      %1350 = vmatpush.bf16.msra.mxu0 %v1311
      %1351 = vmatpush.bf16.msra.mxu0 %v1309
      %1352 = vmatpush.bf16.msra.mxu0 %v1307
      %1353 = vmatpush.bf16.msra.mxu0 %v1305
      %1354 = vmatmul.bf16.gmra.mxu0 %v1325
      %v1355 = vpop.f32.mrf.mxu0
      %v1356 = vadd.f32 %v1322, %v1355
      %v1357 = vpop.f32.mrf.mxu0
      %1358 = vdwg.mxu0
      %v1359 = vadd.f32 %v1343, %v1356
      %1360 = vadd.xlane.f32.xlu0 %v1359
      %v1361 = vpop.xlane.xlu0 %1360
      %v1362 = vmul.f32 %v1343, %v1343
      %v1363 = vmul.f32 %v1356, %v1356
      %v1364 = vadd.f32 %v1362, %v1363
      %1365 = vadd.xlane.f32.xlu0 %v1364
      %v1366 = vpop.xlane.xlu0 %1365
      %v1367 = vmul.f32 %v1361, 0.00390625
      %v1368 = vmul.f32 %v1366, 0.00390625
      %v1369 = vmul.f32 %v1367, %v1367
      %v1370 = vsub.f32 %v1368, %v1369
      %v1371 = vsub.f32 %v1343, %v1367
      %v1372 = vsub.f32 %v1356, %v1367
      %v1373 = vadd.f32 %v1370, 1e-05
      %v1374 = vrsqrt.pop %v1373
      %v1375 = vmul.f32 %v1374, %v1373
      %v1376 = vmul.f32 %v1375, %v1374
      %v1377 = vmul.f32 0.5, %v1376
      %v1378 = vsub.f32 1.5, %v1377
      %v1379 = vmul.f32 %v1374, %v1378
      %vm1380 = vweird.f32 %v1373
      %vm1381 = vweird.f32 %v1374
      %vm1382 = vmor %vm1380, %vm1381
      %v1383 = vsel %vm1382, %v1374, %v1379
      %v1384 = vmul.f32 %v1371, %v1383
      %v1385 = vmul.f32 %v1372, %v1383
      %s1386 = scalar_lea.vmem %s4, 40
      %v1387 = vld [vmem:[%s1386] sm:$0xff]
      %1389 = vset.pattern.permute.xlu0 0
      %1390 = vperm.xlu0 %1389, %v1387
      %v1391 = vpop.permute.xlu0 %1390
      %v1393 = vmul.f32 %v1384, %v1391
      %v1394 = vmul.f32 %v1385, %v1391
      %s1395 = scalar_lea.vmem %s5, 40
      %v1396 = vld [vmem:[%s1395] sm:$0xff]
      %1398 = vset.pattern.permute.xlu0 0
      %1399 = vperm.xlu0 %1398, %v1396
      %v1400 = vpop.permute.xlu0 %1399
      %v1402 = vadd.f32 %v1393, %v1400
      %v1403 = vadd.f32 %v1394, %v1400
      %v1404 = vadd.f32 %v1402, %v1068
      %v1405 = vadd.f32 %v1403, %v1069
      %vm1406 = vcmp.ge.f32.partialorder %v1404, 0.0
      %vm1407 = vcmp.ge.f32.partialorder %v1405, 0.0
      %v1408 = vmul.f32 %v1404, 0.2
      %v1409 = vmul.f32 %v1405, 0.2
      %v1410 = vsel %vm1406, %v1404, %v1408
      %v1411 = vsel %vm1407, %v1405, %v1409
      %1412 = vrot.lane.b32.xlu0 %v1410, 17
      %v1413 = vpop.permute.xlu0 %1412
      %1414 = vrot.lane.b32.xlu0 %v1411, 17
      %v1415 = vpop.permute.xlu0 %1414
      %v1416 = vsel %vm269, %v1413, %v1415
      %v1417 = vsel %vm269, %v1415, %v1413
      %v1418 = vmul.f32 %v1417, %v272
      %v1419 = vmul.f32 %v1416, %v273
      %1420 = vrot.lane.b32.xlu0 %v1410, 16
      %v1421 = vpop.permute.xlu0 %1420
      %1422 = vrot.lane.b32.xlu0 %v1411, 16
      %v1423 = vpop.permute.xlu0 %1422
      %v1424 = vsel %vm280, %v1421, %v1423
      %v1425 = vsel %vm280, %v1423, %v1421
      %v1426 = vmul.f32 %v1425, %v284
      %v1427 = vmul.f32 %v1424, %v285
      %1428 = vrot.lane.b32.xlu0 %v1410, 15
      %v1429 = vpop.permute.xlu0 %1428
      %1430 = vrot.lane.b32.xlu0 %v1411, 15
      %v1431 = vpop.permute.xlu0 %1430
      %v1432 = vsel %vm292, %v1429, %v1431
      %v1433 = vsel %vm292, %v1431, %v1429
      %v1434 = vmul.f32 %v1433, %v296
      %v1435 = vmul.f32 %v1432, %v297
      %1436 = vrot.lane.b32.xlu0 %v1410, 1
      %v1437 = vpop.permute.xlu0 %1436
      %1438 = vrot.lane.b32.xlu0 %v1411, 1
      %v1439 = vpop.permute.xlu0 %1438
      %v1440 = vsel %vm304, %v1437, %v1439
      %v1441 = vsel %vm304, %v1439, %v1437
      %v1442 = vmul.f32 %v1441, %v308
      %v1443 = vmul.f32 %v1440, %v309
      %1444 = vrot.lane.b32.xlu0 %v1410, 127
      %v1445 = vpop.permute.xlu0 %1444
      %1446 = vrot.lane.b32.xlu0 %v1411, 127
      %v1447 = vpop.permute.xlu0 %1446
      %v1448 = vsel %vm316, %v1445, %v1447
      %v1449 = vsel %vm316, %v1447, %v1445
      %v1450 = vmul.f32 %v1448, %v320
      %v1451 = vmul.f32 %v1449, %v321
      %1452 = vrot.lane.b32.xlu0 %v1410, 113
      %v1453 = vpop.permute.xlu0 %1452
      %1454 = vrot.lane.b32.xlu0 %v1411, 113
      %v1455 = vpop.permute.xlu0 %1454
      %v1456 = vsel %vm328, %v1453, %v1455
      %v1457 = vsel %vm328, %v1455, %v1453
      %v1458 = vmul.f32 %v1456, %v332
      %v1459 = vmul.f32 %v1457, %v333
      %1460 = vrot.lane.b32.xlu0 %v1410, 112
      %v1461 = vpop.permute.xlu0 %1460
      %1462 = vrot.lane.b32.xlu0 %v1411, 112
      %v1463 = vpop.permute.xlu0 %1462
      %v1464 = vsel %vm340, %v1461, %v1463
      %v1465 = vsel %vm340, %v1463, %v1461
      %v1466 = vmul.f32 %v1464, %v344
      %v1467 = vmul.f32 %v1465, %v345
      %1468 = vrot.lane.b32.xlu0 %v1410, 111
      %v1469 = vpop.permute.xlu0 %1468
      %1470 = vrot.lane.b32.xlu0 %v1411, 111
      %v1471 = vpop.permute.xlu0 %1470
      %v1472 = vsel %vm352, %v1469, %v1471
      %v1473 = vsel %vm352, %v1471, %v1469
      %v1474 = vmul.f32 %v1472, %v356
      %v1475 = vmul.f32 %v1473, %v357
      %v1476 = vpack.c.bf16 %v1426, %v1418
      %v1477 = vpack.c.bf16 %v1427, %v1419
      %v1478 = vpack.c.bf16 %v1442, %v1434
      %v1479 = vpack.c.bf16 %v1443, %v1435
      %v1480 = vpack.c.bf16 %v1450, %v1410
      %v1481 = vpack.c.bf16 %v1451, %v1411
      %v1482 = vpack.c.bf16 %v1466, %v1458
      %v1483 = vpack.c.bf16 %v1467, %v1459
      %v1484 = vpack.c.bf16 %v1474, %v1474
      %v1485 = vpack.c.bf16 %v1475, %v1475
      %s1486 = scalar_lea.vmem %s2, 48
      %v1487 = vld [vmem:[%s1486] sm:$0xff]
      %v1488 = vpack.c.bf16 %v1487, %v1487
      %s1489 = scalar_lea.vmem %s3, 48
      %v1490 = vld [vmem:[%s1489] sm:$0xff]
      %1492 = vset.pattern.permute.xlu0 0
      %1493 = vperm.xlu0 %1492, %v1490
      %v1494 = vpop.permute.xlu0 %1493
      %v1497 = vsel %vm378, %v1488, 0
      %v1500 = vsel %vm382, %v1484, 0
      %v1503 = vsel %vm382, %v1485, 0
      %1505 = vmatpush.bf16.msra.mxu0 0
      %1506 = vmatpush.bf16.msra.mxu0 0
      %1507 = vmatpush.bf16.msra.mxu0 0
      %1508 = vmatpush.bf16.msra.mxu0 %v1500
      %1509 = vmatpush.bf16.msra.mxu0 %v1482
      %1510 = vmatpush.bf16.msra.mxu0 %v1480
      %1511 = vmatpush.bf16.msra.mxu0 %v1478
      %1512 = vmatpush.bf16.msra.mxu0 %v1476
      %1513 = vmatmul.bf16.gmra.mxu0 %v1497
      %v1514 = vpop.f32.mrf.mxu0
      %v1515 = vadd.f32 %v1494, %v1514
      %v1516 = vpop.f32.mrf.mxu0
      %1517 = vdwg.mxu0
      %1518 = vmatpush.bf16.msra.mxu0 0
      %1519 = vmatpush.bf16.msra.mxu0 0
      %1520 = vmatpush.bf16.msra.mxu0 0
      %1521 = vmatpush.bf16.msra.mxu0 %v1503
      %1522 = vmatpush.bf16.msra.mxu0 %v1483
      %1523 = vmatpush.bf16.msra.mxu0 %v1481
      %1524 = vmatpush.bf16.msra.mxu0 %v1479
      %1525 = vmatpush.bf16.msra.mxu0 %v1477
      %1526 = vmatmul.bf16.gmra.mxu0 %v1497
      %v1527 = vpop.f32.mrf.mxu0
      %v1528 = vadd.f32 %v1494, %v1527
      %v1529 = vpop.f32.mrf.mxu0
      %1530 = vdwg.mxu0
      %v1531 = vadd.f32 %v1515, %v1528
      %1532 = vadd.xlane.f32.xlu0 %v1531
      %v1533 = vpop.xlane.xlu0 %1532
      %v1534 = vmul.f32 %v1515, %v1515
      %v1535 = vmul.f32 %v1528, %v1528
      %v1536 = vadd.f32 %v1534, %v1535
      %1537 = vadd.xlane.f32.xlu0 %v1536
      %v1538 = vpop.xlane.xlu0 %1537
      %v1539 = vmul.f32 %v1533, 0.00390625
      %v1540 = vmul.f32 %v1538, 0.00390625
      %v1541 = vmul.f32 %v1539, %v1539
      %v1542 = vsub.f32 %v1540, %v1541
      %v1543 = vsub.f32 %v1515, %v1539
      %v1544 = vsub.f32 %v1528, %v1539
      %v1545 = vadd.f32 %v1542, 1e-05
      %v1546 = vrsqrt.pop %v1545
      %v1547 = vmul.f32 %v1546, %v1545
      %v1548 = vmul.f32 %v1547, %v1546
      %v1549 = vmul.f32 0.5, %v1548
      %v1550 = vsub.f32 1.5, %v1549
      %v1551 = vmul.f32 %v1546, %v1550
      %vm1552 = vweird.f32 %v1545
      %vm1553 = vweird.f32 %v1546
      %vm1554 = vmor %vm1552, %vm1553
      %v1555 = vsel %vm1554, %v1546, %v1551
      %v1556 = vmul.f32 %v1543, %v1555
      %v1557 = vmul.f32 %v1544, %v1555
      %s1558 = scalar_lea.vmem %s4, 48
      %v1559 = vld [vmem:[%s1558] sm:$0xff]
      %1561 = vset.pattern.permute.xlu0 0
      %1562 = vperm.xlu0 %1561, %v1559
      %v1563 = vpop.permute.xlu0 %1562
      %v1565 = vmul.f32 %v1556, %v1563
      %v1566 = vmul.f32 %v1557, %v1563
      %s1567 = scalar_lea.vmem %s5, 48
      %v1568 = vld [vmem:[%s1567] sm:$0xff]
      %1570 = vset.pattern.permute.xlu0 0
      %1571 = vperm.xlu0 %1570, %v1568
      %v1572 = vpop.permute.xlu0 %1571
      %v1574 = vadd.f32 %v1565, %v1572
      %v1575 = vadd.f32 %v1566, %v1572
      %v1576 = vmul.f32 %v1574, 0.5
      %v1577 = vmul.f32 %v1575, 0.5
      %v1578 = vmul.f32 %v1574, 0.044715
      %v1579 = vmul.f32 %v1575, 0.044715
      %v1580 = vmul.f32 %v1578, %v1574
      %v1581 = vmul.f32 %v1579, %v1575
      %v1582 = vmul.f32 %v1580, %v1574
      %v1583 = vmul.f32 %v1581, %v1575
      %v1584 = vadd.f32 %v1574, %v1582
      %v1585 = vadd.f32 %v1575, %v1583
      %v1586 = vmul.f32 %v1584, 0.7978846
      %v1587 = vmul.f32 %v1585, 0.7978846
      %v1588 = vtanh.pop %v1586
      %v1589 = vtanh.pop %v1587
      %v1590 = vadd.f32 %v1588, 1.0
      %v1591 = vadd.f32 %v1589, 1.0
      %v1592 = vmul.f32 %v1576, %v1590
      %v1593 = vmul.f32 %v1577, %v1591
      %1594 = vrot.lane.b32.xlu0 %v1592, 17
      %v1595 = vpop.permute.xlu0 %1594
      %1596 = vrot.lane.b32.xlu0 %v1593, 17
      %v1597 = vpop.permute.xlu0 %1596
      %v1598 = vsel %vm269, %v1595, %v1597
      %v1599 = vsel %vm269, %v1597, %v1595
      %v1600 = vmul.f32 %v1599, %v272
      %v1601 = vmul.f32 %v1598, %v273
      %1602 = vrot.lane.b32.xlu0 %v1592, 16
      %v1603 = vpop.permute.xlu0 %1602
      %1604 = vrot.lane.b32.xlu0 %v1593, 16
      %v1605 = vpop.permute.xlu0 %1604
      %v1606 = vsel %vm280, %v1603, %v1605
      %v1607 = vsel %vm280, %v1605, %v1603
      %v1608 = vmul.f32 %v1607, %v284
      %v1609 = vmul.f32 %v1606, %v285
      %1610 = vrot.lane.b32.xlu0 %v1592, 15
      %v1611 = vpop.permute.xlu0 %1610
      %1612 = vrot.lane.b32.xlu0 %v1593, 15
      %v1613 = vpop.permute.xlu0 %1612
      %v1614 = vsel %vm292, %v1611, %v1613
      %v1615 = vsel %vm292, %v1613, %v1611
      %v1616 = vmul.f32 %v1615, %v296
      %v1617 = vmul.f32 %v1614, %v297
      %1618 = vrot.lane.b32.xlu0 %v1592, 1
      %v1619 = vpop.permute.xlu0 %1618
      %1620 = vrot.lane.b32.xlu0 %v1593, 1
      %v1621 = vpop.permute.xlu0 %1620
      %v1622 = vsel %vm304, %v1619, %v1621
      %v1623 = vsel %vm304, %v1621, %v1619
      %v1624 = vmul.f32 %v1623, %v308
      %v1625 = vmul.f32 %v1622, %v309
      %1626 = vrot.lane.b32.xlu0 %v1592, 127
      %v1627 = vpop.permute.xlu0 %1626
      %1628 = vrot.lane.b32.xlu0 %v1593, 127
      %v1629 = vpop.permute.xlu0 %1628
      %v1630 = vsel %vm316, %v1627, %v1629
      %v1631 = vsel %vm316, %v1629, %v1627
      %v1632 = vmul.f32 %v1630, %v320
      %v1633 = vmul.f32 %v1631, %v321
      %1634 = vrot.lane.b32.xlu0 %v1592, 113
      %v1635 = vpop.permute.xlu0 %1634
      %1636 = vrot.lane.b32.xlu0 %v1593, 113
      %v1637 = vpop.permute.xlu0 %1636
      %v1638 = vsel %vm328, %v1635, %v1637
      %v1639 = vsel %vm328, %v1637, %v1635
      %v1640 = vmul.f32 %v1638, %v332
      %v1641 = vmul.f32 %v1639, %v333
      %1642 = vrot.lane.b32.xlu0 %v1592, 112
      %v1643 = vpop.permute.xlu0 %1642
      %1644 = vrot.lane.b32.xlu0 %v1593, 112
      %v1645 = vpop.permute.xlu0 %1644
      %v1646 = vsel %vm340, %v1643, %v1645
      %v1647 = vsel %vm340, %v1645, %v1643
      %v1648 = vmul.f32 %v1646, %v344
      %v1649 = vmul.f32 %v1647, %v345
      %1650 = vrot.lane.b32.xlu0 %v1592, 111
      %v1651 = vpop.permute.xlu0 %1650
      %1652 = vrot.lane.b32.xlu0 %v1593, 111
      %v1653 = vpop.permute.xlu0 %1652
      %v1654 = vsel %vm352, %v1651, %v1653
      %v1655 = vsel %vm352, %v1653, %v1651
      %v1656 = vmul.f32 %v1654, %v356
      %v1657 = vmul.f32 %v1655, %v357
      %v1658 = vpack.c.bf16 %v1608, %v1600
      %v1659 = vpack.c.bf16 %v1609, %v1601
      %v1660 = vpack.c.bf16 %v1624, %v1616
      %v1661 = vpack.c.bf16 %v1625, %v1617
      %v1662 = vpack.c.bf16 %v1632, %v1592
      %v1663 = vpack.c.bf16 %v1633, %v1593
      %v1664 = vpack.c.bf16 %v1648, %v1640
      %v1665 = vpack.c.bf16 %v1649, %v1641
      %v1666 = vpack.c.bf16 %v1656, %v1656
      %v1667 = vpack.c.bf16 %v1657, %v1657
      %s1668 = scalar_lea.vmem %s2, 56
      %v1669 = vld [vmem:[%s1668] sm:$0xff]
      %v1670 = vpack.c.bf16 %v1669, %v1669
      %s1671 = scalar_lea.vmem %s3, 56
      %v1672 = vld [vmem:[%s1671] sm:$0xff]
      %1674 = vset.pattern.permute.xlu0 0
      %1675 = vperm.xlu0 %1674, %v1672
      %v1676 = vpop.permute.xlu0 %1675
      %v1679 = vsel %vm378, %v1670, 0
      %v1682 = vsel %vm382, %v1666, 0
      %v1685 = vsel %vm382, %v1667, 0
      %1687 = vmatpush.bf16.msra.mxu0 0
      %1688 = vmatpush.bf16.msra.mxu0 0
      %1689 = vmatpush.bf16.msra.mxu0 0
      %1690 = vmatpush.bf16.msra.mxu0 %v1682
      %1691 = vmatpush.bf16.msra.mxu0 %v1664
      %1692 = vmatpush.bf16.msra.mxu0 %v1662
      %1693 = vmatpush.bf16.msra.mxu0 %v1660
      %1694 = vmatpush.bf16.msra.mxu0 %v1658
      %1695 = vmatmul.bf16.gmra.mxu0 %v1679
      %v1696 = vpop.f32.mrf.mxu0
      %v1697 = vadd.f32 %v1676, %v1696
      %v1698 = vpop.f32.mrf.mxu0
      %1699 = vdwg.mxu0
      %1700 = vmatpush.bf16.msra.mxu0 0
      %1701 = vmatpush.bf16.msra.mxu0 0
      %1702 = vmatpush.bf16.msra.mxu0 0
      %1703 = vmatpush.bf16.msra.mxu0 %v1685
      %1704 = vmatpush.bf16.msra.mxu0 %v1665
      %1705 = vmatpush.bf16.msra.mxu0 %v1663
      %1706 = vmatpush.bf16.msra.mxu0 %v1661
      %1707 = vmatpush.bf16.msra.mxu0 %v1659
      %1708 = vmatmul.bf16.gmra.mxu0 %v1679
      %v1709 = vpop.f32.mrf.mxu0
      %v1710 = vadd.f32 %v1676, %v1709
      %v1711 = vpop.f32.mrf.mxu0
      %1712 = vdwg.mxu0
      %v1713 = vadd.f32 %v1697, %v1710
      %1714 = vadd.xlane.f32.xlu0 %v1713
      %v1715 = vpop.xlane.xlu0 %1714
      %v1716 = vmul.f32 %v1697, %v1697
      %v1717 = vmul.f32 %v1710, %v1710
      %v1718 = vadd.f32 %v1716, %v1717
      %1719 = vadd.xlane.f32.xlu0 %v1718
      %v1720 = vpop.xlane.xlu0 %1719
      %v1721 = vmul.f32 %v1715, 0.00390625
      %v1722 = vmul.f32 %v1720, 0.00390625
      %v1723 = vmul.f32 %v1721, %v1721
      %v1724 = vsub.f32 %v1722, %v1723
      %v1725 = vsub.f32 %v1697, %v1721
      %v1726 = vsub.f32 %v1710, %v1721
      %v1727 = vadd.f32 %v1724, 1e-05
      %v1728 = vrsqrt.pop %v1727
      %v1729 = vmul.f32 %v1728, %v1727
      %v1730 = vmul.f32 %v1729, %v1728
      %v1731 = vmul.f32 0.5, %v1730
      %v1732 = vsub.f32 1.5, %v1731
      %v1733 = vmul.f32 %v1728, %v1732
      %vm1734 = vweird.f32 %v1727
      %vm1735 = vweird.f32 %v1728
      %vm1736 = vmor %vm1734, %vm1735
      %v1737 = vsel %vm1736, %v1728, %v1733
      %v1738 = vmul.f32 %v1725, %v1737
      %v1739 = vmul.f32 %v1726, %v1737
      %s1740 = scalar_lea.vmem %s4, 56
      %v1741 = vld [vmem:[%s1740] sm:$0xff]
      %1743 = vset.pattern.permute.xlu0 0
      %1744 = vperm.xlu0 %1743, %v1741
      %v1745 = vpop.permute.xlu0 %1744
      %v1747 = vmul.f32 %v1738, %v1745
      %v1748 = vmul.f32 %v1739, %v1745
      %s1749 = scalar_lea.vmem %s5, 56
      %v1750 = vld [vmem:[%s1749] sm:$0xff]
      %1752 = vset.pattern.permute.xlu0 0
      %1753 = vperm.xlu0 %1752, %v1750
      %v1754 = vpop.permute.xlu0 %1753
      %v1756 = vadd.f32 %v1747, %v1754
      %v1757 = vadd.f32 %v1748, %v1754
      %v1758 = vadd.f32 %v1756, %v1410
      %v1759 = vadd.f32 %v1757, %v1411
      %v1760 = vmul.f32 %v1758, 0.5
      %v1761 = vmul.f32 %v1759, 0.5
      %v1762 = vmul.f32 %v1758, 0.044715
      %v1763 = vmul.f32 %v1759, 0.044715
      %v1764 = vmul.f32 %v1762, %v1758
      %v1765 = vmul.f32 %v1763, %v1759
      %v1766 = vmul.f32 %v1764, %v1758
      %v1767 = vmul.f32 %v1765, %v1759
      %v1768 = vadd.f32 %v1758, %v1766
      %v1769 = vadd.f32 %v1759, %v1767
      %v1770 = vmul.f32 %v1768, 0.7978846
      %v1771 = vmul.f32 %v1769, 0.7978846
      %v1772 = vtanh.pop %v1770
      %v1773 = vtanh.pop %v1771
      %v1774 = vadd.f32 %v1772, 1.0
      %v1775 = vadd.f32 %v1773, 1.0
      %v1776 = vmul.f32 %v1760, %v1774
      %v1777 = vmul.f32 %v1761, %v1775
      %1778 = vrot.lane.b32.xlu0 %v1776, 17
      %v1779 = vpop.permute.xlu0 %1778
      %1780 = vrot.lane.b32.xlu0 %v1777, 17
      %v1781 = vpop.permute.xlu0 %1780
      %v1782 = vsel %vm269, %v1779, %v1781
      %v1783 = vsel %vm269, %v1781, %v1779
      %v1784 = vmul.f32 %v1783, %v272
      %v1785 = vmul.f32 %v1782, %v273
      %1786 = vrot.lane.b32.xlu0 %v1776, 16
      %v1787 = vpop.permute.xlu0 %1786
      %1788 = vrot.lane.b32.xlu0 %v1777, 16
      %v1789 = vpop.permute.xlu0 %1788
      %v1790 = vsel %vm280, %v1787, %v1789
      %v1791 = vsel %vm280, %v1789, %v1787
      %v1792 = vmul.f32 %v1791, %v284
      %v1793 = vmul.f32 %v1790, %v285
      %1794 = vrot.lane.b32.xlu0 %v1776, 15
      %v1795 = vpop.permute.xlu0 %1794
      %1796 = vrot.lane.b32.xlu0 %v1777, 15
      %v1797 = vpop.permute.xlu0 %1796
      %v1798 = vsel %vm292, %v1795, %v1797
      %v1799 = vsel %vm292, %v1797, %v1795
      %v1800 = vmul.f32 %v1799, %v296
      %v1801 = vmul.f32 %v1798, %v297
      %1802 = vrot.lane.b32.xlu0 %v1776, 1
      %v1803 = vpop.permute.xlu0 %1802
      %1804 = vrot.lane.b32.xlu0 %v1777, 1
      %v1805 = vpop.permute.xlu0 %1804
      %v1806 = vsel %vm304, %v1803, %v1805
      %v1807 = vsel %vm304, %v1805, %v1803
      %v1808 = vmul.f32 %v1807, %v308
      %v1809 = vmul.f32 %v1806, %v309
      %1810 = vrot.lane.b32.xlu0 %v1776, 127
      %v1811 = vpop.permute.xlu0 %1810
      %1812 = vrot.lane.b32.xlu0 %v1777, 127
      %v1813 = vpop.permute.xlu0 %1812
      %v1814 = vsel %vm316, %v1811, %v1813
      %v1815 = vsel %vm316, %v1813, %v1811
      %v1816 = vmul.f32 %v1814, %v320
      %v1817 = vmul.f32 %v1815, %v321
      %1818 = vrot.lane.b32.xlu0 %v1776, 113
      %v1819 = vpop.permute.xlu0 %1818
      %1820 = vrot.lane.b32.xlu0 %v1777, 113
      %v1821 = vpop.permute.xlu0 %1820
      %v1822 = vsel %vm328, %v1819, %v1821
      %v1823 = vsel %vm328, %v1821, %v1819
      %v1824 = vmul.f32 %v1822, %v332
      %v1825 = vmul.f32 %v1823, %v333
      %1826 = vrot.lane.b32.xlu0 %v1776, 112
      %v1827 = vpop.permute.xlu0 %1826
      %1828 = vrot.lane.b32.xlu0 %v1777, 112
      %v1829 = vpop.permute.xlu0 %1828
      %v1830 = vsel %vm340, %v1827, %v1829
      %v1831 = vsel %vm340, %v1829, %v1827
      %v1832 = vmul.f32 %v1830, %v344
      %v1833 = vmul.f32 %v1831, %v345
      %1834 = vrot.lane.b32.xlu0 %v1776, 111
      %v1835 = vpop.permute.xlu0 %1834
      %1836 = vrot.lane.b32.xlu0 %v1777, 111
      %v1837 = vpop.permute.xlu0 %1836
      %v1838 = vsel %vm352, %v1835, %v1837
      %v1839 = vsel %vm352, %v1837, %v1835
      %v1840 = vmul.f32 %v1838, %v356
      %v1841 = vmul.f32 %v1839, %v357
      %v1842 = vpack.c.bf16 %v1792, %v1784
      %v1843 = vpack.c.bf16 %v1793, %v1785
      %v1844 = vpack.c.bf16 %v1808, %v1800
      %v1845 = vpack.c.bf16 %v1809, %v1801
      %v1846 = vpack.c.bf16 %v1816, %v1776
      %v1847 = vpack.c.bf16 %v1817, %v1777
      %v1848 = vpack.c.bf16 %v1832, %v1824
      %v1849 = vpack.c.bf16 %v1833, %v1825
      %v1850 = vpack.c.bf16 %v1840, %v1840
      %v1851 = vpack.c.bf16 %v1841, %v1841
      %s1852 = scalar_lea.vmem %s2, 64
      %v1853 = vld [vmem:[%s1852] sm:$0xff]
      %v1854 = vpack.c.bf16 %v1853, %v1853
      %s1855 = scalar_lea.vmem %s3, 64
      %v1856 = vld [vmem:[%s1855] sm:$0xff]
      %1858 = vset.pattern.permute.xlu0 0
      %1859 = vperm.xlu0 %1858, %v1856
      %v1860 = vpop.permute.xlu0 %1859
      %v1863 = vsel %vm378, %v1854, 0
      %v1866 = vsel %vm382, %v1850, 0
      %v1869 = vsel %vm382, %v1851, 0
      %1871 = vmatpush.bf16.msra.mxu0 0
      %1872 = vmatpush.bf16.msra.mxu0 0
      %1873 = vmatpush.bf16.msra.mxu0 0
      %1874 = vmatpush.bf16.msra.mxu0 %v1866
      %1875 = vmatpush.bf16.msra.mxu0 %v1848
      %1876 = vmatpush.bf16.msra.mxu0 %v1846
      %1877 = vmatpush.bf16.msra.mxu0 %v1844
      %1878 = vmatpush.bf16.msra.mxu0 %v1842
      %1879 = vmatmul.bf16.gmra.mxu0 %v1863
      %v1880 = vpop.f32.mrf.mxu0
      %v1881 = vadd.f32 %v1860, %v1880
      %v1882 = vpop.f32.mrf.mxu0
      %1883 = vdwg.mxu0
      %1884 = vmatpush.bf16.msra.mxu0 0
      %1885 = vmatpush.bf16.msra.mxu0 0
      %1886 = vmatpush.bf16.msra.mxu0 0
      %1887 = vmatpush.bf16.msra.mxu0 %v1869
      %1888 = vmatpush.bf16.msra.mxu0 %v1849
      %1889 = vmatpush.bf16.msra.mxu0 %v1847
      %1890 = vmatpush.bf16.msra.mxu0 %v1845
      %1891 = vmatpush.bf16.msra.mxu0 %v1843
      %1892 = vmatmul.bf16.gmra.mxu0 %v1863
      %v1893 = vpop.f32.mrf.mxu0
      %v1894 = vadd.f32 %v1860, %v1893
      %v1895 = vpop.f32.mrf.mxu0
      %1896 = vdwg.mxu0
      %v1897 = vadd.f32 %v1881, %v1894
      %1898 = vadd.xlane.f32.xlu0 %v1897
      %v1899 = vpop.xlane.xlu0 %1898
      %v1900 = vmul.f32 %v1881, %v1881
      %v1901 = vmul.f32 %v1894, %v1894
      %v1902 = vadd.f32 %v1900, %v1901
      %1903 = vadd.xlane.f32.xlu0 %v1902
      %v1904 = vpop.xlane.xlu0 %1903
      %v1905 = vmul.f32 %v1899, 0.00390625
      %v1906 = vmul.f32 %v1904, 0.00390625
      %v1907 = vmul.f32 %v1905, %v1905
      %v1908 = vsub.f32 %v1906, %v1907
      %v1909 = vsub.f32 %v1881, %v1905
      %v1910 = vsub.f32 %v1894, %v1905
      %v1911 = vadd.f32 %v1908, 1e-05
      %v1912 = vrsqrt.pop %v1911
      %v1913 = vmul.f32 %v1912, %v1911
      %v1914 = vmul.f32 %v1913, %v1912
      %v1915 = vmul.f32 0.5, %v1914
      %v1916 = vsub.f32 1.5, %v1915
      %v1917 = vmul.f32 %v1912, %v1916
      %vm1918 = vweird.f32 %v1911
      %vm1919 = vweird.f32 %v1912
      %vm1920 = vmor %vm1918, %vm1919
      %v1921 = vsel %vm1920, %v1912, %v1917
      %v1922 = vmul.f32 %v1909, %v1921
      %v1923 = vmul.f32 %v1910, %v1921
      %s1924 = scalar_lea.vmem %s4, 64
      %v1925 = vld [vmem:[%s1924] sm:$0xff]
      %1927 = vset.pattern.permute.xlu0 0
      %1928 = vperm.xlu0 %1927, %v1925
      %v1929 = vpop.permute.xlu0 %1928
      %v1931 = vmul.f32 %v1922, %v1929
      %v1932 = vmul.f32 %v1923, %v1929
      %s1933 = scalar_lea.vmem %s5, 64
      %v1934 = vld [vmem:[%s1933] sm:$0xff]
      %1936 = vset.pattern.permute.xlu0 0
      %1937 = vperm.xlu0 %1936, %v1934
      %v1938 = vpop.permute.xlu0 %1937
      %v1940 = vadd.f32 %v1931, %v1938
      %v1941 = vadd.f32 %v1932, %v1938
      %v1942 = vxor.u32 %v1940, 2147483648
      %v1943 = vxor.u32 %v1941, 2147483648
      %v1944 = vmul.f32 %v1942, 1.442695
      %v1945 = vpow.pop %v1944
      %v1946 = vmul.f32 %v1943, 1.442695
      %v1947 = vpow.pop %v1946
      %v1948 = vadd.f32 %v1945, 1.0
      %v1949 = vadd.f32 %v1947, 1.0
      %v1950 = vrcp.pop %v1948
      %v1951 = vmul.f32 %v1948, %v1950
      %v1952 = vsub.f32 1.0, %v1951
      %v1953 = vmul.f32 %v1950, %v1952
      %v1954 = vadd.f32 %v1950, %v1953
      %vm1955 = vweird.f32 %v1948
      %vm1956 = vweird.f32 %v1950
      %vm1957 = vmor %vm1955, %vm1956
      %v1958 = vsel %vm1957, %v1950, %v1954
      %v1959 = vand.u32 2147483647, %v1948
      %vm1960 = vcmp.eq.f32.partialorder %v1959, 8.507059e+37
      %v1961 = vand.u32 %v1948, 2147483648
      %v1962 = vor.u32 1.1754944e-38, %v1961
      %v1963 = vsel %vm1960, %v1962, %v1958
      %v1964 = vmul.f32 1.0, %v1963
      %v1965 = vrcp.pop %v1949
      %v1966 = vmul.f32 %v1949, %v1965
      %v1967 = vsub.f32 1.0, %v1966
      %v1968 = vmul.f32 %v1965, %v1967
      %v1969 = vadd.f32 %v1965, %v1968
      %vm1970 = vweird.f32 %v1949
      %vm1971 = vweird.f32 %v1965
      %vm1972 = vmor %vm1970, %vm1971
      %v1973 = vsel %vm1972, %v1965, %v1969
      %v1974 = vand.u32 2147483647, %v1949
      %vm1975 = vcmp.eq.f32.partialorder %v1974, 8.507059e+37
      %v1976 = vand.u32 %v1949, 2147483648
      %v1977 = vor.u32 1.1754944e-38, %v1976
      %v1978 = vsel %vm1975, %v1977, %v1973
      %v1979 = vmul.f32 1.0, %v1978
      %v1980 = vmul.f32 %v1940, %v1964
      %v1981 = vmul.f32 %v1941, %v1979
      %1982 = vrot.lane.b32.xlu0 %v1980, 17
      %v1983 = vpop.permute.xlu0 %1982
      %1984 = vrot.lane.b32.xlu0 %v1981, 17
      %v1985 = vpop.permute.xlu0 %1984
      %v1986 = vsel %vm269, %v1983, %v1985
      %v1987 = vsel %vm269, %v1985, %v1983
      %v1988 = vmul.f32 %v1987, %v272
      %v1989 = vmul.f32 %v1986, %v273
      %1990 = vrot.lane.b32.xlu0 %v1980, 16
      %v1991 = vpop.permute.xlu0 %1990
      %1992 = vrot.lane.b32.xlu0 %v1981, 16
      %v1993 = vpop.permute.xlu0 %1992
      %v1994 = vsel %vm280, %v1991, %v1993
      %v1995 = vsel %vm280, %v1993, %v1991
      %v1996 = vmul.f32 %v1995, %v284
      %v1997 = vmul.f32 %v1994, %v285
      %1998 = vrot.lane.b32.xlu0 %v1980, 15
      %v1999 = vpop.permute.xlu0 %1998
      %2000 = vrot.lane.b32.xlu0 %v1981, 15
      %v2001 = vpop.permute.xlu0 %2000
      %v2002 = vsel %vm292, %v1999, %v2001
      %v2003 = vsel %vm292, %v2001, %v1999
      %v2004 = vmul.f32 %v2003, %v296
      %v2005 = vmul.f32 %v2002, %v297
      %2006 = vrot.lane.b32.xlu0 %v1980, 1
      %v2007 = vpop.permute.xlu0 %2006
      %2008 = vrot.lane.b32.xlu0 %v1981, 1
      %v2009 = vpop.permute.xlu0 %2008
      %v2010 = vsel %vm304, %v2007, %v2009
      %v2011 = vsel %vm304, %v2009, %v2007
      %v2012 = vmul.f32 %v2011, %v308
      %v2013 = vmul.f32 %v2010, %v309
      %2014 = vrot.lane.b32.xlu0 %v1980, 127
      %v2015 = vpop.permute.xlu0 %2014
      %2016 = vrot.lane.b32.xlu0 %v1981, 127
      %v2017 = vpop.permute.xlu0 %2016
      %v2018 = vsel %vm316, %v2015, %v2017
      %v2019 = vsel %vm316, %v2017, %v2015
      %v2020 = vmul.f32 %v2018, %v320
      %v2021 = vmul.f32 %v2019, %v321
      %2022 = vrot.lane.b32.xlu0 %v1980, 113
      %v2023 = vpop.permute.xlu0 %2022
      %2024 = vrot.lane.b32.xlu0 %v1981, 113
      %v2025 = vpop.permute.xlu0 %2024
      %v2026 = vsel %vm328, %v2023, %v2025
      %v2027 = vsel %vm328, %v2025, %v2023
      %v2028 = vmul.f32 %v2026, %v332
      %v2029 = vmul.f32 %v2027, %v333
      %2030 = vrot.lane.b32.xlu0 %v1980, 112
      %v2031 = vpop.permute.xlu0 %2030
      %2032 = vrot.lane.b32.xlu0 %v1981, 112
      %v2033 = vpop.permute.xlu0 %2032
      %v2034 = vsel %vm340, %v2031, %v2033
      %v2035 = vsel %vm340, %v2033, %v2031
      %v2036 = vmul.f32 %v2034, %v344
      %v2037 = vmul.f32 %v2035, %v345
      %2038 = vrot.lane.b32.xlu0 %v1980, 111
      %v2039 = vpop.permute.xlu0 %2038
      %2040 = vrot.lane.b32.xlu0 %v1981, 111
      %v2041 = vpop.permute.xlu0 %2040
      %v2042 = vsel %vm352, %v2039, %v2041
      %v2043 = vsel %vm352, %v2041, %v2039
      %v2044 = vmul.f32 %v2042, %v356
      %v2045 = vmul.f32 %v2043, %v357
      %v2046 = vpack.c.bf16 %v1996, %v1988
      %v2047 = vpack.c.bf16 %v1997, %v1989
      %v2048 = vpack.c.bf16 %v2012, %v2004
      %v2049 = vpack.c.bf16 %v2013, %v2005
      %v2050 = vpack.c.bf16 %v2020, %v1980
      %v2051 = vpack.c.bf16 %v2021, %v1981
      %v2052 = vpack.c.bf16 %v2036, %v2028
      %v2053 = vpack.c.bf16 %v2037, %v2029
      %v2054 = vpack.c.bf16 %v2044, %v2044
      %v2055 = vpack.c.bf16 %v2045, %v2045
      %s2056 = scalar_lea.vmem %s2, 72
      %v2057 = vld [vmem:[%s2056] sm:$0xff]
      %v2058 = vpack.c.bf16 %v2057, %v2057
      %s2059 = scalar_lea.vmem %s3, 72
      %v2060 = vld [vmem:[%s2059] sm:$0xff]
      %2062 = vset.pattern.permute.xlu0 0
      %2063 = vperm.xlu0 %2062, %v2060
      %v2064 = vpop.permute.xlu0 %2063
      %v2067 = vsel %vm378, %v2058, 0
      %v2070 = vsel %vm382, %v2054, 0
      %v2073 = vsel %vm382, %v2055, 0
      %2075 = vmatpush.bf16.msra.mxu0 0
      %2076 = vmatpush.bf16.msra.mxu0 0
      %2077 = vmatpush.bf16.msra.mxu0 0
      %2078 = vmatpush.bf16.msra.mxu0 %v2070
      %2079 = vmatpush.bf16.msra.mxu0 %v2052
      %2080 = vmatpush.bf16.msra.mxu0 %v2050
      %2081 = vmatpush.bf16.msra.mxu0 %v2048
      %2082 = vmatpush.bf16.msra.mxu0 %v2046
      %2083 = vmatmul.bf16.gmra.mxu0 %v2067
      %v2084 = vpop.f32.mrf.mxu0
      %v2085 = vadd.f32 %v2064, %v2084
      %v2086 = vpop.f32.mrf.mxu0
      %2087 = vdwg.mxu0
      %2088 = vmatpush.bf16.msra.mxu0 0
      %2089 = vmatpush.bf16.msra.mxu0 0
      %2090 = vmatpush.bf16.msra.mxu0 0
      %2091 = vmatpush.bf16.msra.mxu0 %v2073
      %2092 = vmatpush.bf16.msra.mxu0 %v2053
      %2093 = vmatpush.bf16.msra.mxu0 %v2051
      %2094 = vmatpush.bf16.msra.mxu0 %v2049
      %2095 = vmatpush.bf16.msra.mxu0 %v2047
      %2096 = vmatmul.bf16.gmra.mxu0 %v2067
      %v2097 = vpop.f32.mrf.mxu0
      %v2098 = vadd.f32 %v2064, %v2097
      %v2099 = vpop.f32.mrf.mxu0
      %2100 = vdwg.mxu0
      %v2101 = vadd.f32 %v2085, %v2098
      %2102 = vadd.xlane.f32.xlu0 %v2101
      %v2103 = vpop.xlane.xlu0 %2102
      %v2104 = vmul.f32 %v2085, %v2085
      %v2105 = vmul.f32 %v2098, %v2098
      %v2106 = vadd.f32 %v2104, %v2105
      %2107 = vadd.xlane.f32.xlu0 %v2106
      %v2108 = vpop.xlane.xlu0 %2107
      %v2109 = vmul.f32 %v2103, 0.00390625
      %v2110 = vmul.f32 %v2108, 0.00390625
      %v2111 = vmul.f32 %v2109, %v2109
      %v2112 = vsub.f32 %v2110, %v2111
      %v2113 = vsub.f32 %v2085, %v2109
      %v2114 = vsub.f32 %v2098, %v2109
      %v2115 = vadd.f32 %v2112, 1e-05
      %v2116 = vrsqrt.pop %v2115
      %v2117 = vmul.f32 %v2116, %v2115
      %v2118 = vmul.f32 %v2117, %v2116
      %v2119 = vmul.f32 0.5, %v2118
      %v2120 = vsub.f32 1.5, %v2119
      %v2121 = vmul.f32 %v2116, %v2120
      %vm2122 = vweird.f32 %v2115
      %vm2123 = vweird.f32 %v2116
      %vm2124 = vmor %vm2122, %vm2123
      %v2125 = vsel %vm2124, %v2116, %v2121
      %v2126 = vmul.f32 %v2113, %v2125
      %v2127 = vmul.f32 %v2114, %v2125
      %s2128 = scalar_lea.vmem %s4, 72
      %v2129 = vld [vmem:[%s2128] sm:$0xff]
      %2131 = vset.pattern.permute.xlu0 0
      %2132 = vperm.xlu0 %2131, %v2129
      %v2133 = vpop.permute.xlu0 %2132
      %v2135 = vmul.f32 %v2126, %v2133
      %v2136 = vmul.f32 %v2127, %v2133
      %s2137 = scalar_lea.vmem %s5, 72
      %v2138 = vld [vmem:[%s2137] sm:$0xff]
      %2140 = vset.pattern.permute.xlu0 0
      %2141 = vperm.xlu0 %2140, %v2138
      %v2142 = vpop.permute.xlu0 %2141
      %v2144 = vadd.f32 %v2135, %v2142
      %v2145 = vadd.f32 %v2136, %v2142
      %v2146 = vadd.f32 %v2144, %v1776
      %v2147 = vadd.f32 %v2145, %v1777
      %v2148 = vxor.u32 %v2146, 2147483648
      %v2149 = vxor.u32 %v2147, 2147483648
      %v2150 = vmul.f32 %v2148, 1.442695
      %v2151 = vpow.pop %v2150
      %v2152 = vmul.f32 %v2149, 1.442695
      %v2153 = vpow.pop %v2152
      %v2154 = vadd.f32 %v2151, 1.0
      %v2155 = vadd.f32 %v2153, 1.0
      %v2156 = vrcp.pop %v2154
      %v2157 = vmul.f32 %v2154, %v2156
      %v2158 = vsub.f32 1.0, %v2157
      %v2159 = vmul.f32 %v2156, %v2158
      %v2160 = vadd.f32 %v2156, %v2159
      %vm2161 = vweird.f32 %v2154
      %vm2162 = vweird.f32 %v2156
      %vm2163 = vmor %vm2161, %vm2162
      %v2164 = vsel %vm2163, %v2156, %v2160
      %v2165 = vand.u32 2147483647, %v2154
      %vm2166 = vcmp.eq.f32.partialorder %v2165, 8.507059e+37
      %v2167 = vand.u32 %v2154, 2147483648
      %v2168 = vor.u32 1.1754944e-38, %v2167
      %v2169 = vsel %vm2166, %v2168, %v2164
      %v2170 = vmul.f32 1.0, %v2169
      %v2171 = vrcp.pop %v2155
      %v2172 = vmul.f32 %v2155, %v2171
      %v2173 = vsub.f32 1.0, %v2172
      %v2174 = vmul.f32 %v2171, %v2173
      %v2175 = vadd.f32 %v2171, %v2174
      %vm2176 = vweird.f32 %v2155
      %vm2177 = vweird.f32 %v2171
      %vm2178 = vmor %vm2176, %vm2177
      %v2179 = vsel %vm2178, %v2171, %v2175
      %v2180 = vand.u32 2147483647, %v2155
      %vm2181 = vcmp.eq.f32.partialorder %v2180, 8.507059e+37
      %v2182 = vand.u32 %v2155, 2147483648
      %v2183 = vor.u32 1.1754944e-38, %v2182
      %v2184 = vsel %vm2181, %v2183, %v2179
      %v2185 = vmul.f32 1.0, %v2184
      %v2186 = vmul.f32 %v2146, %v2170
      %v2187 = vmul.f32 %v2147, %v2185
      %2188 = vrot.lane.b32.xlu0 %v2186, 17
      %v2189 = vpop.permute.xlu0 %2188
      %2190 = vrot.lane.b32.xlu0 %v2187, 17
      %v2191 = vpop.permute.xlu0 %2190
      %v2192 = vsel %vm269, %v2189, %v2191
      %v2193 = vsel %vm269, %v2191, %v2189
      %v2194 = vmul.f32 %v2193, %v272
      %v2195 = vmul.f32 %v2192, %v273
      %2196 = vrot.lane.b32.xlu0 %v2186, 16
      %v2197 = vpop.permute.xlu0 %2196
      %2198 = vrot.lane.b32.xlu0 %v2187, 16
      %v2199 = vpop.permute.xlu0 %2198
      %v2200 = vsel %vm280, %v2197, %v2199
      %v2201 = vsel %vm280, %v2199, %v2197
      %v2202 = vmul.f32 %v2201, %v284
      %v2203 = vmul.f32 %v2200, %v285
      %2204 = vrot.lane.b32.xlu0 %v2186, 15
      %v2205 = vpop.permute.xlu0 %2204
      %2206 = vrot.lane.b32.xlu0 %v2187, 15
      %v2207 = vpop.permute.xlu0 %2206
      %v2208 = vsel %vm292, %v2205, %v2207
      %v2209 = vsel %vm292, %v2207, %v2205
      %v2210 = vmul.f32 %v2209, %v296
      %v2211 = vmul.f32 %v2208, %v297
      %2212 = vrot.lane.b32.xlu0 %v2186, 1
      %v2213 = vpop.permute.xlu0 %2212
      %2214 = vrot.lane.b32.xlu0 %v2187, 1
      %v2215 = vpop.permute.xlu0 %2214
      %v2216 = vsel %vm304, %v2213, %v2215
      %v2217 = vsel %vm304, %v2215, %v2213
      %v2218 = vmul.f32 %v2217, %v308
      %v2219 = vmul.f32 %v2216, %v309
      %2220 = vrot.lane.b32.xlu0 %v2186, 127
      %v2221 = vpop.permute.xlu0 %2220
      %2222 = vrot.lane.b32.xlu0 %v2187, 127
      %v2223 = vpop.permute.xlu0 %2222
      %v2224 = vsel %vm316, %v2221, %v2223
      %v2225 = vsel %vm316, %v2223, %v2221
      %v2226 = vmul.f32 %v2224, %v320
      %v2227 = vmul.f32 %v2225, %v321
      %2228 = vrot.lane.b32.xlu0 %v2186, 113
      %v2229 = vpop.permute.xlu0 %2228
      %2230 = vrot.lane.b32.xlu0 %v2187, 113
      %v2231 = vpop.permute.xlu0 %2230
      %v2232 = vsel %vm328, %v2229, %v2231
      %v2233 = vsel %vm328, %v2231, %v2229
      %v2234 = vmul.f32 %v2232, %v332
      %v2235 = vmul.f32 %v2233, %v333
      %2236 = vrot.lane.b32.xlu0 %v2186, 112
      %v2237 = vpop.permute.xlu0 %2236
      %2238 = vrot.lane.b32.xlu0 %v2187, 112
      %v2239 = vpop.permute.xlu0 %2238
      %v2240 = vsel %vm340, %v2237, %v2239
      %v2241 = vsel %vm340, %v2239, %v2237
      %v2242 = vmul.f32 %v2240, %v344
      %v2243 = vmul.f32 %v2241, %v345
      %2244 = vrot.lane.b32.xlu0 %v2186, 111
      %v2245 = vpop.permute.xlu0 %2244
      %2246 = vrot.lane.b32.xlu0 %v2187, 111
      %v2247 = vpop.permute.xlu0 %2246
      %v2248 = vsel %vm352, %v2245, %v2247
      %v2249 = vsel %vm352, %v2247, %v2245
      %v2250 = vmul.f32 %v2248, %v356
      %v2251 = vmul.f32 %v2249, %v357
      %v2252 = vpack.c.bf16 %v2202, %v2194
      %v2253 = vpack.c.bf16 %v2203, %v2195
      %v2254 = vpack.c.bf16 %v2218, %v2210
      %v2255 = vpack.c.bf16 %v2219, %v2211
      %v2256 = vpack.c.bf16 %v2226, %v2186
      %v2257 = vpack.c.bf16 %v2227, %v2187
      %v2258 = vpack.c.bf16 %v2242, %v2234
      %v2259 = vpack.c.bf16 %v2243, %v2235
      %v2260 = vpack.c.bf16 %v2250, %v2250
      %v2261 = vpack.c.bf16 %v2251, %v2251
      %s2262 = scalar_lea.vmem %s2, 80
      %v2263 = vld [vmem:[%s2262] sm:$0xff]
      %v2264 = vpack.c.bf16 %v2263, %v2263
      %s2265 = scalar_lea.vmem %s3, 80
      %v2266 = vld [vmem:[%s2265] sm:$0xff]
      %2268 = vset.pattern.permute.xlu0 0
      %2269 = vperm.xlu0 %2268, %v2266
      %v2270 = vpop.permute.xlu0 %2269
      %v2273 = vsel %vm378, %v2264, 0
      %v2276 = vsel %vm382, %v2260, 0
      %v2279 = vsel %vm382, %v2261, 0
      %2281 = vmatpush.bf16.msra.mxu0 0
      %2282 = vmatpush.bf16.msra.mxu0 0
      %2283 = vmatpush.bf16.msra.mxu0 0
      %2284 = vmatpush.bf16.msra.mxu0 %v2276
      %2285 = vmatpush.bf16.msra.mxu0 %v2258
      %2286 = vmatpush.bf16.msra.mxu0 %v2256
      %2287 = vmatpush.bf16.msra.mxu0 %v2254
      %2288 = vmatpush.bf16.msra.mxu0 %v2252
      %2289 = vmatmul.bf16.gmra.mxu0 %v2273
      %v2290 = vpop.f32.mrf.mxu0
      %v2291 = vadd.f32 %v2270, %v2290
      %v2292 = vpop.f32.mrf.mxu0
      %2293 = vdwg.mxu0
      %2294 = vmatpush.bf16.msra.mxu0 0
      %2295 = vmatpush.bf16.msra.mxu0 0
      %2296 = vmatpush.bf16.msra.mxu0 0
      %2297 = vmatpush.bf16.msra.mxu0 %v2279
      %2298 = vmatpush.bf16.msra.mxu0 %v2259
      %2299 = vmatpush.bf16.msra.mxu0 %v2257
      %2300 = vmatpush.bf16.msra.mxu0 %v2255
      %2301 = vmatpush.bf16.msra.mxu0 %v2253
      %2302 = vmatmul.bf16.gmra.mxu0 %v2273
      %v2303 = vpop.f32.mrf.mxu0
      %v2304 = vadd.f32 %v2270, %v2303
      %v2305 = vpop.f32.mrf.mxu0
      %2306 = vdwg.mxu0
      %v2307 = vadd.f32 %v2291, %v2304
      %2308 = vadd.xlane.f32.xlu0 %v2307
      %v2309 = vpop.xlane.xlu0 %2308
      %v2310 = vmul.f32 %v2291, %v2291
      %v2311 = vmul.f32 %v2304, %v2304
      %v2312 = vadd.f32 %v2310, %v2311
      %2313 = vadd.xlane.f32.xlu0 %v2312
      %v2314 = vpop.xlane.xlu0 %2313
      %v2315 = vmul.f32 %v2309, 0.00390625
      %v2316 = vmul.f32 %v2314, 0.00390625
      %v2317 = vmul.f32 %v2315, %v2315
      %v2318 = vsub.f32 %v2316, %v2317
      %v2319 = vsub.f32 %v2291, %v2315
      %v2320 = vsub.f32 %v2304, %v2315
      %v2321 = vadd.f32 %v2318, 1e-05
      %v2322 = vrsqrt.pop %v2321
      %v2323 = vmul.f32 %v2322, %v2321
      %v2324 = vmul.f32 %v2323, %v2322
      %v2325 = vmul.f32 0.5, %v2324
      %v2326 = vsub.f32 1.5, %v2325
      %v2327 = vmul.f32 %v2322, %v2326
      %vm2328 = vweird.f32 %v2321
      %vm2329 = vweird.f32 %v2322
      %vm2330 = vmor %vm2328, %vm2329
      %v2331 = vsel %vm2330, %v2322, %v2327
      %v2332 = vmul.f32 %v2319, %v2331
      %v2333 = vmul.f32 %v2320, %v2331
      %s2334 = scalar_lea.vmem %s4, 80
      %v2335 = vld [vmem:[%s2334] sm:$0xff]
      %2337 = vset.pattern.permute.xlu0 0
      %2338 = vperm.xlu0 %2337, %v2335
      %v2339 = vpop.permute.xlu0 %2338
      %v2341 = vmul.f32 %v2332, %v2339
      %v2342 = vmul.f32 %v2333, %v2339
      %s2343 = scalar_lea.vmem %s5, 80
      %v2344 = vld [vmem:[%s2343] sm:$0xff]
      %2346 = vset.pattern.permute.xlu0 0
      %2347 = vperm.xlu0 %2346, %v2344
      %v2348 = vpop.permute.xlu0 %2347
      %v2350 = vadd.f32 %v2341, %v2348
      %v2351 = vadd.f32 %v2342, %v2348
      %vm2352 = vcmp.ge.f32.partialorder %v2350, 0.0
      %vm2353 = vcmp.ge.f32.partialorder %v2351, 0.0
      %v2354 = vmul.f32 %v2350, 0.2
      %v2355 = vmul.f32 %v2351, 0.2
      %v2356 = vsel %vm2352, %v2350, %v2354
      %v2357 = vsel %vm2353, %v2351, %v2355
      %2358 = vrot.lane.b32.xlu0 %v2356, 17
      %v2359 = vpop.permute.xlu0 %2358
      %2360 = vrot.lane.b32.xlu0 %v2357, 17
      %v2361 = vpop.permute.xlu0 %2360
      %v2362 = vsel %vm269, %v2359, %v2361
      %v2363 = vsel %vm269, %v2361, %v2359
      %v2364 = vmul.f32 %v2363, %v272
      %v2365 = vmul.f32 %v2362, %v273
      %2366 = vrot.lane.b32.xlu0 %v2356, 16
      %v2367 = vpop.permute.xlu0 %2366
      %2368 = vrot.lane.b32.xlu0 %v2357, 16
      %v2369 = vpop.permute.xlu0 %2368
      %v2370 = vsel %vm280, %v2367, %v2369
      %v2371 = vsel %vm280, %v2369, %v2367
      %v2372 = vmul.f32 %v2371, %v284
      %v2373 = vmul.f32 %v2370, %v285
      %2374 = vrot.lane.b32.xlu0 %v2356, 15
      %v2375 = vpop.permute.xlu0 %2374
      %2376 = vrot.lane.b32.xlu0 %v2357, 15
      %v2377 = vpop.permute.xlu0 %2376
      %v2378 = vsel %vm292, %v2375, %v2377
      %v2379 = vsel %vm292, %v2377, %v2375
      %v2380 = vmul.f32 %v2379, %v296
      %v2381 = vmul.f32 %v2378, %v297
      %2382 = vrot.lane.b32.xlu0 %v2356, 1
      %v2383 = vpop.permute.xlu0 %2382
      %2384 = vrot.lane.b32.xlu0 %v2357, 1
      %v2385 = vpop.permute.xlu0 %2384
      %v2386 = vsel %vm304, %v2383, %v2385
      %v2387 = vsel %vm304, %v2385, %v2383
      %v2388 = vmul.f32 %v2387, %v308
      %v2389 = vmul.f32 %v2386, %v309
      %2390 = vrot.lane.b32.xlu0 %v2356, 127
      %v2391 = vpop.permute.xlu0 %2390
      %2392 = vrot.lane.b32.xlu0 %v2357, 127
      %v2393 = vpop.permute.xlu0 %2392
      %v2394 = vsel %vm316, %v2391, %v2393
      %v2395 = vsel %vm316, %v2393, %v2391
      %v2396 = vmul.f32 %v2394, %v320
      %v2397 = vmul.f32 %v2395, %v321
      %2398 = vrot.lane.b32.xlu0 %v2356, 113
      %v2399 = vpop.permute.xlu0 %2398
      %2400 = vrot.lane.b32.xlu0 %v2357, 113
      %v2401 = vpop.permute.xlu0 %2400
      %v2402 = vsel %vm328, %v2399, %v2401
      %v2403 = vsel %vm328, %v2401, %v2399
      %v2404 = vmul.f32 %v2402, %v332
      %v2405 = vmul.f32 %v2403, %v333
      %2406 = vrot.lane.b32.xlu0 %v2356, 112
      %v2407 = vpop.permute.xlu0 %2406
      %2408 = vrot.lane.b32.xlu0 %v2357, 112
      %v2409 = vpop.permute.xlu0 %2408
      %v2410 = vsel %vm340, %v2407, %v2409
      %v2411 = vsel %vm340, %v2409, %v2407
      %v2412 = vmul.f32 %v2410, %v344
      %v2413 = vmul.f32 %v2411, %v345
      %2414 = vrot.lane.b32.xlu0 %v2356, 111
      %v2415 = vpop.permute.xlu0 %2414
      %2416 = vrot.lane.b32.xlu0 %v2357, 111
      %v2417 = vpop.permute.xlu0 %2416
      %v2418 = vsel %vm352, %v2415, %v2417
      %v2419 = vsel %vm352, %v2417, %v2415
      %v2420 = vmul.f32 %v2418, %v356
      %v2421 = vmul.f32 %v2419, %v357
      %v2422 = vpack.c.bf16 %v2372, %v2364
      %v2423 = vpack.c.bf16 %v2373, %v2365
      %v2424 = vpack.c.bf16 %v2388, %v2380
      %v2425 = vpack.c.bf16 %v2389, %v2381
      %v2426 = vpack.c.bf16 %v2396, %v2356
      %v2427 = vpack.c.bf16 %v2397, %v2357
      %v2428 = vpack.c.bf16 %v2412, %v2404
      %v2429 = vpack.c.bf16 %v2413, %v2405
      %v2430 = vpack.c.bf16 %v2420, %v2420
      %v2431 = vpack.c.bf16 %v2421, %v2421
      %s2432 = scalar_lea.vmem %s2, 88
      %v2433 = vld [vmem:[%s2432] sm:$0xff]
      %v2434 = vpack.c.bf16 %v2433, %v2433
      %s2435 = scalar_lea.vmem %s3, 88
      %v2436 = vld [vmem:[%s2435] sm:$0xff]
      %2438 = vset.pattern.permute.xlu0 0
      %2439 = vperm.xlu0 %2438, %v2436
      %v2440 = vpop.permute.xlu0 %2439
      %v2443 = vsel %vm378, %v2434, 0
      %v2446 = vsel %vm382, %v2430, 0
      %v2449 = vsel %vm382, %v2431, 0
      %2451 = vmatpush.bf16.msra.mxu0 0
      %2452 = vmatpush.bf16.msra.mxu0 0
      %2453 = vmatpush.bf16.msra.mxu0 0
      %2454 = vmatpush.bf16.msra.mxu0 %v2446
      %2455 = vmatpush.bf16.msra.mxu0 %v2428
      %2456 = vmatpush.bf16.msra.mxu0 %v2426
      %2457 = vmatpush.bf16.msra.mxu0 %v2424
      %2458 = vmatpush.bf16.msra.mxu0 %v2422
      %2459 = vmatmul.bf16.gmra.mxu0 %v2443
      %v2460 = vpop.f32.mrf.mxu0
      %v2461 = vadd.f32 %v2440, %v2460
      %v2462 = vpop.f32.mrf.mxu0
      %2463 = vdwg.mxu0
      %2464 = vmatpush.bf16.msra.mxu0 0
      %2465 = vmatpush.bf16.msra.mxu0 0
      %2466 = vmatpush.bf16.msra.mxu0 0
      %2467 = vmatpush.bf16.msra.mxu0 %v2449
      %2468 = vmatpush.bf16.msra.mxu0 %v2429
      %2469 = vmatpush.bf16.msra.mxu0 %v2427
      %2470 = vmatpush.bf16.msra.mxu0 %v2425
      %2471 = vmatpush.bf16.msra.mxu0 %v2423
      %2472 = vmatmul.bf16.gmra.mxu0 %v2443
      %v2473 = vpop.f32.mrf.mxu0
      %v2474 = vadd.f32 %v2440, %v2473
      %v2475 = vpop.f32.mrf.mxu0
      %2476 = vdwg.mxu0
      %v2477 = vadd.f32 %v2461, %v2474
      %2478 = vadd.xlane.f32.xlu0 %v2477
      %v2479 = vpop.xlane.xlu0 %2478
      %v2480 = vmul.f32 %v2461, %v2461
      %v2481 = vmul.f32 %v2474, %v2474
      %v2482 = vadd.f32 %v2480, %v2481
      %2483 = vadd.xlane.f32.xlu0 %v2482
      %v2484 = vpop.xlane.xlu0 %2483
      %v2485 = vmul.f32 %v2479, 0.00390625
      %v2486 = vmul.f32 %v2484, 0.00390625
      %v2487 = vmul.f32 %v2485, %v2485
      %v2488 = vsub.f32 %v2486, %v2487
      %v2489 = vsub.f32 %v2461, %v2485
      %v2490 = vsub.f32 %v2474, %v2485
      %v2491 = vadd.f32 %v2488, 1e-05
      %v2492 = vrsqrt.pop %v2491
      %v2493 = vmul.f32 %v2492, %v2491
      %v2494 = vmul.f32 %v2493, %v2492
      %v2495 = vmul.f32 0.5, %v2494
      %v2496 = vsub.f32 1.5, %v2495
      %v2497 = vmul.f32 %v2492, %v2496
      %vm2498 = vweird.f32 %v2491
      %vm2499 = vweird.f32 %v2492
      %vm2500 = vmor %vm2498, %vm2499
      %v2501 = vsel %vm2500, %v2492, %v2497
      %v2502 = vmul.f32 %v2489, %v2501
      %v2503 = vmul.f32 %v2490, %v2501
      %s2504 = scalar_lea.vmem %s4, 88
      %v2505 = vld [vmem:[%s2504] sm:$0xff]
      %2507 = vset.pattern.permute.xlu0 0
      %2508 = vperm.xlu0 %2507, %v2505
      %v2509 = vpop.permute.xlu0 %2508
      %v2511 = vmul.f32 %v2502, %v2509
      %v2512 = vmul.f32 %v2503, %v2509
      %s2513 = scalar_lea.vmem %s5, 88
      %v2514 = vld [vmem:[%s2513] sm:$0xff]
      %2516 = vset.pattern.permute.xlu0 0
      %2517 = vperm.xlu0 %2516, %v2514
      %v2518 = vpop.permute.xlu0 %2517
      %v2520 = vadd.f32 %v2511, %v2518
      %v2521 = vadd.f32 %v2512, %v2518
      %v2522 = vadd.f32 %v2520, %v2186
      %v2523 = vadd.f32 %v2521, %v2187
      %vm2524 = vcmp.ge.f32.partialorder %v2522, 0.0
      %vm2525 = vcmp.ge.f32.partialorder %v2523, 0.0
      %v2526 = vmul.f32 %v2522, 0.2
      %v2527 = vmul.f32 %v2523, 0.2
      %v2528 = vsel %vm2524, %v2522, %v2526
      %v2529 = vsel %vm2525, %v2523, %v2527
      %2530 = vrot.lane.b32.xlu0 %v2528, 17
      %v2531 = vpop.permute.xlu0 %2530
      %2532 = vrot.lane.b32.xlu0 %v2529, 17
      %v2533 = vpop.permute.xlu0 %2532
      %v2534 = vsel %vm269, %v2531, %v2533
      %v2535 = vsel %vm269, %v2533, %v2531
      %v2536 = vmul.f32 %v2535, %v272
      %v2537 = vmul.f32 %v2534, %v273
      %2538 = vrot.lane.b32.xlu0 %v2528, 16
      %v2539 = vpop.permute.xlu0 %2538
      %2540 = vrot.lane.b32.xlu0 %v2529, 16
      %v2541 = vpop.permute.xlu0 %2540
      %v2542 = vsel %vm280, %v2539, %v2541
      %v2543 = vsel %vm280, %v2541, %v2539
      %v2544 = vmul.f32 %v2543, %v284
      %v2545 = vmul.f32 %v2542, %v285
      %2546 = vrot.lane.b32.xlu0 %v2528, 15
      %v2547 = vpop.permute.xlu0 %2546
      %2548 = vrot.lane.b32.xlu0 %v2529, 15
      %v2549 = vpop.permute.xlu0 %2548
      %v2550 = vsel %vm292, %v2547, %v2549
      %v2551 = vsel %vm292, %v2549, %v2547
      %v2552 = vmul.f32 %v2551, %v296
      %v2553 = vmul.f32 %v2550, %v297
      %2554 = vrot.lane.b32.xlu0 %v2528, 1
      %v2555 = vpop.permute.xlu0 %2554
      %2556 = vrot.lane.b32.xlu0 %v2529, 1
      %v2557 = vpop.permute.xlu0 %2556
      %v2558 = vsel %vm304, %v2555, %v2557
      %v2559 = vsel %vm304, %v2557, %v2555
      %v2560 = vmul.f32 %v2559, %v308
      %v2561 = vmul.f32 %v2558, %v309
      %2562 = vrot.lane.b32.xlu0 %v2528, 127
      %v2563 = vpop.permute.xlu0 %2562
      %2564 = vrot.lane.b32.xlu0 %v2529, 127
      %v2565 = vpop.permute.xlu0 %2564
      %v2566 = vsel %vm316, %v2563, %v2565
      %v2567 = vsel %vm316, %v2565, %v2563
      %v2568 = vmul.f32 %v2566, %v320
      %v2569 = vmul.f32 %v2567, %v321
      %2570 = vrot.lane.b32.xlu0 %v2528, 113
      %v2571 = vpop.permute.xlu0 %2570
      %2572 = vrot.lane.b32.xlu0 %v2529, 113
      %v2573 = vpop.permute.xlu0 %2572
      %v2574 = vsel %vm328, %v2571, %v2573
      %v2575 = vsel %vm328, %v2573, %v2571
      %v2576 = vmul.f32 %v2574, %v332
      %v2577 = vmul.f32 %v2575, %v333
      %2578 = vrot.lane.b32.xlu0 %v2528, 112
      %v2579 = vpop.permute.xlu0 %2578
      %2580 = vrot.lane.b32.xlu0 %v2529, 112
      %v2581 = vpop.permute.xlu0 %2580
      %v2582 = vsel %vm340, %v2579, %v2581
      %v2583 = vsel %vm340, %v2581, %v2579
      %v2584 = vmul.f32 %v2582, %v344
      %v2585 = vmul.f32 %v2583, %v345
      %2586 = vrot.lane.b32.xlu0 %v2528, 111
      %v2587 = vpop.permute.xlu0 %2586
      %2588 = vrot.lane.b32.xlu0 %v2529, 111
      %v2589 = vpop.permute.xlu0 %2588
      %v2590 = vsel %vm352, %v2587, %v2589
      %v2591 = vsel %vm352, %v2589, %v2587
      %v2592 = vmul.f32 %v2590, %v356
      %v2593 = vmul.f32 %v2591, %v357
      %v2594 = vpack.c.bf16 %v2544, %v2536
      %v2595 = vpack.c.bf16 %v2545, %v2537
      %v2596 = vpack.c.bf16 %v2560, %v2552
      %v2597 = vpack.c.bf16 %v2561, %v2553
      %v2598 = vpack.c.bf16 %v2568, %v2528
      %v2599 = vpack.c.bf16 %v2569, %v2529
      %v2600 = vpack.c.bf16 %v2584, %v2576
      %v2601 = vpack.c.bf16 %v2585, %v2577
      %v2602 = vpack.c.bf16 %v2592, %v2592
      %v2603 = vpack.c.bf16 %v2593, %v2593
      %s2604 = scalar_lea.vmem %s2, 96
      %v2605 = vld [vmem:[%s2604] sm:$0xff]
      %v2606 = vpack.c.bf16 %v2605, %v2605
      %s2607 = scalar_lea.vmem %s3, 96
      %v2608 = vld [vmem:[%s2607] sm:$0xff]
      %2610 = vset.pattern.permute.xlu0 0
      %2611 = vperm.xlu0 %2610, %v2608
      %v2612 = vpop.permute.xlu0 %2611
      %v2615 = vsel %vm378, %v2606, 0
      %v2618 = vsel %vm382, %v2602, 0
      %v2621 = vsel %vm382, %v2603, 0
      %2623 = vmatpush.bf16.msra.mxu0 0
      %2624 = vmatpush.bf16.msra.mxu0 0
      %2625 = vmatpush.bf16.msra.mxu0 0
      %2626 = vmatpush.bf16.msra.mxu0 %v2618
      %2627 = vmatpush.bf16.msra.mxu0 %v2600
      %2628 = vmatpush.bf16.msra.mxu0 %v2598
      %2629 = vmatpush.bf16.msra.mxu0 %v2596
      %2630 = vmatpush.bf16.msra.mxu0 %v2594
      %2631 = vmatmul.bf16.gmra.mxu0 %v2615
      %v2632 = vpop.f32.mrf.mxu0
      %v2633 = vadd.f32 %v2612, %v2632
      %v2634 = vpop.f32.mrf.mxu0
      %2635 = vdwg.mxu0
      %2636 = vmatpush.bf16.msra.mxu0 0
      %2637 = vmatpush.bf16.msra.mxu0 0
      %2638 = vmatpush.bf16.msra.mxu0 0
      %2639 = vmatpush.bf16.msra.mxu0 %v2621
      %2640 = vmatpush.bf16.msra.mxu0 %v2601
      %2641 = vmatpush.bf16.msra.mxu0 %v2599
      %2642 = vmatpush.bf16.msra.mxu0 %v2597
      %2643 = vmatpush.bf16.msra.mxu0 %v2595
      %2644 = vmatmul.bf16.gmra.mxu0 %v2615
      %v2645 = vpop.f32.mrf.mxu0
      %v2646 = vadd.f32 %v2612, %v2645
      %v2647 = vpop.f32.mrf.mxu0
      %2648 = vdwg.mxu0
      %v2649 = vadd.f32 %v2633, %v2646
      %2650 = vadd.xlane.f32.xlu0 %v2649
      %v2651 = vpop.xlane.xlu0 %2650
      %v2652 = vmul.f32 %v2633, %v2633
      %v2653 = vmul.f32 %v2646, %v2646
      %v2654 = vadd.f32 %v2652, %v2653
      %2655 = vadd.xlane.f32.xlu0 %v2654
      %v2656 = vpop.xlane.xlu0 %2655
      %v2657 = vmul.f32 %v2651, 0.00390625
      %v2658 = vmul.f32 %v2656, 0.00390625
      %v2659 = vmul.f32 %v2657, %v2657
      %v2660 = vsub.f32 %v2658, %v2659
      %v2661 = vsub.f32 %v2633, %v2657
      %v2662 = vsub.f32 %v2646, %v2657
      %v2663 = vadd.f32 %v2660, 1e-05
      %v2664 = vrsqrt.pop %v2663
      %v2665 = vmul.f32 %v2664, %v2663
      %v2666 = vmul.f32 %v2665, %v2664
      %v2667 = vmul.f32 0.5, %v2666
      %v2668 = vsub.f32 1.5, %v2667
      %v2669 = vmul.f32 %v2664, %v2668
      %vm2670 = vweird.f32 %v2663
      %vm2671 = vweird.f32 %v2664
      %vm2672 = vmor %vm2670, %vm2671
      %v2673 = vsel %vm2672, %v2664, %v2669
      %v2674 = vmul.f32 %v2661, %v2673
      %v2675 = vmul.f32 %v2662, %v2673
      %s2676 = scalar_lea.vmem %s4, 96
      %v2677 = vld [vmem:[%s2676] sm:$0xff]
      %2679 = vset.pattern.permute.xlu0 0
      %2680 = vperm.xlu0 %2679, %v2677
      %v2681 = vpop.permute.xlu0 %2680
      %v2683 = vmul.f32 %v2674, %v2681
      %v2684 = vmul.f32 %v2675, %v2681
      %s2685 = scalar_lea.vmem %s5, 96
      %v2686 = vld [vmem:[%s2685] sm:$0xff]
      %2688 = vset.pattern.permute.xlu0 0
      %2689 = vperm.xlu0 %2688, %v2686
      %v2690 = vpop.permute.xlu0 %2689
      %v2692 = vadd.f32 %v2683, %v2690
      %v2693 = vadd.f32 %v2684, %v2690
      %v2694 = vadd.f32 %v2692, %v261
      %v2695 = vadd.f32 %v2693, %v262
      %v2696 = vmul.f32 %v2694, 0.5
      %v2697 = vmul.f32 %v2695, 0.5
      %v2698 = vmul.f32 %v2694, 0.044715
      %v2699 = vmul.f32 %v2695, 0.044715
      %v2700 = vmul.f32 %v2698, %v2694
      %v2701 = vmul.f32 %v2699, %v2695
      %v2702 = vmul.f32 %v2700, %v2694
      %v2703 = vmul.f32 %v2701, %v2695
      %v2704 = vadd.f32 %v2694, %v2702
      %v2705 = vadd.f32 %v2695, %v2703
      %v2706 = vmul.f32 %v2704, 0.7978846
      %v2707 = vmul.f32 %v2705, 0.7978846
      %v2708 = vtanh.pop %v2706
      %v2709 = vtanh.pop %v2707
      %v2710 = vadd.f32 %v2708, 1.0
      %v2711 = vadd.f32 %v2709, 1.0
      %v2712 = vmul.f32 %v2696, %v2710
      %v2713 = vmul.f32 %v2697, %v2711
      %2714 = vst [vmem:[%s258] sm:$0xff] %v2712
      %2715 = vst [vmem:[%s258 + $0x8] sm:$0xff] %v2713
      %s2716 = scalar_lea.vmem %s251, 16
      %v2717 = vld [vmem:[%s2716] sm:$0xff]
      %v2718 = vld [vmem:[%s2716 + $0x8] sm:$0xff]
      %2719 = vrot.lane.b32.xlu0 %v2717, 17
      %v2720 = vpop.permute.xlu0 %2719
      %2721 = vrot.lane.b32.xlu0 %v2718, 17
      %v2722 = vpop.permute.xlu0 %2721
      %v2723 = vsel %vm269, %v2720, %v2722
      %v2724 = vsel %vm269, %v2722, %v2720
      %v2725 = vld [vmem:[%s1] sm:$0xff]
      %v2726 = vld [vmem:[%s1 + $0x8] sm:$0xff]
      %v2727 = vmul.f32 %v2724, %v2725
      %v2728 = vmul.f32 %v2723, %v2726
      %2729 = vrot.lane.b32.xlu0 %v2717, 16
      %v2730 = vpop.permute.xlu0 %2729
      %2731 = vrot.lane.b32.xlu0 %v2718, 16
      %v2732 = vpop.permute.xlu0 %2731
      %v2733 = vsel %vm280, %v2730, %v2732
      %v2734 = vsel %vm280, %v2732, %v2730
      %v2735 = vld [vmem:[%s283] sm:$0xff]
      %v2736 = vld [vmem:[%s283 + $0x8] sm:$0xff]
      %v2737 = vmul.f32 %v2734, %v2735
      %v2738 = vmul.f32 %v2733, %v2736
      %2739 = vrot.lane.b32.xlu0 %v2717, 15
      %v2740 = vpop.permute.xlu0 %2739
      %2741 = vrot.lane.b32.xlu0 %v2718, 15
      %v2742 = vpop.permute.xlu0 %2741
      %v2743 = vsel %vm292, %v2740, %v2742
      %v2744 = vsel %vm292, %v2742, %v2740
      %v2745 = vld [vmem:[%s295] sm:$0xff]
      %v2746 = vld [vmem:[%s295 + $0x8] sm:$0xff]
      %v2747 = vmul.f32 %v2744, %v2745
      %v2748 = vmul.f32 %v2743, %v2746
      %2749 = vrot.lane.b32.xlu0 %v2717, 1
      %v2750 = vpop.permute.xlu0 %2749
      %2751 = vrot.lane.b32.xlu0 %v2718, 1
      %v2752 = vpop.permute.xlu0 %2751
      %v2753 = vsel %vm304, %v2750, %v2752
      %v2754 = vsel %vm304, %v2752, %v2750
      %v2755 = vld [vmem:[%s307] sm:$0xff]
      %v2756 = vld [vmem:[%s307 + $0x8] sm:$0xff]
      %v2757 = vmul.f32 %v2754, %v2755
      %v2758 = vmul.f32 %v2753, %v2756
      %2759 = vrot.lane.b32.xlu0 %v2717, 127
      %v2760 = vpop.permute.xlu0 %2759
      %2761 = vrot.lane.b32.xlu0 %v2718, 127
      %v2762 = vpop.permute.xlu0 %2761
      %v2763 = vsel %vm316, %v2760, %v2762
      %v2764 = vsel %vm316, %v2762, %v2760
      %v2765 = vld [vmem:[%s319] sm:$0xff]
      %v2766 = vld [vmem:[%s319 + $0x8] sm:$0xff]
      %v2767 = vmul.f32 %v2763, %v2765
      %v2768 = vmul.f32 %v2764, %v2766
      %2769 = vrot.lane.b32.xlu0 %v2717, 113
      %v2770 = vpop.permute.xlu0 %2769
      %2771 = vrot.lane.b32.xlu0 %v2718, 113
      %v2772 = vpop.permute.xlu0 %2771
      %v2773 = vsel %vm328, %v2770, %v2772
      %v2774 = vsel %vm328, %v2772, %v2770
      %v2775 = vld [vmem:[%s331] sm:$0xff]
      %v2776 = vld [vmem:[%s331 + $0x8] sm:$0xff]
      %v2777 = vmul.f32 %v2773, %v2775
      %v2778 = vmul.f32 %v2774, %v2776
      %2779 = vrot.lane.b32.xlu0 %v2717, 112
      %v2780 = vpop.permute.xlu0 %2779
      %2781 = vrot.lane.b32.xlu0 %v2718, 112
      %v2782 = vpop.permute.xlu0 %2781
      %v2783 = vsel %vm340, %v2780, %v2782
      %v2784 = vsel %vm340, %v2782, %v2780
      %v2785 = vld [vmem:[%s343] sm:$0xff]
      %v2786 = vld [vmem:[%s343 + $0x8] sm:$0xff]
      %v2787 = vmul.f32 %v2783, %v2785
      %v2788 = vmul.f32 %v2784, %v2786
      %2789 = vrot.lane.b32.xlu0 %v2717, 111
      %v2790 = vpop.permute.xlu0 %2789
      %2791 = vrot.lane.b32.xlu0 %v2718, 111
      %v2792 = vpop.permute.xlu0 %2791
      %v2793 = vsel %vm352, %v2790, %v2792
      %v2794 = vsel %vm352, %v2792, %v2790
      %v2795 = vld [vmem:[%s355] sm:$0xff]
      %v2796 = vld [vmem:[%s355 + $0x8] sm:$0xff]
      %v2797 = vmul.f32 %v2793, %v2795
      %v2798 = vmul.f32 %v2794, %v2796
      %v2799 = vpack.c.bf16 %v2737, %v2727
      %v2800 = vpack.c.bf16 %v2738, %v2728
      %v2801 = vpack.c.bf16 %v2757, %v2747
      %v2802 = vpack.c.bf16 %v2758, %v2748
      %v2803 = vpack.c.bf16 %v2767, %v2717
      %v2804 = vpack.c.bf16 %v2768, %v2718
      %v2805 = vpack.c.bf16 %v2787, %v2777
      %v2806 = vpack.c.bf16 %v2788, %v2778
      %v2807 = vpack.c.bf16 %v2797, %v2797
      %v2808 = vpack.c.bf16 %v2798, %v2798
      %v2809 = vld [vmem:[%s2] sm:$0xff]
      %v2810 = vpack.c.bf16 %v2809, %v2809
      %v2811 = vld [vmem:[%s3] sm:$0xff]
      %2813 = vset.pattern.permute.xlu0 0
      %2814 = vperm.xlu0 %2813, %v2811
      %v2815 = vpop.permute.xlu0 %2814
      %v2818 = vsel %vm378, %v2810, 0
      %v2821 = vsel %vm382, %v2807, 0
      %v2824 = vsel %vm382, %v2808, 0
      %2826 = vmatpush.bf16.msra.mxu0 0
      %2827 = vmatpush.bf16.msra.mxu0 0
      %2828 = vmatpush.bf16.msra.mxu0 0
      %2829 = vmatpush.bf16.msra.mxu0 %v2821
      %2830 = vmatpush.bf16.msra.mxu0 %v2805
      %2831 = vmatpush.bf16.msra.mxu0 %v2803
      %2832 = vmatpush.bf16.msra.mxu0 %v2801
      %2833 = vmatpush.bf16.msra.mxu0 %v2799
      %2834 = vmatmul.bf16.gmra.mxu0 %v2818
      %v2835 = vpop.f32.mrf.mxu0
      %v2836 = vadd.f32 %v2815, %v2835
      %v2837 = vpop.f32.mrf.mxu0
      %2838 = vdwg.mxu0
      %2839 = vmatpush.bf16.msra.mxu0 0
      %2840 = vmatpush.bf16.msra.mxu0 0
      %2841 = vmatpush.bf16.msra.mxu0 0
      %2842 = vmatpush.bf16.msra.mxu0 %v2824
      %2843 = vmatpush.bf16.msra.mxu0 %v2806
      %2844 = vmatpush.bf16.msra.mxu0 %v2804
      %2845 = vmatpush.bf16.msra.mxu0 %v2802
      %2846 = vmatpush.bf16.msra.mxu0 %v2800
      %2847 = vmatmul.bf16.gmra.mxu0 %v2818
      %v2848 = vpop.f32.mrf.mxu0
      %v2849 = vadd.f32 %v2815, %v2848
      %v2850 = vpop.f32.mrf.mxu0
      %2851 = vdwg.mxu0
      %v2852 = vadd.f32 %v2836, %v2849
      %2853 = vadd.xlane.f32.xlu0 %v2852
      %v2854 = vpop.xlane.xlu0 %2853
      %v2855 = vmul.f32 %v2836, %v2836
      %v2856 = vmul.f32 %v2849, %v2849
      %v2857 = vadd.f32 %v2855, %v2856
      %2858 = vadd.xlane.f32.xlu0 %v2857
      %v2859 = vpop.xlane.xlu0 %2858
      %v2860 = vmul.f32 %v2854, 0.00390625
      %v2861 = vmul.f32 %v2859, 0.00390625
      %v2862 = vmul.f32 %v2860, %v2860
      %v2863 = vsub.f32 %v2861, %v2862
      %v2864 = vsub.f32 %v2836, %v2860
      %v2865 = vsub.f32 %v2849, %v2860
      %v2866 = vadd.f32 %v2863, 1e-05
      %v2867 = vrsqrt.pop %v2866
      %v2868 = vmul.f32 %v2867, %v2866
      %v2869 = vmul.f32 %v2868, %v2867
      %v2870 = vmul.f32 0.5, %v2869
      %v2871 = vsub.f32 1.5, %v2870
      %v2872 = vmul.f32 %v2867, %v2871
      %vm2873 = vweird.f32 %v2866
      %vm2874 = vweird.f32 %v2867
      %vm2875 = vmor %vm2873, %vm2874
      %v2876 = vsel %vm2875, %v2867, %v2872
      %v2877 = vmul.f32 %v2864, %v2876
      %v2878 = vmul.f32 %v2865, %v2876
      %v2879 = vld [vmem:[%s4] sm:$0xff]
      %2881 = vset.pattern.permute.xlu0 0
      %2882 = vperm.xlu0 %2881, %v2879
      %v2883 = vpop.permute.xlu0 %2882
      %v2885 = vmul.f32 %v2877, %v2883
      %v2886 = vmul.f32 %v2878, %v2883
      %v2887 = vld [vmem:[%s5] sm:$0xff]
      %2889 = vset.pattern.permute.xlu0 0
      %2890 = vperm.xlu0 %2889, %v2887
      %v2891 = vpop.permute.xlu0 %2890
      %v2893 = vadd.f32 %v2885, %v2891
      %v2894 = vadd.f32 %v2886, %v2891
      %v2895 = vmul.f32 %v2893, 0.5
      %v2896 = vmul.f32 %v2894, 0.5
      %v2897 = vmul.f32 %v2893, 0.044715
      %v2898 = vmul.f32 %v2894, 0.044715
      %v2899 = vmul.f32 %v2897, %v2893
      %v2900 = vmul.f32 %v2898, %v2894
      %v2901 = vmul.f32 %v2899, %v2893
      %v2902 = vmul.f32 %v2900, %v2894
      %v2903 = vadd.f32 %v2893, %v2901
      %v2904 = vadd.f32 %v2894, %v2902
      %v2905 = vmul.f32 %v2903, 0.7978846
      %v2906 = vmul.f32 %v2904, 0.7978846
      %v2907 = vtanh.pop %v2905
      %v2908 = vtanh.pop %v2906
      %v2909 = vadd.f32 %v2907, 1.0
      %v2910 = vadd.f32 %v2908, 1.0
      %v2911 = vmul.f32 %v2895, %v2909
      %v2912 = vmul.f32 %v2896, %v2910
      %2913 = vrot.lane.b32.xlu0 %v2911, 17
      %v2914 = vpop.permute.xlu0 %2913
      %2915 = vrot.lane.b32.xlu0 %v2912, 17
      %v2916 = vpop.permute.xlu0 %2915
      %v2917 = vsel %vm269, %v2914, %v2916
      %v2918 = vsel %vm269, %v2916, %v2914
      %v2919 = vmul.f32 %v2918, %v2725
      %v2920 = vmul.f32 %v2917, %v2726
      %2921 = vrot.lane.b32.xlu0 %v2911, 16
      %v2922 = vpop.permute.xlu0 %2921
      %2923 = vrot.lane.b32.xlu0 %v2912, 16
      %v2924 = vpop.permute.xlu0 %2923
      %v2925 = vsel %vm280, %v2922, %v2924
      %v2926 = vsel %vm280, %v2924, %v2922
      %v2927 = vmul.f32 %v2926, %v2735
      %v2928 = vmul.f32 %v2925, %v2736
      %2929 = vrot.lane.b32.xlu0 %v2911, 15
      %v2930 = vpop.permute.xlu0 %2929
      %2931 = vrot.lane.b32.xlu0 %v2912, 15
      %v2932 = vpop.permute.xlu0 %2931
      %v2933 = vsel %vm292, %v2930, %v2932
      %v2934 = vsel %vm292, %v2932, %v2930
      %v2935 = vmul.f32 %v2934, %v2745
      %v2936 = vmul.f32 %v2933, %v2746
      %2937 = vrot.lane.b32.xlu0 %v2911, 1
      %v2938 = vpop.permute.xlu0 %2937
      %2939 = vrot.lane.b32.xlu0 %v2912, 1
      %v2940 = vpop.permute.xlu0 %2939
      %v2941 = vsel %vm304, %v2938, %v2940
      %v2942 = vsel %vm304, %v2940, %v2938
      %v2943 = vmul.f32 %v2942, %v2755
      %v2944 = vmul.f32 %v2941, %v2756
      %2945 = vrot.lane.b32.xlu0 %v2911, 127
      %v2946 = vpop.permute.xlu0 %2945
      %2947 = vrot.lane.b32.xlu0 %v2912, 127
      %v2948 = vpop.permute.xlu0 %2947
      %v2949 = vsel %vm316, %v2946, %v2948
      %v2950 = vsel %vm316, %v2948, %v2946
      %v2951 = vmul.f32 %v2949, %v2765
      %v2952 = vmul.f32 %v2950, %v2766
      %2953 = vrot.lane.b32.xlu0 %v2911, 113
      %v2954 = vpop.permute.xlu0 %2953
      %2955 = vrot.lane.b32.xlu0 %v2912, 113
      %v2956 = vpop.permute.xlu0 %2955
      %v2957 = vsel %vm328, %v2954, %v2956
      %v2958 = vsel %vm328, %v2956, %v2954
      %v2959 = vmul.f32 %v2957, %v2775
      %v2960 = vmul.f32 %v2958, %v2776
      %2961 = vrot.lane.b32.xlu0 %v2911, 112
      %v2962 = vpop.permute.xlu0 %2961
      %2963 = vrot.lane.b32.xlu0 %v2912, 112
      %v2964 = vpop.permute.xlu0 %2963
      %v2965 = vsel %vm340, %v2962, %v2964
      %v2966 = vsel %vm340, %v2964, %v2962
      %v2967 = vmul.f32 %v2965, %v2785
      %v2968 = vmul.f32 %v2966, %v2786
      %2969 = vrot.lane.b32.xlu0 %v2911, 111
      %v2970 = vpop.permute.xlu0 %2969
      %2971 = vrot.lane.b32.xlu0 %v2912, 111
      %v2972 = vpop.permute.xlu0 %2971
      %v2973 = vsel %vm352, %v2970, %v2972
      %v2974 = vsel %vm352, %v2972, %v2970
      %v2975 = vmul.f32 %v2973, %v2795
      %v2976 = vmul.f32 %v2974, %v2796
      %v2977 = vpack.c.bf16 %v2927, %v2919
      %v2978 = vpack.c.bf16 %v2928, %v2920
      %v2979 = vpack.c.bf16 %v2943, %v2935
      %v2980 = vpack.c.bf16 %v2944, %v2936
      %v2981 = vpack.c.bf16 %v2951, %v2911
      %v2982 = vpack.c.bf16 %v2952, %v2912
      %v2983 = vpack.c.bf16 %v2967, %v2959
      %v2984 = vpack.c.bf16 %v2968, %v2960
      %v2985 = vpack.c.bf16 %v2975, %v2975
      %v2986 = vpack.c.bf16 %v2976, %v2976
      %v2987 = vld [vmem:[%s550] sm:$0xff]
      %v2988 = vpack.c.bf16 %v2987, %v2987
      %v2989 = vld [vmem:[%s553] sm:$0xff]
      %2991 = vset.pattern.permute.xlu0 0
      %2992 = vperm.xlu0 %2991, %v2989
      %v2993 = vpop.permute.xlu0 %2992
      %v2996 = vsel %vm378, %v2988, 0
      %v2999 = vsel %vm382, %v2985, 0
      %v3002 = vsel %vm382, %v2986, 0
      %3004 = vmatpush.bf16.msra.mxu0 0
      %3005 = vmatpush.bf16.msra.mxu0 0
      %3006 = vmatpush.bf16.msra.mxu0 0
      %3007 = vmatpush.bf16.msra.mxu0 %v2999
      %3008 = vmatpush.bf16.msra.mxu0 %v2983
      %3009 = vmatpush.bf16.msra.mxu0 %v2981
      %3010 = vmatpush.bf16.msra.mxu0 %v2979
      %3011 = vmatpush.bf16.msra.mxu0 %v2977
      %3012 = vmatmul.bf16.gmra.mxu0 %v2996
      %v3013 = vpop.f32.mrf.mxu0
      %v3014 = vadd.f32 %v2993, %v3013
      %v3015 = vpop.f32.mrf.mxu0
      %3016 = vdwg.mxu0
      %3017 = vmatpush.bf16.msra.mxu0 0
      %3018 = vmatpush.bf16.msra.mxu0 0
      %3019 = vmatpush.bf16.msra.mxu0 0
      %3020 = vmatpush.bf16.msra.mxu0 %v3002
      %3021 = vmatpush.bf16.msra.mxu0 %v2984
      %3022 = vmatpush.bf16.msra.mxu0 %v2982
      %3023 = vmatpush.bf16.msra.mxu0 %v2980
      %3024 = vmatpush.bf16.msra.mxu0 %v2978
      %3025 = vmatmul.bf16.gmra.mxu0 %v2996
      %v3026 = vpop.f32.mrf.mxu0
      %v3027 = vadd.f32 %v2993, %v3026
      %v3028 = vpop.f32.mrf.mxu0
      %3029 = vdwg.mxu0
      %v3030 = vadd.f32 %v3014, %v3027
      %3031 = vadd.xlane.f32.xlu0 %v3030
      %v3032 = vpop.xlane.xlu0 %3031
      %v3033 = vmul.f32 %v3014, %v3014
      %v3034 = vmul.f32 %v3027, %v3027
      %v3035 = vadd.f32 %v3033, %v3034
      %3036 = vadd.xlane.f32.xlu0 %v3035
      %v3037 = vpop.xlane.xlu0 %3036
      %v3038 = vmul.f32 %v3032, 0.00390625
      %v3039 = vmul.f32 %v3037, 0.00390625
      %v3040 = vmul.f32 %v3038, %v3038
      %v3041 = vsub.f32 %v3039, %v3040
      %v3042 = vsub.f32 %v3014, %v3038
      %v3043 = vsub.f32 %v3027, %v3038
      %v3044 = vadd.f32 %v3041, 1e-05
      %v3045 = vrsqrt.pop %v3044
      %v3046 = vmul.f32 %v3045, %v3044
      %v3047 = vmul.f32 %v3046, %v3045
      %v3048 = vmul.f32 0.5, %v3047
      %v3049 = vsub.f32 1.5, %v3048
      %v3050 = vmul.f32 %v3045, %v3049
      %vm3051 = vweird.f32 %v3044
      %vm3052 = vweird.f32 %v3045
      %vm3053 = vmor %vm3051, %vm3052
      %v3054 = vsel %vm3053, %v3045, %v3050
      %v3055 = vmul.f32 %v3042, %v3054
      %v3056 = vmul.f32 %v3043, %v3054
      %v3057 = vld [vmem:[%s622] sm:$0xff]
      %3059 = vset.pattern.permute.xlu0 0
      %3060 = vperm.xlu0 %3059, %v3057
      %v3061 = vpop.permute.xlu0 %3060
      %v3063 = vmul.f32 %v3055, %v3061
      %v3064 = vmul.f32 %v3056, %v3061
      %v3065 = vld [vmem:[%s631] sm:$0xff]
      %3067 = vset.pattern.permute.xlu0 0
      %3068 = vperm.xlu0 %3067, %v3065
      %v3069 = vpop.permute.xlu0 %3068
      %v3071 = vadd.f32 %v3063, %v3069
      %v3072 = vadd.f32 %v3064, %v3069
      %v3073 = vadd.f32 %v3071, %v2717
      %v3074 = vadd.f32 %v3072, %v2718
      %v3075 = vmul.f32 %v3073, 0.5
      %v3076 = vmul.f32 %v3074, 0.5
      %v3077 = vmul.f32 %v3073, 0.044715
      %v3078 = vmul.f32 %v3074, 0.044715
      %v3079 = vmul.f32 %v3077, %v3073
      %v3080 = vmul.f32 %v3078, %v3074
      %v3081 = vmul.f32 %v3079, %v3073
      %v3082 = vmul.f32 %v3080, %v3074
      %v3083 = vadd.f32 %v3073, %v3081
      %v3084 = vadd.f32 %v3074, %v3082
      %v3085 = vmul.f32 %v3083, 0.7978846
      %v3086 = vmul.f32 %v3084, 0.7978846
      %v3087 = vtanh.pop %v3085
      %v3088 = vtanh.pop %v3086
      %v3089 = vadd.f32 %v3087, 1.0
      %v3090 = vadd.f32 %v3088, 1.0
      %v3091 = vmul.f32 %v3075, %v3089
      %v3092 = vmul.f32 %v3076, %v3090
      %3093 = vrot.lane.b32.xlu0 %v3091, 17
      %v3094 = vpop.permute.xlu0 %3093
      %3095 = vrot.lane.b32.xlu0 %v3092, 17
      %v3096 = vpop.permute.xlu0 %3095
      %v3097 = vsel %vm269, %v3094, %v3096
      %v3098 = vsel %vm269, %v3096, %v3094
      %v3099 = vmul.f32 %v3098, %v2725
      %v3100 = vmul.f32 %v3097, %v2726
      %3101 = vrot.lane.b32.xlu0 %v3091, 16
      %v3102 = vpop.permute.xlu0 %3101
      %3103 = vrot.lane.b32.xlu0 %v3092, 16
      %v3104 = vpop.permute.xlu0 %3103
      %v3105 = vsel %vm280, %v3102, %v3104
      %v3106 = vsel %vm280, %v3104, %v3102
      %v3107 = vmul.f32 %v3106, %v2735
      %v3108 = vmul.f32 %v3105, %v2736
      %3109 = vrot.lane.b32.xlu0 %v3091, 15
      %v3110 = vpop.permute.xlu0 %3109
      %3111 = vrot.lane.b32.xlu0 %v3092, 15
      %v3112 = vpop.permute.xlu0 %3111
      %v3113 = vsel %vm292, %v3110, %v3112
      %v3114 = vsel %vm292, %v3112, %v3110
      %v3115 = vmul.f32 %v3114, %v2745
      %v3116 = vmul.f32 %v3113, %v2746
      %3117 = vrot.lane.b32.xlu0 %v3091, 1
      %v3118 = vpop.permute.xlu0 %3117
      %3119 = vrot.lane.b32.xlu0 %v3092, 1
      %v3120 = vpop.permute.xlu0 %3119
      %v3121 = vsel %vm304, %v3118, %v3120
      %v3122 = vsel %vm304, %v3120, %v3118
      %v3123 = vmul.f32 %v3122, %v2755
      %v3124 = vmul.f32 %v3121, %v2756
      %3125 = vrot.lane.b32.xlu0 %v3091, 127
      %v3126 = vpop.permute.xlu0 %3125
      %3127 = vrot.lane.b32.xlu0 %v3092, 127
      %v3128 = vpop.permute.xlu0 %3127
      %v3129 = vsel %vm316, %v3126, %v3128
      %v3130 = vsel %vm316, %v3128, %v3126
      %v3131 = vmul.f32 %v3129, %v2765
      %v3132 = vmul.f32 %v3130, %v2766
      %3133 = vrot.lane.b32.xlu0 %v3091, 113
      %v3134 = vpop.permute.xlu0 %3133
      %3135 = vrot.lane.b32.xlu0 %v3092, 113
      %v3136 = vpop.permute.xlu0 %3135
      %v3137 = vsel %vm328, %v3134, %v3136
      %v3138 = vsel %vm328, %v3136, %v3134
      %v3139 = vmul.f32 %v3137, %v2775
      %v3140 = vmul.f32 %v3138, %v2776
      %3141 = vrot.lane.b32.xlu0 %v3091, 112
      %v3142 = vpop.permute.xlu0 %3141
      %3143 = vrot.lane.b32.xlu0 %v3092, 112
      %v3144 = vpop.permute.xlu0 %3143
      %v3145 = vsel %vm340, %v3142, %v3144
      %v3146 = vsel %vm340, %v3144, %v3142
      %v3147 = vmul.f32 %v3145, %v2785
      %v3148 = vmul.f32 %v3146, %v2786
      %3149 = vrot.lane.b32.xlu0 %v3091, 111
      %v3150 = vpop.permute.xlu0 %3149
      %3151 = vrot.lane.b32.xlu0 %v3092, 111
      %v3152 = vpop.permute.xlu0 %3151
      %v3153 = vsel %vm352, %v3150, %v3152
      %v3154 = vsel %vm352, %v3152, %v3150
      %v3155 = vmul.f32 %v3153, %v2795
      %v3156 = vmul.f32 %v3154, %v2796
      %v3157 = vpack.c.bf16 %v3107, %v3099
      %v3158 = vpack.c.bf16 %v3108, %v3100
      %v3159 = vpack.c.bf16 %v3123, %v3115
      %v3160 = vpack.c.bf16 %v3124, %v3116
      %v3161 = vpack.c.bf16 %v3131, %v3091
      %v3162 = vpack.c.bf16 %v3132, %v3092
      %v3163 = vpack.c.bf16 %v3147, %v3139
      %v3164 = vpack.c.bf16 %v3148, %v3140
      %v3165 = vpack.c.bf16 %v3155, %v3155
      %v3166 = vpack.c.bf16 %v3156, %v3156
      %v3167 = vld [vmem:[%s734] sm:$0xff]
      %v3168 = vpack.c.bf16 %v3167, %v3167
      %v3169 = vld [vmem:[%s737] sm:$0xff]
      %3171 = vset.pattern.permute.xlu0 0
      %3172 = vperm.xlu0 %3171, %v3169
      %v3173 = vpop.permute.xlu0 %3172
      %v3176 = vsel %vm378, %v3168, 0
      %v3179 = vsel %vm382, %v3165, 0
      %v3182 = vsel %vm382, %v3166, 0
      %3184 = vmatpush.bf16.msra.mxu0 0
      %3185 = vmatpush.bf16.msra.mxu0 0
      %3186 = vmatpush.bf16.msra.mxu0 0
      %3187 = vmatpush.bf16.msra.mxu0 %v3179
      %3188 = vmatpush.bf16.msra.mxu0 %v3163
      %3189 = vmatpush.bf16.msra.mxu0 %v3161
      %3190 = vmatpush.bf16.msra.mxu0 %v3159
      %3191 = vmatpush.bf16.msra.mxu0 %v3157
      %3192 = vmatmul.bf16.gmra.mxu0 %v3176
      %v3193 = vpop.f32.mrf.mxu0
      %v3194 = vadd.f32 %v3173, %v3193
      %v3195 = vpop.f32.mrf.mxu0
      %3196 = vdwg.mxu0
      %3197 = vmatpush.bf16.msra.mxu0 0
      %3198 = vmatpush.bf16.msra.mxu0 0
      %3199 = vmatpush.bf16.msra.mxu0 0
      %3200 = vmatpush.bf16.msra.mxu0 %v3182
      %3201 = vmatpush.bf16.msra.mxu0 %v3164
      %3202 = vmatpush.bf16.msra.mxu0 %v3162
      %3203 = vmatpush.bf16.msra.mxu0 %v3160
      %3204 = vmatpush.bf16.msra.mxu0 %v3158
      %3205 = vmatmul.bf16.gmra.mxu0 %v3176
      %v3206 = vpop.f32.mrf.mxu0
      %v3207 = vadd.f32 %v3173, %v3206
      %v3208 = vpop.f32.mrf.mxu0
      %3209 = vdwg.mxu0
      %v3210 = vadd.f32 %v3194, %v3207
      %3211 = vadd.xlane.f32.xlu0 %v3210
      %v3212 = vpop.xlane.xlu0 %3211
      %v3213 = vmul.f32 %v3194, %v3194
      %v3214 = vmul.f32 %v3207, %v3207
      %v3215 = vadd.f32 %v3213, %v3214
      %3216 = vadd.xlane.f32.xlu0 %v3215
      %v3217 = vpop.xlane.xlu0 %3216
      %v3218 = vmul.f32 %v3212, 0.00390625
      %v3219 = vmul.f32 %v3217, 0.00390625
      %v3220 = vmul.f32 %v3218, %v3218
      %v3221 = vsub.f32 %v3219, %v3220
      %v3222 = vsub.f32 %v3194, %v3218
      %v3223 = vsub.f32 %v3207, %v3218
      %v3224 = vadd.f32 %v3221, 1e-05
      %v3225 = vrsqrt.pop %v3224
      %v3226 = vmul.f32 %v3225, %v3224
      %v3227 = vmul.f32 %v3226, %v3225
      %v3228 = vmul.f32 0.5, %v3227
      %v3229 = vsub.f32 1.5, %v3228
      %v3230 = vmul.f32 %v3225, %v3229
      %vm3231 = vweird.f32 %v3224
      %vm3232 = vweird.f32 %v3225
      %vm3233 = vmor %vm3231, %vm3232
      %v3234 = vsel %vm3233, %v3225, %v3230
      %v3235 = vmul.f32 %v3222, %v3234
      %v3236 = vmul.f32 %v3223, %v3234
      %v3237 = vld [vmem:[%s806] sm:$0xff]
      %3239 = vset.pattern.permute.xlu0 0
      %3240 = vperm.xlu0 %3239, %v3237
      %v3241 = vpop.permute.xlu0 %3240
      %v3243 = vmul.f32 %v3235, %v3241
      %v3244 = vmul.f32 %v3236, %v3241
      %v3245 = vld [vmem:[%s815] sm:$0xff]
      %3247 = vset.pattern.permute.xlu0 0
      %3248 = vperm.xlu0 %3247, %v3245
      %v3249 = vpop.permute.xlu0 %3248
      %v3251 = vadd.f32 %v3243, %v3249
      %v3252 = vadd.f32 %v3244, %v3249
      %v3253 = vxor.u32 %v3251, 2147483648
      %v3254 = vxor.u32 %v3252, 2147483648
      %v3255 = vmul.f32 %v3253, 1.442695
      %v3256 = vpow.pop %v3255
      %v3257 = vmul.f32 %v3254, 1.442695
      %v3258 = vpow.pop %v3257
      %v3259 = vadd.f32 %v3256, 1.0
      %v3260 = vadd.f32 %v3258, 1.0
      %v3261 = vrcp.pop %v3259
      %v3262 = vmul.f32 %v3259, %v3261
      %v3263 = vsub.f32 1.0, %v3262
      %v3264 = vmul.f32 %v3261, %v3263
      %v3265 = vadd.f32 %v3261, %v3264
      %vm3266 = vweird.f32 %v3259
      %vm3267 = vweird.f32 %v3261
      %vm3268 = vmor %vm3266, %vm3267
      %v3269 = vsel %vm3268, %v3261, %v3265
      %v3270 = vand.u32 2147483647, %v3259
      %vm3271 = vcmp.eq.f32.partialorder %v3270, 8.507059e+37
      %v3272 = vand.u32 %v3259, 2147483648
      %v3273 = vor.u32 1.1754944e-38, %v3272
      %v3274 = vsel %vm3271, %v3273, %v3269
      %v3275 = vmul.f32 1.0, %v3274
      %v3276 = vrcp.pop %v3260
      %v3277 = vmul.f32 %v3260, %v3276
      %v3278 = vsub.f32 1.0, %v3277
      %v3279 = vmul.f32 %v3276, %v3278
      %v3280 = vadd.f32 %v3276, %v3279
      %vm3281 = vweird.f32 %v3260
      %vm3282 = vweird.f32 %v3276
      %vm3283 = vmor %vm3281, %vm3282
      %v3284 = vsel %vm3283, %v3276, %v3280
      %v3285 = vand.u32 2147483647, %v3260
      %vm3286 = vcmp.eq.f32.partialorder %v3285, 8.507059e+37
      %v3287 = vand.u32 %v3260, 2147483648
      %v3288 = vor.u32 1.1754944e-38, %v3287
      %v3289 = vsel %vm3286, %v3288, %v3284
      %v3290 = vmul.f32 1.0, %v3289
      %v3291 = vmul.f32 %v3251, %v3275
      %v3292 = vmul.f32 %v3252, %v3290
      %3293 = vrot.lane.b32.xlu0 %v3291, 17
      %v3294 = vpop.permute.xlu0 %3293
      %3295 = vrot.lane.b32.xlu0 %v3292, 17
      %v3296 = vpop.permute.xlu0 %3295
      %v3297 = vsel %vm269, %v3294, %v3296
      %v3298 = vsel %vm269, %v3296, %v3294
      %v3299 = vmul.f32 %v3298, %v2725
      %v3300 = vmul.f32 %v3297, %v2726
      %3301 = vrot.lane.b32.xlu0 %v3291, 16
      %v3302 = vpop.permute.xlu0 %3301
      %3303 = vrot.lane.b32.xlu0 %v3292, 16
      %v3304 = vpop.permute.xlu0 %3303
      %v3305 = vsel %vm280, %v3302, %v3304
      %v3306 = vsel %vm280, %v3304, %v3302
      %v3307 = vmul.f32 %v3306, %v2735
      %v3308 = vmul.f32 %v3305, %v2736
      %3309 = vrot.lane.b32.xlu0 %v3291, 15
      %v3310 = vpop.permute.xlu0 %3309
      %3311 = vrot.lane.b32.xlu0 %v3292, 15
      %v3312 = vpop.permute.xlu0 %3311
      %v3313 = vsel %vm292, %v3310, %v3312
      %v3314 = vsel %vm292, %v3312, %v3310
      %v3315 = vmul.f32 %v3314, %v2745
      %v3316 = vmul.f32 %v3313, %v2746
      %3317 = vrot.lane.b32.xlu0 %v3291, 1
      %v3318 = vpop.permute.xlu0 %3317
      %3319 = vrot.lane.b32.xlu0 %v3292, 1
      %v3320 = vpop.permute.xlu0 %3319
      %v3321 = vsel %vm304, %v3318, %v3320
      %v3322 = vsel %vm304, %v3320, %v3318
      %v3323 = vmul.f32 %v3322, %v2755
      %v3324 = vmul.f32 %v3321, %v2756
      %3325 = vrot.lane.b32.xlu0 %v3291, 127
      %v3326 = vpop.permute.xlu0 %3325
      %3327 = vrot.lane.b32.xlu0 %v3292, 127
      %v3328 = vpop.permute.xlu0 %3327
      %v3329 = vsel %vm316, %v3326, %v3328
      %v3330 = vsel %vm316, %v3328, %v3326
      %v3331 = vmul.f32 %v3329, %v2765
      %v3332 = vmul.f32 %v3330, %v2766
      %3333 = vrot.lane.b32.xlu0 %v3291, 113
      %v3334 = vpop.permute.xlu0 %3333
      %3335 = vrot.lane.b32.xlu0 %v3292, 113
      %v3336 = vpop.permute.xlu0 %3335
      %v3337 = vsel %vm328, %v3334, %v3336
      %v3338 = vsel %vm328, %v3336, %v3334
      %v3339 = vmul.f32 %v3337, %v2775
      %v3340 = vmul.f32 %v3338, %v2776
      %3341 = vrot.lane.b32.xlu0 %v3291, 112
      %v3342 = vpop.permute.xlu0 %3341
      %3343 = vrot.lane.b32.xlu0 %v3292, 112
      %v3344 = vpop.permute.xlu0 %3343
      %v3345 = vsel %vm340, %v3342, %v3344
      %v3346 = vsel %vm340, %v3344, %v3342
      %v3347 = vmul.f32 %v3345, %v2785
      %v3348 = vmul.f32 %v3346, %v2786
      %3349 = vrot.lane.b32.xlu0 %v3291, 111
      %v3350 = vpop.permute.xlu0 %3349
      %3351 = vrot.lane.b32.xlu0 %v3292, 111
      %v3352 = vpop.permute.xlu0 %3351
      %v3353 = vsel %vm352, %v3350, %v3352
      %v3354 = vsel %vm352, %v3352, %v3350
      %v3355 = vmul.f32 %v3353, %v2795
      %v3356 = vmul.f32 %v3354, %v2796
      %v3357 = vpack.c.bf16 %v3307, %v3299
      %v3358 = vpack.c.bf16 %v3308, %v3300
      %v3359 = vpack.c.bf16 %v3323, %v3315
      %v3360 = vpack.c.bf16 %v3324, %v3316
      %v3361 = vpack.c.bf16 %v3331, %v3291
      %v3362 = vpack.c.bf16 %v3332, %v3292
      %v3363 = vpack.c.bf16 %v3347, %v3339
      %v3364 = vpack.c.bf16 %v3348, %v3340
      %v3365 = vpack.c.bf16 %v3355, %v3355
      %v3366 = vpack.c.bf16 %v3356, %v3356
      %v3367 = vld [vmem:[%s938] sm:$0xff]
      %v3368 = vpack.c.bf16 %v3367, %v3367
      %v3369 = vld [vmem:[%s941] sm:$0xff]
      %3371 = vset.pattern.permute.xlu0 0
      %3372 = vperm.xlu0 %3371, %v3369
      %v3373 = vpop.permute.xlu0 %3372
      %v3376 = vsel %vm378, %v3368, 0
      %v3379 = vsel %vm382, %v3365, 0
      %v3382 = vsel %vm382, %v3366, 0
      %3384 = vmatpush.bf16.msra.mxu0 0
      %3385 = vmatpush.bf16.msra.mxu0 0
      %3386 = vmatpush.bf16.msra.mxu0 0
      %3387 = vmatpush.bf16.msra.mxu0 %v3379
      %3388 = vmatpush.bf16.msra.mxu0 %v3363
      %3389 = vmatpush.bf16.msra.mxu0 %v3361
      %3390 = vmatpush.bf16.msra.mxu0 %v3359
      %3391 = vmatpush.bf16.msra.mxu0 %v3357
      %3392 = vmatmul.bf16.gmra.mxu0 %v3376
      %v3393 = vpop.f32.mrf.mxu0
      %v3394 = vadd.f32 %v3373, %v3393
      %v3395 = vpop.f32.mrf.mxu0
      %3396 = vdwg.mxu0
      %3397 = vmatpush.bf16.msra.mxu0 0
      %3398 = vmatpush.bf16.msra.mxu0 0
      %3399 = vmatpush.bf16.msra.mxu0 0
      %3400 = vmatpush.bf16.msra.mxu0 %v3382
      %3401 = vmatpush.bf16.msra.mxu0 %v3364
      %3402 = vmatpush.bf16.msra.mxu0 %v3362
      %3403 = vmatpush.bf16.msra.mxu0 %v3360
      %3404 = vmatpush.bf16.msra.mxu0 %v3358
      %3405 = vmatmul.bf16.gmra.mxu0 %v3376
      %v3406 = vpop.f32.mrf.mxu0
      %v3407 = vadd.f32 %v3373, %v3406
      %v3408 = vpop.f32.mrf.mxu0
      %3409 = vdwg.mxu0
      %v3410 = vadd.f32 %v3394, %v3407
      %3411 = vadd.xlane.f32.xlu0 %v3410
      %v3412 = vpop.xlane.xlu0 %3411
      %v3413 = vmul.f32 %v3394, %v3394
      %v3414 = vmul.f32 %v3407, %v3407
      %v3415 = vadd.f32 %v3413, %v3414
      %3416 = vadd.xlane.f32.xlu0 %v3415
      %v3417 = vpop.xlane.xlu0 %3416
      %v3418 = vmul.f32 %v3412, 0.00390625
      %v3419 = vmul.f32 %v3417, 0.00390625
      %v3420 = vmul.f32 %v3418, %v3418
      %v3421 = vsub.f32 %v3419, %v3420
      %v3422 = vsub.f32 %v3394, %v3418
      %v3423 = vsub.f32 %v3407, %v3418
      %v3424 = vadd.f32 %v3421, 1e-05
      %v3425 = vrsqrt.pop %v3424
      %v3426 = vmul.f32 %v3425, %v3424
      %v3427 = vmul.f32 %v3426, %v3425
      %v3428 = vmul.f32 0.5, %v3427
      %v3429 = vsub.f32 1.5, %v3428
      %v3430 = vmul.f32 %v3425, %v3429
      %vm3431 = vweird.f32 %v3424
      %vm3432 = vweird.f32 %v3425
      %vm3433 = vmor %vm3431, %vm3432
      %v3434 = vsel %vm3433, %v3425, %v3430
      %v3435 = vmul.f32 %v3422, %v3434
      %v3436 = vmul.f32 %v3423, %v3434
      %v3437 = vld [vmem:[%s1010] sm:$0xff]
      %3439 = vset.pattern.permute.xlu0 0
      %3440 = vperm.xlu0 %3439, %v3437
      %v3441 = vpop.permute.xlu0 %3440
      %v3443 = vmul.f32 %v3435, %v3441
      %v3444 = vmul.f32 %v3436, %v3441
      %v3445 = vld [vmem:[%s1019] sm:$0xff]
      %3447 = vset.pattern.permute.xlu0 0
      %3448 = vperm.xlu0 %3447, %v3445
      %v3449 = vpop.permute.xlu0 %3448
      %v3451 = vadd.f32 %v3443, %v3449
      %v3452 = vadd.f32 %v3444, %v3449
      %v3453 = vadd.f32 %v3451, %v3091
      %v3454 = vadd.f32 %v3452, %v3092
      %v3455 = vxor.u32 %v3453, 2147483648
      %v3456 = vxor.u32 %v3454, 2147483648
      %v3457 = vmul.f32 %v3455, 1.442695
      %v3458 = vpow.pop %v3457
      %v3459 = vmul.f32 %v3456, 1.442695
      %v3460 = vpow.pop %v3459
      %v3461 = vadd.f32 %v3458, 1.0
      %v3462 = vadd.f32 %v3460, 1.0
      %v3463 = vrcp.pop %v3461
      %v3464 = vmul.f32 %v3461, %v3463
      %v3465 = vsub.f32 1.0, %v3464
      %v3466 = vmul.f32 %v3463, %v3465
      %v3467 = vadd.f32 %v3463, %v3466
      %vm3468 = vweird.f32 %v3461
      %vm3469 = vweird.f32 %v3463
      %vm3470 = vmor %vm3468, %vm3469
      %v3471 = vsel %vm3470, %v3463, %v3467
      %v3472 = vand.u32 2147483647, %v3461
      %vm3473 = vcmp.eq.f32.partialorder %v3472, 8.507059e+37
      %v3474 = vand.u32 %v3461, 2147483648
      %v3475 = vor.u32 1.1754944e-38, %v3474
      %v3476 = vsel %vm3473, %v3475, %v3471
      %v3477 = vmul.f32 1.0, %v3476
      %v3478 = vrcp.pop %v3462
      %v3479 = vmul.f32 %v3462, %v3478
      %v3480 = vsub.f32 1.0, %v3479
      %v3481 = vmul.f32 %v3478, %v3480
      %v3482 = vadd.f32 %v3478, %v3481
      %vm3483 = vweird.f32 %v3462
      %vm3484 = vweird.f32 %v3478
      %vm3485 = vmor %vm3483, %vm3484
      %v3486 = vsel %vm3485, %v3478, %v3482
      %v3487 = vand.u32 2147483647, %v3462
      %vm3488 = vcmp.eq.f32.partialorder %v3487, 8.507059e+37
      %v3489 = vand.u32 %v3462, 2147483648
      %v3490 = vor.u32 1.1754944e-38, %v3489
      %v3491 = vsel %vm3488, %v3490, %v3486
      %v3492 = vmul.f32 1.0, %v3491
      %v3493 = vmul.f32 %v3453, %v3477
      %v3494 = vmul.f32 %v3454, %v3492
      %3495 = vrot.lane.b32.xlu0 %v3493, 17
      %v3496 = vpop.permute.xlu0 %3495
      %3497 = vrot.lane.b32.xlu0 %v3494, 17
      %v3498 = vpop.permute.xlu0 %3497
      %v3499 = vsel %vm269, %v3496, %v3498
      %v3500 = vsel %vm269, %v3498, %v3496
      %v3501 = vmul.f32 %v3500, %v2725
      %v3502 = vmul.f32 %v3499, %v2726
      %3503 = vrot.lane.b32.xlu0 %v3493, 16
      %v3504 = vpop.permute.xlu0 %3503
      %3505 = vrot.lane.b32.xlu0 %v3494, 16
      %v3506 = vpop.permute.xlu0 %3505
      %v3507 = vsel %vm280, %v3504, %v3506
      %v3508 = vsel %vm280, %v3506, %v3504
      %v3509 = vmul.f32 %v3508, %v2735
      %v3510 = vmul.f32 %v3507, %v2736
      %3511 = vrot.lane.b32.xlu0 %v3493, 15
      %v3512 = vpop.permute.xlu0 %3511
      %3513 = vrot.lane.b32.xlu0 %v3494, 15
      %v3514 = vpop.permute.xlu0 %3513
      %v3515 = vsel %vm292, %v3512, %v3514
      %v3516 = vsel %vm292, %v3514, %v3512
      %v3517 = vmul.f32 %v3516, %v2745
      %v3518 = vmul.f32 %v3515, %v2746
      %3519 = vrot.lane.b32.xlu0 %v3493, 1
      %v3520 = vpop.permute.xlu0 %3519
      %3521 = vrot.lane.b32.xlu0 %v3494, 1
      %v3522 = vpop.permute.xlu0 %3521
      %v3523 = vsel %vm304, %v3520, %v3522
      %v3524 = vsel %vm304, %v3522, %v3520
      %v3525 = vmul.f32 %v3524, %v2755
      %v3526 = vmul.f32 %v3523, %v2756
      %3527 = vrot.lane.b32.xlu0 %v3493, 127
      %v3528 = vpop.permute.xlu0 %3527
      %3529 = vrot.lane.b32.xlu0 %v3494, 127
      %v3530 = vpop.permute.xlu0 %3529
      %v3531 = vsel %vm316, %v3528, %v3530
      %v3532 = vsel %vm316, %v3530, %v3528
      %v3533 = vmul.f32 %v3531, %v2765
      %v3534 = vmul.f32 %v3532, %v2766
      %3535 = vrot.lane.b32.xlu0 %v3493, 113
      %v3536 = vpop.permute.xlu0 %3535
      %3537 = vrot.lane.b32.xlu0 %v3494, 113
      %v3538 = vpop.permute.xlu0 %3537
      %v3539 = vsel %vm328, %v3536, %v3538
      %v3540 = vsel %vm328, %v3538, %v3536
      %v3541 = vmul.f32 %v3539, %v2775
      %v3542 = vmul.f32 %v3540, %v2776
      %3543 = vrot.lane.b32.xlu0 %v3493, 112
      %v3544 = vpop.permute.xlu0 %3543
      %3545 = vrot.lane.b32.xlu0 %v3494, 112
      %v3546 = vpop.permute.xlu0 %3545
      %v3547 = vsel %vm340, %v3544, %v3546
      %v3548 = vsel %vm340, %v3546, %v3544
      %v3549 = vmul.f32 %v3547, %v2785
      %v3550 = vmul.f32 %v3548, %v2786
      %3551 = vrot.lane.b32.xlu0 %v3493, 111
      %v3552 = vpop.permute.xlu0 %3551
      %3553 = vrot.lane.b32.xlu0 %v3494, 111
      %v3554 = vpop.permute.xlu0 %3553
      %v3555 = vsel %vm352, %v3552, %v3554
      %v3556 = vsel %vm352, %v3554, %v3552
      %v3557 = vmul.f32 %v3555, %v2795
      %v3558 = vmul.f32 %v3556, %v2796
      %v3559 = vpack.c.bf16 %v3509, %v3501
      %v3560 = vpack.c.bf16 %v3510, %v3502
      %v3561 = vpack.c.bf16 %v3525, %v3517
      %v3562 = vpack.c.bf16 %v3526, %v3518
      %v3563 = vpack.c.bf16 %v3533, %v3493
      %v3564 = vpack.c.bf16 %v3534, %v3494
      %v3565 = vpack.c.bf16 %v3549, %v3541
      %v3566 = vpack.c.bf16 %v3550, %v3542
      %v3567 = vpack.c.bf16 %v3557, %v3557
      %v3568 = vpack.c.bf16 %v3558, %v3558
      %v3569 = vld [vmem:[%s1144] sm:$0xff]
      %v3570 = vpack.c.bf16 %v3569, %v3569
      %v3571 = vld [vmem:[%s1147] sm:$0xff]
      %3573 = vset.pattern.permute.xlu0 0
      %3574 = vperm.xlu0 %3573, %v3571
      %v3575 = vpop.permute.xlu0 %3574
      %v3578 = vsel %vm378, %v3570, 0
      %v3581 = vsel %vm382, %v3567, 0
      %v3584 = vsel %vm382, %v3568, 0
      %3586 = vmatpush.bf16.msra.mxu0 0
      %3587 = vmatpush.bf16.msra.mxu0 0
      %3588 = vmatpush.bf16.msra.mxu0 0
      %3589 = vmatpush.bf16.msra.mxu0 %v3581
      %3590 = vmatpush.bf16.msra.mxu0 %v3565
      %3591 = vmatpush.bf16.msra.mxu0 %v3563
      %3592 = vmatpush.bf16.msra.mxu0 %v3561
      %3593 = vmatpush.bf16.msra.mxu0 %v3559
      %3594 = vmatmul.bf16.gmra.mxu0 %v3578
      %v3595 = vpop.f32.mrf.mxu0
      %v3596 = vadd.f32 %v3575, %v3595
      %v3597 = vpop.f32.mrf.mxu0
      %3598 = vdwg.mxu0
      %3599 = vmatpush.bf16.msra.mxu0 0
      %3600 = vmatpush.bf16.msra.mxu0 0
      %3601 = vmatpush.bf16.msra.mxu0 0
      %3602 = vmatpush.bf16.msra.mxu0 %v3584
      %3603 = vmatpush.bf16.msra.mxu0 %v3566
      %3604 = vmatpush.bf16.msra.mxu0 %v3564
      %3605 = vmatpush.bf16.msra.mxu0 %v3562
      %3606 = vmatpush.bf16.msra.mxu0 %v3560
      %3607 = vmatmul.bf16.gmra.mxu0 %v3578
      %v3608 = vpop.f32.mrf.mxu0
      %v3609 = vadd.f32 %v3575, %v3608
      %v3610 = vpop.f32.mrf.mxu0
      %3611 = vdwg.mxu0
      %v3612 = vadd.f32 %v3596, %v3609
      %3613 = vadd.xlane.f32.xlu0 %v3612
      %v3614 = vpop.xlane.xlu0 %3613
      %v3615 = vmul.f32 %v3596, %v3596
      %v3616 = vmul.f32 %v3609, %v3609
      %v3617 = vadd.f32 %v3615, %v3616
      %3618 = vadd.xlane.f32.xlu0 %v3617
      %v3619 = vpop.xlane.xlu0 %3618
      %v3620 = vmul.f32 %v3614, 0.00390625
      %v3621 = vmul.f32 %v3619, 0.00390625
      %v3622 = vmul.f32 %v3620, %v3620
      %v3623 = vsub.f32 %v3621, %v3622
      %v3624 = vsub.f32 %v3596, %v3620
      %v3625 = vsub.f32 %v3609, %v3620
      %v3626 = vadd.f32 %v3623, 1e-05
      %v3627 = vrsqrt.pop %v3626
      %v3628 = vmul.f32 %v3627, %v3626
      %v3629 = vmul.f32 %v3628, %v3627
      %v3630 = vmul.f32 0.5, %v3629
      %v3631 = vsub.f32 1.5, %v3630
      %v3632 = vmul.f32 %v3627, %v3631
      %vm3633 = vweird.f32 %v3626
      %vm3634 = vweird.f32 %v3627
      %vm3635 = vmor %vm3633, %vm3634
      %v3636 = vsel %vm3635, %v3627, %v3632
      %v3637 = vmul.f32 %v3624, %v3636
      %v3638 = vmul.f32 %v3625, %v3636
      %v3639 = vld [vmem:[%s1216] sm:$0xff]
      %3641 = vset.pattern.permute.xlu0 0
      %3642 = vperm.xlu0 %3641, %v3639
      %v3643 = vpop.permute.xlu0 %3642
      %v3645 = vmul.f32 %v3637, %v3643
      %v3646 = vmul.f32 %v3638, %v3643
      %v3647 = vld [vmem:[%s1225] sm:$0xff]
      %3649 = vset.pattern.permute.xlu0 0
      %3650 = vperm.xlu0 %3649, %v3647
      %v3651 = vpop.permute.xlu0 %3650
      %v3653 = vadd.f32 %v3645, %v3651
      %v3654 = vadd.f32 %v3646, %v3651
      %vm3655 = vcmp.ge.f32.partialorder %v3653, 0.0
      %vm3656 = vcmp.ge.f32.partialorder %v3654, 0.0
      %v3657 = vmul.f32 %v3653, 0.2
      %v3658 = vmul.f32 %v3654, 0.2
      %v3659 = vsel %vm3655, %v3653, %v3657
      %v3660 = vsel %vm3656, %v3654, %v3658
      %3661 = vrot.lane.b32.xlu0 %v3659, 17
      %v3662 = vpop.permute.xlu0 %3661
      %3663 = vrot.lane.b32.xlu0 %v3660, 17
      %v3664 = vpop.permute.xlu0 %3663
      %v3665 = vsel %vm269, %v3662, %v3664
      %v3666 = vsel %vm269, %v3664, %v3662
      %v3667 = vmul.f32 %v3666, %v2725
      %v3668 = vmul.f32 %v3665, %v2726
      %3669 = vrot.lane.b32.xlu0 %v3659, 16
      %v3670 = vpop.permute.xlu0 %3669
      %3671 = vrot.lane.b32.xlu0 %v3660, 16
      %v3672 = vpop.permute.xlu0 %3671
      %v3673 = vsel %vm280, %v3670, %v3672
      %v3674 = vsel %vm280, %v3672, %v3670
      %v3675 = vmul.f32 %v3674, %v2735
      %v3676 = vmul.f32 %v3673, %v2736
      %3677 = vrot.lane.b32.xlu0 %v3659, 15
      %v3678 = vpop.permute.xlu0 %3677
      %3679 = vrot.lane.b32.xlu0 %v3660, 15
      %v3680 = vpop.permute.xlu0 %3679
      %v3681 = vsel %vm292, %v3678, %v3680
      %v3682 = vsel %vm292, %v3680, %v3678
      %v3683 = vmul.f32 %v3682, %v2745
      %v3684 = vmul.f32 %v3681, %v2746
      %3685 = vrot.lane.b32.xlu0 %v3659, 1
      %v3686 = vpop.permute.xlu0 %3685
      %3687 = vrot.lane.b32.xlu0 %v3660, 1
      %v3688 = vpop.permute.xlu0 %3687
      %v3689 = vsel %vm304, %v3686, %v3688
      %v3690 = vsel %vm304, %v3688, %v3686
      %v3691 = vmul.f32 %v3690, %v2755
      %v3692 = vmul.f32 %v3689, %v2756
      %3693 = vrot.lane.b32.xlu0 %v3659, 127
      %v3694 = vpop.permute.xlu0 %3693
      %3695 = vrot.lane.b32.xlu0 %v3660, 127
      %v3696 = vpop.permute.xlu0 %3695
      %v3697 = vsel %vm316, %v3694, %v3696
      %v3698 = vsel %vm316, %v3696, %v3694
      %v3699 = vmul.f32 %v3697, %v2765
      %v3700 = vmul.f32 %v3698, %v2766
      %3701 = vrot.lane.b32.xlu0 %v3659, 113
      %v3702 = vpop.permute.xlu0 %3701
      %3703 = vrot.lane.b32.xlu0 %v3660, 113
      %v3704 = vpop.permute.xlu0 %3703
      %v3705 = vsel %vm328, %v3702, %v3704
      %v3706 = vsel %vm328, %v3704, %v3702
      %v3707 = vmul.f32 %v3705, %v2775
      %v3708 = vmul.f32 %v3706, %v2776
      %3709 = vrot.lane.b32.xlu0 %v3659, 112
      %v3710 = vpop.permute.xlu0 %3709
      %3711 = vrot.lane.b32.xlu0 %v3660, 112
      %v3712 = vpop.permute.xlu0 %3711
      %v3713 = vsel %vm340, %v3710, %v3712
      %v3714 = vsel %vm340, %v3712, %v3710
      %v3715 = vmul.f32 %v3713, %v2785
      %v3716 = vmul.f32 %v3714, %v2786
      %3717 = vrot.lane.b32.xlu0 %v3659, 111
      %v3718 = vpop.permute.xlu0 %3717
      %3719 = vrot.lane.b32.xlu0 %v3660, 111
      %v3720 = vpop.permute.xlu0 %3719
      %v3721 = vsel %vm352, %v3718, %v3720
      %v3722 = vsel %vm352, %v3720, %v3718
      %v3723 = vmul.f32 %v3721, %v2795
      %v3724 = vmul.f32 %v3722, %v2796
      %v3725 = vpack.c.bf16 %v3675, %v3667
      %v3726 = vpack.c.bf16 %v3676, %v3668
      %v3727 = vpack.c.bf16 %v3691, %v3683
      %v3728 = vpack.c.bf16 %v3692, %v3684
      %v3729 = vpack.c.bf16 %v3699, %v3659
      %v3730 = vpack.c.bf16 %v3700, %v3660
      %v3731 = vpack.c.bf16 %v3715, %v3707
      %v3732 = vpack.c.bf16 %v3716, %v3708
      %v3733 = vpack.c.bf16 %v3723, %v3723
      %v3734 = vpack.c.bf16 %v3724, %v3724
      %v3735 = vld [vmem:[%s1314] sm:$0xff]
      %v3736 = vpack.c.bf16 %v3735, %v3735
      %v3737 = vld [vmem:[%s1317] sm:$0xff]
      %3739 = vset.pattern.permute.xlu0 0
      %3740 = vperm.xlu0 %3739, %v3737
      %v3741 = vpop.permute.xlu0 %3740
      %v3744 = vsel %vm378, %v3736, 0
      %v3747 = vsel %vm382, %v3733, 0
      %v3750 = vsel %vm382, %v3734, 0
      %3752 = vmatpush.bf16.msra.mxu0 0
      %3753 = vmatpush.bf16.msra.mxu0 0
      %3754 = vmatpush.bf16.msra.mxu0 0
      %3755 = vmatpush.bf16.msra.mxu0 %v3747
      %3756 = vmatpush.bf16.msra.mxu0 %v3731
      %3757 = vmatpush.bf16.msra.mxu0 %v3729
      %3758 = vmatpush.bf16.msra.mxu0 %v3727
      %3759 = vmatpush.bf16.msra.mxu0 %v3725
      %3760 = vmatmul.bf16.gmra.mxu0 %v3744
      %v3761 = vpop.f32.mrf.mxu0
      %v3762 = vadd.f32 %v3741, %v3761
      %v3763 = vpop.f32.mrf.mxu0
      %3764 = vdwg.mxu0
      %3765 = vmatpush.bf16.msra.mxu0 0
      %3766 = vmatpush.bf16.msra.mxu0 0
      %3767 = vmatpush.bf16.msra.mxu0 0
      %3768 = vmatpush.bf16.msra.mxu0 %v3750
      %3769 = vmatpush.bf16.msra.mxu0 %v3732
      %3770 = vmatpush.bf16.msra.mxu0 %v3730
      %3771 = vmatpush.bf16.msra.mxu0 %v3728
      %3772 = vmatpush.bf16.msra.mxu0 %v3726
      %3773 = vmatmul.bf16.gmra.mxu0 %v3744
      %v3774 = vpop.f32.mrf.mxu0
      %v3775 = vadd.f32 %v3741, %v3774
      %v3776 = vpop.f32.mrf.mxu0
      %3777 = vdwg.mxu0
      %v3778 = vadd.f32 %v3762, %v3775
      %3779 = vadd.xlane.f32.xlu0 %v3778
      %v3780 = vpop.xlane.xlu0 %3779
      %v3781 = vmul.f32 %v3762, %v3762
      %v3782 = vmul.f32 %v3775, %v3775
      %v3783 = vadd.f32 %v3781, %v3782
      %3784 = vadd.xlane.f32.xlu0 %v3783
      %v3785 = vpop.xlane.xlu0 %3784
      %v3786 = vmul.f32 %v3780, 0.00390625
      %v3787 = vmul.f32 %v3785, 0.00390625
      %v3788 = vmul.f32 %v3786, %v3786
      %v3789 = vsub.f32 %v3787, %v3788
      %v3790 = vsub.f32 %v3762, %v3786
      %v3791 = vsub.f32 %v3775, %v3786
      %v3792 = vadd.f32 %v3789, 1e-05
      %v3793 = vrsqrt.pop %v3792
      %v3794 = vmul.f32 %v3793, %v3792
      %v3795 = vmul.f32 %v3794, %v3793
      %v3796 = vmul.f32 0.5, %v3795
      %v3797 = vsub.f32 1.5, %v3796
      %v3798 = vmul.f32 %v3793, %v3797
      %vm3799 = vweird.f32 %v3792
      %vm3800 = vweird.f32 %v3793
      %vm3801 = vmor %vm3799, %vm3800
      %v3802 = vsel %vm3801, %v3793, %v3798
      %v3803 = vmul.f32 %v3790, %v3802
      %v3804 = vmul.f32 %v3791, %v3802
      %v3805 = vld [vmem:[%s1386] sm:$0xff]
      %3807 = vset.pattern.permute.xlu0 0
      %3808 = vperm.xlu0 %3807, %v3805
      %v3809 = vpop.permute.xlu0 %3808
      %v3811 = vmul.f32 %v3803, %v3809
      %v3812 = vmul.f32 %v3804, %v3809
      %v3813 = vld [vmem:[%s1395] sm:$0xff]
      %3815 = vset.pattern.permute.xlu0 0
      %3816 = vperm.xlu0 %3815, %v3813
      %v3817 = vpop.permute.xlu0 %3816
      %v3819 = vadd.f32 %v3811, %v3817
      %v3820 = vadd.f32 %v3812, %v3817
      %v3821 = vadd.f32 %v3819, %v3493
      %v3822 = vadd.f32 %v3820, %v3494
      %vm3823 = vcmp.ge.f32.partialorder %v3821, 0.0
      %vm3824 = vcmp.ge.f32.partialorder %v3822, 0.0
      %v3825 = vmul.f32 %v3821, 0.2
      %v3826 = vmul.f32 %v3822, 0.2
      %v3827 = vsel %vm3823, %v3821, %v3825
      %v3828 = vsel %vm3824, %v3822, %v3826
      %3829 = vrot.lane.b32.xlu0 %v3827, 17
      %v3830 = vpop.permute.xlu0 %3829
      %3831 = vrot.lane.b32.xlu0 %v3828, 17
      %v3832 = vpop.permute.xlu0 %3831
      %v3833 = vsel %vm269, %v3830, %v3832
      %v3834 = vsel %vm269, %v3832, %v3830
      %v3835 = vmul.f32 %v3834, %v2725
      %v3836 = vmul.f32 %v3833, %v2726
      %3837 = vrot.lane.b32.xlu0 %v3827, 16
      %v3838 = vpop.permute.xlu0 %3837
      %3839 = vrot.lane.b32.xlu0 %v3828, 16
      %v3840 = vpop.permute.xlu0 %3839
      %v3841 = vsel %vm280, %v3838, %v3840
      %v3842 = vsel %vm280, %v3840, %v3838
      %v3843 = vmul.f32 %v3842, %v2735
      %v3844 = vmul.f32 %v3841, %v2736
      %3845 = vrot.lane.b32.xlu0 %v3827, 15
      %v3846 = vpop.permute.xlu0 %3845
      %3847 = vrot.lane.b32.xlu0 %v3828, 15
      %v3848 = vpop.permute.xlu0 %3847
      %v3849 = vsel %vm292, %v3846, %v3848
      %v3850 = vsel %vm292, %v3848, %v3846
      %v3851 = vmul.f32 %v3850, %v2745
      %v3852 = vmul.f32 %v3849, %v2746
      %3853 = vrot.lane.b32.xlu0 %v3827, 1
      %v3854 = vpop.permute.xlu0 %3853
      %3855 = vrot.lane.b32.xlu0 %v3828, 1
      %v3856 = vpop.permute.xlu0 %3855
      %v3857 = vsel %vm304, %v3854, %v3856
      %v3858 = vsel %vm304, %v3856, %v3854
      %v3859 = vmul.f32 %v3858, %v2755
      %v3860 = vmul.f32 %v3857, %v2756
      %3861 = vrot.lane.b32.xlu0 %v3827, 127
      %v3862 = vpop.permute.xlu0 %3861
      %3863 = vrot.lane.b32.xlu0 %v3828, 127
      %v3864 = vpop.permute.xlu0 %3863
      %v3865 = vsel %vm316, %v3862, %v3864
      %v3866 = vsel %vm316, %v3864, %v3862
      %v3867 = vmul.f32 %v3865, %v2765
      %v3868 = vmul.f32 %v3866, %v2766
      %3869 = vrot.lane.b32.xlu0 %v3827, 113
      %v3870 = vpop.permute.xlu0 %3869
      %3871 = vrot.lane.b32.xlu0 %v3828, 113
      %v3872 = vpop.permute.xlu0 %3871
      %v3873 = vsel %vm328, %v3870, %v3872
      %v3874 = vsel %vm328, %v3872, %v3870
      %v3875 = vmul.f32 %v3873, %v2775
      %v3876 = vmul.f32 %v3874, %v2776
      %3877 = vrot.lane.b32.xlu0 %v3827, 112
      %v3878 = vpop.permute.xlu0 %3877
      %3879 = vrot.lane.b32.xlu0 %v3828, 112
      %v3880 = vpop.permute.xlu0 %3879
      %v3881 = vsel %vm340, %v3878, %v3880
      %v3882 = vsel %vm340, %v3880, %v3878
      %v3883 = vmul.f32 %v3881, %v2785
      %v3884 = vmul.f32 %v3882, %v2786
      %3885 = vrot.lane.b32.xlu0 %v3827, 111
      %v3886 = vpop.permute.xlu0 %3885
      %3887 = vrot.lane.b32.xlu0 %v3828, 111
      %v3888 = vpop.permute.xlu0 %3887
      %v3889 = vsel %vm352, %v3886, %v3888
      %v3890 = vsel %vm352, %v3888, %v3886
      %v3891 = vmul.f32 %v3889, %v2795
      %v3892 = vmul.f32 %v3890, %v2796
      %v3893 = vpack.c.bf16 %v3843, %v3835
      %v3894 = vpack.c.bf16 %v3844, %v3836
      %v3895 = vpack.c.bf16 %v3859, %v3851
      %v3896 = vpack.c.bf16 %v3860, %v3852
      %v3897 = vpack.c.bf16 %v3867, %v3827
      %v3898 = vpack.c.bf16 %v3868, %v3828
      %v3899 = vpack.c.bf16 %v3883, %v3875
      %v3900 = vpack.c.bf16 %v3884, %v3876
      %v3901 = vpack.c.bf16 %v3891, %v3891
      %v3902 = vpack.c.bf16 %v3892, %v3892
      %v3903 = vld [vmem:[%s1486] sm:$0xff]
      %v3904 = vpack.c.bf16 %v3903, %v3903
      %v3905 = vld [vmem:[%s1489] sm:$0xff]
      %3907 = vset.pattern.permute.xlu0 0
      %3908 = vperm.xlu0 %3907, %v3905
      %v3909 = vpop.permute.xlu0 %3908
      %v3912 = vsel %vm378, %v3904, 0
      %v3915 = vsel %vm382, %v3901, 0
      %v3918 = vsel %vm382, %v3902, 0
      %3920 = vmatpush.bf16.msra.mxu0 0
      %3921 = vmatpush.bf16.msra.mxu0 0
      %3922 = vmatpush.bf16.msra.mxu0 0
      %3923 = vmatpush.bf16.msra.mxu0 %v3915
      %3924 = vmatpush.bf16.msra.mxu0 %v3899
      %3925 = vmatpush.bf16.msra.mxu0 %v3897
      %3926 = vmatpush.bf16.msra.mxu0 %v3895
      %3927 = vmatpush.bf16.msra.mxu0 %v3893
      %3928 = vmatmul.bf16.gmra.mxu0 %v3912
      %v3929 = vpop.f32.mrf.mxu0
      %v3930 = vadd.f32 %v3909, %v3929
      %v3931 = vpop.f32.mrf.mxu0
      %3932 = vdwg.mxu0
      %3933 = vmatpush.bf16.msra.mxu0 0
      %3934 = vmatpush.bf16.msra.mxu0 0
      %3935 = vmatpush.bf16.msra.mxu0 0
      %3936 = vmatpush.bf16.msra.mxu0 %v3918
      %3937 = vmatpush.bf16.msra.mxu0 %v3900
      %3938 = vmatpush.bf16.msra.mxu0 %v3898
      %3939 = vmatpush.bf16.msra.mxu0 %v3896
      %3940 = vmatpush.bf16.msra.mxu0 %v3894
      %3941 = vmatmul.bf16.gmra.mxu0 %v3912
      %v3942 = vpop.f32.mrf.mxu0
      %v3943 = vadd.f32 %v3909, %v3942
      %v3944 = vpop.f32.mrf.mxu0
      %3945 = vdwg.mxu0
      %v3946 = vadd.f32 %v3930, %v3943
      %3947 = vadd.xlane.f32.xlu0 %v3946
      %v3948 = vpop.xlane.xlu0 %3947
      %v3949 = vmul.f32 %v3930, %v3930
      %v3950 = vmul.f32 %v3943, %v3943
      %v3951 = vadd.f32 %v3949, %v3950
      %3952 = vadd.xlane.f32.xlu0 %v3951
      %v3953 = vpop.xlane.xlu0 %3952
      %v3954 = vmul.f32 %v3948, 0.00390625
      %v3955 = vmul.f32 %v3953, 0.00390625
      %v3956 = vmul.f32 %v3954, %v3954
      %v3957 = vsub.f32 %v3955, %v3956
      %v3958 = vsub.f32 %v3930, %v3954
      %v3959 = vsub.f32 %v3943, %v3954
      %v3960 = vadd.f32 %v3957, 1e-05
      %v3961 = vrsqrt.pop %v3960
      %v3962 = vmul.f32 %v3961, %v3960
      %v3963 = vmul.f32 %v3962, %v3961
      %v3964 = vmul.f32 0.5, %v3963
      %v3965 = vsub.f32 1.5, %v3964
      %v3966 = vmul.f32 %v3961, %v3965
      %vm3967 = vweird.f32 %v3960
      %vm3968 = vweird.f32 %v3961
      %vm3969 = vmor %vm3967, %vm3968
      %v3970 = vsel %vm3969, %v3961, %v3966
      %v3971 = vmul.f32 %v3958, %v3970
      %v3972 = vmul.f32 %v3959, %v3970
      %v3973 = vld [vmem:[%s1558] sm:$0xff]
      %3975 = vset.pattern.permute.xlu0 0
      %3976 = vperm.xlu0 %3975, %v3973
      %v3977 = vpop.permute.xlu0 %3976
      %v3979 = vmul.f32 %v3971, %v3977
      %v3980 = vmul.f32 %v3972, %v3977
      %v3981 = vld [vmem:[%s1567] sm:$0xff]
      %3983 = vset.pattern.permute.xlu0 0
      %3984 = vperm.xlu0 %3983, %v3981
      %v3985 = vpop.permute.xlu0 %3984
      %v3987 = vadd.f32 %v3979, %v3985
      %v3988 = vadd.f32 %v3980, %v3985
      %v3989 = vmul.f32 %v3987, 0.5
      %v3990 = vmul.f32 %v3988, 0.5
      %v3991 = vmul.f32 %v3987, 0.044715
      %v3992 = vmul.f32 %v3988, 0.044715
      %v3993 = vmul.f32 %v3991, %v3987
      %v3994 = vmul.f32 %v3992, %v3988
      %v3995 = vmul.f32 %v3993, %v3987
      %v3996 = vmul.f32 %v3994, %v3988
      %v3997 = vadd.f32 %v3987, %v3995
      %v3998 = vadd.f32 %v3988, %v3996
      %v3999 = vmul.f32 %v3997, 0.7978846
      %v4000 = vmul.f32 %v3998, 0.7978846
      %v4001 = vtanh.pop %v3999
      %v4002 = vtanh.pop %v4000
      %v4003 = vadd.f32 %v4001, 1.0
      %v4004 = vadd.f32 %v4002, 1.0
      %v4005 = vmul.f32 %v3989, %v4003
      %v4006 = vmul.f32 %v3990, %v4004
      %4007 = vrot.lane.b32.xlu0 %v4005, 17
      %v4008 = vpop.permute.xlu0 %4007
      %4009 = vrot.lane.b32.xlu0 %v4006, 17
      %v4010 = vpop.permute.xlu0 %4009
      %v4011 = vsel %vm269, %v4008, %v4010
      %v4012 = vsel %vm269, %v4010, %v4008
      %v4013 = vmul.f32 %v4012, %v2725
      %v4014 = vmul.f32 %v4011, %v2726
      %4015 = vrot.lane.b32.xlu0 %v4005, 16
      %v4016 = vpop.permute.xlu0 %4015
      %4017 = vrot.lane.b32.xlu0 %v4006, 16
      %v4018 = vpop.permute.xlu0 %4017
      %v4019 = vsel %vm280, %v4016, %v4018
      %v4020 = vsel %vm280, %v4018, %v4016
      %v4021 = vmul.f32 %v4020, %v2735
      %v4022 = vmul.f32 %v4019, %v2736
      %4023 = vrot.lane.b32.xlu0 %v4005, 15
      %v4024 = vpop.permute.xlu0 %4023
      %4025 = vrot.lane.b32.xlu0 %v4006, 15
      %v4026 = vpop.permute.xlu0 %4025
      %v4027 = vsel %vm292, %v4024, %v4026
      %v4028 = vsel %vm292, %v4026, %v4024
      %v4029 = vmul.f32 %v4028, %v2745
      %v4030 = vmul.f32 %v4027, %v2746
      %4031 = vrot.lane.b32.xlu0 %v4005, 1
      %v4032 = vpop.permute.xlu0 %4031
      %4033 = vrot.lane.b32.xlu0 %v4006, 1
      %v4034 = vpop.permute.xlu0 %4033
      %v4035 = vsel %vm304, %v4032, %v4034
      %v4036 = vsel %vm304, %v4034, %v4032
      %v4037 = vmul.f32 %v4036, %v2755
      %v4038 = vmul.f32 %v4035, %v2756
      %4039 = vrot.lane.b32.xlu0 %v4005, 127
      %v4040 = vpop.permute.xlu0 %4039
      %4041 = vrot.lane.b32.xlu0 %v4006, 127
      %v4042 = vpop.permute.xlu0 %4041
      %v4043 = vsel %vm316, %v4040, %v4042
      %v4044 = vsel %vm316, %v4042, %v4040
      %v4045 = vmul.f32 %v4043, %v2765
      %v4046 = vmul.f32 %v4044, %v2766
      %4047 = vrot.lane.b32.xlu0 %v4005, 113
      %v4048 = vpop.permute.xlu0 %4047
      %4049 = vrot.lane.b32.xlu0 %v4006, 113
      %v4050 = vpop.permute.xlu0 %4049
      %v4051 = vsel %vm328, %v4048, %v4050
      %v4052 = vsel %vm328, %v4050, %v4048
      %v4053 = vmul.f32 %v4051, %v2775
      %v4054 = vmul.f32 %v4052, %v2776
      %4055 = vrot.lane.b32.xlu0 %v4005, 112
      %v4056 = vpop.permute.xlu0 %4055
      %4057 = vrot.lane.b32.xlu0 %v4006, 112
      %v4058 = vpop.permute.xlu0 %4057
      %v4059 = vsel %vm340, %v4056, %v4058
      %v4060 = vsel %vm340, %v4058, %v4056
      %v4061 = vmul.f32 %v4059, %v2785
      %v4062 = vmul.f32 %v4060, %v2786
      %4063 = vrot.lane.b32.xlu0 %v4005, 111
      %v4064 = vpop.permute.xlu0 %4063
      %4065 = vrot.lane.b32.xlu0 %v4006, 111
      %v4066 = vpop.permute.xlu0 %4065
      %v4067 = vsel %vm352, %v4064, %v4066
      %v4068 = vsel %vm352, %v4066, %v4064
      %v4069 = vmul.f32 %v4067, %v2795
      %v4070 = vmul.f32 %v4068, %v2796
      %v4071 = vpack.c.bf16 %v4021, %v4013
      %v4072 = vpack.c.bf16 %v4022, %v4014
      %v4073 = vpack.c.bf16 %v4037, %v4029
      %v4074 = vpack.c.bf16 %v4038, %v4030
      %v4075 = vpack.c.bf16 %v4045, %v4005
      %v4076 = vpack.c.bf16 %v4046, %v4006
      %v4077 = vpack.c.bf16 %v4061, %v4053
      %v4078 = vpack.c.bf16 %v4062, %v4054
      %v4079 = vpack.c.bf16 %v4069, %v4069
      %v4080 = vpack.c.bf16 %v4070, %v4070
      %v4081 = vld [vmem:[%s1668] sm:$0xff]
      %v4082 = vpack.c.bf16 %v4081, %v4081
      %v4083 = vld [vmem:[%s1671] sm:$0xff]
      %4085 = vset.pattern.permute.xlu0 0
      %4086 = vperm.xlu0 %4085, %v4083
      %v4087 = vpop.permute.xlu0 %4086
      %v4090 = vsel %vm378, %v4082, 0
      %v4093 = vsel %vm382, %v4079, 0
      %v4096 = vsel %vm382, %v4080, 0
      %4098 = vmatpush.bf16.msra.mxu0 0
      %4099 = vmatpush.bf16.msra.mxu0 0
      %4100 = vmatpush.bf16.msra.mxu0 0
      %4101 = vmatpush.bf16.msra.mxu0 %v4093
      %4102 = vmatpush.bf16.msra.mxu0 %v4077
      %4103 = vmatpush.bf16.msra.mxu0 %v4075
      %4104 = vmatpush.bf16.msra.mxu0 %v4073
      %4105 = vmatpush.bf16.msra.mxu0 %v4071
      %4106 = vmatmul.bf16.gmra.mxu0 %v4090
      %v4107 = vpop.f32.mrf.mxu0
      %v4108 = vadd.f32 %v4087, %v4107
      %v4109 = vpop.f32.mrf.mxu0
      %4110 = vdwg.mxu0
      %4111 = vmatpush.bf16.msra.mxu0 0
      %4112 = vmatpush.bf16.msra.mxu0 0
      %4113 = vmatpush.bf16.msra.mxu0 0
      %4114 = vmatpush.bf16.msra.mxu0 %v4096
      %4115 = vmatpush.bf16.msra.mxu0 %v4078
      %4116 = vmatpush.bf16.msra.mxu0 %v4076
      %4117 = vmatpush.bf16.msra.mxu0 %v4074
      %4118 = vmatpush.bf16.msra.mxu0 %v4072
      %4119 = vmatmul.bf16.gmra.mxu0 %v4090
      %v4120 = vpop.f32.mrf.mxu0
      %v4121 = vadd.f32 %v4087, %v4120
      %v4122 = vpop.f32.mrf.mxu0
      %4123 = vdwg.mxu0
      %v4124 = vadd.f32 %v4108, %v4121
      %4125 = vadd.xlane.f32.xlu0 %v4124
      %v4126 = vpop.xlane.xlu0 %4125
      %v4127 = vmul.f32 %v4108, %v4108
      %v4128 = vmul.f32 %v4121, %v4121
      %v4129 = vadd.f32 %v4127, %v4128
      %4130 = vadd.xlane.f32.xlu0 %v4129
      %v4131 = vpop.xlane.xlu0 %4130
      %v4132 = vmul.f32 %v4126, 0.00390625
      %v4133 = vmul.f32 %v4131, 0.00390625
      %v4134 = vmul.f32 %v4132, %v4132
      %v4135 = vsub.f32 %v4133, %v4134
      %v4136 = vsub.f32 %v4108, %v4132
      %v4137 = vsub.f32 %v4121, %v4132
      %v4138 = vadd.f32 %v4135, 1e-05
      %v4139 = vrsqrt.pop %v4138
      %v4140 = vmul.f32 %v4139, %v4138
      %v4141 = vmul.f32 %v4140, %v4139
      %v4142 = vmul.f32 0.5, %v4141
      %v4143 = vsub.f32 1.5, %v4142
      %v4144 = vmul.f32 %v4139, %v4143
      %vm4145 = vweird.f32 %v4138
      %vm4146 = vweird.f32 %v4139
      %vm4147 = vmor %vm4145, %vm4146
      %v4148 = vsel %vm4147, %v4139, %v4144
      %v4149 = vmul.f32 %v4136, %v4148
      %v4150 = vmul.f32 %v4137, %v4148
      %v4151 = vld [vmem:[%s1740] sm:$0xff]
      %4153 = vset.pattern.permute.xlu0 0
      %4154 = vperm.xlu0 %4153, %v4151
      %v4155 = vpop.permute.xlu0 %4154
      %v4157 = vmul.f32 %v4149, %v4155
      %v4158 = vmul.f32 %v4150, %v4155
      %v4159 = vld [vmem:[%s1749] sm:$0xff]
      %4161 = vset.pattern.permute.xlu0 0
      %4162 = vperm.xlu0 %4161, %v4159
      %v4163 = vpop.permute.xlu0 %4162
      %v4165 = vadd.f32 %v4157, %v4163
      %v4166 = vadd.f32 %v4158, %v4163
      %v4167 = vadd.f32 %v4165, %v3827
      %v4168 = vadd.f32 %v4166, %v3828
      %v4169 = vmul.f32 %v4167, 0.5
      %v4170 = vmul.f32 %v4168, 0.5
      %v4171 = vmul.f32 %v4167, 0.044715
      %v4172 = vmul.f32 %v4168, 0.044715
      %v4173 = vmul.f32 %v4171, %v4167
      %v4174 = vmul.f32 %v4172, %v4168
      %v4175 = vmul.f32 %v4173, %v4167
      %v4176 = vmul.f32 %v4174, %v4168
      %v4177 = vadd.f32 %v4167, %v4175
      %v4178 = vadd.f32 %v4168, %v4176
      %v4179 = vmul.f32 %v4177, 0.7978846
      %v4180 = vmul.f32 %v4178, 0.7978846
      %v4181 = vtanh.pop %v4179
      %v4182 = vtanh.pop %v4180
      %v4183 = vadd.f32 %v4181, 1.0
      %v4184 = vadd.f32 %v4182, 1.0
      %v4185 = vmul.f32 %v4169, %v4183
      %v4186 = vmul.f32 %v4170, %v4184
      %4187 = vrot.lane.b32.xlu0 %v4185, 17
      %v4188 = vpop.permute.xlu0 %4187
      %4189 = vrot.lane.b32.xlu0 %v4186, 17
      %v4190 = vpop.permute.xlu0 %4189
      %v4191 = vsel %vm269, %v4188, %v4190
      %v4192 = vsel %vm269, %v4190, %v4188
      %v4193 = vmul.f32 %v4192, %v2725
      %v4194 = vmul.f32 %v4191, %v2726
      %4195 = vrot.lane.b32.xlu0 %v4185, 16
      %v4196 = vpop.permute.xlu0 %4195
      %4197 = vrot.lane.b32.xlu0 %v4186, 16
      %v4198 = vpop.permute.xlu0 %4197
      %v4199 = vsel %vm280, %v4196, %v4198
      %v4200 = vsel %vm280, %v4198, %v4196
      %v4201 = vmul.f32 %v4200, %v2735
      %v4202 = vmul.f32 %v4199, %v2736
      %4203 = vrot.lane.b32.xlu0 %v4185, 15
      %v4204 = vpop.permute.xlu0 %4203
      %4205 = vrot.lane.b32.xlu0 %v4186, 15
      %v4206 = vpop.permute.xlu0 %4205
      %v4207 = vsel %vm292, %v4204, %v4206
      %v4208 = vsel %vm292, %v4206, %v4204
      %v4209 = vmul.f32 %v4208, %v2745
      %v4210 = vmul.f32 %v4207, %v2746
      %4211 = vrot.lane.b32.xlu0 %v4185, 1
      %v4212 = vpop.permute.xlu0 %4211
      %4213 = vrot.lane.b32.xlu0 %v4186, 1
      %v4214 = vpop.permute.xlu0 %4213
      %v4215 = vsel %vm304, %v4212, %v4214
      %v4216 = vsel %vm304, %v4214, %v4212
      %v4217 = vmul.f32 %v4216, %v2755
      %v4218 = vmul.f32 %v4215, %v2756
      %4219 = vrot.lane.b32.xlu0 %v4185, 127
      %v4220 = vpop.permute.xlu0 %4219
      %4221 = vrot.lane.b32.xlu0 %v4186, 127
      %v4222 = vpop.permute.xlu0 %4221
      %v4223 = vsel %vm316, %v4220, %v4222
      %v4224 = vsel %vm316, %v4222, %v4220
      %v4225 = vmul.f32 %v4223, %v2765
      %v4226 = vmul.f32 %v4224, %v2766
      %4227 = vrot.lane.b32.xlu0 %v4185, 113
      %v4228 = vpop.permute.xlu0 %4227
      %4229 = vrot.lane.b32.xlu0 %v4186, 113
      %v4230 = vpop.permute.xlu0 %4229
      %v4231 = vsel %vm328, %v4228, %v4230
      %v4232 = vsel %vm328, %v4230, %v4228
      %v4233 = vmul.f32 %v4231, %v2775
      %v4234 = vmul.f32 %v4232, %v2776
      %4235 = vrot.lane.b32.xlu0 %v4185, 112
      %v4236 = vpop.permute.xlu0 %4235
      %4237 = vrot.lane.b32.xlu0 %v4186, 112
      %v4238 = vpop.permute.xlu0 %4237
      %v4239 = vsel %vm340, %v4236, %v4238
      %v4240 = vsel %vm340, %v4238, %v4236
      %v4241 = vmul.f32 %v4239, %v2785
      %v4242 = vmul.f32 %v4240, %v2786
      %4243 = vrot.lane.b32.xlu0 %v4185, 111
      %v4244 = vpop.permute.xlu0 %4243
      %4245 = vrot.lane.b32.xlu0 %v4186, 111
      %v4246 = vpop.permute.xlu0 %4245
      %v4247 = vsel %vm352, %v4244, %v4246
      %v4248 = vsel %vm352, %v4246, %v4244
      %v4249 = vmul.f32 %v4247, %v2795
      %v4250 = vmul.f32 %v4248, %v2796
      %v4251 = vpack.c.bf16 %v4201, %v4193
      %v4252 = vpack.c.bf16 %v4202, %v4194
      %v4253 = vpack.c.bf16 %v4217, %v4209
      %v4254 = vpack.c.bf16 %v4218, %v4210
      %v4255 = vpack.c.bf16 %v4225, %v4185
      %v4256 = vpack.c.bf16 %v4226, %v4186
      %v4257 = vpack.c.bf16 %v4241, %v4233
      %v4258 = vpack.c.bf16 %v4242, %v4234
      %v4259 = vpack.c.bf16 %v4249, %v4249
      %v4260 = vpack.c.bf16 %v4250, %v4250
      %v4261 = vld [vmem:[%s1852] sm:$0xff]
      %v4262 = vpack.c.bf16 %v4261, %v4261
      %v4263 = vld [vmem:[%s1855] sm:$0xff]
      %4265 = vset.pattern.permute.xlu0 0
      %4266 = vperm.xlu0 %4265, %v4263
      %v4267 = vpop.permute.xlu0 %4266
      %v4270 = vsel %vm378, %v4262, 0
      %v4273 = vsel %vm382, %v4259, 0
      %v4276 = vsel %vm382, %v4260, 0
      %4278 = vmatpush.bf16.msra.mxu0 0
      %4279 = vmatpush.bf16.msra.mxu0 0
      %4280 = vmatpush.bf16.msra.mxu0 0
      %4281 = vmatpush.bf16.msra.mxu0 %v4273
      %4282 = vmatpush.bf16.msra.mxu0 %v4257
      %4283 = vmatpush.bf16.msra.mxu0 %v4255
      %4284 = vmatpush.bf16.msra.mxu0 %v4253
      %4285 = vmatpush.bf16.msra.mxu0 %v4251
      %4286 = vmatmul.bf16.gmra.mxu0 %v4270
      %v4287 = vpop.f32.mrf.mxu0
      %v4288 = vadd.f32 %v4267, %v4287
      %v4289 = vpop.f32.mrf.mxu0
      %4290 = vdwg.mxu0
      %4291 = vmatpush.bf16.msra.mxu0 0
      %4292 = vmatpush.bf16.msra.mxu0 0
      %4293 = vmatpush.bf16.msra.mxu0 0
      %4294 = vmatpush.bf16.msra.mxu0 %v4276
      %4295 = vmatpush.bf16.msra.mxu0 %v4258
      %4296 = vmatpush.bf16.msra.mxu0 %v4256
      %4297 = vmatpush.bf16.msra.mxu0 %v4254
      %4298 = vmatpush.bf16.msra.mxu0 %v4252
      %4299 = vmatmul.bf16.gmra.mxu0 %v4270
      %v4300 = vpop.f32.mrf.mxu0
      %v4301 = vadd.f32 %v4267, %v4300
      %v4302 = vpop.f32.mrf.mxu0
      %4303 = vdwg.mxu0
      %v4304 = vadd.f32 %v4288, %v4301
      %4305 = vadd.xlane.f32.xlu0 %v4304
      %v4306 = vpop.xlane.xlu0 %4305
      %v4307 = vmul.f32 %v4288, %v4288
      %v4308 = vmul.f32 %v4301, %v4301
      %v4309 = vadd.f32 %v4307, %v4308
      %4310 = vadd.xlane.f32.xlu0 %v4309
      %v4311 = vpop.xlane.xlu0 %4310
      %v4312 = vmul.f32 %v4306, 0.00390625
      %v4313 = vmul.f32 %v4311, 0.00390625
      %v4314 = vmul.f32 %v4312, %v4312
      %v4315 = vsub.f32 %v4313, %v4314
      %v4316 = vsub.f32 %v4288, %v4312
      %v4317 = vsub.f32 %v4301, %v4312
      %v4318 = vadd.f32 %v4315, 1e-05
      %v4319 = vrsqrt.pop %v4318
      %v4320 = vmul.f32 %v4319, %v4318
      %v4321 = vmul.f32 %v4320, %v4319
      %v4322 = vmul.f32 0.5, %v4321
      %v4323 = vsub.f32 1.5, %v4322
      %v4324 = vmul.f32 %v4319, %v4323
      %vm4325 = vweird.f32 %v4318
      %vm4326 = vweird.f32 %v4319
      %vm4327 = vmor %vm4325, %vm4326
      %v4328 = vsel %vm4327, %v4319, %v4324
      %v4329 = vmul.f32 %v4316, %v4328
      %v4330 = vmul.f32 %v4317, %v4328
      %v4331 = vld [vmem:[%s1924] sm:$0xff]
      %4333 = vset.pattern.permute.xlu0 0
      %4334 = vperm.xlu0 %4333, %v4331
      %v4335 = vpop.permute.xlu0 %4334
      %v4337 = vmul.f32 %v4329, %v4335
      %v4338 = vmul.f32 %v4330, %v4335
      %v4339 = vld [vmem:[%s1933] sm:$0xff]
      %4341 = vset.pattern.permute.xlu0 0
      %4342 = vperm.xlu0 %4341, %v4339
      %v4343 = vpop.permute.xlu0 %4342
      %v4345 = vadd.f32 %v4337, %v4343
      %v4346 = vadd.f32 %v4338, %v4343
      %v4347 = vxor.u32 %v4345, 2147483648
      %v4348 = vxor.u32 %v4346, 2147483648
      %v4349 = vmul.f32 %v4347, 1.442695
      %v4350 = vpow.pop %v4349
      %v4351 = vmul.f32 %v4348, 1.442695
      %v4352 = vpow.pop %v4351
      %v4353 = vadd.f32 %v4350, 1.0
      %v4354 = vadd.f32 %v4352, 1.0
      %v4355 = vrcp.pop %v4353
      %v4356 = vmul.f32 %v4353, %v4355
      %v4357 = vsub.f32 1.0, %v4356
      %v4358 = vmul.f32 %v4355, %v4357
      %v4359 = vadd.f32 %v4355, %v4358
      %vm4360 = vweird.f32 %v4353
      %vm4361 = vweird.f32 %v4355
      %vm4362 = vmor %vm4360, %vm4361
      %v4363 = vsel %vm4362, %v4355, %v4359
      %v4364 = vand.u32 2147483647, %v4353
      %vm4365 = vcmp.eq.f32.partialorder %v4364, 8.507059e+37
      %v4366 = vand.u32 %v4353, 2147483648
      %v4367 = vor.u32 1.1754944e-38, %v4366
      %v4368 = vsel %vm4365, %v4367, %v4363
      %v4369 = vmul.f32 1.0, %v4368
      %v4370 = vrcp.pop %v4354
      %v4371 = vmul.f32 %v4354, %v4370
      %v4372 = vsub.f32 1.0, %v4371
      %v4373 = vmul.f32 %v4370, %v4372
      %v4374 = vadd.f32 %v4370, %v4373
      %vm4375 = vweird.f32 %v4354
      %vm4376 = vweird.f32 %v4370
      %vm4377 = vmor %vm4375, %vm4376
      %v4378 = vsel %vm4377, %v4370, %v4374
      %v4379 = vand.u32 2147483647, %v4354
      %vm4380 = vcmp.eq.f32.partialorder %v4379, 8.507059e+37
      %v4381 = vand.u32 %v4354, 2147483648
      %v4382 = vor.u32 1.1754944e-38, %v4381
      %v4383 = vsel %vm4380, %v4382, %v4378
      %v4384 = vmul.f32 1.0, %v4383
      %v4385 = vmul.f32 %v4345, %v4369
      %v4386 = vmul.f32 %v4346, %v4384
      %4387 = vrot.lane.b32.xlu0 %v4385, 17
      %v4388 = vpop.permute.xlu0 %4387
      %4389 = vrot.lane.b32.xlu0 %v4386, 17
      %v4390 = vpop.permute.xlu0 %4389
      %v4391 = vsel %vm269, %v4388, %v4390
      %v4392 = vsel %vm269, %v4390, %v4388
      %v4393 = vmul.f32 %v4392, %v2725
      %v4394 = vmul.f32 %v4391, %v2726
      %4395 = vrot.lane.b32.xlu0 %v4385, 16
      %v4396 = vpop.permute.xlu0 %4395
      %4397 = vrot.lane.b32.xlu0 %v4386, 16
      %v4398 = vpop.permute.xlu0 %4397
      %v4399 = vsel %vm280, %v4396, %v4398
      %v4400 = vsel %vm280, %v4398, %v4396
      %v4401 = vmul.f32 %v4400, %v2735
      %v4402 = vmul.f32 %v4399, %v2736
      %4403 = vrot.lane.b32.xlu0 %v4385, 15
      %v4404 = vpop.permute.xlu0 %4403
      %4405 = vrot.lane.b32.xlu0 %v4386, 15
      %v4406 = vpop.permute.xlu0 %4405
      %v4407 = vsel %vm292, %v4404, %v4406
      %v4408 = vsel %vm292, %v4406, %v4404
      %v4409 = vmul.f32 %v4408, %v2745
      %v4410 = vmul.f32 %v4407, %v2746
      %4411 = vrot.lane.b32.xlu0 %v4385, 1
      %v4412 = vpop.permute.xlu0 %4411
      %4413 = vrot.lane.b32.xlu0 %v4386, 1
      %v4414 = vpop.permute.xlu0 %4413
      %v4415 = vsel %vm304, %v4412, %v4414
      %v4416 = vsel %vm304, %v4414, %v4412
      %v4417 = vmul.f32 %v4416, %v2755
      %v4418 = vmul.f32 %v4415, %v2756
      %4419 = vrot.lane.b32.xlu0 %v4385, 127
      %v4420 = vpop.permute.xlu0 %4419
      %4421 = vrot.lane.b32.xlu0 %v4386, 127
      %v4422 = vpop.permute.xlu0 %4421
      %v4423 = vsel %vm316, %v4420, %v4422
      %v4424 = vsel %vm316, %v4422, %v4420
      %v4425 = vmul.f32 %v4423, %v2765
      %v4426 = vmul.f32 %v4424, %v2766
      %4427 = vrot.lane.b32.xlu0 %v4385, 113
      %v4428 = vpop.permute.xlu0 %4427
      %4429 = vrot.lane.b32.xlu0 %v4386, 113
      %v4430 = vpop.permute.xlu0 %4429
      %v4431 = vsel %vm328, %v4428, %v4430
      %v4432 = vsel %vm328, %v4430, %v4428
      %v4433 = vmul.f32 %v4431, %v2775
      %v4434 = vmul.f32 %v4432, %v2776
      %4435 = vrot.lane.b32.xlu0 %v4385, 112
      %v4436 = vpop.permute.xlu0 %4435
      %4437 = vrot.lane.b32.xlu0 %v4386, 112
      %v4438 = vpop.permute.xlu0 %4437
      %v4439 = vsel %vm340, %v4436, %v4438
      %v4440 = vsel %vm340, %v4438, %v4436
      %v4441 = vmul.f32 %v4439, %v2785
      %v4442 = vmul.f32 %v4440, %v2786
      %4443 = vrot.lane.b32.xlu0 %v4385, 111
      %v4444 = vpop.permute.xlu0 %4443
      %4445 = vrot.lane.b32.xlu0 %v4386, 111
      %v4446 = vpop.permute.xlu0 %4445
      %v4447 = vsel %vm352, %v4444, %v4446
      %v4448 = vsel %vm352, %v4446, %v4444
      %v4449 = vmul.f32 %v4447, %v2795
      %v4450 = vmul.f32 %v4448, %v2796
      %v4451 = vpack.c.bf16 %v4401, %v4393
      %v4452 = vpack.c.bf16 %v4402, %v4394
      %v4453 = vpack.c.bf16 %v4417, %v4409
      %v4454 = vpack.c.bf16 %v4418, %v4410
      %v4455 = vpack.c.bf16 %v4425, %v4385
      %v4456 = vpack.c.bf16 %v4426, %v4386
      %v4457 = vpack.c.bf16 %v4441, %v4433
      %v4458 = vpack.c.bf16 %v4442, %v4434
      %v4459 = vpack.c.bf16 %v4449, %v4449
      %v4460 = vpack.c.bf16 %v4450, %v4450
      %v4461 = vld [vmem:[%s2056] sm:$0xff]
      %v4462 = vpack.c.bf16 %v4461, %v4461
      %v4463 = vld [vmem:[%s2059] sm:$0xff]
      %4465 = vset.pattern.permute.xlu0 0
      %4466 = vperm.xlu0 %4465, %v4463
      %v4467 = vpop.permute.xlu0 %4466
      %v4470 = vsel %vm378, %v4462, 0
      %v4473 = vsel %vm382, %v4459, 0
      %v4476 = vsel %vm382, %v4460, 0
      %4478 = vmatpush.bf16.msra.mxu0 0
      %4479 = vmatpush.bf16.msra.mxu0 0
      %4480 = vmatpush.bf16.msra.mxu0 0
      %4481 = vmatpush.bf16.msra.mxu0 %v4473
      %4482 = vmatpush.bf16.msra.mxu0 %v4457
      %4483 = vmatpush.bf16.msra.mxu0 %v4455
      %4484 = vmatpush.bf16.msra.mxu0 %v4453
      %4485 = vmatpush.bf16.msra.mxu0 %v4451
      %4486 = vmatmul.bf16.gmra.mxu0 %v4470
      %v4487 = vpop.f32.mrf.mxu0
      %v4488 = vadd.f32 %v4467, %v4487
      %v4489 = vpop.f32.mrf.mxu0
      %4490 = vdwg.mxu0
      %4491 = vmatpush.bf16.msra.mxu0 0
      %4492 = vmatpush.bf16.msra.mxu0 0
      %4493 = vmatpush.bf16.msra.mxu0 0
      %4494 = vmatpush.bf16.msra.mxu0 %v4476
      %4495 = vmatpush.bf16.msra.mxu0 %v4458
      %4496 = vmatpush.bf16.msra.mxu0 %v4456
      %4497 = vmatpush.bf16.msra.mxu0 %v4454
      %4498 = vmatpush.bf16.msra.mxu0 %v4452
      %4499 = vmatmul.bf16.gmra.mxu0 %v4470
      %v4500 = vpop.f32.mrf.mxu0
      %v4501 = vadd.f32 %v4467, %v4500
      %v4502 = vpop.f32.mrf.mxu0
      %4503 = vdwg.mxu0
      %v4504 = vadd.f32 %v4488, %v4501
      %4505 = vadd.xlane.f32.xlu0 %v4504
      %v4506 = vpop.xlane.xlu0 %4505
      %v4507 = vmul.f32 %v4488, %v4488
      %v4508 = vmul.f32 %v4501, %v4501
      %v4509 = vadd.f32 %v4507, %v4508
      %4510 = vadd.xlane.f32.xlu0 %v4509
      %v4511 = vpop.xlane.xlu0 %4510
      %v4512 = vmul.f32 %v4506, 0.00390625
      %v4513 = vmul.f32 %v4511, 0.00390625
      %v4514 = vmul.f32 %v4512, %v4512
      %v4515 = vsub.f32 %v4513, %v4514
      %v4516 = vsub.f32 %v4488, %v4512
      %v4517 = vsub.f32 %v4501, %v4512
      %v4518 = vadd.f32 %v4515, 1e-05
      %v4519 = vrsqrt.pop %v4518
      %v4520 = vmul.f32 %v4519, %v4518
      %v4521 = vmul.f32 %v4520, %v4519
      %v4522 = vmul.f32 0.5, %v4521
      %v4523 = vsub.f32 1.5, %v4522
      %v4524 = vmul.f32 %v4519, %v4523
      %vm4525 = vweird.f32 %v4518
      %vm4526 = vweird.f32 %v4519
      %vm4527 = vmor %vm4525, %vm4526
      %v4528 = vsel %vm4527, %v4519, %v4524
      %v4529 = vmul.f32 %v4516, %v4528
      %v4530 = vmul.f32 %v4517, %v4528
      %v4531 = vld [vmem:[%s2128] sm:$0xff]
      %4533 = vset.pattern.permute.xlu0 0
      %4534 = vperm.xlu0 %4533, %v4531
      %v4535 = vpop.permute.xlu0 %4534
      %v4537 = vmul.f32 %v4529, %v4535
      %v4538 = vmul.f32 %v4530, %v4535
      %v4539 = vld [vmem:[%s2137] sm:$0xff]
      %4541 = vset.pattern.permute.xlu0 0
      %4542 = vperm.xlu0 %4541, %v4539
      %v4543 = vpop.permute.xlu0 %4542
      %v4545 = vadd.f32 %v4537, %v4543
      %v4546 = vadd.f32 %v4538, %v4543
      %v4547 = vadd.f32 %v4545, %v4185
      %v4548 = vadd.f32 %v4546, %v4186
      %v4549 = vxor.u32 %v4547, 2147483648
      %v4550 = vxor.u32 %v4548, 2147483648
      %v4551 = vmul.f32 %v4549, 1.442695
      %v4552 = vpow.pop %v4551
      %v4553 = vmul.f32 %v4550, 1.442695
      %v4554 = vpow.pop %v4553
      %v4555 = vadd.f32 %v4552, 1.0
      %v4556 = vadd.f32 %v4554, 1.0
      %v4557 = vrcp.pop %v4555
      %v4558 = vmul.f32 %v4555, %v4557
      %v4559 = vsub.f32 1.0, %v4558
      %v4560 = vmul.f32 %v4557, %v4559
      %v4561 = vadd.f32 %v4557, %v4560
      %vm4562 = vweird.f32 %v4555
      %vm4563 = vweird.f32 %v4557
      %vm4564 = vmor %vm4562, %vm4563
      %v4565 = vsel %vm4564, %v4557, %v4561
      %v4566 = vand.u32 2147483647, %v4555
      %vm4567 = vcmp.eq.f32.partialorder %v4566, 8.507059e+37
      %v4568 = vand.u32 %v4555, 2147483648
      %v4569 = vor.u32 1.1754944e-38, %v4568
      %v4570 = vsel %vm4567, %v4569, %v4565
      %v4571 = vmul.f32 1.0, %v4570
      %v4572 = vrcp.pop %v4556
      %v4573 = vmul.f32 %v4556, %v4572
      %v4574 = vsub.f32 1.0, %v4573
      %v4575 = vmul.f32 %v4572, %v4574
      %v4576 = vadd.f32 %v4572, %v4575
      %vm4577 = vweird.f32 %v4556
      %vm4578 = vweird.f32 %v4572
      %vm4579 = vmor %vm4577, %vm4578
      %v4580 = vsel %vm4579, %v4572, %v4576
      %v4581 = vand.u32 2147483647, %v4556
      %vm4582 = vcmp.eq.f32.partialorder %v4581, 8.507059e+37
      %v4583 = vand.u32 %v4556, 2147483648
      %v4584 = vor.u32 1.1754944e-38, %v4583
      %v4585 = vsel %vm4582, %v4584, %v4580
      %v4586 = vmul.f32 1.0, %v4585
      %v4587 = vmul.f32 %v4547, %v4571
      %v4588 = vmul.f32 %v4548, %v4586
      %4589 = vrot.lane.b32.xlu0 %v4587, 17
      %v4590 = vpop.permute.xlu0 %4589
      %4591 = vrot.lane.b32.xlu0 %v4588, 17
      %v4592 = vpop.permute.xlu0 %4591
      %v4593 = vsel %vm269, %v4590, %v4592
      %v4594 = vsel %vm269, %v4592, %v4590
      %v4595 = vmul.f32 %v4594, %v2725
      %v4596 = vmul.f32 %v4593, %v2726
      %4597 = vrot.lane.b32.xlu0 %v4587, 16
      %v4598 = vpop.permute.xlu0 %4597
      %4599 = vrot.lane.b32.xlu0 %v4588, 16
      %v4600 = vpop.permute.xlu0 %4599
      %v4601 = vsel %vm280, %v4598, %v4600
      %v4602 = vsel %vm280, %v4600, %v4598
      %v4603 = vmul.f32 %v4602, %v2735
      %v4604 = vmul.f32 %v4601, %v2736
      %4605 = vrot.lane.b32.xlu0 %v4587, 15
      %v4606 = vpop.permute.xlu0 %4605
      %4607 = vrot.lane.b32.xlu0 %v4588, 15
      %v4608 = vpop.permute.xlu0 %4607
      %v4609 = vsel %vm292, %v4606, %v4608
      %v4610 = vsel %vm292, %v4608, %v4606
      %v4611 = vmul.f32 %v4610, %v2745
      %v4612 = vmul.f32 %v4609, %v2746
      %4613 = vrot.lane.b32.xlu0 %v4587, 1
      %v4614 = vpop.permute.xlu0 %4613
      %4615 = vrot.lane.b32.xlu0 %v4588, 1
      %v4616 = vpop.permute.xlu0 %4615
      %v4617 = vsel %vm304, %v4614, %v4616
      %v4618 = vsel %vm304, %v4616, %v4614
      %v4619 = vmul.f32 %v4618, %v2755
      %v4620 = vmul.f32 %v4617, %v2756
      %4621 = vrot.lane.b32.xlu0 %v4587, 127
      %v4622 = vpop.permute.xlu0 %4621
      %4623 = vrot.lane.b32.xlu0 %v4588, 127
      %v4624 = vpop.permute.xlu0 %4623
      %v4625 = vsel %vm316, %v4622, %v4624
      %v4626 = vsel %vm316, %v4624, %v4622
      %v4627 = vmul.f32 %v4625, %v2765
      %v4628 = vmul.f32 %v4626, %v2766
      %4629 = vrot.lane.b32.xlu0 %v4587, 113
      %v4630 = vpop.permute.xlu0 %4629
      %4631 = vrot.lane.b32.xlu0 %v4588, 113
      %v4632 = vpop.permute.xlu0 %4631
      %v4633 = vsel %vm328, %v4630, %v4632
      %v4634 = vsel %vm328, %v4632, %v4630
      %v4635 = vmul.f32 %v4633, %v2775
      %v4636 = vmul.f32 %v4634, %v2776
      %4637 = vrot.lane.b32.xlu0 %v4587, 112
      %v4638 = vpop.permute.xlu0 %4637
      %4639 = vrot.lane.b32.xlu0 %v4588, 112
      %v4640 = vpop.permute.xlu0 %4639
      %v4641 = vsel %vm340, %v4638, %v4640
      %v4642 = vsel %vm340, %v4640, %v4638
      %v4643 = vmul.f32 %v4641, %v2785
      %v4644 = vmul.f32 %v4642, %v2786
      %4645 = vrot.lane.b32.xlu0 %v4587, 111
      %v4646 = vpop.permute.xlu0 %4645
      %4647 = vrot.lane.b32.xlu0 %v4588, 111
      %v4648 = vpop.permute.xlu0 %4647
      %v4649 = vsel %vm352, %v4646, %v4648
      %v4650 = vsel %vm352, %v4648, %v4646
      %v4651 = vmul.f32 %v4649, %v2795
      %v4652 = vmul.f32 %v4650, %v2796
      %v4653 = vpack.c.bf16 %v4603, %v4595
      %v4654 = vpack.c.bf16 %v4604, %v4596
      %v4655 = vpack.c.bf16 %v4619, %v4611
      %v4656 = vpack.c.bf16 %v4620, %v4612
      %v4657 = vpack.c.bf16 %v4627, %v4587
      %v4658 = vpack.c.bf16 %v4628, %v4588
      %v4659 = vpack.c.bf16 %v4643, %v4635
      %v4660 = vpack.c.bf16 %v4644, %v4636
      %v4661 = vpack.c.bf16 %v4651, %v4651
      %v4662 = vpack.c.bf16 %v4652, %v4652
      %v4663 = vld [vmem:[%s2262] sm:$0xff]
      %v4664 = vpack.c.bf16 %v4663, %v4663
      %v4665 = vld [vmem:[%s2265] sm:$0xff]
      %4667 = vset.pattern.permute.xlu0 0
      %4668 = vperm.xlu0 %4667, %v4665
      %v4669 = vpop.permute.xlu0 %4668
      %v4672 = vsel %vm378, %v4664, 0
      %v4675 = vsel %vm382, %v4661, 0
      %v4678 = vsel %vm382, %v4662, 0
      %4680 = vmatpush.bf16.msra.mxu0 0
      %4681 = vmatpush.bf16.msra.mxu0 0
      %4682 = vmatpush.bf16.msra.mxu0 0
      %4683 = vmatpush.bf16.msra.mxu0 %v4675
      %4684 = vmatpush.bf16.msra.mxu0 %v4659
      %4685 = vmatpush.bf16.msra.mxu0 %v4657
      %4686 = vmatpush.bf16.msra.mxu0 %v4655
      %4687 = vmatpush.bf16.msra.mxu0 %v4653
      %4688 = vmatmul.bf16.gmra.mxu0 %v4672
      %v4689 = vpop.f32.mrf.mxu0
      %v4690 = vadd.f32 %v4669, %v4689
      %v4691 = vpop.f32.mrf.mxu0
      %4692 = vdwg.mxu0
      %4693 = vmatpush.bf16.msra.mxu0 0
      %4694 = vmatpush.bf16.msra.mxu0 0
      %4695 = vmatpush.bf16.msra.mxu0 0
      %4696 = vmatpush.bf16.msra.mxu0 %v4678
      %4697 = vmatpush.bf16.msra.mxu0 %v4660
      %4698 = vmatpush.bf16.msra.mxu0 %v4658
      %4699 = vmatpush.bf16.msra.mxu0 %v4656
      %4700 = vmatpush.bf16.msra.mxu0 %v4654
      %4701 = vmatmul.bf16.gmra.mxu0 %v4672
      %v4702 = vpop.f32.mrf.mxu0
      %v4703 = vadd.f32 %v4669, %v4702
      %v4704 = vpop.f32.mrf.mxu0
      %4705 = vdwg.mxu0
      %v4706 = vadd.f32 %v4690, %v4703
      %4707 = vadd.xlane.f32.xlu0 %v4706
      %v4708 = vpop.xlane.xlu0 %4707
      %v4709 = vmul.f32 %v4690, %v4690
      %v4710 = vmul.f32 %v4703, %v4703
      %v4711 = vadd.f32 %v4709, %v4710
      %4712 = vadd.xlane.f32.xlu0 %v4711
      %v4713 = vpop.xlane.xlu0 %4712
      %v4714 = vmul.f32 %v4708, 0.00390625
      %v4715 = vmul.f32 %v4713, 0.00390625
      %v4716 = vmul.f32 %v4714, %v4714
      %v4717 = vsub.f32 %v4715, %v4716
      %v4718 = vsub.f32 %v4690, %v4714
      %v4719 = vsub.f32 %v4703, %v4714
      %v4720 = vadd.f32 %v4717, 1e-05
      %v4721 = vrsqrt.pop %v4720
      %v4722 = vmul.f32 %v4721, %v4720
      %v4723 = vmul.f32 %v4722, %v4721
      %v4724 = vmul.f32 0.5, %v4723
      %v4725 = vsub.f32 1.5, %v4724
      %v4726 = vmul.f32 %v4721, %v4725
      %vm4727 = vweird.f32 %v4720
      %vm4728 = vweird.f32 %v4721
      %vm4729 = vmor %vm4727, %vm4728
      %v4730 = vsel %vm4729, %v4721, %v4726
      %v4731 = vmul.f32 %v4718, %v4730
      %v4732 = vmul.f32 %v4719, %v4730
      %v4733 = vld [vmem:[%s2334] sm:$0xff]
      %4735 = vset.pattern.permute.xlu0 0
      %4736 = vperm.xlu0 %4735, %v4733
      %v4737 = vpop.permute.xlu0 %4736
      %v4739 = vmul.f32 %v4731, %v4737
      %v4740 = vmul.f32 %v4732, %v4737
      %v4741 = vld [vmem:[%s2343] sm:$0xff]
      %4743 = vset.pattern.permute.xlu0 0
      %4744 = vperm.xlu0 %4743, %v4741
      %v4745 = vpop.permute.xlu0 %4744
      %v4747 = vadd.f32 %v4739, %v4745
      %v4748 = vadd.f32 %v4740, %v4745
      %vm4749 = vcmp.ge.f32.partialorder %v4747, 0.0
      %vm4750 = vcmp.ge.f32.partialorder %v4748, 0.0
      %v4751 = vmul.f32 %v4747, 0.2
      %v4752 = vmul.f32 %v4748, 0.2
      %v4753 = vsel %vm4749, %v4747, %v4751
      %v4754 = vsel %vm4750, %v4748, %v4752
      %4755 = vrot.lane.b32.xlu0 %v4753, 17
      %v4756 = vpop.permute.xlu0 %4755
      %4757 = vrot.lane.b32.xlu0 %v4754, 17
      %v4758 = vpop.permute.xlu0 %4757
      %v4759 = vsel %vm269, %v4756, %v4758
      %v4760 = vsel %vm269, %v4758, %v4756
      %v4761 = vmul.f32 %v4760, %v2725
      %v4762 = vmul.f32 %v4759, %v2726
      %4763 = vrot.lane.b32.xlu0 %v4753, 16
      %v4764 = vpop.permute.xlu0 %4763
      %4765 = vrot.lane.b32.xlu0 %v4754, 16
      %v4766 = vpop.permute.xlu0 %4765
      %v4767 = vsel %vm280, %v4764, %v4766
      %v4768 = vsel %vm280, %v4766, %v4764
      %v4769 = vmul.f32 %v4768, %v2735
      %v4770 = vmul.f32 %v4767, %v2736
      %4771 = vrot.lane.b32.xlu0 %v4753, 15
      %v4772 = vpop.permute.xlu0 %4771
      %4773 = vrot.lane.b32.xlu0 %v4754, 15
      %v4774 = vpop.permute.xlu0 %4773
      %v4775 = vsel %vm292, %v4772, %v4774
      %v4776 = vsel %vm292, %v4774, %v4772
      %v4777 = vmul.f32 %v4776, %v2745
      %v4778 = vmul.f32 %v4775, %v2746
      %4779 = vrot.lane.b32.xlu0 %v4753, 1
      %v4780 = vpop.permute.xlu0 %4779
      %4781 = vrot.lane.b32.xlu0 %v4754, 1
      %v4782 = vpop.permute.xlu0 %4781
      %v4783 = vsel %vm304, %v4780, %v4782
      %v4784 = vsel %vm304, %v4782, %v4780
      %v4785 = vmul.f32 %v4784, %v2755
      %v4786 = vmul.f32 %v4783, %v2756
      %4787 = vrot.lane.b32.xlu0 %v4753, 127
      %v4788 = vpop.permute.xlu0 %4787
      %4789 = vrot.lane.b32.xlu0 %v4754, 127
      %v4790 = vpop.permute.xlu0 %4789
      %v4791 = vsel %vm316, %v4788, %v4790
      %v4792 = vsel %vm316, %v4790, %v4788
      %v4793 = vmul.f32 %v4791, %v2765
      %v4794 = vmul.f32 %v4792, %v2766
      %4795 = vrot.lane.b32.xlu0 %v4753, 113
      %v4796 = vpop.permute.xlu0 %4795
      %4797 = vrot.lane.b32.xlu0 %v4754, 113
      %v4798 = vpop.permute.xlu0 %4797
      %v4799 = vsel %vm328, %v4796, %v4798
      %v4800 = vsel %vm328, %v4798, %v4796
      %v4801 = vmul.f32 %v4799, %v2775
      %v4802 = vmul.f32 %v4800, %v2776
      %4803 = vrot.lane.b32.xlu0 %v4753, 112
      %v4804 = vpop.permute.xlu0 %4803
      %4805 = vrot.lane.b32.xlu0 %v4754, 112
      %v4806 = vpop.permute.xlu0 %4805
      %v4807 = vsel %vm340, %v4804, %v4806
      %v4808 = vsel %vm340, %v4806, %v4804
      %v4809 = vmul.f32 %v4807, %v2785
      %v4810 = vmul.f32 %v4808, %v2786
      %4811 = vrot.lane.b32.xlu0 %v4753, 111
      %v4812 = vpop.permute.xlu0 %4811
      %4813 = vrot.lane.b32.xlu0 %v4754, 111
      %v4814 = vpop.permute.xlu0 %4813
      %v4815 = vsel %vm352, %v4812, %v4814
      %v4816 = vsel %vm352, %v4814, %v4812
      %v4817 = vmul.f32 %v4815, %v2795
      %v4818 = vmul.f32 %v4816, %v2796
      %v4819 = vpack.c.bf16 %v4769, %v4761
      %v4820 = vpack.c.bf16 %v4770, %v4762
      %v4821 = vpack.c.bf16 %v4785, %v4777
      %v4822 = vpack.c.bf16 %v4786, %v4778
      %v4823 = vpack.c.bf16 %v4793, %v4753
      %v4824 = vpack.c.bf16 %v4794, %v4754
      %v4825 = vpack.c.bf16 %v4809, %v4801
      %v4826 = vpack.c.bf16 %v4810, %v4802
      %v4827 = vpack.c.bf16 %v4817, %v4817
      %v4828 = vpack.c.bf16 %v4818, %v4818
      %v4829 = vld [vmem:[%s2432] sm:$0xff]
      %v4830 = vpack.c.bf16 %v4829, %v4829
      %v4831 = vld [vmem:[%s2435] sm:$0xff]
      %4833 = vset.pattern.permute.xlu0 0
      %4834 = vperm.xlu0 %4833, %v4831
      %v4835 = vpop.permute.xlu0 %4834
      %v4838 = vsel %vm378, %v4830, 0
      %v4841 = vsel %vm382, %v4827, 0
      %v4844 = vsel %vm382, %v4828, 0
      %4846 = vmatpush.bf16.msra.mxu0 0
      %4847 = vmatpush.bf16.msra.mxu0 0
      %4848 = vmatpush.bf16.msra.mxu0 0
      %4849 = vmatpush.bf16.msra.mxu0 %v4841
      %4850 = vmatpush.bf16.msra.mxu0 %v4825
      %4851 = vmatpush.bf16.msra.mxu0 %v4823
      %4852 = vmatpush.bf16.msra.mxu0 %v4821
      %4853 = vmatpush.bf16.msra.mxu0 %v4819
      %4854 = vmatmul.bf16.gmra.mxu0 %v4838
      %v4855 = vpop.f32.mrf.mxu0
      %v4856 = vadd.f32 %v4835, %v4855
      %v4857 = vpop.f32.mrf.mxu0
      %4858 = vdwg.mxu0
      %4859 = vmatpush.bf16.msra.mxu0 0
      %4860 = vmatpush.bf16.msra.mxu0 0
      %4861 = vmatpush.bf16.msra.mxu0 0
      %4862 = vmatpush.bf16.msra.mxu0 %v4844
      %4863 = vmatpush.bf16.msra.mxu0 %v4826
      %4864 = vmatpush.bf16.msra.mxu0 %v4824
      %4865 = vmatpush.bf16.msra.mxu0 %v4822
      %4866 = vmatpush.bf16.msra.mxu0 %v4820
      %4867 = vmatmul.bf16.gmra.mxu0 %v4838
      %v4868 = vpop.f32.mrf.mxu0
      %v4869 = vadd.f32 %v4835, %v4868
      %v4870 = vpop.f32.mrf.mxu0
      %4871 = vdwg.mxu0
      %v4872 = vadd.f32 %v4856, %v4869
      %4873 = vadd.xlane.f32.xlu0 %v4872
      %v4874 = vpop.xlane.xlu0 %4873
      %v4875 = vmul.f32 %v4856, %v4856
      %v4876 = vmul.f32 %v4869, %v4869
      %v4877 = vadd.f32 %v4875, %v4876
      %4878 = vadd.xlane.f32.xlu0 %v4877
      %v4879 = vpop.xlane.xlu0 %4878
      %v4880 = vmul.f32 %v4874, 0.00390625
      %v4881 = vmul.f32 %v4879, 0.00390625
      %v4882 = vmul.f32 %v4880, %v4880
      %v4883 = vsub.f32 %v4881, %v4882
      %v4884 = vsub.f32 %v4856, %v4880
      %v4885 = vsub.f32 %v4869, %v4880
      %v4886 = vadd.f32 %v4883, 1e-05
      %v4887 = vrsqrt.pop %v4886
      %v4888 = vmul.f32 %v4887, %v4886
      %v4889 = vmul.f32 %v4888, %v4887
      %v4890 = vmul.f32 0.5, %v4889
      %v4891 = vsub.f32 1.5, %v4890
      %v4892 = vmul.f32 %v4887, %v4891
      %vm4893 = vweird.f32 %v4886
      %vm4894 = vweird.f32 %v4887
      %vm4895 = vmor %vm4893, %vm4894
      %v4896 = vsel %vm4895, %v4887, %v4892
      %v4897 = vmul.f32 %v4884, %v4896
      %v4898 = vmul.f32 %v4885, %v4896
      %v4899 = vld [vmem:[%s2504] sm:$0xff]
      %4901 = vset.pattern.permute.xlu0 0
      %4902 = vperm.xlu0 %4901, %v4899
      %v4903 = vpop.permute.xlu0 %4902
      %v4905 = vmul.f32 %v4897, %v4903
      %v4906 = vmul.f32 %v4898, %v4903
      %v4907 = vld [vmem:[%s2513] sm:$0xff]
      %4909 = vset.pattern.permute.xlu0 0
      %4910 = vperm.xlu0 %4909, %v4907
      %v4911 = vpop.permute.xlu0 %4910
      %v4913 = vadd.f32 %v4905, %v4911
      %v4914 = vadd.f32 %v4906, %v4911
      %v4915 = vadd.f32 %v4913, %v4587
      %v4916 = vadd.f32 %v4914, %v4588
      %vm4917 = vcmp.ge.f32.partialorder %v4915, 0.0
      %vm4918 = vcmp.ge.f32.partialorder %v4916, 0.0
      %v4919 = vmul.f32 %v4915, 0.2
      %v4920 = vmul.f32 %v4916, 0.2
      %v4921 = vsel %vm4917, %v4915, %v4919
      %v4922 = vsel %vm4918, %v4916, %v4920
      %4923 = vrot.lane.b32.xlu0 %v4921, 17
      %v4924 = vpop.permute.xlu0 %4923
      %4925 = vrot.lane.b32.xlu0 %v4922, 17
      %v4926 = vpop.permute.xlu0 %4925
      %v4927 = vsel %vm269, %v4924, %v4926
      %v4928 = vsel %vm269, %v4926, %v4924
      %v4929 = vmul.f32 %v4928, %v2725
      %v4930 = vmul.f32 %v4927, %v2726
      %4931 = vrot.lane.b32.xlu0 %v4921, 16
      %v4932 = vpop.permute.xlu0 %4931
      %4933 = vrot.lane.b32.xlu0 %v4922, 16
      %v4934 = vpop.permute.xlu0 %4933
      %v4935 = vsel %vm280, %v4932, %v4934
      %v4936 = vsel %vm280, %v4934, %v4932
      %v4937 = vmul.f32 %v4936, %v2735
      %v4938 = vmul.f32 %v4935, %v2736
      %4939 = vrot.lane.b32.xlu0 %v4921, 15
      %v4940 = vpop.permute.xlu0 %4939
      %4941 = vrot.lane.b32.xlu0 %v4922, 15
      %v4942 = vpop.permute.xlu0 %4941
      %v4943 = vsel %vm292, %v4940, %v4942
      %v4944 = vsel %vm292, %v4942, %v4940
      %v4945 = vmul.f32 %v4944, %v2745
      %v4946 = vmul.f32 %v4943, %v2746
      %4947 = vrot.lane.b32.xlu0 %v4921, 1
      %v4948 = vpop.permute.xlu0 %4947
      %4949 = vrot.lane.b32.xlu0 %v4922, 1
      %v4950 = vpop.permute.xlu0 %4949
      %v4951 = vsel %vm304, %v4948, %v4950
      %v4952 = vsel %vm304, %v4950, %v4948
      %v4953 = vmul.f32 %v4952, %v2755
      %v4954 = vmul.f32 %v4951, %v2756
      %4955 = vrot.lane.b32.xlu0 %v4921, 127
      %v4956 = vpop.permute.xlu0 %4955
      %4957 = vrot.lane.b32.xlu0 %v4922, 127
      %v4958 = vpop.permute.xlu0 %4957
      %v4959 = vsel %vm316, %v4956, %v4958
      %v4960 = vsel %vm316, %v4958, %v4956
      %v4961 = vmul.f32 %v4959, %v2765
      %v4962 = vmul.f32 %v4960, %v2766
      %4963 = vrot.lane.b32.xlu0 %v4921, 113
      %v4964 = vpop.permute.xlu0 %4963
      %4965 = vrot.lane.b32.xlu0 %v4922, 113
      %v4966 = vpop.permute.xlu0 %4965
      %v4967 = vsel %vm328, %v4964, %v4966
      %v4968 = vsel %vm328, %v4966, %v4964
      %v4969 = vmul.f32 %v4967, %v2775
      %v4970 = vmul.f32 %v4968, %v2776
      %4971 = vrot.lane.b32.xlu0 %v4921, 112
      %v4972 = vpop.permute.xlu0 %4971
      %4973 = vrot.lane.b32.xlu0 %v4922, 112
      %v4974 = vpop.permute.xlu0 %4973
      %v4975 = vsel %vm340, %v4972, %v4974
      %v4976 = vsel %vm340, %v4974, %v4972
      %v4977 = vmul.f32 %v4975, %v2785
      %v4978 = vmul.f32 %v4976, %v2786
      %4979 = vrot.lane.b32.xlu0 %v4921, 111
      %v4980 = vpop.permute.xlu0 %4979
      %4981 = vrot.lane.b32.xlu0 %v4922, 111
      %v4982 = vpop.permute.xlu0 %4981
      %v4983 = vsel %vm352, %v4980, %v4982
      %v4984 = vsel %vm352, %v4982, %v4980
      %v4985 = vmul.f32 %v4983, %v2795
      %v4986 = vmul.f32 %v4984, %v2796
      %v4987 = vpack.c.bf16 %v4937, %v4929
      %v4988 = vpack.c.bf16 %v4938, %v4930
      %v4989 = vpack.c.bf16 %v4953, %v4945
      %v4990 = vpack.c.bf16 %v4954, %v4946
      %v4991 = vpack.c.bf16 %v4961, %v4921
      %v4992 = vpack.c.bf16 %v4962, %v4922
      %v4993 = vpack.c.bf16 %v4977, %v4969
      %v4994 = vpack.c.bf16 %v4978, %v4970
      %v4995 = vpack.c.bf16 %v4985, %v4985
      %v4996 = vpack.c.bf16 %v4986, %v4986
      %v4997 = vld [vmem:[%s2604] sm:$0xff]
      %v4998 = vpack.c.bf16 %v4997, %v4997
      %v4999 = vld [vmem:[%s2607] sm:$0xff]
      %5001 = vset.pattern.permute.xlu0 0
      %5002 = vperm.xlu0 %5001, %v4999
      %v5003 = vpop.permute.xlu0 %5002
      %v5006 = vsel %vm378, %v4998, 0
      %v5009 = vsel %vm382, %v4995, 0
      %v5012 = vsel %vm382, %v4996, 0
      %5014 = vmatpush.bf16.msra.mxu0 0
      %5015 = vmatpush.bf16.msra.mxu0 0
      %5016 = vmatpush.bf16.msra.mxu0 0
      %5017 = vmatpush.bf16.msra.mxu0 %v5009
      %5018 = vmatpush.bf16.msra.mxu0 %v4993
      %5019 = vmatpush.bf16.msra.mxu0 %v4991
      %5020 = vmatpush.bf16.msra.mxu0 %v4989
      %5021 = vmatpush.bf16.msra.mxu0 %v4987
      %5022 = vmatmul.bf16.gmra.mxu0 %v5006
      %v5023 = vpop.f32.mrf.mxu0
      %v5024 = vadd.f32 %v5003, %v5023
      %v5025 = vpop.f32.mrf.mxu0
      %5026 = vdwg.mxu0
      %5027 = vmatpush.bf16.msra.mxu0 0
      %5028 = vmatpush.bf16.msra.mxu0 0
      %5029 = vmatpush.bf16.msra.mxu0 0
      %5030 = vmatpush.bf16.msra.mxu0 %v5012
      %5031 = vmatpush.bf16.msra.mxu0 %v4994
      %5032 = vmatpush.bf16.msra.mxu0 %v4992
      %5033 = vmatpush.bf16.msra.mxu0 %v4990
      %5034 = vmatpush.bf16.msra.mxu0 %v4988
      %5035 = vmatmul.bf16.gmra.mxu0 %v5006
      %v5036 = vpop.f32.mrf.mxu0
      %v5037 = vadd.f32 %v5003, %v5036
      %v5038 = vpop.f32.mrf.mxu0
      %5039 = vdwg.mxu0
      %v5040 = vadd.f32 %v5024, %v5037
      %5041 = vadd.xlane.f32.xlu0 %v5040
      %v5042 = vpop.xlane.xlu0 %5041
      %v5043 = vmul.f32 %v5024, %v5024
      %v5044 = vmul.f32 %v5037, %v5037
      %v5045 = vadd.f32 %v5043, %v5044
      %5046 = vadd.xlane.f32.xlu0 %v5045
      %v5047 = vpop.xlane.xlu0 %5046
      %v5048 = vmul.f32 %v5042, 0.00390625
      %v5049 = vmul.f32 %v5047, 0.00390625
      %v5050 = vmul.f32 %v5048, %v5048
      %v5051 = vsub.f32 %v5049, %v5050
      %v5052 = vsub.f32 %v5024, %v5048
      %v5053 = vsub.f32 %v5037, %v5048
      %v5054 = vadd.f32 %v5051, 1e-05
      %v5055 = vrsqrt.pop %v5054
      %v5056 = vmul.f32 %v5055, %v5054
      %v5057 = vmul.f32 %v5056, %v5055
      %v5058 = vmul.f32 0.5, %v5057
      %v5059 = vsub.f32 1.5, %v5058
      %v5060 = vmul.f32 %v5055, %v5059
      %vm5061 = vweird.f32 %v5054
      %vm5062 = vweird.f32 %v5055
      %vm5063 = vmor %vm5061, %vm5062
      %v5064 = vsel %vm5063, %v5055, %v5060
      %v5065 = vmul.f32 %v5052, %v5064
      %v5066 = vmul.f32 %v5053, %v5064
      %v5067 = vld [vmem:[%s2676] sm:$0xff]
      %5069 = vset.pattern.permute.xlu0 0
      %5070 = vperm.xlu0 %5069, %v5067
      %v5071 = vpop.permute.xlu0 %5070
      %v5073 = vmul.f32 %v5065, %v5071
      %v5074 = vmul.f32 %v5066, %v5071
      %v5075 = vld [vmem:[%s2685] sm:$0xff]
      %5077 = vset.pattern.permute.xlu0 0
      %5078 = vperm.xlu0 %5077, %v5075
      %v5079 = vpop.permute.xlu0 %5078
      %v5081 = vadd.f32 %v5073, %v5079
      %v5082 = vadd.f32 %v5074, %v5079
      %v5083 = vadd.f32 %v5081, %v2717
      %v5084 = vadd.f32 %v5082, %v2718
      %v5085 = vmul.f32 %v5083, 0.5
      %v5086 = vmul.f32 %v5084, 0.5
      %v5087 = vmul.f32 %v5083, 0.044715
      %v5088 = vmul.f32 %v5084, 0.044715
      %v5089 = vmul.f32 %v5087, %v5083
      %v5090 = vmul.f32 %v5088, %v5084
      %v5091 = vmul.f32 %v5089, %v5083
      %v5092 = vmul.f32 %v5090, %v5084
      %v5093 = vadd.f32 %v5083, %v5091
      %v5094 = vadd.f32 %v5084, %v5092
      %v5095 = vmul.f32 %v5093, 0.7978846
      %v5096 = vmul.f32 %v5094, 0.7978846
      %v5097 = vtanh.pop %v5095
      %v5098 = vtanh.pop %v5096
      %v5099 = vadd.f32 %v5097, 1.0
      %v5100 = vadd.f32 %v5098, 1.0
      %v5101 = vmul.f32 %v5085, %v5099
      %v5102 = vmul.f32 %v5086, %v5100
      %s5103 = scalar_lea.vmem %s258, 16
      %5104 = vst [vmem:[%s5103] sm:$0xff] %v5101
      %5105 = vst [vmem:[%s5103 + $0x8] sm:$0xff] %v5102
      %s5106 = smul.u32 2, %s17
      %p5107 = scmp.lt.s32.totalorder %s5106, 3
      %s5108 = scalar_select %p5107, %s5106, 3
      %s5109 = smul.addr %s5108, 2
      %s5110 = smul.addr %s5109, 8
      %s5111 = scalar_lea.vmem %s6, %s5110
      // Predicated region
      $region45: #{residual_group_fwd.1} parent=43 // pred_check
        %p5112 = pneg %p166
      $region46: #{residual_group_fwd.1} parent=43 // pred_check_branch
        %5114 = sbr.rel (%p5112) target = $region48
      $region47: #{residual_group_fwd.1} parent=43 // pred_region
        %s5115 = smul.u32 2, %s17
      $region48: #{residual_group_fwd.1} parent=43 // pred_fallthru
        _
    $region44: #{residual_group_fwd.1} parent=5 // pred_fallthru
      _
    %p5116 = scmp.le.s32.totalorder 2, %s12
    // Predicated region
    $region49: #{residual_group_fwd.1} parent=5 // pred_check
      %p5117 = pneg %p5116
    $region50: #{residual_group_fwd.1} parent=5 // pred_check_branch
      %5119 = sbr.rel (%p5117) target = $region52
    $region51: #{residual_group_fwd.1} parent=5 // pred_region
      %s5120 = ssub.s32 %s12, 2
      // Predicated region
      $region53: #{residual_group_fwd.1} parent=51 // pred_check
        %p5121 = pneg %p172
      $region54: #{residual_group_fwd.1} parent=51 // pred_check_branch
        %5123 = sbr.rel (%p5121) target = $region56
      $region55: #{residual_group_fwd.1} parent=51 // pred_region
        %s5124 = smul.u32 2, %s18
        %p5125 = scmp.lt.s32.totalorder %s5124, 3
        %s5126 = scalar_select %p5125, %s5124, 3
        %s5127 = smul.addr %s5126, 2
        %s5128 = smul.addr %s5127, 8
        %s5129 = scalar_lea.vmem %s6, %s5128
      $region56: #{residual_group_fwd.1} parent=51 // pred_fallthru
        _
    $region52: #{residual_group_fwd.1} parent=5 // pred_fallthru
      _
  $region6: #{residual_group_fwd.1} parent=0 // loop_footer
    %s16 = sadd.s32 1, %s12
  $region7: #{residual_group_fwd.1} parent=0 // loop_footer_branch
    %11 = sbr.rel target = $region3
  $region8: #{residual_group_fwd.1} parent=0 // loop_exit
    _

</llo_original>
